<compile_context>
chip_gen: v7x
topology: tpu7x:2x2x1
jax: 0.10.0
libtpu: 0.0.40
codegen_flags: <defaults>
</compile_context>

<pallas_src>
from functools import partial

import jax
import jax.numpy as jnp
from jax.experimental import pallas as pl
from jax.experimental.pallas import tpu as pltpu


# ---------------------------------------------------------------------------
# Fused kernel factory: conv+ReLU features -> Gram / L1 losses -> scalar loss.
# ---------------------------------------------------------------------------
def _make_fused_kernel(*, B, C, Cp, N, R, Wp, taps, terms, mxu_dtype):
    """terms: static tuple of (gram_weight, l1_weight) per target (zip order)."""
    n_t = len(terms)
    inv_gram = 1.0 / (C * N)
    need_gram = any(gw != 0.0 for gw, _ in terms)

    def kernel(w_ref, b_ref, m_ref, x_ref, *rest):
        t_refs = rest[:n_t]
        out_ref = rest[n_t]
        acc_sm = rest[n_t + 1]

        b_idx = pl.program_id(0)

        # Hoisted once per grid step (avoid re-loading / re-broadcasting in loops).
        w_taps = [w_ref[t] for t in range(len(taps))]      # (Cin_p, Cp) each, bf16
        bias_row = b_ref[...]                              # (1, Cp)  f32
        mask_col = m_ref[...]                              # (R, 1)   f32

        def conv_relu(src_ref):
            # 9 shifted (R, Cin_p) @ (Cin_p, Cp) matmuls, f32 accumulation.
            acc = jnp.zeros((R, Cp), jnp.float32)
            for t, (dh, dw) in enumerate(taps):
                start = dh * Wp + dw                       # static offset
                patch = src_ref[start:start + R, :]        # (R, Cin_p) mxu_dtype
                acc = acc + jnp.dot(patch, w_taps[t],
                                    preferred_element_type=jnp.float32)
            # bias + ReLU, then zero the rows that belong to horizontal padding.
            return jnp.maximum(acc + bias_row, 0.0) * mask_col

        def gram(feat):
            # Natural (N, C)^T @ (N, C) form (contract the row axis of both).
            fm = feat.astype(mxu_dtype)
            g = jax.lax.dot_general(fm, fm, (((0,), (0,)), ((), ())),
                                    preferred_element_type=jnp.float32)
            return g * inv_gram

        f_in = conv_relu(x_ref)
        g_in = gram(f_in) if need_gram else None           # computed once, reused

        contrib = jnp.float32(0.0)
        for (gram_w, l1_w), t_ref in zip(terms, t_refs):
            f_t = conv_relu(t_ref)
            if gram_w != 0.0:                               # Gram L1 (mean) term
                contrib = contrib + (gram_w / (B * B * C * C)) * jnp.sum(
                    jnp.abs(g_in - gram(f_t)))
            if l1_w != 0.0:                                 # raw-feature L1 term
                contrib = contrib + (l1_w / (B * B * C * N)) * jnp.sum(
                    jnp.abs(f_in - f_t))

        @pl.when(b_idx == 0)
        def _():
            acc_sm[0] = jnp.float32(0.0)

        acc_sm[0] = acc_sm[0] + contrib
        out_ref[0] = acc_sm[0]

    return kernel


# ---------------------------------------------------------------------------
# Jitted wrapper: layout prep (1x traffic) + single pallas_call.
# ---------------------------------------------------------------------------
@partial(jax.jit, static_argnames=("terms", "mxu_dtype"))
def med_perceptual_loss(x, targets, weight, bias, *, terms, mxu_dtype):
    B, Cin, H, W = x.shape
    Cout, _, kh, kw = weight.shape
    assert (kh, kw) == (3, 3), "synthetic feature extractor is a 3x3 conv"

    Wp = W + 2                            # padded width
    R = H * Wp                            # conv output rows per batch (incl. masked cols)
    Rp = (H + 3) * Wp                     # flattened padded rows (extra row => safe reads)
    N = H * W                             # true spatial size
    Cin_p = max(8, -(-Cin // 8) * 8)      # sublane-pad the contraction dim
    Cp = max(128, -(-Cout // 128) * 128)  # lane-dense output channels
    taps = tuple((dh, dw) for dh in range(3) for dw in range(3))

    def to_rows(v):                       # (B, Cin, H, W) -> (B, Rp, Cin_p)
        v = jnp.transpose(v, (0, 2, 3, 1)).astype(mxu_dtype)       # NHWC
        v = jnp.pad(v, ((0, 0), (1, 2), (1, 1), (0, Cin_p - Cin)))
        return v.reshape(B, Rp, Cin_p)

    x_rows = to_rows(x)
    t_rows = [to_rows(t) for t in targets]

    # (Cout, Cin, 3, 3) -> (9, Cin_p, Cp), tap-major (dh, dw), zero padded.
    w_taps = jnp.transpose(weight, (2, 3, 1, 0)).reshape(kh * kw, Cin, Cout)
    w_taps = jnp.pad(w_taps, ((0, 0), (0, Cin_p - Cin), (0, Cp - Cout)))
    w_taps = w_taps.astype(mxu_dtype)
    bias_row = jnp.pad(bias.astype(jnp.float32), (0, Cp - Cout)).reshape(1, Cp)

    # Rows whose flattened index maps to a horizontal-padding column are masked.
    mask = ((jnp.arange(R, dtype=jnp.int32) % Wp) < W)
    mask = mask.astype(jnp.float32).reshape(R, 1)

    kernel = _make_fused_kernel(B=B, C=Cout, Cp=Cp, N=N, R=R, Wp=Wp,
                                taps=taps, terms=terms, mxu_dtype=mxu_dtype)
    n_t = len(terms)

    grid_spec = pltpu.PrefetchScalarGridSpec(
        num_scalar_prefetch=0,
        grid=(B,),
        in_specs=[
            pl.BlockSpec((kh * kw, Cin_p, Cp), lambda b: (0, 0, 0)),   # weights
            pl.BlockSpec((1, Cp), lambda b: (0, 0)),                   # bias
            pl.BlockSpec((R, 1), lambda b: (0, 0)),                    # valid-row mask
        ] + [pl.BlockSpec((None, Rp, Cin_p), lambda b: (b, 0, 0))      # x + targets
             for _ in range(1 + n_t)],
        out_specs=pl.BlockSpec(memory_space=pltpu.MemorySpace.SMEM),   # scalar loss
        scratch_shapes=[pltpu.SMEM((1,), jnp.float32)],                # loss accumulator
    )

    return pl.pallas_call(
        kernel,
        out_shape=jax.ShapeDtypeStruct((1,), jnp.float32),
        grid_spec=grid_spec,
        compiler_params=pltpu.CompilerParams(
            dimension_semantics=("arbitrary",),        # loss is a batch reduction
            vmem_limit_bytes=32 * 1024 * 1024,
        ),
    )(w_taps, bias_row, mask, x_rows, *t_rows)


# ---------------------------------------------------------------------------
# MedPerceptualLoss (forward semantics)
# ---------------------------------------------------------------------------
class MedPerceptualLossPallas:
    """Forward-pass equivalent of MedPerceptualLoss with a synthetic one-layer
    feature extractor (Conv3x3 + ReLU standing in for the pretrained model's
    'UNetBlock_0.DownConvBlock.Activation_1' layer)."""

    def __init__(self, conv_weight, conv_bias,
                 losses=(("Gram", 1.0), ("torch_nn_L1Loss", 1.0)),
                 shape=(4, 16, 16), mxu_dtype=jnp.bfloat16):
        # TODO(synk): torch checkpoint loading (torch.load / torch.hub state
        # dicts) has no Pallas equivalent; the feature-extractor weights are
        # synthesized deterministically in-script instead.
        self.w = conv_weight
        self.b = conv_bias
        self.losses = tuple(losses)
        self.shape = tuple(shape)
        self.mxu_dtype = mxu_dtype

    def __call__(self, x, *targets):
        # TODO(synk): F.interpolate (bilinear/trilinear) resize preprocessing is
        # not implemented; inputs are constructed to already match self.shape.
        # Reproduce _compute's zip(losses.items(), target_layers) semantics:
        # the i-th loss is paired with the i-th target, each divided by B.
        pairs = list(zip(self.losses, targets))
        if not pairs:
            return jnp.zeros((1,), jnp.float32)
        terms = tuple((float(wt), 0.0) if name == "Gram" else (0.0, float(wt))
                      for (name, wt), _ in pairs)
        used_targets = tuple(t for _, t in pairs)
        return med_perceptual_loss(x, used_targets, self.w, self.b,
                                   terms=terms, mxu_dtype=self.mxu_dtype)


# ---------------------------------------------------------------------------
# Pure-JAX reference (for a sanity check only).
# ---------------------------------------------------------------------------
def _reference_loss(x, targets, weight, bias, losses):
    def feats(v):
        y = jax.lax.conv_general_dilated(
            v.astype(jnp.float32), weight.astype(jnp.float32), (1, 1), "SAME",
            dimension_numbers=("NCHW", "OIHW", "NCHW"))
        y = jnp.maximum(y + bias.reshape(1, -1, 1, 1), 0.0)
        b_, c_, h_, w_ = y.shape
        return y.reshape(b_, c_, h_ * w_)

    f_in = feats(x)
    b_, c_, n_ = f_in.shape
    loss = jnp.zeros((1,), jnp.float32)
    for (name, wt), t in zip(losses, targets):
        f_t = feats(t)
        if name == "Gram":
            g_i = jnp.einsum("bcn,bdn->bcd", f_in, f_in,
                             precision=jax.lax.Precision.HIGHEST) / (c_ * n_)
            g_t = jnp.einsum("bcn,bdn->bcd", f_t, f_t,
                             precision=jax.lax.Precision.HIGHEST) / (c_ * n_)
            val = jnp.mean(jnp.abs(g_i - g_t))
        else:
            val = jnp.mean(jnp.abs(f_in - f_t))
        loss = loss + wt * val / b_
    return loss


if __name__ == "__main__":
    key = jax.random.PRNGKey(0)
    k_x, k_t0, k_t1, k_w = jax.random.split(key, 4)

    B, Cin, H, W = 2, 4, 16, 16
    Cout = 8

    x = jax.random.normal(k_x, (B, Cin, H, W), jnp.float32)
    t0 = jax.random.normal(k_t0, (B, Cin, H, W), jnp.float32)
    t1 = jax.random.normal(k_t1, (B, Cin, H, W), jnp.float32)

    conv_w = 0.1 * jax.random.normal(k_w, (Cout, Cin, 3, 3), jnp.float32)
    conv_b = 0.01 * jnp.arange(Cout, dtype=jnp.float32)

    criterion = MedPerceptualLossPallas(conv_w, conv_b, shape=(Cin, H, W))
    loss = criterion(x, t0, t1)          # Gram loss vs t0, L1 loss vs t1
    jax.block_until_ready(loss)

    assert loss.shape == (1,) and loss.dtype == jnp.float32

    ref = _reference_loss(x, (t0, t1), conv_w, conv_b, criterion.losses)
    rel_err = abs(float(loss[0]) - float(ref[0])) / max(abs(float(ref[0])), 1e-6)
    assert rel_err < 5e-2, f"kernel {float(loss[0])} vs ref {float(ref[0])} (rel {rel_err})"

    print("KERNEL_OK")
</pallas_src>

<mosaic_0001>
module attributes {stable_mosaic.version = 11 : i64} {
  func.func @kernel(%arg0: i32, %arg1: memref<9x8x128xbf16, #tpu.memory_space<vmem>>, %arg2: memref<1x128xf32, #tpu.memory_space<vmem>>, %arg3: memref<288x1xf32, #tpu.memory_space<vmem>>, %arg4: memref<1x342x8xbf16, #tpu.memory_space<vmem>>, %arg5: memref<1x342x8xbf16, #tpu.memory_space<vmem>>, %arg6: memref<1x342x8xbf16, #tpu.memory_space<vmem>>, %arg7: memref<1xf32, #tpu.memory_space<smem>>, %arg8: memref<1xf32, #tpu.memory_space<smem>>) attributes {dimension_semantics = [#tpu.dimension_semantics<arbitrary>], iteration_bounds = array<i64: 2>, scalar_prefetch = 0 : i64, scratch_operands = 1 : i64, tpu.core_type = #tpu.core_type<tc>, window_params = [{pipeline_mode = #tpu.pipeline_mode<synchronous>, transform_indices = @transform_0, window_bounds = array<i64: 9, 8, 128>}, {pipeline_mode = #tpu.pipeline_mode<synchronous>, transform_indices = @transform_1, window_bounds = array<i64: 1, 128>}, {pipeline_mode = #tpu.pipeline_mode<synchronous>, transform_indices = @transform_2, window_bounds = array<i64: 288, 1>}, {transform_indices = @transform_3, window_bounds = array<i64: 1, 342, 8>}, {transform_indices = @transform_4, window_bounds = array<i64: 1, 342, 8>}, {transform_indices = @transform_5, window_bounds = array<i64: 1, 342, 8>}, {transform_indices = @transform_6, window_bounds = array<i64: 1>}]} {
    %c0 = arith.constant 0 : index
    %c0_0 = arith.constant 0 : index
    %c0_1 = arith.constant 0 : index
    %0 = vector.load %arg1[%c0, %c0_0, %c0_1] : memref<9x8x128xbf16, #tpu.memory_space<vmem>>, vector<1x8x128xbf16>
    %1 = vector.shape_cast %0 : vector<1x8x128xbf16> to vector<8x128xbf16>
    %c1 = arith.constant 1 : index
    %c0_2 = arith.constant 0 : index
    %c0_3 = arith.constant 0 : index
    %2 = vector.load %arg1[%c1, %c0_2, %c0_3] : memref<9x8x128xbf16, #tpu.memory_space<vmem>>, vector<1x8x128xbf16>
    %3 = vector.shape_cast %2 : vector<1x8x128xbf16> to vector<8x128xbf16>
    %c2 = arith.constant 2 : index
    %c0_4 = arith.constant 0 : index
    %c0_5 = arith.constant 0 : index
    %4 = vector.load %arg1[%c2, %c0_4, %c0_5] : memref<9x8x128xbf16, #tpu.memory_space<vmem>>, vector<1x8x128xbf16>
    %5 = vector.shape_cast %4 : vector<1x8x128xbf16> to vector<8x128xbf16>
    %c3 = arith.constant 3 : index
    %c0_6 = arith.constant 0 : index
    %c0_7 = arith.constant 0 : index
    %6 = vector.load %arg1[%c3, %c0_6, %c0_7] : memref<9x8x128xbf16, #tpu.memory_space<vmem>>, vector<1x8x128xbf16>
    %7 = vector.shape_cast %6 : vector<1x8x128xbf16> to vector<8x128xbf16>
    %c4 = arith.constant 4 : index
    %c0_8 = arith.constant 0 : index
    %c0_9 = arith.constant 0 : index
    %8 = vector.load %arg1[%c4, %c0_8, %c0_9] : memref<9x8x128xbf16, #tpu.memory_space<vmem>>, vector<1x8x128xbf16>
    %9 = vector.shape_cast %8 : vector<1x8x128xbf16> to vector<8x128xbf16>
    %c5 = arith.constant 5 : index
    %c0_10 = arith.constant 0 : index
    %c0_11 = arith.constant 0 : index
    %10 = vector.load %arg1[%c5, %c0_10, %c0_11] : memref<9x8x128xbf16, #tpu.memory_space<vmem>>, vector<1x8x128xbf16>
    %11 = vector.shape_cast %10 : vector<1x8x128xbf16> to vector<8x128xbf16>
    %c6 = arith.constant 6 : index
    %c0_12 = arith.constant 0 : index
    %c0_13 = arith.constant 0 : index
    %12 = vector.load %arg1[%c6, %c0_12, %c0_13] : memref<9x8x128xbf16, #tpu.memory_space<vmem>>, vector<1x8x128xbf16>
    %13 = vector.shape_cast %12 : vector<1x8x128xbf16> to vector<8x128xbf16>
    %c7 = arith.constant 7 : index
    %c0_14 = arith.constant 0 : index
    %c0_15 = arith.constant 0 : index
    %14 = vector.load %arg1[%c7, %c0_14, %c0_15] : memref<9x8x128xbf16, #tpu.memory_space<vmem>>, vector<1x8x128xbf16>
    %15 = vector.shape_cast %14 : vector<1x8x128xbf16> to vector<8x128xbf16>
    %c8 = arith.constant 8 : index
    %c0_16 = arith.constant 0 : index
    %c0_17 = arith.constant 0 : index
    %16 = vector.load %arg1[%c8, %c0_16, %c0_17] : memref<9x8x128xbf16, #tpu.memory_space<vmem>>, vector<1x8x128xbf16>
    %17 = vector.shape_cast %16 : vector<1x8x128xbf16> to vector<8x128xbf16>
    %c0_18 = arith.constant 0 : index
    %c0_19 = arith.constant 0 : index
    %18 = vector.load %arg2[%c0_18, %c0_19] : memref<1x128xf32, #tpu.memory_space<vmem>>, vector<1x128xf32>
    %c0_20 = arith.constant 0 : index
    %c0_21 = arith.constant 0 : index
    %19 = vector.load %arg3[%c0_20, %c0_21] : memref<288x1xf32, #tpu.memory_space<vmem>>, vector<288x1xf32>
    %cst = arith.constant 0.000000e+00 : f32
    %20 = vector.broadcast %cst : f32 to vector<288x128xf32>
    %c0_22 = arith.constant 0 : index
    %c0_23 = arith.constant 0 : index
    %c0_24 = arith.constant 0 : index
    %21 = vector.load %arg4[%c0_22, %c0_23, %c0_24] : memref<1x342x8xbf16, #tpu.memory_space<vmem>>, vector<1x288x8xbf16>
    %22 = vector.shape_cast %21 : vector<1x288x8xbf16> to vector<288x8xbf16>
    %cst_25 = arith.constant dense<0.000000e+00> : vector<288x128xf32>
    %23 = tpu.matmul %22, %1, %cst_25 {dimension_numbers = #tpu.dot_dimension_numbers<[1], [0], [0], [1], [0, 0, 1, 1], [], []>} : vector<288x8xbf16>, vector<8x128xbf16>, vector<288x128xf32> -> vector<288x128xf32>
    %24 = arith.addf %20, %23 : vector<288x128xf32>
    %c0_26 = arith.constant 0 : index
    %c1_27 = arith.constant 1 : index
    %c0_28 = arith.constant 0 : index
    %25 = vector.load %arg4[%c0_26, %c1_27, %c0_28] : memref<1x342x8xbf16, #tpu.memory_space<vmem>>, vector<1x288x8xbf16>
    %26 = vector.shape_cast %25 : vector<1x288x8xbf16> to vector<288x8xbf16>
    %cst_29 = arith.constant dense<0.000000e+00> : vector<288x128xf32>
    %27 = tpu.matmul %26, %3, %cst_29 {dimension_numbers = #tpu.dot_dimension_numbers<[1], [0], [0], [1], [0, 0, 1, 1], [], []>} : vector<288x8xbf16>, vector<8x128xbf16>, vector<288x128xf32> -> vector<288x128xf32>
    %28 = arith.addf %24, %27 : vector<288x128xf32>
    %c0_30 = arith.constant 0 : index
    %c2_31 = arith.constant 2 : index
    %c0_32 = arith.constant 0 : index
    %29 = vector.load %arg4[%c0_30, %c2_31, %c0_32] : memref<1x342x8xbf16, #tpu.memory_space<vmem>>, vector<1x288x8xbf16>
    %30 = vector.shape_cast %29 : vector<1x288x8xbf16> to vector<288x8xbf16>
    %cst_33 = arith.constant dense<0.000000e+00> : vector<288x128xf32>
    %31 = tpu.matmul %30, %5, %cst_33 {dimension_numbers = #tpu.dot_dimension_numbers<[1], [0], [0], [1], [0, 0, 1, 1], [], []>} : vector<288x8xbf16>, vector<8x128xbf16>, vector<288x128xf32> -> vector<288x128xf32>
    %32 = arith.addf %28, %31 : vector<288x128xf32>
    %c0_34 = arith.constant 0 : index
    %c18 = arith.constant 18 : index
    %c0_35 = arith.constant 0 : index
    %33 = vector.load %arg4[%c0_34, %c18, %c0_35] : memref<1x342x8xbf16, #tpu.memory_space<vmem>>, vector<1x288x8xbf16>
    %34 = vector.shape_cast %33 : vector<1x288x8xbf16> to vector<288x8xbf16>
    %cst_36 = arith.constant dense<0.000000e+00> : vector<288x128xf32>
    %35 = tpu.matmul %34, %7, %cst_36 {dimension_numbers = #tpu.dot_dimension_numbers<[1], [0], [0], [1], [0, 0, 1, 1], [], []>} : vector<288x8xbf16>, vector<8x128xbf16>, vector<288x128xf32> -> vector<288x128xf32>
    %36 = arith.addf %32, %35 : vector<288x128xf32>
    %c0_37 = arith.constant 0 : index
    %c19 = arith.constant 19 : index
    %c0_38 = arith.constant 0 : index
    %37 = vector.load %arg4[%c0_37, %c19, %c0_38] : memref<1x342x8xbf16, #tpu.memory_space<vmem>>, vector<1x288x8xbf16>
    %38 = vector.shape_cast %37 : vector<1x288x8xbf16> to vector<288x8xbf16>
    %cst_39 = arith.constant dense<0.000000e+00> : vector<288x128xf32>
    %39 = tpu.matmul %38, %9, %cst_39 {dimension_numbers = #tpu.dot_dimension_numbers<[1], [0], [0], [1], [0, 0, 1, 1], [], []>} : vector<288x8xbf16>, vector<8x128xbf16>, vector<288x128xf32> -> vector<288x128xf32>
    %40 = arith.addf %36, %39 : vector<288x128xf32>
    %c0_40 = arith.constant 0 : index
    %c20 = arith.constant 20 : index
    %c0_41 = arith.constant 0 : index
    %41 = vector.load %arg4[%c0_40, %c20, %c0_41] : memref<1x342x8xbf16, #tpu.memory_space<vmem>>, vector<1x288x8xbf16>
    %42 = vector.shape_cast %41 : vector<1x288x8xbf16> to vector<288x8xbf16>
    %cst_42 = arith.constant dense<0.000000e+00> : vector<288x128xf32>
    %43 = tpu.matmul %42, %11, %cst_42 {dimension_numbers = #tpu.dot_dimension_numbers<[1], [0], [0], [1], [0, 0, 1, 1], [], []>} : vector<288x8xbf16>, vector<8x128xbf16>, vector<288x128xf32> -> vector<288x128xf32>
    %44 = arith.addf %40, %43 : vector<288x128xf32>
    %c0_43 = arith.constant 0 : index
    %c36 = arith.constant 36 : index
    %c0_44 = arith.constant 0 : index
    %45 = vector.load %arg4[%c0_43, %c36, %c0_44] : memref<1x342x8xbf16, #tpu.memory_space<vmem>>, vector<1x288x8xbf16>
    %46 = vector.shape_cast %45 : vector<1x288x8xbf16> to vector<288x8xbf16>
    %cst_45 = arith.constant dense<0.000000e+00> : vector<288x128xf32>
    %47 = tpu.matmul %46, %13, %cst_45 {dimension_numbers = #tpu.dot_dimension_numbers<[1], [0], [0], [1], [0, 0, 1, 1], [], []>} : vector<288x8xbf16>, vector<8x128xbf16>, vector<288x128xf32> -> vector<288x128xf32>
    %48 = arith.addf %44, %47 : vector<288x128xf32>
    %c0_46 = arith.constant 0 : index
    %c37 = arith.constant 37 : index
    %c0_47 = arith.constant 0 : index
    %49 = vector.load %arg4[%c0_46, %c37, %c0_47] : memref<1x342x8xbf16, #tpu.memory_space<vmem>>, vector<1x288x8xbf16>
    %50 = vector.shape_cast %49 : vector<1x288x8xbf16> to vector<288x8xbf16>
    %cst_48 = arith.constant dense<0.000000e+00> : vector<288x128xf32>
    %51 = tpu.matmul %50, %15, %cst_48 {dimension_numbers = #tpu.dot_dimension_numbers<[1], [0], [0], [1], [0, 0, 1, 1], [], []>} : vector<288x8xbf16>, vector<8x128xbf16>, vector<288x128xf32> -> vector<288x128xf32>
    %52 = arith.addf %48, %51 : vector<288x128xf32>
    %c0_49 = arith.constant 0 : index
    %c38 = arith.constant 38 : index
    %c0_50 = arith.constant 0 : index
    %53 = vector.load %arg4[%c0_49, %c38, %c0_50] : memref<1x342x8xbf16, #tpu.memory_space<vmem>>, vector<1x288x8xbf16>
    %54 = vector.shape_cast %53 : vector<1x288x8xbf16> to vector<288x8xbf16>
    %cst_51 = arith.constant dense<0.000000e+00> : vector<288x128xf32>
    %55 = tpu.matmul %54, %17, %cst_51 {dimension_numbers = #tpu.dot_dimension_numbers<[1], [0], [0], [1], [0, 0, 1, 1], [], []>} : vector<288x8xbf16>, vector<8x128xbf16>, vector<288x128xf32> -> vector<288x128xf32>
    %56 = arith.addf %52, %55 : vector<288x128xf32>
    %57 = vector.broadcast %18 : vector<1x128xf32> to vector<288x128xf32>
    %58 = arith.addf %56, %57 : vector<288x128xf32>
    %cst_52 = arith.constant 0.000000e+00 : f32
    %59 = vector.broadcast %cst_52 : f32 to vector<288x128xf32>
    %60 = arith.maximumf %58, %59 : vector<288x128xf32>
    %61 = vector.broadcast %19 : vector<288x1xf32> to vector<288x128xf32>
    %62 = arith.mulf %60, %61 : vector<288x128xf32>
    %63 = arith.truncf %62 : vector<288x128xf32> to vector<288x128xbf16>
    %cst_53 = arith.constant dense<0.000000e+00> : vector<128x128xf32>
    %64 = tpu.matmul %63, %63, %cst_53 {dimension_numbers = #tpu.dot_dimension_numbers<[0], [0], [1], [1], [0, 1, 1, 1], [], []>} : vector<288x128xbf16>, vector<288x128xbf16>, vector<128x128xf32> -> vector<128x128xf32>
    %cst_54 = arith.constant 4.8828125E-4 : f32
    %65 = vector.broadcast %cst_54 : f32 to vector<128x128xf32>
    %66 = arith.mulf %64, %65 : vector<128x128xf32>
    %cst_55 = arith.constant 0.000000e+00 : f32
    %67 = vector.broadcast %cst_55 : f32 to vector<288x128xf32>
    %c0_56 = arith.constant 0 : index
    %c0_57 = arith.constant 0 : index
    %c0_58 = arith.constant 0 : index
    %68 = vector.load %arg5[%c0_56, %c0_57, %c0_58] : memref<1x342x8xbf16, #tpu.memory_space<vmem>>, vector<1x288x8xbf16>
    %69 = vector.shape_cast %68 : vector<1x288x8xbf16> to vector<288x8xbf16>
    %cst_59 = arith.constant dense<0.000000e+00> : vector<288x128xf32>
    %70 = tpu.matmul %69, %1, %cst_59 {dimension_numbers = #tpu.dot_dimension_numbers<[1], [0], [0], [1], [0, 0, 1, 1], [], []>} : vector<288x8xbf16>, vector<8x128xbf16>, vector<288x128xf32> -> vector<288x128xf32>
    %71 = arith.addf %67, %70 : vector<288x128xf32>
    %c0_60 = arith.constant 0 : index
    %c1_61 = arith.constant 1 : index
    %c0_62 = arith.constant 0 : index
    %72 = vector.load %arg5[%c0_60, %c1_61, %c0_62] : memref<1x342x8xbf16, #tpu.memory_space<vmem>>, vector<1x288x8xbf16>
    %73 = vector.shape_cast %72 : vector<1x288x8xbf16> to vector<288x8xbf16>
    %cst_63 = arith.constant dense<0.000000e+00> : vector<288x128xf32>
    %74 = tpu.matmul %73, %3, %cst_63 {dimension_numbers = #tpu.dot_dimension_numbers<[1], [0], [0], [1], [0, 0, 1, 1], [], []>} : vector<288x8xbf16>, vector<8x128xbf16>, vector<288x128xf32> -> vector<288x128xf32>
    %75 = arith.addf %71, %74 : vector<288x128xf32>
    %c0_64 = arith.constant 0 : index
    %c2_65 = arith.constant 2 : index
    %c0_66 = arith.constant 0 : index
    %76 = vector.load %arg5[%c0_64, %c2_65, %c0_66] : memref<1x342x8xbf16, #tpu.memory_space<vmem>>, vector<1x288x8xbf16>
    %77 = vector.shape_cast %76 : vector<1x288x8xbf16> to vector<288x8xbf16>
    %cst_67 = arith.constant dense<0.000000e+00> : vector<288x128xf32>
    %78 = tpu.matmul %77, %5, %cst_67 {dimension_numbers = #tpu.dot_dimension_numbers<[1], [0], [0], [1], [0, 0, 1, 1], [], []>} : vector<288x8xbf16>, vector<8x128xbf16>, vector<288x128xf32> -> vector<288x128xf32>
    %79 = arith.addf %75, %78 : vector<288x128xf32>
    %c0_68 = arith.constant 0 : index
    %c18_69 = arith.constant 18 : index
    %c0_70 = arith.constant 0 : index
    %80 = vector.load %arg5[%c0_68, %c18_69, %c0_70] : memref<1x342x8xbf16, #tpu.memory_space<vmem>>, vector<1x288x8xbf16>
    %81 = vector.shape_cast %80 : vector<1x288x8xbf16> to vector<288x8xbf16>
    %cst_71 = arith.constant dense<0.000000e+00> : vector<288x128xf32>
    %82 = tpu.matmul %81, %7, %cst_71 {dimension_numbers = #tpu.dot_dimension_numbers<[1], [0], [0], [1], [0, 0, 1, 1], [], []>} : vector<288x8xbf16>, vector<8x128xbf16>, vector<288x128xf32> -> vector<288x128xf32>
    %83 = arith.addf %79, %82 : vector<288x128xf32>
    %c0_72 = arith.constant 0 : index
    %c19_73 = arith.constant 19 : index
    %c0_74 = arith.constant 0 : index
    %84 = vector.load %arg5[%c0_72, %c19_73, %c0_74] : memref<1x342x8xbf16, #tpu.memory_space<vmem>>, vector<1x288x8xbf16>
    %85 = vector.shape_cast %84 : vector<1x288x8xbf16> to vector<288x8xbf16>
    %cst_75 = arith.constant dense<0.000000e+00> : vector<288x128xf32>
    %86 = tpu.matmul %85, %9, %cst_75 {dimension_numbers = #tpu.dot_dimension_numbers<[1], [0], [0], [1], [0, 0, 1, 1], [], []>} : vector<288x8xbf16>, vector<8x128xbf16>, vector<288x128xf32> -> vector<288x128xf32>
    %87 = arith.addf %83, %86 : vector<288x128xf32>
    %c0_76 = arith.constant 0 : index
    %c20_77 = arith.constant 20 : index
    %c0_78 = arith.constant 0 : index
    %88 = vector.load %arg5[%c0_76, %c20_77, %c0_78] : memref<1x342x8xbf16, #tpu.memory_space<vmem>>, vector<1x288x8xbf16>
    %89 = vector.shape_cast %88 : vector<1x288x8xbf16> to vector<288x8xbf16>
    %cst_79 = arith.constant dense<0.000000e+00> : vector<288x128xf32>
    %90 = tpu.matmul %89, %11, %cst_79 {dimension_numbers = #tpu.dot_dimension_numbers<[1], [0], [0], [1], [0, 0, 1, 1], [], []>} : vector<288x8xbf16>, vector<8x128xbf16>, vector<288x128xf32> -> vector<288x128xf32>
    %91 = arith.addf %87, %90 : vector<288x128xf32>
    %c0_80 = arith.constant 0 : index
    %c36_81 = arith.constant 36 : index
    %c0_82 = arith.constant 0 : index
    %92 = vector.load %arg5[%c0_80, %c36_81, %c0_82] : memref<1x342x8xbf16, #tpu.memory_space<vmem>>, vector<1x288x8xbf16>
    %93 = vector.shape_cast %92 : vector<1x288x8xbf16> to vector<288x8xbf16>
    %cst_83 = arith.constant dense<0.000000e+00> : vector<288x128xf32>
    %94 = tpu.matmul %93, %13, %cst_83 {dimension_numbers = #tpu.dot_dimension_numbers<[1], [0], [0], [1], [0, 0, 1, 1], [], []>} : vector<288x8xbf16>, vector<8x128xbf16>, vector<288x128xf32> -> vector<288x128xf32>
    %95 = arith.addf %91, %94 : vector<288x128xf32>
    %c0_84 = arith.constant 0 : index
    %c37_85 = arith.constant 37 : index
    %c0_86 = arith.constant 0 : index
    %96 = vector.load %arg5[%c0_84, %c37_85, %c0_86] : memref<1x342x8xbf16, #tpu.memory_space<vmem>>, vector<1x288x8xbf16>
    %97 = vector.shape_cast %96 : vector<1x288x8xbf16> to vector<288x8xbf16>
    %cst_87 = arith.constant dense<0.000000e+00> : vector<288x128xf32>
    %98 = tpu.matmul %97, %15, %cst_87 {dimension_numbers = #tpu.dot_dimension_numbers<[1], [0], [0], [1], [0, 0, 1, 1], [], []>} : vector<288x8xbf16>, vector<8x128xbf16>, vector<288x128xf32> -> vector<288x128xf32>
    %99 = arith.addf %95, %98 : vector<288x128xf32>
    %c0_88 = arith.constant 0 : index
    %c38_89 = arith.constant 38 : index
    %c0_90 = arith.constant 0 : index
    %100 = vector.load %arg5[%c0_88, %c38_89, %c0_90] : memref<1x342x8xbf16, #tpu.memory_space<vmem>>, vector<1x288x8xbf16>
    %101 = vector.shape_cast %100 : vector<1x288x8xbf16> to vector<288x8xbf16>
    %cst_91 = arith.constant dense<0.000000e+00> : vector<288x128xf32>
    %102 = tpu.matmul %101, %17, %cst_91 {dimension_numbers = #tpu.dot_dimension_numbers<[1], [0], [0], [1], [0, 0, 1, 1], [], []>} : vector<288x8xbf16>, vector<8x128xbf16>, vector<288x128xf32> -> vector<288x128xf32>
    %103 = arith.addf %99, %102 : vector<288x128xf32>
    %104 = vector.broadcast %18 : vector<1x128xf32> to vector<288x128xf32>
    %105 = arith.addf %103, %104 : vector<288x128xf32>
    %cst_92 = arith.constant 0.000000e+00 : f32
    %106 = vector.broadcast %cst_92 : f32 to vector<288x128xf32>
    %107 = arith.maximumf %105, %106 : vector<288x128xf32>
    %108 = vector.broadcast %19 : vector<288x1xf32> to vector<288x128xf32>
    %109 = arith.mulf %107, %108 : vector<288x128xf32>
    %110 = arith.truncf %109 : vector<288x128xf32> to vector<288x128xbf16>
    %cst_93 = arith.constant dense<0.000000e+00> : vector<128x128xf32>
    %111 = tpu.matmul %110, %110, %cst_93 {dimension_numbers = #tpu.dot_dimension_numbers<[0], [0], [1], [1], [0, 1, 1, 1], [], []>} : vector<288x128xbf16>, vector<288x128xbf16>, vector<128x128xf32> -> vector<128x128xf32>
    %cst_94 = arith.constant 4.8828125E-4 : f32
    %112 = vector.broadcast %cst_94 : f32 to vector<128x128xf32>
    %113 = arith.mulf %111, %112 : vector<128x128xf32>
    %114 = arith.subf %66, %113 : vector<128x128xf32>
    %115 = math.absf %114 : vector<128x128xf32>
    %116 = vector.shape_cast %115 : vector<128x128xf32> to vector<1x128x128xf32>
    %cst_95 = arith.constant dense<0.000000e+00> : vector<1xf32>
    %117 = vector.multi_reduction <add>, %116, %cst_95 [1, 2] : vector<1x128x128xf32> to vector<1xf32>
    %118 = vector.shape_cast %117 : vector<1xf32> to vector<1x1x1xf32>
    %119 = vector.extract %118[0, 0, 0] : f32 from vector<1x1x1xf32>
    %cst_96 = arith.constant 3.906250e-03 : f32
    %120 = arith.mulf %cst_96, %119 : f32
    %cst_97 = arith.constant 0.000000e+00 : f32
    %121 = arith.addf %cst_97, %120 : f32
    %cst_98 = arith.constant 0.000000e+00 : f32
    %122 = vector.broadcast %cst_98 : f32 to vector<288x128xf32>
    %c0_99 = arith.constant 0 : index
    %c0_100 = arith.constant 0 : index
    %c0_101 = arith.constant 0 : index
    %123 = vector.load %arg6[%c0_99, %c0_100, %c0_101] : memref<1x342x8xbf16, #tpu.memory_space<vmem>>, vector<1x288x8xbf16>
    %124 = vector.shape_cast %123 : vector<1x288x8xbf16> to vector<288x8xbf16>
    %cst_102 = arith.constant dense<0.000000e+00> : vector<288x128xf32>
    %125 = tpu.matmul %124, %1, %cst_102 {dimension_numbers = #tpu.dot_dimension_numbers<[1], [0], [0], [1], [0, 0, 1, 1], [], []>} : vector<288x8xbf16>, vector<8x128xbf16>, vector<288x128xf32> -> vector<288x128xf32>
    %126 = arith.addf %122, %125 : vector<288x128xf32>
    %c0_103 = arith.constant 0 : index
    %c1_104 = arith.constant 1 : index
    %c0_105 = arith.constant 0 : index
    %127 = vector.load %arg6[%c0_103, %c1_104, %c0_105] : memref<1x342x8xbf16, #tpu.memory_space<vmem>>, vector<1x288x8xbf16>
    %128 = vector.shape_cast %127 : vector<1x288x8xbf16> to vector<288x8xbf16>
    %cst_106 = arith.constant dense<0.000000e+00> : vector<288x128xf32>
    %129 = tpu.matmul %128, %3, %cst_106 {dimension_numbers = #tpu.dot_dimension_numbers<[1], [0], [0], [1], [0, 0, 1, 1], [], []>} : vector<288x8xbf16>, vector<8x128xbf16>, vector<288x128xf32> -> vector<288x128xf32>
    %130 = arith.addf %126, %129 : vector<288x128xf32>
    %c0_107 = arith.constant 0 : index
    %c2_108 = arith.constant 2 : index
    %c0_109 = arith.constant 0 : index
    %131 = vector.load %arg6[%c0_107, %c2_108, %c0_109] : memref<1x342x8xbf16, #tpu.memory_space<vmem>>, vector<1x288x8xbf16>
    %132 = vector.shape_cast %131 : vector<1x288x8xbf16> to vector<288x8xbf16>
    %cst_110 = arith.constant dense<0.000000e+00> : vector<288x128xf32>
    %133 = tpu.matmul %132, %5, %cst_110 {dimension_numbers = #tpu.dot_dimension_numbers<[1], [0], [0], [1], [0, 0, 1, 1], [], []>} : vector<288x8xbf16>, vector<8x128xbf16>, vector<288x128xf32> -> vector<288x128xf32>
    %134 = arith.addf %130, %133 : vector<288x128xf32>
    %c0_111 = arith.constant 0 : index
    %c18_112 = arith.constant 18 : index
    %c0_113 = arith.constant 0 : index
    %135 = vector.load %arg6[%c0_111, %c18_112, %c0_113] : memref<1x342x8xbf16, #tpu.memory_space<vmem>>, vector<1x288x8xbf16>
    %136 = vector.shape_cast %135 : vector<1x288x8xbf16> to vector<288x8xbf16>
    %cst_114 = arith.constant dense<0.000000e+00> : vector<288x128xf32>
    %137 = tpu.matmul %136, %7, %cst_114 {dimension_numbers = #tpu.dot_dimension_numbers<[1], [0], [0], [1], [0, 0, 1, 1], [], []>} : vector<288x8xbf16>, vector<8x128xbf16>, vector<288x128xf32> -> vector<288x128xf32>
    %138 = arith.addf %134, %137 : vector<288x128xf32>
    %c0_115 = arith.constant 0 : index
    %c19_116 = arith.constant 19 : index
    %c0_117 = arith.constant 0 : index
    %139 = vector.load %arg6[%c0_115, %c19_116, %c0_117] : memref<1x342x8xbf16, #tpu.memory_space<vmem>>, vector<1x288x8xbf16>
    %140 = vector.shape_cast %139 : vector<1x288x8xbf16> to vector<288x8xbf16>
    %cst_118 = arith.constant dense<0.000000e+00> : vector<288x128xf32>
    %141 = tpu.matmul %140, %9, %cst_118 {dimension_numbers = #tpu.dot_dimension_numbers<[1], [0], [0], [1], [0, 0, 1, 1], [], []>} : vector<288x8xbf16>, vector<8x128xbf16>, vector<288x128xf32> -> vector<288x128xf32>
    %142 = arith.addf %138, %141 : vector<288x128xf32>
    %c0_119 = arith.constant 0 : index
    %c20_120 = arith.constant 20 : index
    %c0_121 = arith.constant 0 : index
    %143 = vector.load %arg6[%c0_119, %c20_120, %c0_121] : memref<1x342x8xbf16, #tpu.memory_space<vmem>>, vector<1x288x8xbf16>
    %144 = vector.shape_cast %143 : vector<1x288x8xbf16> to vector<288x8xbf16>
    %cst_122 = arith.constant dense<0.000000e+00> : vector<288x128xf32>
    %145 = tpu.matmul %144, %11, %cst_122 {dimension_numbers = #tpu.dot_dimension_numbers<[1], [0], [0], [1], [0, 0, 1, 1], [], []>} : vector<288x8xbf16>, vector<8x128xbf16>, vector<288x128xf32> -> vector<288x128xf32>
    %146 = arith.addf %142, %145 : vector<288x128xf32>
    %c0_123 = arith.constant 0 : index
    %c36_124 = arith.constant 36 : index
    %c0_125 = arith.constant 0 : index
    %147 = vector.load %arg6[%c0_123, %c36_124, %c0_125] : memref<1x342x8xbf16, #tpu.memory_space<vmem>>, vector<1x288x8xbf16>
    %148 = vector.shape_cast %147 : vector<1x288x8xbf16> to vector<288x8xbf16>
    %cst_126 = arith.constant dense<0.000000e+00> : vector<288x128xf32>
    %149 = tpu.matmul %148, %13, %cst_126 {dimension_numbers = #tpu.dot_dimension_numbers<[1], [0], [0], [1], [0, 0, 1, 1], [], []>} : vector<288x8xbf16>, vector<8x128xbf16>, vector<288x128xf32> -> vector<288x128xf32>
    %150 = arith.addf %146, %149 : vector<288x128xf32>
    %c0_127 = arith.constant 0 : index
    %c37_128 = arith.constant 37 : index
    %c0_129 = arith.constant 0 : index
    %151 = vector.load %arg6[%c0_127, %c37_128, %c0_129] : memref<1x342x8xbf16, #tpu.memory_space<vmem>>, vector<1x288x8xbf16>
    %152 = vector.shape_cast %151 : vector<1x288x8xbf16> to vector<288x8xbf16>
    %cst_130 = arith.constant dense<0.000000e+00> : vector<288x128xf32>
    %153 = tpu.matmul %152, %15, %cst_130 {dimension_numbers = #tpu.dot_dimension_numbers<[1], [0], [0], [1], [0, 0, 1, 1], [], []>} : vector<288x8xbf16>, vector<8x128xbf16>, vector<288x128xf32> -> vector<288x128xf32>
    %154 = arith.addf %150, %153 : vector<288x128xf32>
    %c0_131 = arith.constant 0 : index
    %c38_132 = arith.constant 38 : index
    %c0_133 = arith.constant 0 : index
    %155 = vector.load %arg6[%c0_131, %c38_132, %c0_133] : memref<1x342x8xbf16, #tpu.memory_space<vmem>>, vector<1x288x8xbf16>
    %156 = vector.shape_cast %155 : vector<1x288x8xbf16> to vector<288x8xbf16>
    %cst_134 = arith.constant dense<0.000000e+00> : vector<288x128xf32>
    %157 = tpu.matmul %156, %17, %cst_134 {dimension_numbers = #tpu.dot_dimension_numbers<[1], [0], [0], [1], [0, 0, 1, 1], [], []>} : vector<288x8xbf16>, vector<8x128xbf16>, vector<288x128xf32> -> vector<288x128xf32>
    %158 = arith.addf %154, %157 : vector<288x128xf32>
    %159 = vector.broadcast %18 : vector<1x128xf32> to vector<288x128xf32>
    %160 = arith.addf %158, %159 : vector<288x128xf32>
    %cst_135 = arith.constant 0.000000e+00 : f32
    %161 = vector.broadcast %cst_135 : f32 to vector<288x128xf32>
    %162 = arith.maximumf %160, %161 : vector<288x128xf32>
    %163 = vector.broadcast %19 : vector<288x1xf32> to vector<288x128xf32>
    %164 = arith.mulf %162, %163 : vector<288x128xf32>
    %165 = arith.subf %62, %164 : vector<288x128xf32>
    %166 = math.absf %165 : vector<288x128xf32>
    %167 = vector.shape_cast %166 : vector<288x128xf32> to vector<1x288x128xf32>
    %cst_136 = arith.constant dense<0.000000e+00> : vector<1xf32>
    %168 = vector.multi_reduction <add>, %167, %cst_136 [1, 2] : vector<1x288x128xf32> to vector<1xf32>
    %169 = vector.shape_cast %168 : vector<1xf32> to vector<1x1x1xf32>
    %170 = vector.extract %169[0, 0, 0] : f32 from vector<1x1x1xf32>
    %cst_137 = arith.constant 1.22070313E-4 : f32
    %171 = arith.mulf %cst_137, %170 : f32
    %172 = arith.addf %121, %171 : f32
    %c0_i32 = arith.constant 0 : i32
    %173 = arith.cmpi eq, %arg0, %c0_i32 : i32
    %174 = arith.extui %173 : i1 to i32
    %c0_i32_138 = arith.constant 0 : i32
    %175 = arith.cmpi ne, %174, %c0_i32_138 : i32
    scf.if %175 {
      %cst_143 = arith.constant 0.000000e+00 : f32
      %c0_144 = arith.constant 0 : index
      %181 = memref.load %arg8[%c0_144] : memref<1xf32, #tpu.memory_space<smem>>
      memref.store %cst_143, %arg8[%c0_144] : memref<1xf32, #tpu.memory_space<smem>>
    } else {
    }
    %c0_139 = arith.constant 0 : index
    %176 = memref.load %arg8[%c0_139] : memref<1xf32, #tpu.memory_space<smem>>
    %177 = arith.addf %176, %172 : f32
    %c0_140 = arith.constant 0 : index
    %178 = memref.load %arg8[%c0_140] : memref<1xf32, #tpu.memory_space<smem>>
    memref.store %177, %arg8[%c0_140] : memref<1xf32, #tpu.memory_space<smem>>
    %c0_141 = arith.constant 0 : index
    %179 = memref.load %arg8[%c0_141] : memref<1xf32, #tpu.memory_space<smem>>
    %c0_142 = arith.constant 0 : index
    %180 = memref.load %arg7[%c0_142] : memref<1xf32, #tpu.memory_space<smem>>
    memref.store %179, %arg7[%c0_142] : memref<1xf32, #tpu.memory_space<smem>>
    return
  }
  func.func @transform_0(%arg0: i32) -> (i32, i32, i32) {
    %c0_i32 = arith.constant 0 : i32
    %c0_i32_0 = arith.constant 0 : i32
    %c0_i32_1 = arith.constant 0 : i32
    %c0_i32_2 = arith.constant 0 : i32
    return %c0_i32, %c0_i32_0, %c0_i32_1 : i32, i32, i32
  }
  func.func @transform_1(%arg0: i32) -> (i32, i32) {
    %c0_i32 = arith.constant 0 : i32
    %c0_i32_0 = arith.constant 0 : i32
    %c0_i32_1 = arith.constant 0 : i32
    return %c0_i32, %c0_i32_0 : i32, i32
  }
  func.func @transform_2(%arg0: i32) -> (i32, i32) {
    %c0_i32 = arith.constant 0 : i32
    %c0_i32_0 = arith.constant 0 : i32
    %c0_i32_1 = arith.constant 0 : i32
    return %c0_i32, %c0_i32_0 : i32, i32
  }
  func.func @transform_3(%arg0: i32) -> (i32, i32, i32) {
    %c0_i32 = arith.constant 0 : i32
    %c0_i32_0 = arith.constant 0 : i32
    %c0_i32_1 = arith.constant 0 : i32
    return %arg0, %c0_i32, %c0_i32_0 : i32, i32, i32
  }
  func.func @transform_4(%arg0: i32) -> (i32, i32, i32) {
    %c0_i32 = arith.constant 0 : i32
    %c0_i32_0 = arith.constant 0 : i32
    %c0_i32_1 = arith.constant 0 : i32
    return %arg0, %c0_i32, %c0_i32_0 : i32, i32, i32
  }
  func.func @transform_5(%arg0: i32) -> (i32, i32, i32) {
    %c0_i32 = arith.constant 0 : i32
    %c0_i32_0 = arith.constant 0 : i32
    %c0_i32_1 = arith.constant 0 : i32
    return %arg0, %c0_i32, %c0_i32_0 : i32, i32, i32
  }
  func.func @transform_6(%arg0: i32) -> i32 {
    %c0_i32 = arith.constant 0 : i32
    %c0_i32_0 = arith.constant 0 : i32
    return %c0_i32 : i32
  }
}

</mosaic_0001>

<llo_original>
// kernel: med_perceptual_loss.1
$region0: #{med_perceptual_loss.1}
  #allocation0 [shape = 'u32[]', space=smem, size = 0x4, offset = 0x4, fixed_abs, tag = 'smem constant byte address 0x4 - core index']
  #allocation1 [shape = 'u32[144,128]{1,0:T(1,128)}', space=vmem, size = 0x12000, scoped, tag = 'internal scratch']
  #allocation2 [shape = 'f32[1]{0:T(128)}', space=smem, size = 0x200, scoped, tag = 'scratch operand']
  %s0 = inlined_call_operand.vmem [shape: bf16[9,8,128], index: 0, kind: input, shape index: {}]
  %s1 = inlined_call_operand.vmem [shape: f32[1,128], index: 1, kind: input, shape index: {}]
  %s2 = inlined_call_operand.vmem [shape: f32[288,1], index: 2, kind: input, shape index: {}]
  %s3 = inlined_call_operand.vmem [shape: bf16[2,342,8], index: 3, kind: input, shape index: {}]
  %s4 = inlined_call_operand.vmem [shape: bf16[2,342,8], index: 4, kind: input, shape index: {}]
  %s5 = inlined_call_operand.vmem [shape: bf16[2,342,8], index: 5, kind: input, shape index: {}]
  %s6 = inlined_call_operand.hbm [shape: f32[1], index: 6, kind: output, shape index: {}]
  %s7 = sld [smem:[#allocation0]]
  $region61: #{med_perceptual_loss.1} parent=0
    _
  %s9 = ssub.s32 1, %s7
  %s10 = scalar_select 0, %s9, %s7
  $region1: #{med_perceptual_loss.1} parent=0
    #allocation3 [shape = 'u8[512]{0}', space=smem, size = 0x200, scoped, tag = 'output window, operand 0, single buffered']
    #allocation4 [shape = 's32[2]{0}', space=sflag, size = 0x8, scoped, tag = 'scoped memory for med_perceptual_loss.1']
    %11 = vsyncpa [#allocation4], 0
    loop: start=0, step=1, limit=4
    $region2: #{med_perceptual_loss.1} parent=1 // loop_pre_header
      _
    $region3: #{med_perceptual_loss.1} parent=1 // loop_header
      %s13 = sphi 0, %s17
      %p14 = scmp.ge.s32.totalorder %s13, 4
      %s21 = sphi 0, %s21
      %s23 = sphi 0, %s21
      %s24 = sphi 0, %s23
      %s38 = sphi 0, %s24
      %s42 = sphi 0, %s42
      %s44 = sphi 0, %s42
      %s45 = sphi 0, %s44
      %s59 = sphi 0, %s45
      %s63 = sphi 0, %s63
      %s65 = sphi 0, %s63
      %s66 = sphi 0, %s65
      %s80 = sphi 0, %s66
      %s86 = sphi 0, %s88
      %s89 = sphi 0, %s86
      %s90 = sphi 0, %s89
      %s106 = sphi 0, %s90
      %s112 = sphi 0, %s114
      %s115 = sphi 0, %s112
      %s116 = sphi 0, %s115
      %s132 = sphi 0, %s116
      %s138 = sphi 0, %s140
      %s141 = sphi 0, %s138
      %s142 = sphi 0, %s141
      %s158 = sphi 0, %s142
      %s162 = sphi 0, %s162
      %s164 = sphi 0, %s162
      %s165 = sphi 0, %s164
      %s179 = sphi 0, %s165
    $region4: #{med_perceptual_loss.1} parent=1 // loop_header_branch
      %16 = sbr.rel (%p14) target = $region8
    $region5: #{med_perceptual_loss.1} parent=1 // loop_body
      %s18 = ssub.s32 %s13, 1
      %s19 = ssub.s32 %s13, 2
      %s20 = sadd.s32 %s13, 1
      %s22 = sadd.s32 %s21, 1
      %p25 = scmp.eq.s32.totalorder %s13, 1
      %p26 = scmp.ne.s32.totalorder %s21, %s23
      %p27 = scmp.eq.s32.totalorder %s13, 0
      %p28 = por %p26, %p27
      %p29 = scmp.ne.s32.totalorder %s21, %s23
      %p30 = scmp.eq.s32.totalorder %s18, 1
      %p31 = por %p29, %p30
      %p32 = scmp.ne.s32.totalorder %s23, %s24
      %p33 = scmp.eq.s32.totalorder %s18, 0
      %p34 = por %p32, %p33
      %p35 = scmp.ne.s32.totalorder %s23, %s24
      %p36 = scmp.eq.s32.totalorder %s19, 1
      %p37 = por %p35, %p36
      %p39 = scmp.ne.s32.totalorder %s24, %s38
      %p40 = scmp.eq.s32.totalorder %s19, 0
      %p41 = por %p39, %p40
      %s43 = sadd.s32 %s42, 1
      %p46 = scmp.eq.s32.totalorder %s13, 1
      %p47 = scmp.ne.s32.totalorder %s42, %s44
      %p48 = scmp.eq.s32.totalorder %s13, 0
      %p49 = por %p47, %p48
      %p50 = scmp.ne.s32.totalorder %s42, %s44
      %p51 = scmp.eq.s32.totalorder %s18, 1
      %p52 = por %p50, %p51
      %p53 = scmp.ne.s32.totalorder %s44, %s45
      %p54 = scmp.eq.s32.totalorder %s18, 0
      %p55 = por %p53, %p54
      %p56 = scmp.ne.s32.totalorder %s44, %s45
      %p57 = scmp.eq.s32.totalorder %s19, 1
      %p58 = por %p56, %p57
      %p60 = scmp.ne.s32.totalorder %s45, %s59
      %p61 = scmp.eq.s32.totalorder %s19, 0
      %p62 = por %p60, %p61
      %s64 = sadd.s32 %s63, 1
      %p67 = scmp.eq.s32.totalorder %s13, 1
      %p68 = scmp.ne.s32.totalorder %s63, %s65
      %p69 = scmp.eq.s32.totalorder %s13, 0
      %p70 = por %p68, %p69
      %p71 = scmp.ne.s32.totalorder %s63, %s65
      %p72 = scmp.eq.s32.totalorder %s18, 1
      %p73 = por %p71, %p72
      %p74 = scmp.ne.s32.totalorder %s65, %s66
      %p75 = scmp.eq.s32.totalorder %s18, 0
      %p76 = por %p74, %p75
      %p77 = scmp.ne.s32.totalorder %s65, %s66
      %p78 = scmp.eq.s32.totalorder %s19, 1
      %p79 = por %p77, %p78
      %p81 = scmp.ne.s32.totalorder %s66, %s80
      %p82 = scmp.eq.s32.totalorder %s19, 0
      %p83 = por %p81, %p82
      %s84 = ssub.s32 %s13, %s20
      %p85 = scmp.eq.s32.totalorder %s84, 0
      %s87 = sadd.s32 %s86, 1
      %s88 = scalar_select %p85, %s86, %s87
      %p91 = pneg %p85
      %p92 = scmp.eq.s32.totalorder %s13, 1
      %p93 = por %p91, %p92
      %p94 = scmp.ne.s32.totalorder %s86, %s89
      %p95 = scmp.eq.s32.totalorder %s13, 0
      %p96 = por %p94, %p95
      %p97 = scmp.ne.s32.totalorder %s86, %s89
      %p98 = scmp.eq.s32.totalorder %s18, 1
      %p99 = por %p97, %p98
      %p100 = scmp.ne.s32.totalorder %s89, %s90
      %p101 = scmp.eq.s32.totalorder %s18, 0
      %p102 = por %p100, %p101
      %p103 = scmp.ne.s32.totalorder %s89, %s90
      %p104 = scmp.eq.s32.totalorder %s19, 1
      %p105 = por %p103, %p104
      %p107 = scmp.ne.s32.totalorder %s90, %s106
      %p108 = scmp.eq.s32.totalorder %s19, 0
      %p109 = por %p107, %p108
      %s110 = ssub.s32 %s13, %s20
      %p111 = scmp.eq.s32.totalorder %s110, 0
      %s113 = sadd.s32 %s112, 1
      %s114 = scalar_select %p111, %s112, %s113
      %p117 = pneg %p111
      %p118 = scmp.eq.s32.totalorder %s13, 1
      %p119 = por %p117, %p118
      %p120 = scmp.ne.s32.totalorder %s112, %s115
      %p121 = scmp.eq.s32.totalorder %s13, 0
      %p122 = por %p120, %p121
      %p123 = scmp.ne.s32.totalorder %s112, %s115
      %p124 = scmp.eq.s32.totalorder %s18, 1
      %p125 = por %p123, %p124
      %p126 = scmp.ne.s32.totalorder %s115, %s116
      %p127 = scmp.eq.s32.totalorder %s18, 0
      %p128 = por %p126, %p127
      %p129 = scmp.ne.s32.totalorder %s115, %s116
      %p130 = scmp.eq.s32.totalorder %s19, 1
      %p131 = por %p129, %p130
      %p133 = scmp.ne.s32.totalorder %s116, %s132
      %p134 = scmp.eq.s32.totalorder %s19, 0
      %p135 = por %p133, %p134
      %s136 = ssub.s32 %s13, %s20
      %p137 = scmp.eq.s32.totalorder %s136, 0
      %s139 = sadd.s32 %s138, 1
      %s140 = scalar_select %p137, %s138, %s139
      %p143 = pneg %p137
      %p144 = scmp.eq.s32.totalorder %s13, 1
      %p145 = por %p143, %p144
      %p146 = scmp.ne.s32.totalorder %s138, %s141
      %p147 = scmp.eq.s32.totalorder %s13, 0
      %p148 = por %p146, %p147
      %p149 = scmp.ne.s32.totalorder %s138, %s141
      %p150 = scmp.eq.s32.totalorder %s18, 1
      %p151 = por %p149, %p150
      %p152 = scmp.ne.s32.totalorder %s141, %s142
      %p153 = scmp.eq.s32.totalorder %s18, 0
      %p154 = por %p152, %p153
      %p155 = scmp.ne.s32.totalorder %s141, %s142
      %p156 = scmp.eq.s32.totalorder %s19, 1
      %p157 = por %p155, %p156
      %p159 = scmp.ne.s32.totalorder %s142, %s158
      %p160 = scmp.eq.s32.totalorder %s19, 0
      %p161 = por %p159, %p160
      %s163 = sadd.s32 %s162, 1
      %p166 = scmp.eq.s32.totalorder %s13, 1
      %p167 = scmp.ne.s32.totalorder %s162, %s164
      %p168 = scmp.eq.s32.totalorder %s13, 0
      %p169 = por %p167, %p168
      %p170 = scmp.ne.s32.totalorder %s162, %s164
      %p171 = scmp.eq.s32.totalorder %s18, 1
      %p172 = por %p170, %p171
      %p173 = scmp.ne.s32.totalorder %s164, %s165
      %p174 = scmp.eq.s32.totalorder %s18, 0
      %p175 = por %p173, %p174
      %p176 = scmp.ne.s32.totalorder %s164, %s165
      %p177 = scmp.eq.s32.totalorder %s19, 1
      %p178 = por %p176, %p177
      %p180 = scmp.ne.s32.totalorder %s165, %s179
      %p181 = scmp.eq.s32.totalorder %s19, 0
      %p182 = por %p180, %p181
      %p183 = scmp.le.s32.totalorder 1, %s13
      %p184 = scmp.lt.s32.totalorder %s13, 3
      %p185 = pnand %p183, %p184
      %p186 = pneg %p185
      // Predicated region
      $region9: #{med_perceptual_loss.1} parent=5 // pred_check
        _
      $region10: #{med_perceptual_loss.1} parent=5 // pred_check_branch
        %188 = sbr.rel (%p185) target = $region12
      $region11: #{med_perceptual_loss.1} parent=5 // pred_region
        %s189 = ssub.s32 %s13, 1
        // Predicated region
        $region13: #{med_perceptual_loss.1} parent=11 // pred_check
          %p190 = pneg %p34
        $region14: #{med_perceptual_loss.1} parent=11 // pred_check_branch
          %192 = sbr.rel (%p190) target = $region16
        $region15: #{med_perceptual_loss.1} parent=11 // pred_region
          _
        $region16: #{med_perceptual_loss.1} parent=11 // pred_fallthru
          _
        // Predicated region
        $region17: #{med_perceptual_loss.1} parent=11 // pred_check
          %p193 = pneg %p55
        $region18: #{med_perceptual_loss.1} parent=11 // pred_check_branch
          %195 = sbr.rel (%p193) target = $region20
        $region19: #{med_perceptual_loss.1} parent=11 // pred_region
          _
        $region20: #{med_perceptual_loss.1} parent=11 // pred_fallthru
          _
        // Predicated region
        $region21: #{med_perceptual_loss.1} parent=11 // pred_check
          %p196 = pneg %p76
        $region22: #{med_perceptual_loss.1} parent=11 // pred_check_branch
          %198 = sbr.rel (%p196) target = $region24
        $region23: #{med_perceptual_loss.1} parent=11 // pred_region
          _
        $region24: #{med_perceptual_loss.1} parent=11 // pred_fallthru
          _
      $region12: #{med_perceptual_loss.1} parent=5 // pred_fallthru
        _
      %p199 = scmp.lt.s32.totalorder %s13, 2
      // Predicated region
      $region25: #{med_perceptual_loss.1} parent=5 // pred_check
        %p200 = pneg %p199
      $region26: #{med_perceptual_loss.1} parent=5 // pred_check_branch
        %202 = sbr.rel (%p200) target = $region28
      $region27: #{med_perceptual_loss.1} parent=5 // pred_region
        // Predicated region
        $region29: #{med_perceptual_loss.1} parent=27 // pred_check
          %p203 = pneg %p96
        $region30: #{med_perceptual_loss.1} parent=27 // pred_check_branch
          %205 = sbr.rel (%p203) target = $region32
        $region31: #{med_perceptual_loss.1} parent=27 // pred_region
          %p206 = scmp.lt.s32.totalorder %s13, 1
          %s207 = scalar_select %p206, %s13, 1
          %s208 = smul.addr %s207, 43
          %s209 = smul.addr %s208, 4
          %s210 = scalar_lea.vmem %s3, %s209
        $region32: #{med_perceptual_loss.1} parent=27 // pred_fallthru
          _
        // Predicated region
        $region33: #{med_perceptual_loss.1} parent=27 // pred_check
          %p211 = pneg %p122
        $region34: #{med_perceptual_loss.1} parent=27 // pred_check_branch
          %213 = sbr.rel (%p211) target = $region36
        $region35: #{med_perceptual_loss.1} parent=27 // pred_region
          %p214 = scmp.lt.s32.totalorder %s13, 1
          %s215 = scalar_select %p214, %s13, 1
          %s216 = smul.addr %s215, 43
          %s217 = smul.addr %s216, 4
          %s218 = scalar_lea.vmem %s4, %s217
        $region36: #{med_perceptual_loss.1} parent=27 // pred_fallthru
          _
        // Predicated region
        $region37: #{med_perceptual_loss.1} parent=27 // pred_check
          %p219 = pneg %p148
        $region38: #{med_perceptual_loss.1} parent=27 // pred_check_branch
          %221 = sbr.rel (%p219) target = $region40
        $region39: #{med_perceptual_loss.1} parent=27 // pred_region
          %p222 = scmp.lt.s32.totalorder %s13, 1
          %s223 = scalar_select %p222, %s13, 1
          %s224 = smul.addr %s223, 43
          %s225 = smul.addr %s224, 4
          %s226 = scalar_lea.vmem %s5, %s225
        $region40: #{med_perceptual_loss.1} parent=27 // pred_fallthru
          _
      $region28: #{med_perceptual_loss.1} parent=5 // pred_fallthru
        _
      %p227 = scmp.le.s32.totalorder 1, %s13
      %p228 = scmp.lt.s32.totalorder %s13, 3
      %p229 = pnand %p227, %p228
      %p230 = pneg %p229
      // Predicated region
      $region41: #{med_perceptual_loss.1} parent=5 // pred_check
        _
      $region42: #{med_perceptual_loss.1} parent=5 // pred_check_branch
        %232 = sbr.rel (%p229) target = $region44
      $region43: #{med_perceptual_loss.1} parent=5 // pred_region
        %s233 = ssub.s32 %s13, 1
        %p234 = pneg %p34
        %p235 = pneg %p31
        %p236 = pneg %p55
        %p237 = pneg %p52
        %p238 = pneg %p76
        %p239 = pneg %p73
        %p240 = scmp.lt.s32.totalorder %s18, 1
        %s241 = scalar_select %p240, %s18, 1
        %s242 = smul.addr %s241, 43
        %s243 = smul.addr %s242, 4
        %s244 = scalar_lea.vmem %s3, %s243
        %p245 = pneg %p102
        %p246 = pneg %p99
        %p247 = scmp.lt.s32.totalorder %s18, 1
        %s248 = scalar_select %p247, %s18, 1
        %s249 = smul.addr %s248, 43
        %s250 = smul.addr %s249, 4
        %s251 = scalar_lea.vmem %s4, %s250
        %p252 = pneg %p128
        %p253 = pneg %p125
        %p254 = scmp.lt.s32.totalorder %s18, 1
        %s255 = scalar_select %p254, %s18, 1
        %s256 = smul.addr %s255, 43
        %s257 = smul.addr %s256, 4
        %s258 = scalar_lea.vmem %s5, %s257
        %p259 = pneg %p154
        %p260 = pneg %p151
        %p261 = pneg %p175
        %p262 = pneg %p172
        %p263 = scmp.lt.s32.totalorder %s18, 1
        %s264 = scalar_select %p263, %s18, 1
        %s265 = smul.addr %s264, 43
        %s266 = smul.addr %s265, 4
        %s267 = scalar_lea.vmem %s3, %s266
        %p268 = scmp.lt.s32.totalorder %s18, 1
        %s269 = scalar_select %p268, %s18, 1
        %s270 = smul.addr %s269, 43
        %s271 = smul.addr %s270, 4
        %s272 = scalar_lea.vmem %s4, %s271
        %p273 = scmp.lt.s32.totalorder %s18, 1
        %s274 = scalar_select %p273, %s18, 1
        %s275 = smul.addr %s274, 43
        %s276 = smul.addr %s275, 4
        %s277 = scalar_lea.vmem %s5, %s276
        %v279 = vld [vmem:[%s0] sm:$0xf]
        %s280 = scalar_lea.vmem %s0, 4
        %v281 = vld [vmem:[%s280] sm:$0xf]
        %s282 = scalar_lea.vmem %s0, 8
        %v283 = vld [vmem:[%s282] sm:$0xf]
        %s284 = scalar_lea.vmem %s0, 12
        %v285 = vld [vmem:[%s284] sm:$0xf]
        %s286 = scalar_lea.vmem %s0, 16
        %v287 = vld [vmem:[%s286] sm:$0xf]
        %s288 = scalar_lea.vmem %s0, 20
        %v289 = vld [vmem:[%s288] sm:$0xf]
        %s290 = scalar_lea.vmem %s0, 24
        %v291 = vld [vmem:[%s290] sm:$0xf]
        %s292 = scalar_lea.vmem %s0, 28
        %v293 = vld [vmem:[%s292] sm:$0xf]
        %s294 = scalar_lea.vmem %s0, 32
        %v295 = vld [vmem:[%s294] sm:$0xf]
        %v296 = vld [vmem:[%s1] sm:$0x1]
        %v297 = vld [vmem:[%s2] sm:$0xff]
        %v298 = vld [vmem:[%s2 + $0x8] sm:$0xff]
        %v299 = vld [vmem:[%s2 + $0x10] sm:$0xff]
        %v300 = vld [vmem:[%s2 + $0x18] sm:$0xff]
        %v301 = vld [vmem:[%s2 + $0x20] sm:$0xff]
        %v302 = vld [vmem:[%s2 + $0x28] sm:$0xff]
        %v303 = vld [vmem:[%s2 + $0x30] sm:$0xff]
        %v304 = vld [vmem:[%s2 + $0x38] sm:$0xff]
        %v305 = vld [vmem:[%s2 + $0x40] sm:$0xff]
        %v306 = vld [vmem:[%s2 + $0x48] sm:$0xff]
        %v307 = vld [vmem:[%s2 + $0x50] sm:$0xff]
        %v308 = vld [vmem:[%s2 + $0x58] sm:$0xff]
        %v309 = vld [vmem:[%s2 + $0x60] sm:$0xff]
        %v310 = vld [vmem:[%s2 + $0x68] sm:$0xff]
        %v311 = vld [vmem:[%s2 + $0x70] sm:$0xff]
        %v312 = vld [vmem:[%s2 + $0x78] sm:$0xff]
        %v313 = vld [vmem:[%s2 + $0x80] sm:$0xff]
        %v314 = vld [vmem:[%s2 + $0x88] sm:$0xff]
        %v315 = vld [vmem:[%s2 + $0x90] sm:$0xff]
        %v316 = vld [vmem:[%s2 + $0x98] sm:$0xff]
        %v317 = vld [vmem:[%s2 + $0xa0] sm:$0xff]
        %v318 = vld [vmem:[%s2 + $0xa8] sm:$0xff]
        %v319 = vld [vmem:[%s2 + $0xb0] sm:$0xff]
        %v320 = vld [vmem:[%s2 + $0xb8] sm:$0xff]
        %v321 = vld [vmem:[%s2 + $0xc0] sm:$0xff]
        %v322 = vld [vmem:[%s2 + $0xc8] sm:$0xff]
        %v323 = vld [vmem:[%s2 + $0xd0] sm:$0xff]
        %v324 = vld [vmem:[%s2 + $0xd8] sm:$0xff]
        %v325 = vld [vmem:[%s2 + $0xe0] sm:$0xff]
        %v326 = vld [vmem:[%s2 + $0xe8] sm:$0xff]
        %v327 = vld [vmem:[%s2 + $0xf0] sm:$0xff]
        %v328 = vld [vmem:[%s2 + $0xf8] sm:$0xff]
        %v329 = vld [vmem:[%s2 + $0x100] sm:$0xff]
        %v330 = vld [vmem:[%s2 + $0x108] sm:$0xff]
        %v331 = vld [vmem:[%s2 + $0x110] sm:$0xff]
        %v332 = vld [vmem:[%s2 + $0x118] sm:$0xff]
        %v333 = vld [vmem:[%s267] sm:$0xf]
        %v334 = vld [vmem:[%s267 + $0x4] sm:$0xf]
        %v335 = vld [vmem:[%s267 + $0x8] sm:$0xf]
        %v336 = vld [vmem:[%s267 + $0xc] sm:$0xf]
        %v337 = vld [vmem:[%s267 + $0x10] sm:$0xf]
        %v338 = vld [vmem:[%s267 + $0x14] sm:$0xf]
        %v339 = vld [vmem:[%s267 + $0x18] sm:$0xf]
        %v340 = vld [vmem:[%s267 + $0x1c] sm:$0xf]
        %v341 = vld [vmem:[%s267 + $0x20] sm:$0xf]
        %v342 = vld [vmem:[%s267 + $0x24] sm:$0xf]
        %v343 = vld [vmem:[%s267 + $0x28] sm:$0xf]
        %v344 = vld [vmem:[%s267 + $0x2c] sm:$0xf]
        %v345 = vld [vmem:[%s267 + $0x30] sm:$0xf]
        %v346 = vld [vmem:[%s267 + $0x34] sm:$0xf]
        %v347 = vld [vmem:[%s267 + $0x38] sm:$0xf]
        %v348 = vld [vmem:[%s267 + $0x3c] sm:$0xf]
        %v349 = vld [vmem:[%s267 + $0x40] sm:$0xf]
        %v350 = vld [vmem:[%s267 + $0x44] sm:$0xf]
        %v351 = vld [vmem:[%s267 + $0x48] sm:$0xf]
        %v352 = vld [vmem:[%s267 + $0x4c] sm:$0xf]
        %v353 = vld [vmem:[%s267 + $0x50] sm:$0xf]
        %v354 = vld [vmem:[%s267 + $0x54] sm:$0xf]
        %v355 = vld [vmem:[%s267 + $0x58] sm:$0xf]
        %v356 = vld [vmem:[%s267 + $0x5c] sm:$0xf]
        %v357 = vld [vmem:[%s267 + $0x60] sm:$0xf]
        %v358 = vld [vmem:[%s267 + $0x64] sm:$0xf]
        %v359 = vld [vmem:[%s267 + $0x68] sm:$0xf]
        %v360 = vld [vmem:[%s267 + $0x6c] sm:$0xf]
        %v361 = vld [vmem:[%s267 + $0x70] sm:$0xf]
        %v362 = vld [vmem:[%s267 + $0x74] sm:$0xf]
        %v363 = vld [vmem:[%s267 + $0x78] sm:$0xf]
        %v364 = vld [vmem:[%s267 + $0x7c] sm:$0xf]
        %v365 = vld [vmem:[%s267 + $0x80] sm:$0xf]
        %v366 = vld [vmem:[%s267 + $0x84] sm:$0xf]
        %v367 = vld [vmem:[%s267 + $0x88] sm:$0xf]
        %v368 = vld [vmem:[%s267 + $0x8c] sm:$0xf]
        %v369 = vld [vmem:[%s267 + $0x90] sm:$0x1]
        %v407 = vunpack.c.l.b16 %v333
        %v408 = vunpack.c.l.b16 %v334
        %v409 = vunpack.c.l.b16 %v335
        %v410 = vunpack.c.l.b16 %v336
        %v411 = vunpack.c.l.b16 %v337
        %v412 = vunpack.c.l.b16 %v338
        %v413 = vunpack.c.l.b16 %v339
        %v414 = vunpack.c.l.b16 %v340
        %v415 = vunpack.c.l.b16 %v341
        %v416 = vunpack.c.l.b16 %v342
        %v417 = vunpack.c.l.b16 %v343
        %v418 = vunpack.c.l.b16 %v344
        %v419 = vunpack.c.l.b16 %v345
        %v420 = vunpack.c.l.b16 %v346
        %v421 = vunpack.c.l.b16 %v347
        %v422 = vunpack.c.l.b16 %v348
        %v423 = vunpack.c.l.b16 %v349
        %v424 = vunpack.c.l.b16 %v350
        %v425 = vunpack.c.l.b16 %v351
        %v426 = vunpack.c.l.b16 %v352
        %v427 = vunpack.c.l.b16 %v353
        %v428 = vunpack.c.l.b16 %v354
        %v429 = vunpack.c.l.b16 %v355
        %v430 = vunpack.c.l.b16 %v356
        %v431 = vunpack.c.l.b16 %v357
        %v432 = vunpack.c.l.b16 %v358
        %v433 = vunpack.c.l.b16 %v359
        %v434 = vunpack.c.l.b16 %v360
        %v435 = vunpack.c.l.b16 %v361
        %v436 = vunpack.c.l.b16 %v362
        %v437 = vunpack.c.l.b16 %v363
        %v438 = vunpack.c.l.b16 %v364
        %v439 = vunpack.c.l.b16 %v365
        %v440 = vunpack.c.l.b16 %v366
        %v441 = vunpack.c.l.b16 %v367
        %v442 = vunpack.c.l.b16 %v368
        %v443 = vunpack.c.l.b16 %v369
        %v444 = vpack.c.b16 %v408, %v407
        %v445 = vpack.c.b16 %v410, %v409
        %v446 = vpack.c.b16 %v412, %v411
        %v447 = vpack.c.b16 %v414, %v413
        %v448 = vpack.c.b16 %v416, %v415
        %v449 = vpack.c.b16 %v418, %v417
        %v450 = vpack.c.b16 %v420, %v419
        %v451 = vpack.c.b16 %v422, %v421
        %v452 = vpack.c.b16 %v424, %v423
        %v453 = vpack.c.b16 %v426, %v425
        %v454 = vpack.c.b16 %v428, %v427
        %v455 = vpack.c.b16 %v430, %v429
        %v456 = vpack.c.b16 %v432, %v431
        %v457 = vpack.c.b16 %v434, %v433
        %v458 = vpack.c.b16 %v436, %v435
        %v459 = vpack.c.b16 %v438, %v437
        %v460 = vpack.c.b16 %v440, %v439
        %v461 = vpack.c.b16 %v442, %v441
        %v462 = vpack.c.b16 %v443, %v443
        %vm463 = vsmask.f32 7424
        %v465 = vshrl.u32 %v444, 16
        %v467 = vshll.u32 %v444, 16
        %v469 = vrot.slane %v467, 1
        %v470 = vor.u32 %v465, %v469
        %v472 = vshll.u32 %v445, 16
        %v474 = vrot.slane %v472, 1
        %v475 = vsel %vm463, %v470, %v474
        %v476 = vshrl.u32 %v445, 16
        %v478 = vor.u32 %v476, %v474
        %v480 = vshll.u32 %v446, 16
        %v482 = vrot.slane %v480, 1
        %v483 = vsel %vm463, %v478, %v482
        %v484 = vshrl.u32 %v446, 16
        %v486 = vor.u32 %v484, %v482
        %v488 = vshll.u32 %v447, 16
        %v490 = vrot.slane %v488, 1
        %v491 = vsel %vm463, %v486, %v490
        %v492 = vshrl.u32 %v447, 16
        %v494 = vor.u32 %v492, %v490
        %v496 = vshll.u32 %v448, 16
        %v498 = vrot.slane %v496, 1
        %v499 = vsel %vm463, %v494, %v498
        %v500 = vshrl.u32 %v448, 16
        %v502 = vor.u32 %v500, %v498
        %v504 = vshll.u32 %v449, 16
        %v506 = vrot.slane %v504, 1
        %v507 = vsel %vm463, %v502, %v506
        %v508 = vshrl.u32 %v449, 16
        %v510 = vor.u32 %v508, %v506
        %v512 = vshll.u32 %v450, 16
        %v514 = vrot.slane %v512, 1
        %v515 = vsel %vm463, %v510, %v514
        %v516 = vshrl.u32 %v450, 16
        %v518 = vor.u32 %v516, %v514
        %v520 = vshll.u32 %v451, 16
        %v522 = vrot.slane %v520, 1
        %v523 = vsel %vm463, %v518, %v522
        %v524 = vshrl.u32 %v451, 16
        %v526 = vor.u32 %v524, %v522
        %v528 = vshll.u32 %v452, 16
        %v530 = vrot.slane %v528, 1
        %v531 = vsel %vm463, %v526, %v530
        %v532 = vshrl.u32 %v452, 16
        %v534 = vor.u32 %v532, %v530
        %v536 = vshll.u32 %v453, 16
        %v538 = vrot.slane %v536, 1
        %v539 = vsel %vm463, %v534, %v538
        %v540 = vshrl.u32 %v453, 16
        %v542 = vor.u32 %v540, %v538
        %v544 = vshll.u32 %v454, 16
        %v546 = vrot.slane %v544, 1
        %v547 = vsel %vm463, %v542, %v546
        %v548 = vshrl.u32 %v454, 16
        %v550 = vor.u32 %v548, %v546
        %v552 = vshll.u32 %v455, 16
        %v554 = vrot.slane %v552, 1
        %v555 = vsel %vm463, %v550, %v554
        %v556 = vshrl.u32 %v455, 16
        %v558 = vor.u32 %v556, %v554
        %v560 = vshll.u32 %v456, 16
        %v562 = vrot.slane %v560, 1
        %v563 = vsel %vm463, %v558, %v562
        %v564 = vshrl.u32 %v456, 16
        %v566 = vor.u32 %v564, %v562
        %v568 = vshll.u32 %v457, 16
        %v570 = vrot.slane %v568, 1
        %v571 = vsel %vm463, %v566, %v570
        %v572 = vshrl.u32 %v457, 16
        %v574 = vor.u32 %v572, %v570
        %v576 = vshll.u32 %v458, 16
        %v578 = vrot.slane %v576, 1
        %v579 = vsel %vm463, %v574, %v578
        %v580 = vshrl.u32 %v458, 16
        %v582 = vor.u32 %v580, %v578
        %v584 = vshll.u32 %v459, 16
        %v586 = vrot.slane %v584, 1
        %v587 = vsel %vm463, %v582, %v586
        %v588 = vshrl.u32 %v459, 16
        %v590 = vor.u32 %v588, %v586
        %v592 = vshll.u32 %v460, 16
        %v594 = vrot.slane %v592, 1
        %v595 = vsel %vm463, %v590, %v594
        %v596 = vshrl.u32 %v460, 16
        %v598 = vor.u32 %v596, %v594
        %v600 = vshll.u32 %v461, 16
        %v602 = vrot.slane %v600, 1
        %v603 = vsel %vm463, %v598, %v602
        %v604 = vshrl.u32 %v461, 16
        %v606 = vor.u32 %v604, %v602
        %v608 = vshll.u32 %v462, 16
        %v610 = vrot.slane %v608, 1
        %v611 = vsel %vm463, %v606, %v610
        %vm612 = vcmask 64512
        %v614 = vsel %vm612, %v475, 0
        %v617 = vsel %vm612, %v483, 0
        %v620 = vsel %vm612, %v491, 0
        %v623 = vsel %vm612, %v499, 0
        %v626 = vsel %vm612, %v507, 0
        %v629 = vsel %vm612, %v515, 0
        %v632 = vsel %vm612, %v523, 0
        %v635 = vsel %vm612, %v531, 0
        %v638 = vsel %vm612, %v539, 0
        %v641 = vsel %vm612, %v547, 0
        %v644 = vsel %vm612, %v555, 0
        %v647 = vsel %vm612, %v563, 0
        %v650 = vsel %vm612, %v571, 0
        %v653 = vsel %vm612, %v579, 0
        %v656 = vsel %vm612, %v587, 0
        %v659 = vsel %vm612, %v595, 0
        %v662 = vsel %vm612, %v603, 0
        %v665 = vsel %vm612, %v611, 0
        %vm667 = vcmask 1043456
        %v669 = vsel %vm667, %v281, 0
        %671 = vmatprep.subr.bf16.mxu0 0
        %672 = vmatpush1.bf16.msra.mxu0 %v669
        %673 = vmatprep.subr.bf16.mxu0 0
        %674 = vmatpush1.bf16.msra.mxu0 0
        %675 = vmatprep.subr.bf16.mxu0 0
        %676 = vmatpush1.bf16.msra.mxu0 0
        %677 = vmatprep.subr.bf16.mxu0 0
        %678 = vmatpush1.bf16.msra.mxu0 0
        %679 = vmatprep.subr.bf16.mxu0 0
        %680 = vmatpush1.bf16.msra.mxu0 0
        %681 = vmatprep.subr.bf16.mxu0 0
        %682 = vmatpush1.bf16.msra.mxu0 0
        %683 = vmatprep.subr.bf16.mxu0 0
        %684 = vmatpush1.bf16.msra.mxu0 0
        %685 = vmatprep.subr.bf16.mxu0 0
        %686 = vmatpush1.bf16.msra.mxu0 0
        %687 = vmatprep.subr.bf16.mxu0 0
        %688 = vmatpush1.bf16.msra.mxu0 0
        %689 = vmatprep.subr.bf16.mxu0 0
        %690 = vmatpush1.bf16.msra.mxu0 0
        %691 = vmatprep.subr.bf16.mxu0 0
        %692 = vmatpush1.bf16.msra.mxu0 0
        %693 = vmatprep.subr.bf16.mxu0 0
        %694 = vmatpush1.bf16.msra.mxu0 0
        %695 = vmatprep.subr.bf16.mxu0 0
        %696 = vmatpush1.bf16.msra.mxu0 0
        %697 = vmatprep.subr.bf16.mxu0 0
        %698 = vmatpush1.bf16.msra.mxu0 0
        %699 = vmatprep.subr.bf16.mxu0 0
        %700 = vmatpush1.bf16.msra.mxu0 0
        %701 = vmatprep.subr.bf16.mxu0 0
        %702 = vmatpush1.bf16.msra.mxu0 0
        %703 = vmatprep.mubr.bf16.mxu0 0
        %704 = vmatmul.mubr.bf16.gmra.mrb[0].mxu0 %v614
        %v705 = vpop.f32.mrb[0].mxu0
        %v706 = vadd.f32 0.0, %v705
        %v707 = vpop.f32.mrb[0].mxu0
        %v708 = vpop.f32.mrb[0].mxu0
        %v709 = vadd.f32 0.0, %v708
        %v710 = vpop.f32.mrb[0].mxu0
        %711 = vmatprep.mubr.bf16.mxu0 0
        %712 = vmatmul.mubr.bf16.gmra.mrb[0].mxu0 %v617
        %v713 = vpop.f32.mrb[0].mxu0
        %v714 = vadd.f32 0.0, %v713
        %v715 = vpop.f32.mrb[0].mxu0
        %v716 = vpop.f32.mrb[0].mxu0
        %v717 = vadd.f32 0.0, %v716
        %v718 = vpop.f32.mrb[0].mxu0
        %719 = vmatprep.mubr.bf16.mxu0 0
        %720 = vmatmul.mubr.bf16.gmra.mrb[0].mxu0 %v620
        %v721 = vpop.f32.mrb[0].mxu0
        %v722 = vadd.f32 0.0, %v721
        %v723 = vpop.f32.mrb[0].mxu0
        %v724 = vpop.f32.mrb[0].mxu0
        %v725 = vadd.f32 0.0, %v724
        %v726 = vpop.f32.mrb[0].mxu0
        %727 = vmatprep.mubr.bf16.mxu0 0
        %728 = vmatmul.mubr.bf16.gmra.mrb[0].mxu0 %v623
        %v729 = vpop.f32.mrb[0].mxu0
        %v730 = vadd.f32 0.0, %v729
        %v731 = vpop.f32.mrb[0].mxu0
        %v732 = vpop.f32.mrb[0].mxu0
        %v733 = vadd.f32 0.0, %v732
        %v734 = vpop.f32.mrb[0].mxu0
        %735 = vmatprep.mubr.bf16.mxu0 0
        %736 = vmatmul.mubr.bf16.gmra.mrb[0].mxu0 %v626
        %v737 = vpop.f32.mrb[0].mxu0
        %v738 = vadd.f32 0.0, %v737
        %v739 = vpop.f32.mrb[0].mxu0
        %v740 = vpop.f32.mrb[0].mxu0
        %v741 = vadd.f32 0.0, %v740
        %v742 = vpop.f32.mrb[0].mxu0
        %743 = vmatprep.mubr.bf16.mxu0 0
        %744 = vmatmul.mubr.bf16.gmra.mrb[0].mxu0 %v629
        %v745 = vpop.f32.mrb[0].mxu0
        %v746 = vadd.f32 0.0, %v745
        %v747 = vpop.f32.mrb[0].mxu0
        %v748 = vpop.f32.mrb[0].mxu0
        %v749 = vadd.f32 0.0, %v748
        %v750 = vpop.f32.mrb[0].mxu0
        %751 = vmatprep.mubr.bf16.mxu0 0
        %752 = vmatmul.mubr.bf16.gmra.mrb[0].mxu0 %v632
        %v753 = vpop.f32.mrb[0].mxu0
        %v754 = vadd.f32 0.0, %v753
        %v755 = vpop.f32.mrb[0].mxu0
        %v756 = vpop.f32.mrb[0].mxu0
        %v757 = vadd.f32 0.0, %v756
        %v758 = vpop.f32.mrb[0].mxu0
        %759 = vmatprep.mubr.bf16.mxu0 0
        %760 = vmatmul.mubr.bf16.gmra.mrb[0].mxu0 %v635
        %v761 = vpop.f32.mrb[0].mxu0
        %v762 = vadd.f32 0.0, %v761
        %v763 = vpop.f32.mrb[0].mxu0
        %v764 = vpop.f32.mrb[0].mxu0
        %v765 = vadd.f32 0.0, %v764
        %v766 = vpop.f32.mrb[0].mxu0
        %767 = vmatprep.mubr.bf16.mxu0 0
        %768 = vmatmul.mubr.bf16.gmra.mrb[0].mxu0 %v638
        %v769 = vpop.f32.mrb[0].mxu0
        %v770 = vadd.f32 0.0, %v769
        %v771 = vpop.f32.mrb[0].mxu0
        %v772 = vpop.f32.mrb[0].mxu0
        %v773 = vadd.f32 0.0, %v772
        %v774 = vpop.f32.mrb[0].mxu0
        %775 = vmatprep.mubr.bf16.mxu0 0
        %776 = vmatmul.mubr.bf16.gmra.mrb[0].mxu0 %v641
        %v777 = vpop.f32.mrb[0].mxu0
        %v778 = vadd.f32 0.0, %v777
        %v779 = vpop.f32.mrb[0].mxu0
        %v780 = vpop.f32.mrb[0].mxu0
        %v781 = vadd.f32 0.0, %v780
        %v782 = vpop.f32.mrb[0].mxu0
        %783 = vmatprep.mubr.bf16.mxu0 0
        %784 = vmatmul.mubr.bf16.gmra.mrb[0].mxu0 %v644
        %v785 = vpop.f32.mrb[0].mxu0
        %v786 = vadd.f32 0.0, %v785
        %v787 = vpop.f32.mrb[0].mxu0
        %v788 = vpop.f32.mrb[0].mxu0
        %v789 = vadd.f32 0.0, %v788
        %v790 = vpop.f32.mrb[0].mxu0
        %791 = vmatprep.mubr.bf16.mxu0 0
        %792 = vmatmul.mubr.bf16.gmra.mrb[0].mxu0 %v647
        %v793 = vpop.f32.mrb[0].mxu0
        %v794 = vadd.f32 0.0, %v793
        %v795 = vpop.f32.mrb[0].mxu0
        %v796 = vpop.f32.mrb[0].mxu0
        %v797 = vadd.f32 0.0, %v796
        %v798 = vpop.f32.mrb[0].mxu0
        %799 = vmatprep.mubr.bf16.mxu0 0
        %800 = vmatmul.mubr.bf16.gmra.mrb[0].mxu0 %v650
        %v801 = vpop.f32.mrb[0].mxu0
        %v802 = vadd.f32 0.0, %v801
        %v803 = vpop.f32.mrb[0].mxu0
        %v804 = vpop.f32.mrb[0].mxu0
        %v805 = vadd.f32 0.0, %v804
        %v806 = vpop.f32.mrb[0].mxu0
        %807 = vmatprep.mubr.bf16.mxu0 0
        %808 = vmatmul.mubr.bf16.gmra.mrb[0].mxu0 %v653
        %v809 = vpop.f32.mrb[0].mxu0
        %v810 = vadd.f32 0.0, %v809
        %v811 = vpop.f32.mrb[0].mxu0
        %v812 = vpop.f32.mrb[0].mxu0
        %v813 = vadd.f32 0.0, %v812
        %v814 = vpop.f32.mrb[0].mxu0
        %815 = vmatprep.mubr.bf16.mxu0 0
        %816 = vmatmul.mubr.bf16.gmra.mrb[0].mxu0 %v656
        %v817 = vpop.f32.mrb[0].mxu0
        %v818 = vadd.f32 0.0, %v817
        %v819 = vpop.f32.mrb[0].mxu0
        %v820 = vpop.f32.mrb[0].mxu0
        %v821 = vadd.f32 0.0, %v820
        %v822 = vpop.f32.mrb[0].mxu0
        %823 = vmatprep.mubr.bf16.mxu0 0
        %824 = vmatmul.mubr.bf16.gmra.mrb[0].mxu0 %v659
        %v825 = vpop.f32.mrb[0].mxu0
        %v826 = vadd.f32 0.0, %v825
        %v827 = vpop.f32.mrb[0].mxu0
        %v828 = vpop.f32.mrb[0].mxu0
        %v829 = vadd.f32 0.0, %v828
        %v830 = vpop.f32.mrb[0].mxu0
        %831 = vmatprep.mubr.bf16.mxu0 0
        %832 = vmatmul.mubr.bf16.gmra.mrb[0].mxu0 %v662
        %v833 = vpop.f32.mrb[0].mxu0
        %v834 = vadd.f32 0.0, %v833
        %v835 = vpop.f32.mrb[0].mxu0
        %v836 = vpop.f32.mrb[0].mxu0
        %v837 = vadd.f32 0.0, %v836
        %v838 = vpop.f32.mrb[0].mxu0
        %839 = vmatprep.mubr.bf16.mxu0 0
        %840 = vmatmul.mubr.bf16.gmra.mrb[0].mxu0 %v665
        %v841 = vpop.f32.mrb[0].mxu0
        %v842 = vadd.f32 0.0, %v841
        %v843 = vpop.f32.mrb[0].mxu0
        %v844 = vpop.f32.mrb[0].mxu0
        %v845 = vadd.f32 0.0, %v844
        %v846 = vpop.f32.mrb[0].mxu0
        %847 = vdwg.mxu0
        %v848 = vsel %vm612, %v444, 0
        %v850 = vsel %vm612, %v445, 0
        %v852 = vsel %vm612, %v446, 0
        %v854 = vsel %vm612, %v447, 0
        %v856 = vsel %vm612, %v448, 0
        %v858 = vsel %vm612, %v449, 0
        %v860 = vsel %vm612, %v450, 0
        %v862 = vsel %vm612, %v451, 0
        %v864 = vsel %vm612, %v452, 0
        %v866 = vsel %vm612, %v453, 0
        %v868 = vsel %vm612, %v454, 0
        %v870 = vsel %vm612, %v455, 0
        %v872 = vsel %vm612, %v456, 0
        %v874 = vsel %vm612, %v457, 0
        %v876 = vsel %vm612, %v458, 0
        %v878 = vsel %vm612, %v459, 0
        %v880 = vsel %vm612, %v460, 0
        %v882 = vsel %vm612, %v461, 0
        %v885 = vsel %vm667, %v279, 0
        %887 = vmatprep.subr.bf16.mxu0 0
        %888 = vmatpush1.bf16.msra.mxu0 %v885
        %889 = vmatprep.subr.bf16.mxu0 0
        %890 = vmatpush1.bf16.msra.mxu0 0
        %891 = vmatprep.subr.bf16.mxu0 0
        %892 = vmatpush1.bf16.msra.mxu0 0
        %893 = vmatprep.subr.bf16.mxu0 0
        %894 = vmatpush1.bf16.msra.mxu0 0
        %895 = vmatprep.subr.bf16.mxu0 0
        %896 = vmatpush1.bf16.msra.mxu0 0
        %897 = vmatprep.subr.bf16.mxu0 0
        %898 = vmatpush1.bf16.msra.mxu0 0
        %899 = vmatprep.subr.bf16.mxu0 0
        %900 = vmatpush1.bf16.msra.mxu0 0
        %901 = vmatprep.subr.bf16.mxu0 0
        %902 = vmatpush1.bf16.msra.mxu0 0
        %903 = vmatprep.subr.bf16.mxu0 0
        %904 = vmatpush1.bf16.msra.mxu0 0
        %905 = vmatprep.subr.bf16.mxu0 0
        %906 = vmatpush1.bf16.msra.mxu0 0
        %907 = vmatprep.subr.bf16.mxu0 0
        %908 = vmatpush1.bf16.msra.mxu0 0
        %909 = vmatprep.subr.bf16.mxu0 0
        %910 = vmatpush1.bf16.msra.mxu0 0
        %911 = vmatprep.subr.bf16.mxu0 0
        %912 = vmatpush1.bf16.msra.mxu0 0
        %913 = vmatprep.subr.bf16.mxu0 0
        %914 = vmatpush1.bf16.msra.mxu0 0
        %915 = vmatprep.subr.bf16.mxu0 0
        %916 = vmatpush1.bf16.msra.mxu0 0
        %917 = vmatprep.subr.bf16.mxu0 0
        %918 = vmatpush1.bf16.msra.mxu0 0
        %919 = vmatprep.mubr.bf16.mxu0 0
        %920 = vmatmul.mubr.bf16.gmra.mrb[0].mxu0 %v848
        %v921 = vpop.f32.mrb[0].mxu0
        %v922 = vadd.f32 %v706, %v921
        %v923 = vpop.f32.mrb[0].mxu0
        %v924 = vpop.f32.mrb[0].mxu0
        %v925 = vadd.f32 %v709, %v924
        %v926 = vpop.f32.mrb[0].mxu0
        %927 = vmatprep.mubr.bf16.mxu0 0
        %928 = vmatmul.mubr.bf16.gmra.mrb[0].mxu0 %v850
        %v929 = vpop.f32.mrb[0].mxu0
        %v930 = vadd.f32 %v714, %v929
        %v931 = vpop.f32.mrb[0].mxu0
        %v932 = vpop.f32.mrb[0].mxu0
        %v933 = vadd.f32 %v717, %v932
        %v934 = vpop.f32.mrb[0].mxu0
        %935 = vmatprep.mubr.bf16.mxu0 0
        %936 = vmatmul.mubr.bf16.gmra.mrb[0].mxu0 %v852
        %v937 = vpop.f32.mrb[0].mxu0
        %v938 = vadd.f32 %v722, %v937
        %v939 = vpop.f32.mrb[0].mxu0
        %v940 = vpop.f32.mrb[0].mxu0
        %v941 = vadd.f32 %v725, %v940
        %v942 = vpop.f32.mrb[0].mxu0
        %943 = vmatprep.mubr.bf16.mxu0 0
        %944 = vmatmul.mubr.bf16.gmra.mrb[0].mxu0 %v854
        %v945 = vpop.f32.mrb[0].mxu0
        %v946 = vadd.f32 %v730, %v945
        %v947 = vpop.f32.mrb[0].mxu0
        %v948 = vpop.f32.mrb[0].mxu0
        %v949 = vadd.f32 %v733, %v948
        %v950 = vpop.f32.mrb[0].mxu0
        %951 = vmatprep.mubr.bf16.mxu0 0
        %952 = vmatmul.mubr.bf16.gmra.mrb[0].mxu0 %v856
        %v953 = vpop.f32.mrb[0].mxu0
        %v954 = vadd.f32 %v738, %v953
        %v955 = vpop.f32.mrb[0].mxu0
        %v956 = vpop.f32.mrb[0].mxu0
        %v957 = vadd.f32 %v741, %v956
        %v958 = vpop.f32.mrb[0].mxu0
        %959 = vmatprep.mubr.bf16.mxu0 0
        %960 = vmatmul.mubr.bf16.gmra.mrb[0].mxu0 %v858
        %v961 = vpop.f32.mrb[0].mxu0
        %v962 = vadd.f32 %v746, %v961
        %v963 = vpop.f32.mrb[0].mxu0
        %v964 = vpop.f32.mrb[0].mxu0
        %v965 = vadd.f32 %v749, %v964
        %v966 = vpop.f32.mrb[0].mxu0
        %967 = vmatprep.mubr.bf16.mxu0 0
        %968 = vmatmul.mubr.bf16.gmra.mrb[0].mxu0 %v860
        %v969 = vpop.f32.mrb[0].mxu0
        %v970 = vadd.f32 %v754, %v969
        %v971 = vpop.f32.mrb[0].mxu0
        %v972 = vpop.f32.mrb[0].mxu0
        %v973 = vadd.f32 %v757, %v972
        %v974 = vpop.f32.mrb[0].mxu0
        %975 = vmatprep.mubr.bf16.mxu0 0
        %976 = vmatmul.mubr.bf16.gmra.mrb[0].mxu0 %v862
        %v977 = vpop.f32.mrb[0].mxu0
        %v978 = vadd.f32 %v762, %v977
        %v979 = vpop.f32.mrb[0].mxu0
        %v980 = vpop.f32.mrb[0].mxu0
        %v981 = vadd.f32 %v765, %v980
        %v982 = vpop.f32.mrb[0].mxu0
        %983 = vmatprep.mubr.bf16.mxu0 0
        %984 = vmatmul.mubr.bf16.gmra.mrb[0].mxu0 %v864
        %v985 = vpop.f32.mrb[0].mxu0
        %v986 = vadd.f32 %v770, %v985
        %v987 = vpop.f32.mrb[0].mxu0
        %v988 = vpop.f32.mrb[0].mxu0
        %v989 = vadd.f32 %v773, %v988
        %v990 = vpop.f32.mrb[0].mxu0
        %991 = vmatprep.mubr.bf16.mxu0 0
        %992 = vmatmul.mubr.bf16.gmra.mrb[0].mxu0 %v866
        %v993 = vpop.f32.mrb[0].mxu0
        %v994 = vadd.f32 %v778, %v993
        %v995 = vpop.f32.mrb[0].mxu0
        %v996 = vpop.f32.mrb[0].mxu0
        %v997 = vadd.f32 %v781, %v996
        %v998 = vpop.f32.mrb[0].mxu0
        %999 = vmatprep.mubr.bf16.mxu0 0
        %1000 = vmatmul.mubr.bf16.gmra.mrb[0].mxu0 %v868
        %v1001 = vpop.f32.mrb[0].mxu0
        %v1002 = vadd.f32 %v786, %v1001
        %v1003 = vpop.f32.mrb[0].mxu0
        %v1004 = vpop.f32.mrb[0].mxu0
        %v1005 = vadd.f32 %v789, %v1004
        %v1006 = vpop.f32.mrb[0].mxu0
        %1007 = vmatprep.mubr.bf16.mxu0 0
        %1008 = vmatmul.mubr.bf16.gmra.mrb[0].mxu0 %v870
        %v1009 = vpop.f32.mrb[0].mxu0
        %v1010 = vadd.f32 %v794, %v1009
        %v1011 = vpop.f32.mrb[0].mxu0
        %v1012 = vpop.f32.mrb[0].mxu0
        %v1013 = vadd.f32 %v797, %v1012
        %v1014 = vpop.f32.mrb[0].mxu0
        %1015 = vmatprep.mubr.bf16.mxu0 0
        %1016 = vmatmul.mubr.bf16.gmra.mrb[0].mxu0 %v872
        %v1017 = vpop.f32.mrb[0].mxu0
        %v1018 = vadd.f32 %v802, %v1017
        %v1019 = vpop.f32.mrb[0].mxu0
        %v1020 = vpop.f32.mrb[0].mxu0
        %v1021 = vadd.f32 %v805, %v1020
        %v1022 = vpop.f32.mrb[0].mxu0
        %1023 = vmatprep.mubr.bf16.mxu0 0
        %1024 = vmatmul.mubr.bf16.gmra.mrb[0].mxu0 %v874
        %v1025 = vpop.f32.mrb[0].mxu0
        %v1026 = vadd.f32 %v810, %v1025
        %v1027 = vpop.f32.mrb[0].mxu0
        %v1028 = vpop.f32.mrb[0].mxu0
        %v1029 = vadd.f32 %v813, %v1028
        %v1030 = vpop.f32.mrb[0].mxu0
        %1031 = vmatprep.mubr.bf16.mxu0 0
        %1032 = vmatmul.mubr.bf16.gmra.mrb[0].mxu0 %v876
        %v1033 = vpop.f32.mrb[0].mxu0
        %v1034 = vadd.f32 %v818, %v1033
        %v1035 = vpop.f32.mrb[0].mxu0
        %v1036 = vpop.f32.mrb[0].mxu0
        %v1037 = vadd.f32 %v821, %v1036
        %v1038 = vpop.f32.mrb[0].mxu0
        %1039 = vmatprep.mubr.bf16.mxu0 0
        %1040 = vmatmul.mubr.bf16.gmra.mrb[0].mxu0 %v878
        %v1041 = vpop.f32.mrb[0].mxu0
        %v1042 = vadd.f32 %v826, %v1041
        %v1043 = vpop.f32.mrb[0].mxu0
        %v1044 = vpop.f32.mrb[0].mxu0
        %v1045 = vadd.f32 %v829, %v1044
        %v1046 = vpop.f32.mrb[0].mxu0
        %1047 = vmatprep.mubr.bf16.mxu0 0
        %1048 = vmatmul.mubr.bf16.gmra.mrb[0].mxu0 %v880
        %v1049 = vpop.f32.mrb[0].mxu0
        %v1050 = vadd.f32 %v834, %v1049
        %v1051 = vpop.f32.mrb[0].mxu0
        %v1052 = vpop.f32.mrb[0].mxu0
        %v1053 = vadd.f32 %v837, %v1052
        %v1054 = vpop.f32.mrb[0].mxu0
        %1055 = vmatprep.mubr.bf16.mxu0 0
        %1056 = vmatmul.mubr.bf16.gmra.mrb[0].mxu0 %v882
        %v1057 = vpop.f32.mrb[0].mxu0
        %v1058 = vadd.f32 %v842, %v1057
        %v1059 = vpop.f32.mrb[0].mxu0
        %v1060 = vpop.f32.mrb[0].mxu0
        %v1061 = vadd.f32 %v845, %v1060
        %v1062 = vpop.f32.mrb[0].mxu0
        %1063 = vdwg.mxu0
        %v1064 = vld [vmem:[%s267] sm:$0xe]
        %v1066 = vunpack.c.l.b16 %v1064
        %v1067 = vpack.c.b16 %v408, %v1066
        %vm1068 = vcmask 1046528
        %v1069 = vrot.slane %v1067, 1
        %v1070 = vrot.slane %v445, 1
        %v1071 = vsel %vm1068, %v1069, %v1070
        %v1072 = vrot.slane %v446, 1
        %v1073 = vsel %vm1068, %v1070, %v1072
        %v1074 = vrot.slane %v447, 1
        %v1075 = vsel %vm1068, %v1072, %v1074
        %v1076 = vrot.slane %v448, 1
        %v1077 = vsel %vm1068, %v1074, %v1076
        %v1078 = vrot.slane %v449, 1
        %v1079 = vsel %vm1068, %v1076, %v1078
        %v1080 = vrot.slane %v450, 1
        %v1081 = vsel %vm1068, %v1078, %v1080
        %v1082 = vrot.slane %v451, 1
        %v1083 = vsel %vm1068, %v1080, %v1082
        %v1084 = vrot.slane %v452, 1
        %v1085 = vsel %vm1068, %v1082, %v1084
        %v1086 = vrot.slane %v453, 1
        %v1087 = vsel %vm1068, %v1084, %v1086
        %v1088 = vrot.slane %v454, 1
        %v1089 = vsel %vm1068, %v1086, %v1088
        %v1090 = vrot.slane %v455, 1
        %v1091 = vsel %vm1068, %v1088, %v1090
        %v1092 = vrot.slane %v456, 1
        %v1093 = vsel %vm1068, %v1090, %v1092
        %v1094 = vrot.slane %v457, 1
        %v1095 = vsel %vm1068, %v1092, %v1094
        %v1096 = vrot.slane %v458, 1
        %v1097 = vsel %vm1068, %v1094, %v1096
        %v1098 = vrot.slane %v459, 1
        %v1099 = vsel %vm1068, %v1096, %v1098
        %v1100 = vrot.slane %v460, 1
        %v1101 = vsel %vm1068, %v1098, %v1100
        %v1102 = vrot.slane %v461, 1
        %v1103 = vsel %vm1068, %v1100, %v1102
        %v1104 = vrot.slane %v462, 1
        %v1105 = vsel %vm1068, %v1102, %v1104
        %v1107 = vsel %vm612, %v1071, 0
        %v1110 = vsel %vm612, %v1073, 0
        %v1113 = vsel %vm612, %v1075, 0
        %v1116 = vsel %vm612, %v1077, 0
        %v1119 = vsel %vm612, %v1079, 0
        %v1122 = vsel %vm612, %v1081, 0
        %v1125 = vsel %vm612, %v1083, 0
        %v1128 = vsel %vm612, %v1085, 0
        %v1131 = vsel %vm612, %v1087, 0
        %v1134 = vsel %vm612, %v1089, 0
        %v1137 = vsel %vm612, %v1091, 0
        %v1140 = vsel %vm612, %v1093, 0
        %v1143 = vsel %vm612, %v1095, 0
        %v1146 = vsel %vm612, %v1097, 0
        %v1149 = vsel %vm612, %v1099, 0
        %v1152 = vsel %vm612, %v1101, 0
        %v1155 = vsel %vm612, %v1103, 0
        %v1158 = vsel %vm612, %v1105, 0
        %v1161 = vsel %vm667, %v283, 0
        %1163 = vmatprep.subr.bf16.mxu0 0
        %1164 = vmatpush1.bf16.msra.mxu0 %v1161
        %1165 = vmatprep.subr.bf16.mxu0 0
        %1166 = vmatpush1.bf16.msra.mxu0 0
        %1167 = vmatprep.subr.bf16.mxu0 0
        %1168 = vmatpush1.bf16.msra.mxu0 0
        %1169 = vmatprep.subr.bf16.mxu0 0
        %1170 = vmatpush1.bf16.msra.mxu0 0
        %1171 = vmatprep.subr.bf16.mxu0 0
        %1172 = vmatpush1.bf16.msra.mxu0 0
        %1173 = vmatprep.subr.bf16.mxu0 0
        %1174 = vmatpush1.bf16.msra.mxu0 0
        %1175 = vmatprep.subr.bf16.mxu0 0
        %1176 = vmatpush1.bf16.msra.mxu0 0
        %1177 = vmatprep.subr.bf16.mxu0 0
        %1178 = vmatpush1.bf16.msra.mxu0 0
        %1179 = vmatprep.subr.bf16.mxu0 0
        %1180 = vmatpush1.bf16.msra.mxu0 0
        %1181 = vmatprep.subr.bf16.mxu0 0
        %1182 = vmatpush1.bf16.msra.mxu0 0
        %1183 = vmatprep.subr.bf16.mxu0 0
        %1184 = vmatpush1.bf16.msra.mxu0 0
        %1185 = vmatprep.subr.bf16.mxu0 0
        %1186 = vmatpush1.bf16.msra.mxu0 0
        %1187 = vmatprep.subr.bf16.mxu0 0
        %1188 = vmatpush1.bf16.msra.mxu0 0
        %1189 = vmatprep.subr.bf16.mxu0 0
        %1190 = vmatpush1.bf16.msra.mxu0 0
        %1191 = vmatprep.subr.bf16.mxu0 0
        %1192 = vmatpush1.bf16.msra.mxu0 0
        %1193 = vmatprep.subr.bf16.mxu0 0
        %1194 = vmatpush1.bf16.msra.mxu0 0
        %1195 = vmatprep.mubr.bf16.mxu0 0
        %1196 = vmatmul.mubr.bf16.gmra.mrb[0].mxu0 %v1107
        %v1197 = vpop.f32.mrb[0].mxu0
        %v1198 = vadd.f32 0.0, %v1197
        %v1199 = vpop.f32.mrb[0].mxu0
        %v1200 = vpop.f32.mrb[0].mxu0
        %v1201 = vadd.f32 0.0, %v1200
        %v1202 = vpop.f32.mrb[0].mxu0
        %1203 = vmatprep.mubr.bf16.mxu0 0
        %1204 = vmatmul.mubr.bf16.gmra.mrb[0].mxu0 %v1110
        %v1205 = vpop.f32.mrb[0].mxu0
        %v1206 = vadd.f32 0.0, %v1205
        %v1207 = vpop.f32.mrb[0].mxu0
        %v1208 = vpop.f32.mrb[0].mxu0
        %v1209 = vadd.f32 0.0, %v1208
        %v1210 = vpop.f32.mrb[0].mxu0
        %1211 = vmatprep.mubr.bf16.mxu0 0
        %1212 = vmatmul.mubr.bf16.gmra.mrb[0].mxu0 %v1113
        %v1213 = vpop.f32.mrb[0].mxu0
        %v1214 = vadd.f32 0.0, %v1213
        %v1215 = vpop.f32.mrb[0].mxu0
        %v1216 = vpop.f32.mrb[0].mxu0
        %v1217 = vadd.f32 0.0, %v1216
        %v1218 = vpop.f32.mrb[0].mxu0
        %1219 = vmatprep.mubr.bf16.mxu0 0
        %1220 = vmatmul.mubr.bf16.gmra.mrb[0].mxu0 %v1116
        %v1221 = vpop.f32.mrb[0].mxu0
        %v1222 = vadd.f32 0.0, %v1221
        %v1223 = vpop.f32.mrb[0].mxu0
        %v1224 = vpop.f32.mrb[0].mxu0
        %v1225 = vadd.f32 0.0, %v1224
        %v1226 = vpop.f32.mrb[0].mxu0
        %1227 = vmatprep.mubr.bf16.mxu0 0
        %1228 = vmatmul.mubr.bf16.gmra.mrb[0].mxu0 %v1119
        %v1229 = vpop.f32.mrb[0].mxu0
        %v1230 = vadd.f32 0.0, %v1229
        %v1231 = vpop.f32.mrb[0].mxu0
        %v1232 = vpop.f32.mrb[0].mxu0
        %v1233 = vadd.f32 0.0, %v1232
        %v1234 = vpop.f32.mrb[0].mxu0
        %1235 = vmatprep.mubr.bf16.mxu0 0
        %1236 = vmatmul.mubr.bf16.gmra.mrb[0].mxu0 %v1122
        %v1237 = vpop.f32.mrb[0].mxu0
        %v1238 = vadd.f32 0.0, %v1237
        %v1239 = vpop.f32.mrb[0].mxu0
        %v1240 = vpop.f32.mrb[0].mxu0
        %v1241 = vadd.f32 0.0, %v1240
        %v1242 = vpop.f32.mrb[0].mxu0
        %1243 = vmatprep.mubr.bf16.mxu0 0
        %1244 = vmatmul.mubr.bf16.gmra.mrb[0].mxu0 %v1125
        %v1245 = vpop.f32.mrb[0].mxu0
        %v1246 = vadd.f32 0.0, %v1245
        %v1247 = vpop.f32.mrb[0].mxu0
        %v1248 = vpop.f32.mrb[0].mxu0
        %v1249 = vadd.f32 0.0, %v1248
        %v1250 = vpop.f32.mrb[0].mxu0
        %1251 = vmatprep.mubr.bf16.mxu0 0
        %1252 = vmatmul.mubr.bf16.gmra.mrb[0].mxu0 %v1128
        %v1253 = vpop.f32.mrb[0].mxu0
        %v1254 = vadd.f32 0.0, %v1253
        %v1255 = vpop.f32.mrb[0].mxu0
        %v1256 = vpop.f32.mrb[0].mxu0
        %v1257 = vadd.f32 0.0, %v1256
        %v1258 = vpop.f32.mrb[0].mxu0
        %1259 = vmatprep.mubr.bf16.mxu0 0
        %1260 = vmatmul.mubr.bf16.gmra.mrb[0].mxu0 %v1131
        %v1261 = vpop.f32.mrb[0].mxu0
        %v1262 = vadd.f32 0.0, %v1261
        %v1263 = vpop.f32.mrb[0].mxu0
        %v1264 = vpop.f32.mrb[0].mxu0
        %v1265 = vadd.f32 0.0, %v1264
        %v1266 = vpop.f32.mrb[0].mxu0
        %1267 = vmatprep.mubr.bf16.mxu0 0
        %1268 = vmatmul.mubr.bf16.gmra.mrb[0].mxu0 %v1134
        %v1269 = vpop.f32.mrb[0].mxu0
        %v1270 = vadd.f32 0.0, %v1269
        %v1271 = vpop.f32.mrb[0].mxu0
        %v1272 = vpop.f32.mrb[0].mxu0
        %v1273 = vadd.f32 0.0, %v1272
        %v1274 = vpop.f32.mrb[0].mxu0
        %1275 = vmatprep.mubr.bf16.mxu0 0
        %1276 = vmatmul.mubr.bf16.gmra.mrb[0].mxu0 %v1137
        %v1277 = vpop.f32.mrb[0].mxu0
        %v1278 = vadd.f32 0.0, %v1277
        %v1279 = vpop.f32.mrb[0].mxu0
        %v1280 = vpop.f32.mrb[0].mxu0
        %v1281 = vadd.f32 0.0, %v1280
        %v1282 = vpop.f32.mrb[0].mxu0
        %1283 = vmatprep.mubr.bf16.mxu0 0
        %1284 = vmatmul.mubr.bf16.gmra.mrb[0].mxu0 %v1140
        %v1285 = vpop.f32.mrb[0].mxu0
        %v1286 = vadd.f32 0.0, %v1285
        %v1287 = vpop.f32.mrb[0].mxu0
        %v1288 = vpop.f32.mrb[0].mxu0
        %v1289 = vadd.f32 0.0, %v1288
        %v1290 = vpop.f32.mrb[0].mxu0
        %1291 = vmatprep.mubr.bf16.mxu0 0
        %1292 = vmatmul.mubr.bf16.gmra.mrb[0].mxu0 %v1143
        %v1293 = vpop.f32.mrb[0].mxu0
        %v1294 = vadd.f32 0.0, %v1293
        %v1295 = vpop.f32.mrb[0].mxu0
        %v1296 = vpop.f32.mrb[0].mxu0
        %v1297 = vadd.f32 0.0, %v1296
        %v1298 = vpop.f32.mrb[0].mxu0
        %1299 = vmatprep.mubr.bf16.mxu0 0
        %1300 = vmatmul.mubr.bf16.gmra.mrb[0].mxu0 %v1146
        %v1301 = vpop.f32.mrb[0].mxu0
        %v1302 = vadd.f32 0.0, %v1301
        %v1303 = vpop.f32.mrb[0].mxu0
        %v1304 = vpop.f32.mrb[0].mxu0
        %v1305 = vadd.f32 0.0, %v1304
        %v1306 = vpop.f32.mrb[0].mxu0
        %1307 = vmatprep.mubr.bf16.mxu0 0
        %1308 = vmatmul.mubr.bf16.gmra.mrb[0].mxu0 %v1149
        %v1309 = vpop.f32.mrb[0].mxu0
        %v1310 = vadd.f32 0.0, %v1309
        %v1311 = vpop.f32.mrb[0].mxu0
        %v1312 = vpop.f32.mrb[0].mxu0
        %v1313 = vadd.f32 0.0, %v1312
        %v1314 = vpop.f32.mrb[0].mxu0
        %1315 = vmatprep.mubr.bf16.mxu0 0
        %1316 = vmatmul.mubr.bf16.gmra.mrb[0].mxu0 %v1152
        %v1317 = vpop.f32.mrb[0].mxu0
        %v1318 = vadd.f32 0.0, %v1317
        %v1319 = vpop.f32.mrb[0].mxu0
        %v1320 = vpop.f32.mrb[0].mxu0
        %v1321 = vadd.f32 0.0, %v1320
        %v1322 = vpop.f32.mrb[0].mxu0
        %1323 = vmatprep.mubr.bf16.mxu0 0
        %1324 = vmatmul.mubr.bf16.gmra.mrb[0].mxu0 %v1155
        %v1325 = vpop.f32.mrb[0].mxu0
        %v1326 = vadd.f32 0.0, %v1325
        %v1327 = vpop.f32.mrb[0].mxu0
        %v1328 = vpop.f32.mrb[0].mxu0
        %v1329 = vadd.f32 0.0, %v1328
        %v1330 = vpop.f32.mrb[0].mxu0
        %1331 = vmatprep.mubr.bf16.mxu0 0
        %1332 = vmatmul.mubr.bf16.gmra.mrb[0].mxu0 %v1158
        %v1333 = vpop.f32.mrb[0].mxu0
        %v1334 = vadd.f32 0.0, %v1333
        %v1335 = vpop.f32.mrb[0].mxu0
        %v1336 = vpop.f32.mrb[0].mxu0
        %v1337 = vadd.f32 0.0, %v1336
        %v1338 = vpop.f32.mrb[0].mxu0
        %1339 = vdwg.mxu0
        %v1340 = vadd.f32 %v922, %v1198
        %v1341 = vadd.f32 %v925, %v1201
        %v1342 = vadd.f32 %v930, %v1206
        %v1343 = vadd.f32 %v933, %v1209
        %v1344 = vadd.f32 %v938, %v1214
        %v1345 = vadd.f32 %v941, %v1217
        %v1346 = vadd.f32 %v946, %v1222
        %v1347 = vadd.f32 %v949, %v1225
        %v1348 = vadd.f32 %v954, %v1230
        %v1349 = vadd.f32 %v957, %v1233
        %v1350 = vadd.f32 %v962, %v1238
        %v1351 = vadd.f32 %v965, %v1241
        %v1352 = vadd.f32 %v970, %v1246
        %v1353 = vadd.f32 %v973, %v1249
        %v1354 = vadd.f32 %v978, %v1254
        %v1355 = vadd.f32 %v981, %v1257
        %v1356 = vadd.f32 %v986, %v1262
        %v1357 = vadd.f32 %v989, %v1265
        %v1358 = vadd.f32 %v994, %v1270
        %v1359 = vadd.f32 %v997, %v1273
        %v1360 = vadd.f32 %v1002, %v1278
        %v1361 = vadd.f32 %v1005, %v1281
        %v1362 = vadd.f32 %v1010, %v1286
        %v1363 = vadd.f32 %v1013, %v1289
        %v1364 = vadd.f32 %v1018, %v1294
        %v1365 = vadd.f32 %v1021, %v1297
        %v1366 = vadd.f32 %v1026, %v1302
        %v1367 = vadd.f32 %v1029, %v1305
        %v1368 = vadd.f32 %v1034, %v1310
        %v1369 = vadd.f32 %v1037, %v1313
        %v1370 = vadd.f32 %v1042, %v1318
        %v1371 = vadd.f32 %v1045, %v1321
        %v1372 = vadd.f32 %v1050, %v1326
        %v1373 = vadd.f32 %v1053, %v1329
        %v1374 = vadd.f32 %v1058, %v1334
        %v1375 = vadd.f32 %v1061, %v1337
        %v1376 = vld [vmem:[%s267 + $0x8] sm:$0xe]
        %v1377 = vld [vmem:[%s267 + $0xc] sm:$0xf]
        %v1378 = vld [vmem:[%s267 + $0x10] sm:$0xf]
        %v1379 = vld [vmem:[%s267 + $0x14] sm:$0xf]
        %v1380 = vld [vmem:[%s267 + $0x18] sm:$0xf]
        %v1381 = vld [vmem:[%s267 + $0x1c] sm:$0xf]
        %v1382 = vld [vmem:[%s267 + $0x20] sm:$0xf]
        %v1383 = vld [vmem:[%s267 + $0x24] sm:$0xf]
        %v1384 = vld [vmem:[%s267 + $0x28] sm:$0xf]
        %v1385 = vld [vmem:[%s267 + $0x2c] sm:$0xf]
        %v1386 = vld [vmem:[%s267 + $0x30] sm:$0xf]
        %v1387 = vld [vmem:[%s267 + $0x34] sm:$0xf]
        %v1388 = vld [vmem:[%s267 + $0x38] sm:$0xf]
        %v1389 = vld [vmem:[%s267 + $0x3c] sm:$0xf]
        %v1390 = vld [vmem:[%s267 + $0x40] sm:$0xf]
        %v1391 = vld [vmem:[%s267 + $0x44] sm:$0xf]
        %v1392 = vld [vmem:[%s267 + $0x48] sm:$0xf]
        %v1393 = vld [vmem:[%s267 + $0x4c] sm:$0xf]
        %v1394 = vld [vmem:[%s267 + $0x50] sm:$0xf]
        %v1395 = vld [vmem:[%s267 + $0x54] sm:$0xf]
        %v1396 = vld [vmem:[%s267 + $0x58] sm:$0xf]
        %v1397 = vld [vmem:[%s267 + $0x5c] sm:$0xf]
        %v1398 = vld [vmem:[%s267 + $0x60] sm:$0xf]
        %v1399 = vld [vmem:[%s267 + $0x64] sm:$0xf]
        %v1400 = vld [vmem:[%s267 + $0x68] sm:$0xf]
        %v1401 = vld [vmem:[%s267 + $0x6c] sm:$0xf]
        %v1402 = vld [vmem:[%s267 + $0x70] sm:$0xf]
        %v1403 = vld [vmem:[%s267 + $0x74] sm:$0xf]
        %v1404 = vld [vmem:[%s267 + $0x78] sm:$0xf]
        %v1405 = vld [vmem:[%s267 + $0x7c] sm:$0xf]
        %v1406 = vld [vmem:[%s267 + $0x80] sm:$0xf]
        %v1407 = vld [vmem:[%s267 + $0x84] sm:$0xf]
        %v1408 = vld [vmem:[%s267 + $0x88] sm:$0xf]
        %v1409 = vld [vmem:[%s267 + $0x8c] sm:$0xf]
        %v1410 = vld [vmem:[%s267 + $0x90] sm:$0xf]
        %v1411 = vld [vmem:[%s267 + $0x94] sm:$0xf]
        %v1412 = vld [vmem:[%s267 + $0x98] sm:$0x1]
        %v1450 = vunpack.c.l.b16 %v1376
        %v1451 = vunpack.c.l.b16 %v1377
        %v1452 = vunpack.c.l.b16 %v1378
        %v1453 = vunpack.c.l.b16 %v1379
        %v1454 = vunpack.c.l.b16 %v1380
        %v1455 = vunpack.c.l.b16 %v1381
        %v1456 = vunpack.c.l.b16 %v1382
        %v1457 = vunpack.c.l.b16 %v1383
        %v1458 = vunpack.c.l.b16 %v1384
        %v1459 = vunpack.c.l.b16 %v1385
        %v1460 = vunpack.c.l.b16 %v1386
        %v1461 = vunpack.c.l.b16 %v1387
        %v1462 = vunpack.c.l.b16 %v1388
        %v1463 = vunpack.c.l.b16 %v1389
        %v1464 = vunpack.c.l.b16 %v1390
        %v1465 = vunpack.c.l.b16 %v1391
        %v1466 = vunpack.c.l.b16 %v1392
        %v1467 = vunpack.c.l.b16 %v1393
        %v1468 = vunpack.c.l.b16 %v1394
        %v1469 = vunpack.c.l.b16 %v1395
        %v1470 = vunpack.c.l.b16 %v1396
        %v1471 = vunpack.c.l.b16 %v1397
        %v1472 = vunpack.c.l.b16 %v1398
        %v1473 = vunpack.c.l.b16 %v1399
        %v1474 = vunpack.c.l.b16 %v1400
        %v1475 = vunpack.c.l.b16 %v1401
        %v1476 = vunpack.c.l.b16 %v1402
        %v1477 = vunpack.c.l.b16 %v1403
        %v1478 = vunpack.c.l.b16 %v1404
        %v1479 = vunpack.c.l.b16 %v1405
        %v1480 = vunpack.c.l.b16 %v1406
        %v1481 = vunpack.c.l.b16 %v1407
        %v1482 = vunpack.c.l.b16 %v1408
        %v1483 = vunpack.c.l.b16 %v1409
        %v1484 = vunpack.c.l.b16 %v1410
        %v1485 = vunpack.c.l.b16 %v1411
        %v1486 = vunpack.c.l.b16 %v1412
        %v1487 = vpack.c.b16 %v1451, %v1450
        %v1488 = vpack.c.b16 %v1453, %v1452
        %v1489 = vpack.c.b16 %v1455, %v1454
        %v1490 = vpack.c.b16 %v1457, %v1456
        %v1491 = vpack.c.b16 %v1459, %v1458
        %v1492 = vpack.c.b16 %v1461, %v1460
        %v1493 = vpack.c.b16 %v1463, %v1462
        %v1494 = vpack.c.b16 %v1465, %v1464
        %v1495 = vpack.c.b16 %v1467, %v1466
        %v1496 = vpack.c.b16 %v1469, %v1468
        %v1497 = vpack.c.b16 %v1471, %v1470
        %v1498 = vpack.c.b16 %v1473, %v1472
        %v1499 = vpack.c.b16 %v1475, %v1474
        %v1500 = vpack.c.b16 %v1477, %v1476
        %v1501 = vpack.c.b16 %v1479, %v1478
        %v1502 = vpack.c.b16 %v1481, %v1480
        %v1503 = vpack.c.b16 %v1483, %v1482
        %v1504 = vpack.c.b16 %v1485, %v1484
        %v1505 = vpack.c.b16 %v1486, %v1486
        %v1506 = vrot.slane %v1487, 1
        %v1507 = vrot.slane %v1488, 1
        %v1508 = vsel %vm1068, %v1506, %v1507
        %v1509 = vrot.slane %v1489, 1
        %v1510 = vsel %vm1068, %v1507, %v1509
        %v1511 = vrot.slane %v1490, 1
        %v1512 = vsel %vm1068, %v1509, %v1511
        %v1513 = vrot.slane %v1491, 1
        %v1514 = vsel %vm1068, %v1511, %v1513
        %v1515 = vrot.slane %v1492, 1
        %v1516 = vsel %vm1068, %v1513, %v1515
        %v1517 = vrot.slane %v1493, 1
        %v1518 = vsel %vm1068, %v1515, %v1517
        %v1519 = vrot.slane %v1494, 1
        %v1520 = vsel %vm1068, %v1517, %v1519
        %v1521 = vrot.slane %v1495, 1
        %v1522 = vsel %vm1068, %v1519, %v1521
        %v1523 = vrot.slane %v1496, 1
        %v1524 = vsel %vm1068, %v1521, %v1523
        %v1525 = vrot.slane %v1497, 1
        %v1526 = vsel %vm1068, %v1523, %v1525
        %v1527 = vrot.slane %v1498, 1
        %v1528 = vsel %vm1068, %v1525, %v1527
        %v1529 = vrot.slane %v1499, 1
        %v1530 = vsel %vm1068, %v1527, %v1529
        %v1531 = vrot.slane %v1500, 1
        %v1532 = vsel %vm1068, %v1529, %v1531
        %v1533 = vrot.slane %v1501, 1
        %v1534 = vsel %vm1068, %v1531, %v1533
        %v1535 = vrot.slane %v1502, 1
        %v1536 = vsel %vm1068, %v1533, %v1535
        %v1537 = vrot.slane %v1503, 1
        %v1538 = vsel %vm1068, %v1535, %v1537
        %v1539 = vrot.slane %v1504, 1
        %v1540 = vsel %vm1068, %v1537, %v1539
        %v1541 = vrot.slane %v1505, 1
        %v1542 = vsel %vm1068, %v1539, %v1541
        %v1544 = vsel %vm612, %v1508, 0
        %v1547 = vsel %vm612, %v1510, 0
        %v1550 = vsel %vm612, %v1512, 0
        %v1553 = vsel %vm612, %v1514, 0
        %v1556 = vsel %vm612, %v1516, 0
        %v1559 = vsel %vm612, %v1518, 0
        %v1562 = vsel %vm612, %v1520, 0
        %v1565 = vsel %vm612, %v1522, 0
        %v1568 = vsel %vm612, %v1524, 0
        %v1571 = vsel %vm612, %v1526, 0
        %v1574 = vsel %vm612, %v1528, 0
        %v1577 = vsel %vm612, %v1530, 0
        %v1580 = vsel %vm612, %v1532, 0
        %v1583 = vsel %vm612, %v1534, 0
        %v1586 = vsel %vm612, %v1536, 0
        %v1589 = vsel %vm612, %v1538, 0
        %v1592 = vsel %vm612, %v1540, 0
        %v1595 = vsel %vm612, %v1542, 0
        %v1598 = vsel %vm667, %v285, 0
        %1600 = vmatprep.subr.bf16.mxu0 0
        %1601 = vmatpush1.bf16.msra.mxu0 %v1598
        %1602 = vmatprep.subr.bf16.mxu0 0
        %1603 = vmatpush1.bf16.msra.mxu0 0
        %1604 = vmatprep.subr.bf16.mxu0 0
        %1605 = vmatpush1.bf16.msra.mxu0 0
        %1606 = vmatprep.subr.bf16.mxu0 0
        %1607 = vmatpush1.bf16.msra.mxu0 0
        %1608 = vmatprep.subr.bf16.mxu0 0
        %1609 = vmatpush1.bf16.msra.mxu0 0
        %1610 = vmatprep.subr.bf16.mxu0 0
        %1611 = vmatpush1.bf16.msra.mxu0 0
        %1612 = vmatprep.subr.bf16.mxu0 0
        %1613 = vmatpush1.bf16.msra.mxu0 0
        %1614 = vmatprep.subr.bf16.mxu0 0
        %1615 = vmatpush1.bf16.msra.mxu0 0
        %1616 = vmatprep.subr.bf16.mxu0 0
        %1617 = vmatpush1.bf16.msra.mxu0 0
        %1618 = vmatprep.subr.bf16.mxu0 0
        %1619 = vmatpush1.bf16.msra.mxu0 0
        %1620 = vmatprep.subr.bf16.mxu0 0
        %1621 = vmatpush1.bf16.msra.mxu0 0
        %1622 = vmatprep.subr.bf16.mxu0 0
        %1623 = vmatpush1.bf16.msra.mxu0 0
        %1624 = vmatprep.subr.bf16.mxu0 0
        %1625 = vmatpush1.bf16.msra.mxu0 0
        %1626 = vmatprep.subr.bf16.mxu0 0
        %1627 = vmatpush1.bf16.msra.mxu0 0
        %1628 = vmatprep.subr.bf16.mxu0 0
        %1629 = vmatpush1.bf16.msra.mxu0 0
        %1630 = vmatprep.subr.bf16.mxu0 0
        %1631 = vmatpush1.bf16.msra.mxu0 0
        %1632 = vmatprep.mubr.bf16.mxu0 0
        %1633 = vmatmul.mubr.bf16.gmra.mrb[0].mxu0 %v1544
        %v1634 = vpop.f32.mrb[0].mxu0
        %v1635 = vadd.f32 0.0, %v1634
        %v1636 = vpop.f32.mrb[0].mxu0
        %v1637 = vpop.f32.mrb[0].mxu0
        %v1638 = vadd.f32 0.0, %v1637
        %v1639 = vpop.f32.mrb[0].mxu0
        %1640 = vmatprep.mubr.bf16.mxu0 0
        %1641 = vmatmul.mubr.bf16.gmra.mrb[0].mxu0 %v1547
        %v1642 = vpop.f32.mrb[0].mxu0
        %v1643 = vadd.f32 0.0, %v1642
        %v1644 = vpop.f32.mrb[0].mxu0
        %v1645 = vpop.f32.mrb[0].mxu0
        %v1646 = vadd.f32 0.0, %v1645
        %v1647 = vpop.f32.mrb[0].mxu0
        %1648 = vmatprep.mubr.bf16.mxu0 0
        %1649 = vmatmul.mubr.bf16.gmra.mrb[0].mxu0 %v1550
        %v1650 = vpop.f32.mrb[0].mxu0
        %v1651 = vadd.f32 0.0, %v1650
        %v1652 = vpop.f32.mrb[0].mxu0
        %v1653 = vpop.f32.mrb[0].mxu0
        %v1654 = vadd.f32 0.0, %v1653
        %v1655 = vpop.f32.mrb[0].mxu0
        %1656 = vmatprep.mubr.bf16.mxu0 0
        %1657 = vmatmul.mubr.bf16.gmra.mrb[0].mxu0 %v1553
        %v1658 = vpop.f32.mrb[0].mxu0
        %v1659 = vadd.f32 0.0, %v1658
        %v1660 = vpop.f32.mrb[0].mxu0
        %v1661 = vpop.f32.mrb[0].mxu0
        %v1662 = vadd.f32 0.0, %v1661
        %v1663 = vpop.f32.mrb[0].mxu0
        %1664 = vmatprep.mubr.bf16.mxu0 0
        %1665 = vmatmul.mubr.bf16.gmra.mrb[0].mxu0 %v1556
        %v1666 = vpop.f32.mrb[0].mxu0
        %v1667 = vadd.f32 0.0, %v1666
        %v1668 = vpop.f32.mrb[0].mxu0
        %v1669 = vpop.f32.mrb[0].mxu0
        %v1670 = vadd.f32 0.0, %v1669
        %v1671 = vpop.f32.mrb[0].mxu0
        %1672 = vmatprep.mubr.bf16.mxu0 0
        %1673 = vmatmul.mubr.bf16.gmra.mrb[0].mxu0 %v1559
        %v1674 = vpop.f32.mrb[0].mxu0
        %v1675 = vadd.f32 0.0, %v1674
        %v1676 = vpop.f32.mrb[0].mxu0
        %v1677 = vpop.f32.mrb[0].mxu0
        %v1678 = vadd.f32 0.0, %v1677
        %v1679 = vpop.f32.mrb[0].mxu0
        %1680 = vmatprep.mubr.bf16.mxu0 0
        %1681 = vmatmul.mubr.bf16.gmra.mrb[0].mxu0 %v1562
        %v1682 = vpop.f32.mrb[0].mxu0
        %v1683 = vadd.f32 0.0, %v1682
        %v1684 = vpop.f32.mrb[0].mxu0
        %v1685 = vpop.f32.mrb[0].mxu0
        %v1686 = vadd.f32 0.0, %v1685
        %v1687 = vpop.f32.mrb[0].mxu0
        %1688 = vmatprep.mubr.bf16.mxu0 0
        %1689 = vmatmul.mubr.bf16.gmra.mrb[0].mxu0 %v1565
        %v1690 = vpop.f32.mrb[0].mxu0
        %v1691 = vadd.f32 0.0, %v1690
        %v1692 = vpop.f32.mrb[0].mxu0
        %v1693 = vpop.f32.mrb[0].mxu0
        %v1694 = vadd.f32 0.0, %v1693
        %v1695 = vpop.f32.mrb[0].mxu0
        %1696 = vmatprep.mubr.bf16.mxu0 0
        %1697 = vmatmul.mubr.bf16.gmra.mrb[0].mxu0 %v1568
        %v1698 = vpop.f32.mrb[0].mxu0
        %v1699 = vadd.f32 0.0, %v1698
        %v1700 = vpop.f32.mrb[0].mxu0
        %v1701 = vpop.f32.mrb[0].mxu0
        %v1702 = vadd.f32 0.0, %v1701
        %v1703 = vpop.f32.mrb[0].mxu0
        %1704 = vmatprep.mubr.bf16.mxu0 0
        %1705 = vmatmul.mubr.bf16.gmra.mrb[0].mxu0 %v1571
        %v1706 = vpop.f32.mrb[0].mxu0
        %v1707 = vadd.f32 0.0, %v1706
        %v1708 = vpop.f32.mrb[0].mxu0
        %v1709 = vpop.f32.mrb[0].mxu0
        %v1710 = vadd.f32 0.0, %v1709
        %v1711 = vpop.f32.mrb[0].mxu0
        %1712 = vmatprep.mubr.bf16.mxu0 0
        %1713 = vmatmul.mubr.bf16.gmra.mrb[0].mxu0 %v1574
        %v1714 = vpop.f32.mrb[0].mxu0
        %v1715 = vadd.f32 0.0, %v1714
        %v1716 = vpop.f32.mrb[0].mxu0
        %v1717 = vpop.f32.mrb[0].mxu0
        %v1718 = vadd.f32 0.0, %v1717
        %v1719 = vpop.f32.mrb[0].mxu0
        %1720 = vmatprep.mubr.bf16.mxu0 0
        %1721 = vmatmul.mubr.bf16.gmra.mrb[0].mxu0 %v1577
        %v1722 = vpop.f32.mrb[0].mxu0
        %v1723 = vadd.f32 0.0, %v1722
        %v1724 = vpop.f32.mrb[0].mxu0
        %v1725 = vpop.f32.mrb[0].mxu0
        %v1726 = vadd.f32 0.0, %v1725
        %v1727 = vpop.f32.mrb[0].mxu0
        %1728 = vmatprep.mubr.bf16.mxu0 0
        %1729 = vmatmul.mubr.bf16.gmra.mrb[0].mxu0 %v1580
        %v1730 = vpop.f32.mrb[0].mxu0
        %v1731 = vadd.f32 0.0, %v1730
        %v1732 = vpop.f32.mrb[0].mxu0
        %v1733 = vpop.f32.mrb[0].mxu0
        %v1734 = vadd.f32 0.0, %v1733
        %v1735 = vpop.f32.mrb[0].mxu0
        %1736 = vmatprep.mubr.bf16.mxu0 0
        %1737 = vmatmul.mubr.bf16.gmra.mrb[0].mxu0 %v1583
        %v1738 = vpop.f32.mrb[0].mxu0
        %v1739 = vadd.f32 0.0, %v1738
        %v1740 = vpop.f32.mrb[0].mxu0
        %v1741 = vpop.f32.mrb[0].mxu0
        %v1742 = vadd.f32 0.0, %v1741
        %v1743 = vpop.f32.mrb[0].mxu0
        %1744 = vmatprep.mubr.bf16.mxu0 0
        %1745 = vmatmul.mubr.bf16.gmra.mrb[0].mxu0 %v1586
        %v1746 = vpop.f32.mrb[0].mxu0
        %v1747 = vadd.f32 0.0, %v1746
        %v1748 = vpop.f32.mrb[0].mxu0
        %v1749 = vpop.f32.mrb[0].mxu0
        %v1750 = vadd.f32 0.0, %v1749
        %v1751 = vpop.f32.mrb[0].mxu0
        %1752 = vmatprep.mubr.bf16.mxu0 0
        %1753 = vmatmul.mubr.bf16.gmra.mrb[0].mxu0 %v1589
        %v1754 = vpop.f32.mrb[0].mxu0
        %v1755 = vadd.f32 0.0, %v1754
        %v1756 = vpop.f32.mrb[0].mxu0
        %v1757 = vpop.f32.mrb[0].mxu0
        %v1758 = vadd.f32 0.0, %v1757
        %v1759 = vpop.f32.mrb[0].mxu0
        %1760 = vmatprep.mubr.bf16.mxu0 0
        %1761 = vmatmul.mubr.bf16.gmra.mrb[0].mxu0 %v1592
        %v1762 = vpop.f32.mrb[0].mxu0
        %v1763 = vadd.f32 0.0, %v1762
        %v1764 = vpop.f32.mrb[0].mxu0
        %v1765 = vpop.f32.mrb[0].mxu0
        %v1766 = vadd.f32 0.0, %v1765
        %v1767 = vpop.f32.mrb[0].mxu0
        %1768 = vmatprep.mubr.bf16.mxu0 0
        %1769 = vmatmul.mubr.bf16.gmra.mrb[0].mxu0 %v1595
        %v1770 = vpop.f32.mrb[0].mxu0
        %v1771 = vadd.f32 0.0, %v1770
        %v1772 = vpop.f32.mrb[0].mxu0
        %v1773 = vpop.f32.mrb[0].mxu0
        %v1774 = vadd.f32 0.0, %v1773
        %v1775 = vpop.f32.mrb[0].mxu0
        %1776 = vdwg.mxu0
        %v1777 = vadd.f32 %v1340, %v1635
        %v1778 = vadd.f32 %v1341, %v1638
        %v1779 = vadd.f32 %v1342, %v1643
        %v1780 = vadd.f32 %v1343, %v1646
        %v1781 = vadd.f32 %v1344, %v1651
        %v1782 = vadd.f32 %v1345, %v1654
        %v1783 = vadd.f32 %v1346, %v1659
        %v1784 = vadd.f32 %v1347, %v1662
        %v1785 = vadd.f32 %v1348, %v1667
        %v1786 = vadd.f32 %v1349, %v1670
        %v1787 = vadd.f32 %v1350, %v1675
        %v1788 = vadd.f32 %v1351, %v1678
        %v1789 = vadd.f32 %v1352, %v1683
        %v1790 = vadd.f32 %v1353, %v1686
        %v1791 = vadd.f32 %v1354, %v1691
        %v1792 = vadd.f32 %v1355, %v1694
        %v1793 = vadd.f32 %v1356, %v1699
        %v1794 = vadd.f32 %v1357, %v1702
        %v1795 = vadd.f32 %v1358, %v1707
        %v1796 = vadd.f32 %v1359, %v1710
        %v1797 = vadd.f32 %v1360, %v1715
        %v1798 = vadd.f32 %v1361, %v1718
        %v1799 = vadd.f32 %v1362, %v1723
        %v1800 = vadd.f32 %v1363, %v1726
        %v1801 = vadd.f32 %v1364, %v1731
        %v1802 = vadd.f32 %v1365, %v1734
        %v1803 = vadd.f32 %v1366, %v1739
        %v1804 = vadd.f32 %v1367, %v1742
        %v1805 = vadd.f32 %v1368, %v1747
        %v1806 = vadd.f32 %v1369, %v1750
        %v1807 = vadd.f32 %v1370, %v1755
        %v1808 = vadd.f32 %v1371, %v1758
        %v1809 = vadd.f32 %v1372, %v1763
        %v1810 = vadd.f32 %v1373, %v1766
        %v1811 = vadd.f32 %v1374, %v1771
        %v1812 = vadd.f32 %v1375, %v1774
        %v1813 = vld [vmem:[%s267 + $0x98] sm:$0x3]
        %v1815 = vunpack.c.l.b16 %v1813
        %v1816 = vpack.c.b16 %v1815, %v1815
        %vm1817 = vsmask.f32 6400
        %v1819 = vshrl.u32 %v1487, 16
        %v1821 = vrot.slane %v1819, 1
        %v1822 = vshll.u32 %v1487, 16
        %v1824 = vrot.slane %v1822, 2
        %v1825 = vor.u32 %v1821, %v1824
        %v1827 = vshrl.u32 %v1488, 16
        %v1829 = vrot.slane %v1827, 1
        %v1830 = vshll.u32 %v1488, 16
        %v1832 = vrot.slane %v1830, 2
        %v1833 = vor.u32 %v1829, %v1832
        %v1834 = vsel %vm1817, %v1825, %v1833
        %v1836 = vshrl.u32 %v1489, 16
        %v1838 = vrot.slane %v1836, 1
        %v1839 = vshll.u32 %v1489, 16
        %v1841 = vrot.slane %v1839, 2
        %v1842 = vor.u32 %v1838, %v1841
        %v1843 = vsel %vm1817, %v1833, %v1842
        %v1845 = vshrl.u32 %v1490, 16
        %v1847 = vrot.slane %v1845, 1
        %v1848 = vshll.u32 %v1490, 16
        %v1850 = vrot.slane %v1848, 2
        %v1851 = vor.u32 %v1847, %v1850
        %v1852 = vsel %vm1817, %v1842, %v1851
        %v1854 = vshrl.u32 %v1491, 16
        %v1856 = vrot.slane %v1854, 1
        %v1857 = vshll.u32 %v1491, 16
        %v1859 = vrot.slane %v1857, 2
        %v1860 = vor.u32 %v1856, %v1859
        %v1861 = vsel %vm1817, %v1851, %v1860
        %v1863 = vshrl.u32 %v1492, 16
        %v1865 = vrot.slane %v1863, 1
        %v1866 = vshll.u32 %v1492, 16
        %v1868 = vrot.slane %v1866, 2
        %v1869 = vor.u32 %v1865, %v1868
        %v1870 = vsel %vm1817, %v1860, %v1869
        %v1872 = vshrl.u32 %v1493, 16
        %v1874 = vrot.slane %v1872, 1
        %v1875 = vshll.u32 %v1493, 16
        %v1877 = vrot.slane %v1875, 2
        %v1878 = vor.u32 %v1874, %v1877
        %v1879 = vsel %vm1817, %v1869, %v1878
        %v1881 = vshrl.u32 %v1494, 16
        %v1883 = vrot.slane %v1881, 1
        %v1884 = vshll.u32 %v1494, 16
        %v1886 = vrot.slane %v1884, 2
        %v1887 = vor.u32 %v1883, %v1886
        %v1888 = vsel %vm1817, %v1878, %v1887
        %v1890 = vshrl.u32 %v1495, 16
        %v1892 = vrot.slane %v1890, 1
        %v1893 = vshll.u32 %v1495, 16
        %v1895 = vrot.slane %v1893, 2
        %v1896 = vor.u32 %v1892, %v1895
        %v1897 = vsel %vm1817, %v1887, %v1896
        %v1899 = vshrl.u32 %v1496, 16
        %v1901 = vrot.slane %v1899, 1
        %v1902 = vshll.u32 %v1496, 16
        %v1904 = vrot.slane %v1902, 2
        %v1905 = vor.u32 %v1901, %v1904
        %v1906 = vsel %vm1817, %v1896, %v1905
        %v1908 = vshrl.u32 %v1497, 16
        %v1910 = vrot.slane %v1908, 1
        %v1911 = vshll.u32 %v1497, 16
        %v1913 = vrot.slane %v1911, 2
        %v1914 = vor.u32 %v1910, %v1913
        %v1915 = vsel %vm1817, %v1905, %v1914
        %v1917 = vshrl.u32 %v1498, 16
        %v1919 = vrot.slane %v1917, 1
        %v1920 = vshll.u32 %v1498, 16
        %v1922 = vrot.slane %v1920, 2
        %v1923 = vor.u32 %v1919, %v1922
        %v1924 = vsel %vm1817, %v1914, %v1923
        %v1926 = vshrl.u32 %v1499, 16
        %v1928 = vrot.slane %v1926, 1
        %v1929 = vshll.u32 %v1499, 16
        %v1931 = vrot.slane %v1929, 2
        %v1932 = vor.u32 %v1928, %v1931
        %v1933 = vsel %vm1817, %v1923, %v1932
        %v1935 = vshrl.u32 %v1500, 16
        %v1937 = vrot.slane %v1935, 1
        %v1938 = vshll.u32 %v1500, 16
        %v1940 = vrot.slane %v1938, 2
        %v1941 = vor.u32 %v1937, %v1940
        %v1942 = vsel %vm1817, %v1932, %v1941
        %v1944 = vshrl.u32 %v1501, 16
        %v1946 = vrot.slane %v1944, 1
        %v1947 = vshll.u32 %v1501, 16
        %v1949 = vrot.slane %v1947, 2
        %v1950 = vor.u32 %v1946, %v1949
        %v1951 = vsel %vm1817, %v1941, %v1950
        %v1953 = vshrl.u32 %v1502, 16
        %v1955 = vrot.slane %v1953, 1
        %v1956 = vshll.u32 %v1502, 16
        %v1958 = vrot.slane %v1956, 2
        %v1959 = vor.u32 %v1955, %v1958
        %v1960 = vsel %vm1817, %v1950, %v1959
        %v1962 = vshrl.u32 %v1503, 16
        %v1964 = vrot.slane %v1962, 1
        %v1965 = vshll.u32 %v1503, 16
        %v1967 = vrot.slane %v1965, 2
        %v1968 = vor.u32 %v1964, %v1967
        %v1969 = vsel %vm1817, %v1959, %v1968
        %v1971 = vshrl.u32 %v1504, 16
        %v1973 = vrot.slane %v1971, 1
        %v1974 = vshll.u32 %v1504, 16
        %v1976 = vrot.slane %v1974, 2
        %v1977 = vor.u32 %v1973, %v1976
        %v1978 = vsel %vm1817, %v1968, %v1977
        %v1980 = vshrl.u32 %v1816, 16
        %v1982 = vrot.slane %v1980, 1
        %v1983 = vshll.u32 %v1816, 16
        %v1985 = vrot.slane %v1983, 2
        %v1986 = vor.u32 %v1982, %v1985
        %v1987 = vsel %vm1817, %v1977, %v1986
        %v1989 = vsel %vm612, %v1834, 0
        %v1992 = vsel %vm612, %v1843, 0
        %v1995 = vsel %vm612, %v1852, 0
        %v1998 = vsel %vm612, %v1861, 0
        %v2001 = vsel %vm612, %v1870, 0
        %v2004 = vsel %vm612, %v1879, 0
        %v2007 = vsel %vm612, %v1888, 0
        %v2010 = vsel %vm612, %v1897, 0
        %v2013 = vsel %vm612, %v1906, 0
        %v2016 = vsel %vm612, %v1915, 0
        %v2019 = vsel %vm612, %v1924, 0
        %v2022 = vsel %vm612, %v1933, 0
        %v2025 = vsel %vm612, %v1942, 0
        %v2028 = vsel %vm612, %v1951, 0
        %v2031 = vsel %vm612, %v1960, 0
        %v2034 = vsel %vm612, %v1969, 0
        %v2037 = vsel %vm612, %v1978, 0
        %v2040 = vsel %vm612, %v1987, 0
        %v2043 = vsel %vm667, %v287, 0
        %2045 = vmatprep.subr.bf16.mxu0 0
        %2046 = vmatpush1.bf16.msra.mxu0 %v2043
        %2047 = vmatprep.subr.bf16.mxu0 0
        %2048 = vmatpush1.bf16.msra.mxu0 0
        %2049 = vmatprep.subr.bf16.mxu0 0
        %2050 = vmatpush1.bf16.msra.mxu0 0
        %2051 = vmatprep.subr.bf16.mxu0 0
        %2052 = vmatpush1.bf16.msra.mxu0 0
        %2053 = vmatprep.subr.bf16.mxu0 0
        %2054 = vmatpush1.bf16.msra.mxu0 0
        %2055 = vmatprep.subr.bf16.mxu0 0
        %2056 = vmatpush1.bf16.msra.mxu0 0
        %2057 = vmatprep.subr.bf16.mxu0 0
        %2058 = vmatpush1.bf16.msra.mxu0 0
        %2059 = vmatprep.subr.bf16.mxu0 0
        %2060 = vmatpush1.bf16.msra.mxu0 0
        %2061 = vmatprep.subr.bf16.mxu0 0
        %2062 = vmatpush1.bf16.msra.mxu0 0
        %2063 = vmatprep.subr.bf16.mxu0 0
        %2064 = vmatpush1.bf16.msra.mxu0 0
        %2065 = vmatprep.subr.bf16.mxu0 0
        %2066 = vmatpush1.bf16.msra.mxu0 0
        %2067 = vmatprep.subr.bf16.mxu0 0
        %2068 = vmatpush1.bf16.msra.mxu0 0
        %2069 = vmatprep.subr.bf16.mxu0 0
        %2070 = vmatpush1.bf16.msra.mxu0 0
        %2071 = vmatprep.subr.bf16.mxu0 0
        %2072 = vmatpush1.bf16.msra.mxu0 0
        %2073 = vmatprep.subr.bf16.mxu0 0
        %2074 = vmatpush1.bf16.msra.mxu0 0
        %2075 = vmatprep.subr.bf16.mxu0 0
        %2076 = vmatpush1.bf16.msra.mxu0 0
        %2077 = vmatprep.mubr.bf16.mxu0 0
        %2078 = vmatmul.mubr.bf16.gmra.mrb[0].mxu0 %v1989
        %v2079 = vpop.f32.mrb[0].mxu0
        %v2080 = vadd.f32 0.0, %v2079
        %v2081 = vpop.f32.mrb[0].mxu0
        %v2082 = vpop.f32.mrb[0].mxu0
        %v2083 = vadd.f32 0.0, %v2082
        %v2084 = vpop.f32.mrb[0].mxu0
        %2085 = vmatprep.mubr.bf16.mxu0 0
        %2086 = vmatmul.mubr.bf16.gmra.mrb[0].mxu0 %v1992
        %v2087 = vpop.f32.mrb[0].mxu0
        %v2088 = vadd.f32 0.0, %v2087
        %v2089 = vpop.f32.mrb[0].mxu0
        %v2090 = vpop.f32.mrb[0].mxu0
        %v2091 = vadd.f32 0.0, %v2090
        %v2092 = vpop.f32.mrb[0].mxu0
        %2093 = vmatprep.mubr.bf16.mxu0 0
        %2094 = vmatmul.mubr.bf16.gmra.mrb[0].mxu0 %v1995
        %v2095 = vpop.f32.mrb[0].mxu0
        %v2096 = vadd.f32 0.0, %v2095
        %v2097 = vpop.f32.mrb[0].mxu0
        %v2098 = vpop.f32.mrb[0].mxu0
        %v2099 = vadd.f32 0.0, %v2098
        %v2100 = vpop.f32.mrb[0].mxu0
        %2101 = vmatprep.mubr.bf16.mxu0 0
        %2102 = vmatmul.mubr.bf16.gmra.mrb[0].mxu0 %v1998
        %v2103 = vpop.f32.mrb[0].mxu0
        %v2104 = vadd.f32 0.0, %v2103
        %v2105 = vpop.f32.mrb[0].mxu0
        %v2106 = vpop.f32.mrb[0].mxu0
        %v2107 = vadd.f32 0.0, %v2106
        %v2108 = vpop.f32.mrb[0].mxu0
        %2109 = vmatprep.mubr.bf16.mxu0 0
        %2110 = vmatmul.mubr.bf16.gmra.mrb[0].mxu0 %v2001
        %v2111 = vpop.f32.mrb[0].mxu0
        %v2112 = vadd.f32 0.0, %v2111
        %v2113 = vpop.f32.mrb[0].mxu0
        %v2114 = vpop.f32.mrb[0].mxu0
        %v2115 = vadd.f32 0.0, %v2114
        %v2116 = vpop.f32.mrb[0].mxu0
        %2117 = vmatprep.mubr.bf16.mxu0 0
        %2118 = vmatmul.mubr.bf16.gmra.mrb[0].mxu0 %v2004
        %v2119 = vpop.f32.mrb[0].mxu0
        %v2120 = vadd.f32 0.0, %v2119
        %v2121 = vpop.f32.mrb[0].mxu0
        %v2122 = vpop.f32.mrb[0].mxu0
        %v2123 = vadd.f32 0.0, %v2122
        %v2124 = vpop.f32.mrb[0].mxu0
        %2125 = vmatprep.mubr.bf16.mxu0 0
        %2126 = vmatmul.mubr.bf16.gmra.mrb[0].mxu0 %v2007
        %v2127 = vpop.f32.mrb[0].mxu0
        %v2128 = vadd.f32 0.0, %v2127
        %v2129 = vpop.f32.mrb[0].mxu0
        %v2130 = vpop.f32.mrb[0].mxu0
        %v2131 = vadd.f32 0.0, %v2130
        %v2132 = vpop.f32.mrb[0].mxu0
        %2133 = vmatprep.mubr.bf16.mxu0 0
        %2134 = vmatmul.mubr.bf16.gmra.mrb[0].mxu0 %v2010
        %v2135 = vpop.f32.mrb[0].mxu0
        %v2136 = vadd.f32 0.0, %v2135
        %v2137 = vpop.f32.mrb[0].mxu0
        %v2138 = vpop.f32.mrb[0].mxu0
        %v2139 = vadd.f32 0.0, %v2138
        %v2140 = vpop.f32.mrb[0].mxu0
        %2141 = vmatprep.mubr.bf16.mxu0 0
        %2142 = vmatmul.mubr.bf16.gmra.mrb[0].mxu0 %v2013
        %v2143 = vpop.f32.mrb[0].mxu0
        %v2144 = vadd.f32 0.0, %v2143
        %v2145 = vpop.f32.mrb[0].mxu0
        %v2146 = vpop.f32.mrb[0].mxu0
        %v2147 = vadd.f32 0.0, %v2146
        %v2148 = vpop.f32.mrb[0].mxu0
        %2149 = vmatprep.mubr.bf16.mxu0 0
        %2150 = vmatmul.mubr.bf16.gmra.mrb[0].mxu0 %v2016
        %v2151 = vpop.f32.mrb[0].mxu0
        %v2152 = vadd.f32 0.0, %v2151
        %v2153 = vpop.f32.mrb[0].mxu0
        %v2154 = vpop.f32.mrb[0].mxu0
        %v2155 = vadd.f32 0.0, %v2154
        %v2156 = vpop.f32.mrb[0].mxu0
        %2157 = vmatprep.mubr.bf16.mxu0 0
        %2158 = vmatmul.mubr.bf16.gmra.mrb[0].mxu0 %v2019
        %v2159 = vpop.f32.mrb[0].mxu0
        %v2160 = vadd.f32 0.0, %v2159
        %v2161 = vpop.f32.mrb[0].mxu0
        %v2162 = vpop.f32.mrb[0].mxu0
        %v2163 = vadd.f32 0.0, %v2162
        %v2164 = vpop.f32.mrb[0].mxu0
        %2165 = vmatprep.mubr.bf16.mxu0 0
        %2166 = vmatmul.mubr.bf16.gmra.mrb[0].mxu0 %v2022
        %v2167 = vpop.f32.mrb[0].mxu0
        %v2168 = vadd.f32 0.0, %v2167
        %v2169 = vpop.f32.mrb[0].mxu0
        %v2170 = vpop.f32.mrb[0].mxu0
        %v2171 = vadd.f32 0.0, %v2170
        %v2172 = vpop.f32.mrb[0].mxu0
        %2173 = vmatprep.mubr.bf16.mxu0 0
        %2174 = vmatmul.mubr.bf16.gmra.mrb[0].mxu0 %v2025
        %v2175 = vpop.f32.mrb[0].mxu0
        %v2176 = vadd.f32 0.0, %v2175
        %v2177 = vpop.f32.mrb[0].mxu0
        %v2178 = vpop.f32.mrb[0].mxu0
        %v2179 = vadd.f32 0.0, %v2178
        %v2180 = vpop.f32.mrb[0].mxu0
        %2181 = vmatprep.mubr.bf16.mxu0 0
        %2182 = vmatmul.mubr.bf16.gmra.mrb[0].mxu0 %v2028
        %v2183 = vpop.f32.mrb[0].mxu0
        %v2184 = vadd.f32 0.0, %v2183
        %v2185 = vpop.f32.mrb[0].mxu0
        %v2186 = vpop.f32.mrb[0].mxu0
        %v2187 = vadd.f32 0.0, %v2186
        %v2188 = vpop.f32.mrb[0].mxu0
        %2189 = vmatprep.mubr.bf16.mxu0 0
        %2190 = vmatmul.mubr.bf16.gmra.mrb[0].mxu0 %v2031
        %v2191 = vpop.f32.mrb[0].mxu0
        %v2192 = vadd.f32 0.0, %v2191
        %v2193 = vpop.f32.mrb[0].mxu0
        %v2194 = vpop.f32.mrb[0].mxu0
        %v2195 = vadd.f32 0.0, %v2194
        %v2196 = vpop.f32.mrb[0].mxu0
        %2197 = vmatprep.mubr.bf16.mxu0 0
        %2198 = vmatmul.mubr.bf16.gmra.mrb[0].mxu0 %v2034
        %v2199 = vpop.f32.mrb[0].mxu0
        %v2200 = vadd.f32 0.0, %v2199
        %v2201 = vpop.f32.mrb[0].mxu0
        %v2202 = vpop.f32.mrb[0].mxu0
        %v2203 = vadd.f32 0.0, %v2202
        %v2204 = vpop.f32.mrb[0].mxu0
        %2205 = vmatprep.mubr.bf16.mxu0 0
        %2206 = vmatmul.mubr.bf16.gmra.mrb[0].mxu0 %v2037
        %v2207 = vpop.f32.mrb[0].mxu0
        %v2208 = vadd.f32 0.0, %v2207
        %v2209 = vpop.f32.mrb[0].mxu0
        %v2210 = vpop.f32.mrb[0].mxu0
        %v2211 = vadd.f32 0.0, %v2210
        %v2212 = vpop.f32.mrb[0].mxu0
        %2213 = vmatprep.mubr.bf16.mxu0 0
        %2214 = vmatmul.mubr.bf16.gmra.mrb[0].mxu0 %v2040
        %v2215 = vpop.f32.mrb[0].mxu0
        %v2216 = vadd.f32 0.0, %v2215
        %v2217 = vpop.f32.mrb[0].mxu0
        %v2218 = vpop.f32.mrb[0].mxu0
        %v2219 = vadd.f32 0.0, %v2218
        %v2220 = vpop.f32.mrb[0].mxu0
        %2221 = vdwg.mxu0
        %v2222 = vadd.f32 %v1777, %v2080
        %v2223 = vadd.f32 %v1778, %v2083
        %v2224 = vadd.f32 %v1779, %v2088
        %v2225 = vadd.f32 %v1780, %v2091
        %v2226 = vadd.f32 %v1781, %v2096
        %v2227 = vadd.f32 %v1782, %v2099
        %v2228 = vadd.f32 %v1783, %v2104
        %v2229 = vadd.f32 %v1784, %v2107
        %v2230 = vadd.f32 %v1785, %v2112
        %v2231 = vadd.f32 %v1786, %v2115
        %v2232 = vadd.f32 %v1787, %v2120
        %v2233 = vadd.f32 %v1788, %v2123
        %v2234 = vadd.f32 %v1789, %v2128
        %v2235 = vadd.f32 %v1790, %v2131
        %v2236 = vadd.f32 %v1791, %v2136
        %v2237 = vadd.f32 %v1792, %v2139
        %v2238 = vadd.f32 %v1793, %v2144
        %v2239 = vadd.f32 %v1794, %v2147
        %v2240 = vadd.f32 %v1795, %v2152
        %v2241 = vadd.f32 %v1796, %v2155
        %v2242 = vadd.f32 %v1797, %v2160
        %v2243 = vadd.f32 %v1798, %v2163
        %v2244 = vadd.f32 %v1799, %v2168
        %v2245 = vadd.f32 %v1800, %v2171
        %v2246 = vadd.f32 %v1801, %v2176
        %v2247 = vadd.f32 %v1802, %v2179
        %v2248 = vadd.f32 %v1803, %v2184
        %v2249 = vadd.f32 %v1804, %v2187
        %v2250 = vadd.f32 %v1805, %v2192
        %v2251 = vadd.f32 %v1806, %v2195
        %v2252 = vadd.f32 %v1807, %v2200
        %v2253 = vadd.f32 %v1808, %v2203
        %v2254 = vadd.f32 %v1809, %v2208
        %v2255 = vadd.f32 %v1810, %v2211
        %v2256 = vadd.f32 %v1811, %v2216
        %v2257 = vadd.f32 %v1812, %v2219
        %v2258 = vld [vmem:[%s267 + $0x8] sm:$0xc]
        %v2260 = vunpack.c.l.b16 %v2258
        %v2261 = vpack.c.b16 %v1451, %v2260
        %vm2262 = vcmask 1045504
        %v2263 = vrot.slane %v2261, 2
        %v2264 = vrot.slane %v1488, 2
        %v2265 = vsel %vm2262, %v2263, %v2264
        %v2266 = vrot.slane %v1489, 2
        %v2267 = vsel %vm2262, %v2264, %v2266
        %v2268 = vrot.slane %v1490, 2
        %v2269 = vsel %vm2262, %v2266, %v2268
        %v2270 = vrot.slane %v1491, 2
        %v2271 = vsel %vm2262, %v2268, %v2270
        %v2272 = vrot.slane %v1492, 2
        %v2273 = vsel %vm2262, %v2270, %v2272
        %v2274 = vrot.slane %v1493, 2
        %v2275 = vsel %vm2262, %v2272, %v2274
        %v2276 = vrot.slane %v1494, 2
        %v2277 = vsel %vm2262, %v2274, %v2276
        %v2278 = vrot.slane %v1495, 2
        %v2279 = vsel %vm2262, %v2276, %v2278
        %v2280 = vrot.slane %v1496, 2
        %v2281 = vsel %vm2262, %v2278, %v2280
        %v2282 = vrot.slane %v1497, 2
        %v2283 = vsel %vm2262, %v2280, %v2282
        %v2284 = vrot.slane %v1498, 2
        %v2285 = vsel %vm2262, %v2282, %v2284
        %v2286 = vrot.slane %v1499, 2
        %v2287 = vsel %vm2262, %v2284, %v2286
        %v2288 = vrot.slane %v1500, 2
        %v2289 = vsel %vm2262, %v2286, %v2288
        %v2290 = vrot.slane %v1501, 2
        %v2291 = vsel %vm2262, %v2288, %v2290
        %v2292 = vrot.slane %v1502, 2
        %v2293 = vsel %vm2262, %v2290, %v2292
        %v2294 = vrot.slane %v1503, 2
        %v2295 = vsel %vm2262, %v2292, %v2294
        %v2296 = vrot.slane %v1504, 2
        %v2297 = vsel %vm2262, %v2294, %v2296
        %v2298 = vrot.slane %v1816, 2
        %v2299 = vsel %vm2262, %v2296, %v2298
        %v2301 = vsel %vm612, %v2265, 0
        %v2304 = vsel %vm612, %v2267, 0
        %v2307 = vsel %vm612, %v2269, 0
        %v2310 = vsel %vm612, %v2271, 0
        %v2313 = vsel %vm612, %v2273, 0
        %v2316 = vsel %vm612, %v2275, 0
        %v2319 = vsel %vm612, %v2277, 0
        %v2322 = vsel %vm612, %v2279, 0
        %v2325 = vsel %vm612, %v2281, 0
        %v2328 = vsel %vm612, %v2283, 0
        %v2331 = vsel %vm612, %v2285, 0
        %v2334 = vsel %vm612, %v2287, 0
        %v2337 = vsel %vm612, %v2289, 0
        %v2340 = vsel %vm612, %v2291, 0
        %v2343 = vsel %vm612, %v2293, 0
        %v2346 = vsel %vm612, %v2295, 0
        %v2349 = vsel %vm612, %v2297, 0
        %v2352 = vsel %vm612, %v2299, 0
        %v2355 = vsel %vm667, %v289, 0
        %2357 = vmatprep.subr.bf16.mxu0 0
        %2358 = vmatpush1.bf16.msra.mxu0 %v2355
        %2359 = vmatprep.subr.bf16.mxu0 0
        %2360 = vmatpush1.bf16.msra.mxu0 0
        %2361 = vmatprep.subr.bf16.mxu0 0
        %2362 = vmatpush1.bf16.msra.mxu0 0
        %2363 = vmatprep.subr.bf16.mxu0 0
        %2364 = vmatpush1.bf16.msra.mxu0 0
        %2365 = vmatprep.subr.bf16.mxu0 0
        %2366 = vmatpush1.bf16.msra.mxu0 0
        %2367 = vmatprep.subr.bf16.mxu0 0
        %2368 = vmatpush1.bf16.msra.mxu0 0
        %2369 = vmatprep.subr.bf16.mxu0 0
        %2370 = vmatpush1.bf16.msra.mxu0 0
        %2371 = vmatprep.subr.bf16.mxu0 0
        %2372 = vmatpush1.bf16.msra.mxu0 0
        %2373 = vmatprep.subr.bf16.mxu0 0
        %2374 = vmatpush1.bf16.msra.mxu0 0
        %2375 = vmatprep.subr.bf16.mxu0 0
        %2376 = vmatpush1.bf16.msra.mxu0 0
        %2377 = vmatprep.subr.bf16.mxu0 0
        %2378 = vmatpush1.bf16.msra.mxu0 0
        %2379 = vmatprep.subr.bf16.mxu0 0
        %2380 = vmatpush1.bf16.msra.mxu0 0
        %2381 = vmatprep.subr.bf16.mxu0 0
        %2382 = vmatpush1.bf16.msra.mxu0 0
        %2383 = vmatprep.subr.bf16.mxu0 0
        %2384 = vmatpush1.bf16.msra.mxu0 0
        %2385 = vmatprep.subr.bf16.mxu0 0
        %2386 = vmatpush1.bf16.msra.mxu0 0
        %2387 = vmatprep.subr.bf16.mxu0 0
        %2388 = vmatpush1.bf16.msra.mxu0 0
        %2389 = vmatprep.mubr.bf16.mxu0 0
        %2390 = vmatmul.mubr.bf16.gmra.mrb[0].mxu0 %v2301
        %v2391 = vpop.f32.mrb[0].mxu0
        %v2392 = vadd.f32 0.0, %v2391
        %v2393 = vpop.f32.mrb[0].mxu0
        %v2394 = vpop.f32.mrb[0].mxu0
        %v2395 = vadd.f32 0.0, %v2394
        %v2396 = vpop.f32.mrb[0].mxu0
        %2397 = vmatprep.mubr.bf16.mxu0 0
        %2398 = vmatmul.mubr.bf16.gmra.mrb[0].mxu0 %v2304
        %v2399 = vpop.f32.mrb[0].mxu0
        %v2400 = vadd.f32 0.0, %v2399
        %v2401 = vpop.f32.mrb[0].mxu0
        %v2402 = vpop.f32.mrb[0].mxu0
        %v2403 = vadd.f32 0.0, %v2402
        %v2404 = vpop.f32.mrb[0].mxu0
        %2405 = vmatprep.mubr.bf16.mxu0 0
        %2406 = vmatmul.mubr.bf16.gmra.mrb[0].mxu0 %v2307
        %v2407 = vpop.f32.mrb[0].mxu0
        %v2408 = vadd.f32 0.0, %v2407
        %v2409 = vpop.f32.mrb[0].mxu0
        %v2410 = vpop.f32.mrb[0].mxu0
        %v2411 = vadd.f32 0.0, %v2410
        %v2412 = vpop.f32.mrb[0].mxu0
        %2413 = vmatprep.mubr.bf16.mxu0 0
        %2414 = vmatmul.mubr.bf16.gmra.mrb[0].mxu0 %v2310
        %v2415 = vpop.f32.mrb[0].mxu0
        %v2416 = vadd.f32 0.0, %v2415
        %v2417 = vpop.f32.mrb[0].mxu0
        %v2418 = vpop.f32.mrb[0].mxu0
        %v2419 = vadd.f32 0.0, %v2418
        %v2420 = vpop.f32.mrb[0].mxu0
        %2421 = vmatprep.mubr.bf16.mxu0 0
        %2422 = vmatmul.mubr.bf16.gmra.mrb[0].mxu0 %v2313
        %v2423 = vpop.f32.mrb[0].mxu0
        %v2424 = vadd.f32 0.0, %v2423
        %v2425 = vpop.f32.mrb[0].mxu0
        %v2426 = vpop.f32.mrb[0].mxu0
        %v2427 = vadd.f32 0.0, %v2426
        %v2428 = vpop.f32.mrb[0].mxu0
        %2429 = vmatprep.mubr.bf16.mxu0 0
        %2430 = vmatmul.mubr.bf16.gmra.mrb[0].mxu0 %v2316
        %v2431 = vpop.f32.mrb[0].mxu0
        %v2432 = vadd.f32 0.0, %v2431
        %v2433 = vpop.f32.mrb[0].mxu0
        %v2434 = vpop.f32.mrb[0].mxu0
        %v2435 = vadd.f32 0.0, %v2434
        %v2436 = vpop.f32.mrb[0].mxu0
        %2437 = vmatprep.mubr.bf16.mxu0 0
        %2438 = vmatmul.mubr.bf16.gmra.mrb[0].mxu0 %v2319
        %v2439 = vpop.f32.mrb[0].mxu0
        %v2440 = vadd.f32 0.0, %v2439
        %v2441 = vpop.f32.mrb[0].mxu0
        %v2442 = vpop.f32.mrb[0].mxu0
        %v2443 = vadd.f32 0.0, %v2442
        %v2444 = vpop.f32.mrb[0].mxu0
        %2445 = vmatprep.mubr.bf16.mxu0 0
        %2446 = vmatmul.mubr.bf16.gmra.mrb[0].mxu0 %v2322
        %v2447 = vpop.f32.mrb[0].mxu0
        %v2448 = vadd.f32 0.0, %v2447
        %v2449 = vpop.f32.mrb[0].mxu0
        %v2450 = vpop.f32.mrb[0].mxu0
        %v2451 = vadd.f32 0.0, %v2450
        %v2452 = vpop.f32.mrb[0].mxu0
        %2453 = vmatprep.mubr.bf16.mxu0 0
        %2454 = vmatmul.mubr.bf16.gmra.mrb[0].mxu0 %v2325
        %v2455 = vpop.f32.mrb[0].mxu0
        %v2456 = vadd.f32 0.0, %v2455
        %v2457 = vpop.f32.mrb[0].mxu0
        %v2458 = vpop.f32.mrb[0].mxu0
        %v2459 = vadd.f32 0.0, %v2458
        %v2460 = vpop.f32.mrb[0].mxu0
        %2461 = vmatprep.mubr.bf16.mxu0 0
        %2462 = vmatmul.mubr.bf16.gmra.mrb[0].mxu0 %v2328
        %v2463 = vpop.f32.mrb[0].mxu0
        %v2464 = vadd.f32 0.0, %v2463
        %v2465 = vpop.f32.mrb[0].mxu0
        %v2466 = vpop.f32.mrb[0].mxu0
        %v2467 = vadd.f32 0.0, %v2466
        %v2468 = vpop.f32.mrb[0].mxu0
        %2469 = vmatprep.mubr.bf16.mxu0 0
        %2470 = vmatmul.mubr.bf16.gmra.mrb[0].mxu0 %v2331
        %v2471 = vpop.f32.mrb[0].mxu0
        %v2472 = vadd.f32 0.0, %v2471
        %v2473 = vpop.f32.mrb[0].mxu0
        %v2474 = vpop.f32.mrb[0].mxu0
        %v2475 = vadd.f32 0.0, %v2474
        %v2476 = vpop.f32.mrb[0].mxu0
        %2477 = vmatprep.mubr.bf16.mxu0 0
        %2478 = vmatmul.mubr.bf16.gmra.mrb[0].mxu0 %v2334
        %v2479 = vpop.f32.mrb[0].mxu0
        %v2480 = vadd.f32 0.0, %v2479
        %v2481 = vpop.f32.mrb[0].mxu0
        %v2482 = vpop.f32.mrb[0].mxu0
        %v2483 = vadd.f32 0.0, %v2482
        %v2484 = vpop.f32.mrb[0].mxu0
        %2485 = vmatprep.mubr.bf16.mxu0 0
        %2486 = vmatmul.mubr.bf16.gmra.mrb[0].mxu0 %v2337
        %v2487 = vpop.f32.mrb[0].mxu0
        %v2488 = vadd.f32 0.0, %v2487
        %v2489 = vpop.f32.mrb[0].mxu0
        %v2490 = vpop.f32.mrb[0].mxu0
        %v2491 = vadd.f32 0.0, %v2490
        %v2492 = vpop.f32.mrb[0].mxu0
        %2493 = vmatprep.mubr.bf16.mxu0 0
        %2494 = vmatmul.mubr.bf16.gmra.mrb[0].mxu0 %v2340
        %v2495 = vpop.f32.mrb[0].mxu0
        %v2496 = vadd.f32 0.0, %v2495
        %v2497 = vpop.f32.mrb[0].mxu0
        %v2498 = vpop.f32.mrb[0].mxu0
        %v2499 = vadd.f32 0.0, %v2498
        %v2500 = vpop.f32.mrb[0].mxu0
        %2501 = vmatprep.mubr.bf16.mxu0 0
        %2502 = vmatmul.mubr.bf16.gmra.mrb[0].mxu0 %v2343
        %v2503 = vpop.f32.mrb[0].mxu0
        %v2504 = vadd.f32 0.0, %v2503
        %v2505 = vpop.f32.mrb[0].mxu0
        %v2506 = vpop.f32.mrb[0].mxu0
        %v2507 = vadd.f32 0.0, %v2506
        %v2508 = vpop.f32.mrb[0].mxu0
        %2509 = vmatprep.mubr.bf16.mxu0 0
        %2510 = vmatmul.mubr.bf16.gmra.mrb[0].mxu0 %v2346
        %v2511 = vpop.f32.mrb[0].mxu0
        %v2512 = vadd.f32 0.0, %v2511
        %v2513 = vpop.f32.mrb[0].mxu0
        %v2514 = vpop.f32.mrb[0].mxu0
        %v2515 = vadd.f32 0.0, %v2514
        %v2516 = vpop.f32.mrb[0].mxu0
        %2517 = vmatprep.mubr.bf16.mxu0 0
        %2518 = vmatmul.mubr.bf16.gmra.mrb[0].mxu0 %v2349
        %v2519 = vpop.f32.mrb[0].mxu0
        %v2520 = vadd.f32 0.0, %v2519
        %v2521 = vpop.f32.mrb[0].mxu0
        %v2522 = vpop.f32.mrb[0].mxu0
        %v2523 = vadd.f32 0.0, %v2522
        %v2524 = vpop.f32.mrb[0].mxu0
        %2525 = vmatprep.mubr.bf16.mxu0 0
        %2526 = vmatmul.mubr.bf16.gmra.mrb[0].mxu0 %v2352
        %v2527 = vpop.f32.mrb[0].mxu0
        %v2528 = vadd.f32 0.0, %v2527
        %v2529 = vpop.f32.mrb[0].mxu0
        %v2530 = vpop.f32.mrb[0].mxu0
        %v2531 = vadd.f32 0.0, %v2530
        %v2532 = vpop.f32.mrb[0].mxu0
        %2533 = vdwg.mxu0
        %v2534 = vadd.f32 %v2222, %v2392
        %v2535 = vadd.f32 %v2223, %v2395
        %v2536 = vadd.f32 %v2224, %v2400
        %v2537 = vadd.f32 %v2225, %v2403
        %v2538 = vadd.f32 %v2226, %v2408
        %v2539 = vadd.f32 %v2227, %v2411
        %v2540 = vadd.f32 %v2228, %v2416
        %v2541 = vadd.f32 %v2229, %v2419
        %v2542 = vadd.f32 %v2230, %v2424
        %v2543 = vadd.f32 %v2231, %v2427
        %v2544 = vadd.f32 %v2232, %v2432
        %v2545 = vadd.f32 %v2233, %v2435
        %v2546 = vadd.f32 %v2234, %v2440
        %v2547 = vadd.f32 %v2235, %v2443
        %v2548 = vadd.f32 %v2236, %v2448
        %v2549 = vadd.f32 %v2237, %v2451
        %v2550 = vadd.f32 %v2238, %v2456
        %v2551 = vadd.f32 %v2239, %v2459
        %v2552 = vadd.f32 %v2240, %v2464
        %v2553 = vadd.f32 %v2241, %v2467
        %v2554 = vadd.f32 %v2242, %v2472
        %v2555 = vadd.f32 %v2243, %v2475
        %v2556 = vadd.f32 %v2244, %v2480
        %v2557 = vadd.f32 %v2245, %v2483
        %v2558 = vadd.f32 %v2246, %v2488
        %v2559 = vadd.f32 %v2247, %v2491
        %v2560 = vadd.f32 %v2248, %v2496
        %v2561 = vadd.f32 %v2249, %v2499
        %v2562 = vadd.f32 %v2250, %v2504
        %v2563 = vadd.f32 %v2251, %v2507
        %v2564 = vadd.f32 %v2252, %v2512
        %v2565 = vadd.f32 %v2253, %v2515
        %v2566 = vadd.f32 %v2254, %v2520
        %v2567 = vadd.f32 %v2255, %v2523
        %v2568 = vadd.f32 %v2256, %v2528
        %v2569 = vadd.f32 %v2257, %v2531
        %v2570 = vld [vmem:[%s267 + $0x10] sm:$0xc]
        %v2571 = vld [vmem:[%s267 + $0x14] sm:$0xf]
        %v2572 = vld [vmem:[%s267 + $0x18] sm:$0xf]
        %v2573 = vld [vmem:[%s267 + $0x1c] sm:$0xf]
        %v2574 = vld [vmem:[%s267 + $0x20] sm:$0xf]
        %v2575 = vld [vmem:[%s267 + $0x24] sm:$0xf]
        %v2576 = vld [vmem:[%s267 + $0x28] sm:$0xf]
        %v2577 = vld [vmem:[%s267 + $0x2c] sm:$0xf]
        %v2578 = vld [vmem:[%s267 + $0x30] sm:$0xf]
        %v2579 = vld [vmem:[%s267 + $0x34] sm:$0xf]
        %v2580 = vld [vmem:[%s267 + $0x38] sm:$0xf]
        %v2581 = vld [vmem:[%s267 + $0x3c] sm:$0xf]
        %v2582 = vld [vmem:[%s267 + $0x40] sm:$0xf]
        %v2583 = vld [vmem:[%s267 + $0x44] sm:$0xf]
        %v2584 = vld [vmem:[%s267 + $0x48] sm:$0xf]
        %v2585 = vld [vmem:[%s267 + $0x4c] sm:$0xf]
        %v2586 = vld [vmem:[%s267 + $0x50] sm:$0xf]
        %v2587 = vld [vmem:[%s267 + $0x54] sm:$0xf]
        %v2588 = vld [vmem:[%s267 + $0x58] sm:$0xf]
        %v2589 = vld [vmem:[%s267 + $0x5c] sm:$0xf]
        %v2590 = vld [vmem:[%s267 + $0x60] sm:$0xf]
        %v2591 = vld [vmem:[%s267 + $0x64] sm:$0xf]
        %v2592 = vld [vmem:[%s267 + $0x68] sm:$0xf]
        %v2593 = vld [vmem:[%s267 + $0x6c] sm:$0xf]
        %v2594 = vld [vmem:[%s267 + $0x70] sm:$0xf]
        %v2595 = vld [vmem:[%s267 + $0x74] sm:$0xf]
        %v2596 = vld [vmem:[%s267 + $0x78] sm:$0xf]
        %v2597 = vld [vmem:[%s267 + $0x7c] sm:$0xf]
        %v2598 = vld [vmem:[%s267 + $0x80] sm:$0xf]
        %v2599 = vld [vmem:[%s267 + $0x84] sm:$0xf]
        %v2600 = vld [vmem:[%s267 + $0x88] sm:$0xf]
        %v2601 = vld [vmem:[%s267 + $0x8c] sm:$0xf]
        %v2602 = vld [vmem:[%s267 + $0x90] sm:$0xf]
        %v2603 = vld [vmem:[%s267 + $0x94] sm:$0xf]
        %v2604 = vld [vmem:[%s267 + $0x98] sm:$0xf]
        %v2605 = vld [vmem:[%s267 + $0x9c] sm:$0xf]
        %v2606 = vld [vmem:[%s267 + $0xa0] sm:$0x3]
        %v2644 = vunpack.c.l.b16 %v2570
        %v2645 = vunpack.c.l.b16 %v2571
        %v2646 = vunpack.c.l.b16 %v2572
        %v2647 = vunpack.c.l.b16 %v2573
        %v2648 = vunpack.c.l.b16 %v2574
        %v2649 = vunpack.c.l.b16 %v2575
        %v2650 = vunpack.c.l.b16 %v2576
        %v2651 = vunpack.c.l.b16 %v2577
        %v2652 = vunpack.c.l.b16 %v2578
        %v2653 = vunpack.c.l.b16 %v2579
        %v2654 = vunpack.c.l.b16 %v2580
        %v2655 = vunpack.c.l.b16 %v2581
        %v2656 = vunpack.c.l.b16 %v2582
        %v2657 = vunpack.c.l.b16 %v2583
        %v2658 = vunpack.c.l.b16 %v2584
        %v2659 = vunpack.c.l.b16 %v2585
        %v2660 = vunpack.c.l.b16 %v2586
        %v2661 = vunpack.c.l.b16 %v2587
        %v2662 = vunpack.c.l.b16 %v2588
        %v2663 = vunpack.c.l.b16 %v2589
        %v2664 = vunpack.c.l.b16 %v2590
        %v2665 = vunpack.c.l.b16 %v2591
        %v2666 = vunpack.c.l.b16 %v2592
        %v2667 = vunpack.c.l.b16 %v2593
        %v2668 = vunpack.c.l.b16 %v2594
        %v2669 = vunpack.c.l.b16 %v2595
        %v2670 = vunpack.c.l.b16 %v2596
        %v2671 = vunpack.c.l.b16 %v2597
        %v2672 = vunpack.c.l.b16 %v2598
        %v2673 = vunpack.c.l.b16 %v2599
        %v2674 = vunpack.c.l.b16 %v2600
        %v2675 = vunpack.c.l.b16 %v2601
        %v2676 = vunpack.c.l.b16 %v2602
        %v2677 = vunpack.c.l.b16 %v2603
        %v2678 = vunpack.c.l.b16 %v2604
        %v2679 = vunpack.c.l.b16 %v2605
        %v2680 = vunpack.c.l.b16 %v2606
        %v2681 = vpack.c.b16 %v2645, %v2644
        %v2682 = vpack.c.b16 %v2647, %v2646
        %v2683 = vpack.c.b16 %v2649, %v2648
        %v2684 = vpack.c.b16 %v2651, %v2650
        %v2685 = vpack.c.b16 %v2653, %v2652
        %v2686 = vpack.c.b16 %v2655, %v2654
        %v2687 = vpack.c.b16 %v2657, %v2656
        %v2688 = vpack.c.b16 %v2659, %v2658
        %v2689 = vpack.c.b16 %v2661, %v2660
        %v2690 = vpack.c.b16 %v2663, %v2662
        %v2691 = vpack.c.b16 %v2665, %v2664
        %v2692 = vpack.c.b16 %v2667, %v2666
        %v2693 = vpack.c.b16 %v2669, %v2668
        %v2694 = vpack.c.b16 %v2671, %v2670
        %v2695 = vpack.c.b16 %v2673, %v2672
        %v2696 = vpack.c.b16 %v2675, %v2674
        %v2697 = vpack.c.b16 %v2677, %v2676
        %v2698 = vpack.c.b16 %v2679, %v2678
        %v2699 = vpack.c.b16 %v2680, %v2680
        %v2700 = vrot.slane %v2681, 2
        %v2701 = vrot.slane %v2682, 2
        %v2702 = vsel %vm2262, %v2700, %v2701
        %v2703 = vrot.slane %v2683, 2
        %v2704 = vsel %vm2262, %v2701, %v2703
        %v2705 = vrot.slane %v2684, 2
        %v2706 = vsel %vm2262, %v2703, %v2705
        %v2707 = vrot.slane %v2685, 2
        %v2708 = vsel %vm2262, %v2705, %v2707
        %v2709 = vrot.slane %v2686, 2
        %v2710 = vsel %vm2262, %v2707, %v2709
        %v2711 = vrot.slane %v2687, 2
        %v2712 = vsel %vm2262, %v2709, %v2711
        %v2713 = vrot.slane %v2688, 2
        %v2714 = vsel %vm2262, %v2711, %v2713
        %v2715 = vrot.slane %v2689, 2
        %v2716 = vsel %vm2262, %v2713, %v2715
        %v2717 = vrot.slane %v2690, 2
        %v2718 = vsel %vm2262, %v2715, %v2717
        %v2719 = vrot.slane %v2691, 2
        %v2720 = vsel %vm2262, %v2717, %v2719
        %v2721 = vrot.slane %v2692, 2
        %v2722 = vsel %vm2262, %v2719, %v2721
        %v2723 = vrot.slane %v2693, 2
        %v2724 = vsel %vm2262, %v2721, %v2723
        %v2725 = vrot.slane %v2694, 2
        %v2726 = vsel %vm2262, %v2723, %v2725
        %v2727 = vrot.slane %v2695, 2
        %v2728 = vsel %vm2262, %v2725, %v2727
        %v2729 = vrot.slane %v2696, 2
        %v2730 = vsel %vm2262, %v2727, %v2729
        %v2731 = vrot.slane %v2697, 2
        %v2732 = vsel %vm2262, %v2729, %v2731
        %v2733 = vrot.slane %v2698, 2
        %v2734 = vsel %vm2262, %v2731, %v2733
        %v2735 = vrot.slane %v2699, 2
        %v2736 = vsel %vm2262, %v2733, %v2735
        %v2738 = vsel %vm612, %v2702, 0
        %v2741 = vsel %vm612, %v2704, 0
        %v2744 = vsel %vm612, %v2706, 0
        %v2747 = vsel %vm612, %v2708, 0
        %v2750 = vsel %vm612, %v2710, 0
        %v2753 = vsel %vm612, %v2712, 0
        %v2756 = vsel %vm612, %v2714, 0
        %v2759 = vsel %vm612, %v2716, 0
        %v2762 = vsel %vm612, %v2718, 0
        %v2765 = vsel %vm612, %v2720, 0
        %v2768 = vsel %vm612, %v2722, 0
        %v2771 = vsel %vm612, %v2724, 0
        %v2774 = vsel %vm612, %v2726, 0
        %v2777 = vsel %vm612, %v2728, 0
        %v2780 = vsel %vm612, %v2730, 0
        %v2783 = vsel %vm612, %v2732, 0
        %v2786 = vsel %vm612, %v2734, 0
        %v2789 = vsel %vm612, %v2736, 0
        %v2792 = vsel %vm667, %v291, 0
        %2794 = vmatprep.subr.bf16.mxu0 0
        %2795 = vmatpush1.bf16.msra.mxu0 %v2792
        %2796 = vmatprep.subr.bf16.mxu0 0
        %2797 = vmatpush1.bf16.msra.mxu0 0
        %2798 = vmatprep.subr.bf16.mxu0 0
        %2799 = vmatpush1.bf16.msra.mxu0 0
        %2800 = vmatprep.subr.bf16.mxu0 0
        %2801 = vmatpush1.bf16.msra.mxu0 0
        %2802 = vmatprep.subr.bf16.mxu0 0
        %2803 = vmatpush1.bf16.msra.mxu0 0
        %2804 = vmatprep.subr.bf16.mxu0 0
        %2805 = vmatpush1.bf16.msra.mxu0 0
        %2806 = vmatprep.subr.bf16.mxu0 0
        %2807 = vmatpush1.bf16.msra.mxu0 0
        %2808 = vmatprep.subr.bf16.mxu0 0
        %2809 = vmatpush1.bf16.msra.mxu0 0
        %2810 = vmatprep.subr.bf16.mxu0 0
        %2811 = vmatpush1.bf16.msra.mxu0 0
        %2812 = vmatprep.subr.bf16.mxu0 0
        %2813 = vmatpush1.bf16.msra.mxu0 0
        %2814 = vmatprep.subr.bf16.mxu0 0
        %2815 = vmatpush1.bf16.msra.mxu0 0
        %2816 = vmatprep.subr.bf16.mxu0 0
        %2817 = vmatpush1.bf16.msra.mxu0 0
        %2818 = vmatprep.subr.bf16.mxu0 0
        %2819 = vmatpush1.bf16.msra.mxu0 0
        %2820 = vmatprep.subr.bf16.mxu0 0
        %2821 = vmatpush1.bf16.msra.mxu0 0
        %2822 = vmatprep.subr.bf16.mxu0 0
        %2823 = vmatpush1.bf16.msra.mxu0 0
        %2824 = vmatprep.subr.bf16.mxu0 0
        %2825 = vmatpush1.bf16.msra.mxu0 0
        %2826 = vmatprep.mubr.bf16.mxu0 0
        %2827 = vmatmul.mubr.bf16.gmra.mrb[0].mxu0 %v2738
        %v2828 = vpop.f32.mrb[0].mxu0
        %v2829 = vadd.f32 0.0, %v2828
        %v2830 = vpop.f32.mrb[0].mxu0
        %v2831 = vpop.f32.mrb[0].mxu0
        %v2832 = vadd.f32 0.0, %v2831
        %v2833 = vpop.f32.mrb[0].mxu0
        %2834 = vmatprep.mubr.bf16.mxu0 0
        %2835 = vmatmul.mubr.bf16.gmra.mrb[0].mxu0 %v2741
        %v2836 = vpop.f32.mrb[0].mxu0
        %v2837 = vadd.f32 0.0, %v2836
        %v2838 = vpop.f32.mrb[0].mxu0
        %v2839 = vpop.f32.mrb[0].mxu0
        %v2840 = vadd.f32 0.0, %v2839
        %v2841 = vpop.f32.mrb[0].mxu0
        %2842 = vmatprep.mubr.bf16.mxu0 0
        %2843 = vmatmul.mubr.bf16.gmra.mrb[0].mxu0 %v2744
        %v2844 = vpop.f32.mrb[0].mxu0
        %v2845 = vadd.f32 0.0, %v2844
        %v2846 = vpop.f32.mrb[0].mxu0
        %v2847 = vpop.f32.mrb[0].mxu0
        %v2848 = vadd.f32 0.0, %v2847
        %v2849 = vpop.f32.mrb[0].mxu0
        %2850 = vmatprep.mubr.bf16.mxu0 0
        %2851 = vmatmul.mubr.bf16.gmra.mrb[0].mxu0 %v2747
        %v2852 = vpop.f32.mrb[0].mxu0
        %v2853 = vadd.f32 0.0, %v2852
        %v2854 = vpop.f32.mrb[0].mxu0
        %v2855 = vpop.f32.mrb[0].mxu0
        %v2856 = vadd.f32 0.0, %v2855
        %v2857 = vpop.f32.mrb[0].mxu0
        %2858 = vmatprep.mubr.bf16.mxu0 0
        %2859 = vmatmul.mubr.bf16.gmra.mrb[0].mxu0 %v2750
        %v2860 = vpop.f32.mrb[0].mxu0
        %v2861 = vadd.f32 0.0, %v2860
        %v2862 = vpop.f32.mrb[0].mxu0
        %v2863 = vpop.f32.mrb[0].mxu0
        %v2864 = vadd.f32 0.0, %v2863
        %v2865 = vpop.f32.mrb[0].mxu0
        %2866 = vmatprep.mubr.bf16.mxu0 0
        %2867 = vmatmul.mubr.bf16.gmra.mrb[0].mxu0 %v2753
        %v2868 = vpop.f32.mrb[0].mxu0
        %v2869 = vadd.f32 0.0, %v2868
        %v2870 = vpop.f32.mrb[0].mxu0
        %v2871 = vpop.f32.mrb[0].mxu0
        %v2872 = vadd.f32 0.0, %v2871
        %v2873 = vpop.f32.mrb[0].mxu0
        %2874 = vmatprep.mubr.bf16.mxu0 0
        %2875 = vmatmul.mubr.bf16.gmra.mrb[0].mxu0 %v2756
        %v2876 = vpop.f32.mrb[0].mxu0
        %v2877 = vadd.f32 0.0, %v2876
        %v2878 = vpop.f32.mrb[0].mxu0
        %v2879 = vpop.f32.mrb[0].mxu0
        %v2880 = vadd.f32 0.0, %v2879
        %v2881 = vpop.f32.mrb[0].mxu0
        %2882 = vmatprep.mubr.bf16.mxu0 0
        %2883 = vmatmul.mubr.bf16.gmra.mrb[0].mxu0 %v2759
        %v2884 = vpop.f32.mrb[0].mxu0
        %v2885 = vadd.f32 0.0, %v2884
        %v2886 = vpop.f32.mrb[0].mxu0
        %v2887 = vpop.f32.mrb[0].mxu0
        %v2888 = vadd.f32 0.0, %v2887
        %v2889 = vpop.f32.mrb[0].mxu0
        %2890 = vmatprep.mubr.bf16.mxu0 0
        %2891 = vmatmul.mubr.bf16.gmra.mrb[0].mxu0 %v2762
        %v2892 = vpop.f32.mrb[0].mxu0
        %v2893 = vadd.f32 0.0, %v2892
        %v2894 = vpop.f32.mrb[0].mxu0
        %v2895 = vpop.f32.mrb[0].mxu0
        %v2896 = vadd.f32 0.0, %v2895
        %v2897 = vpop.f32.mrb[0].mxu0
        %2898 = vmatprep.mubr.bf16.mxu0 0
        %2899 = vmatmul.mubr.bf16.gmra.mrb[0].mxu0 %v2765
        %v2900 = vpop.f32.mrb[0].mxu0
        %v2901 = vadd.f32 0.0, %v2900
        %v2902 = vpop.f32.mrb[0].mxu0
        %v2903 = vpop.f32.mrb[0].mxu0
        %v2904 = vadd.f32 0.0, %v2903
        %v2905 = vpop.f32.mrb[0].mxu0
        %2906 = vmatprep.mubr.bf16.mxu0 0
        %2907 = vmatmul.mubr.bf16.gmra.mrb[0].mxu0 %v2768
        %v2908 = vpop.f32.mrb[0].mxu0
        %v2909 = vadd.f32 0.0, %v2908
        %v2910 = vpop.f32.mrb[0].mxu0
        %v2911 = vpop.f32.mrb[0].mxu0
        %v2912 = vadd.f32 0.0, %v2911
        %v2913 = vpop.f32.mrb[0].mxu0
        %2914 = vmatprep.mubr.bf16.mxu0 0
        %2915 = vmatmul.mubr.bf16.gmra.mrb[0].mxu0 %v2771
        %v2916 = vpop.f32.mrb[0].mxu0
        %v2917 = vadd.f32 0.0, %v2916
        %v2918 = vpop.f32.mrb[0].mxu0
        %v2919 = vpop.f32.mrb[0].mxu0
        %v2920 = vadd.f32 0.0, %v2919
        %v2921 = vpop.f32.mrb[0].mxu0
        %2922 = vmatprep.mubr.bf16.mxu0 0
        %2923 = vmatmul.mubr.bf16.gmra.mrb[0].mxu0 %v2774
        %v2924 = vpop.f32.mrb[0].mxu0
        %v2925 = vadd.f32 0.0, %v2924
        %v2926 = vpop.f32.mrb[0].mxu0
        %v2927 = vpop.f32.mrb[0].mxu0
        %v2928 = vadd.f32 0.0, %v2927
        %v2929 = vpop.f32.mrb[0].mxu0
        %2930 = vmatprep.mubr.bf16.mxu0 0
        %2931 = vmatmul.mubr.bf16.gmra.mrb[0].mxu0 %v2777
        %v2932 = vpop.f32.mrb[0].mxu0
        %v2933 = vadd.f32 0.0, %v2932
        %v2934 = vpop.f32.mrb[0].mxu0
        %v2935 = vpop.f32.mrb[0].mxu0
        %v2936 = vadd.f32 0.0, %v2935
        %v2937 = vpop.f32.mrb[0].mxu0
        %2938 = vmatprep.mubr.bf16.mxu0 0
        %2939 = vmatmul.mubr.bf16.gmra.mrb[0].mxu0 %v2780
        %v2940 = vpop.f32.mrb[0].mxu0
        %v2941 = vadd.f32 0.0, %v2940
        %v2942 = vpop.f32.mrb[0].mxu0
        %v2943 = vpop.f32.mrb[0].mxu0
        %v2944 = vadd.f32 0.0, %v2943
        %v2945 = vpop.f32.mrb[0].mxu0
        %2946 = vmatprep.mubr.bf16.mxu0 0
        %2947 = vmatmul.mubr.bf16.gmra.mrb[0].mxu0 %v2783
        %v2948 = vpop.f32.mrb[0].mxu0
        %v2949 = vadd.f32 0.0, %v2948
        %v2950 = vpop.f32.mrb[0].mxu0
        %v2951 = vpop.f32.mrb[0].mxu0
        %v2952 = vadd.f32 0.0, %v2951
        %v2953 = vpop.f32.mrb[0].mxu0
        %2954 = vmatprep.mubr.bf16.mxu0 0
        %2955 = vmatmul.mubr.bf16.gmra.mrb[0].mxu0 %v2786
        %v2956 = vpop.f32.mrb[0].mxu0
        %v2957 = vadd.f32 0.0, %v2956
        %v2958 = vpop.f32.mrb[0].mxu0
        %v2959 = vpop.f32.mrb[0].mxu0
        %v2960 = vadd.f32 0.0, %v2959
        %v2961 = vpop.f32.mrb[0].mxu0
        %2962 = vmatprep.mubr.bf16.mxu0 0
        %2963 = vmatmul.mubr.bf16.gmra.mrb[0].mxu0 %v2789
        %v2964 = vpop.f32.mrb[0].mxu0
        %v2965 = vadd.f32 0.0, %v2964
        %v2966 = vpop.f32.mrb[0].mxu0
        %v2967 = vpop.f32.mrb[0].mxu0
        %v2968 = vadd.f32 0.0, %v2967
        %v2969 = vpop.f32.mrb[0].mxu0
        %2970 = vdwg.mxu0
        %v2971 = vadd.f32 %v2534, %v2829
        %v2972 = vadd.f32 %v2535, %v2832
        %v2973 = vadd.f32 %v2536, %v2837
        %v2974 = vadd.f32 %v2537, %v2840
        %v2975 = vadd.f32 %v2538, %v2845
        %v2976 = vadd.f32 %v2539, %v2848
        %v2977 = vadd.f32 %v2540, %v2853
        %v2978 = vadd.f32 %v2541, %v2856
        %v2979 = vadd.f32 %v2542, %v2861
        %v2980 = vadd.f32 %v2543, %v2864
        %v2981 = vadd.f32 %v2544, %v2869
        %v2982 = vadd.f32 %v2545, %v2872
        %v2983 = vadd.f32 %v2546, %v2877
        %v2984 = vadd.f32 %v2547, %v2880
        %v2985 = vadd.f32 %v2548, %v2885
        %v2986 = vadd.f32 %v2549, %v2888
        %v2987 = vadd.f32 %v2550, %v2893
        %v2988 = vadd.f32 %v2551, %v2896
        %v2989 = vadd.f32 %v2552, %v2901
        %v2990 = vadd.f32 %v2553, %v2904
        %v2991 = vadd.f32 %v2554, %v2909
        %v2992 = vadd.f32 %v2555, %v2912
        %v2993 = vadd.f32 %v2556, %v2917
        %v2994 = vadd.f32 %v2557, %v2920
        %v2995 = vadd.f32 %v2558, %v2925
        %v2996 = vadd.f32 %v2559, %v2928
        %v2997 = vadd.f32 %v2560, %v2933
        %v2998 = vadd.f32 %v2561, %v2936
        %v2999 = vadd.f32 %v2562, %v2941
        %v3000 = vadd.f32 %v2563, %v2944
        %v3001 = vadd.f32 %v2564, %v2949
        %v3002 = vadd.f32 %v2565, %v2952
        %v3003 = vadd.f32 %v2566, %v2957
        %v3004 = vadd.f32 %v2567, %v2960
        %v3005 = vadd.f32 %v2568, %v2965
        %v3006 = vadd.f32 %v2569, %v2968
        %v3007 = vld [vmem:[%s267 + $0xa0] sm:$0x7]
        %v3009 = vunpack.c.l.b16 %v3007
        %v3010 = vpack.c.b16 %v3009, %v3009
        %vm3011 = vsmask.f32 5376
        %v3013 = vshrl.u32 %v2681, 16
        %v3015 = vrot.slane %v3013, 2
        %v3016 = vshll.u32 %v2681, 16
        %v3018 = vrot.slane %v3016, 3
        %v3019 = vor.u32 %v3015, %v3018
        %v3021 = vshrl.u32 %v2682, 16
        %v3023 = vrot.slane %v3021, 2
        %v3024 = vshll.u32 %v2682, 16
        %v3026 = vrot.slane %v3024, 3
        %v3027 = vor.u32 %v3023, %v3026
        %v3028 = vsel %vm3011, %v3019, %v3027
        %v3030 = vshrl.u32 %v2683, 16
        %v3032 = vrot.slane %v3030, 2
        %v3033 = vshll.u32 %v2683, 16
        %v3035 = vrot.slane %v3033, 3
        %v3036 = vor.u32 %v3032, %v3035
        %v3037 = vsel %vm3011, %v3027, %v3036
        %v3039 = vshrl.u32 %v2684, 16
        %v3041 = vrot.slane %v3039, 2
        %v3042 = vshll.u32 %v2684, 16
        %v3044 = vrot.slane %v3042, 3
        %v3045 = vor.u32 %v3041, %v3044
        %v3046 = vsel %vm3011, %v3036, %v3045
        %v3048 = vshrl.u32 %v2685, 16
        %v3050 = vrot.slane %v3048, 2
        %v3051 = vshll.u32 %v2685, 16
        %v3053 = vrot.slane %v3051, 3
        %v3054 = vor.u32 %v3050, %v3053
        %v3055 = vsel %vm3011, %v3045, %v3054
        %v3057 = vshrl.u32 %v2686, 16
        %v3059 = vrot.slane %v3057, 2
        %v3060 = vshll.u32 %v2686, 16
        %v3062 = vrot.slane %v3060, 3
        %v3063 = vor.u32 %v3059, %v3062
        %v3064 = vsel %vm3011, %v3054, %v3063
        %v3066 = vshrl.u32 %v2687, 16
        %v3068 = vrot.slane %v3066, 2
        %v3069 = vshll.u32 %v2687, 16
        %v3071 = vrot.slane %v3069, 3
        %v3072 = vor.u32 %v3068, %v3071
        %v3073 = vsel %vm3011, %v3063, %v3072
        %v3075 = vshrl.u32 %v2688, 16
        %v3077 = vrot.slane %v3075, 2
        %v3078 = vshll.u32 %v2688, 16
        %v3080 = vrot.slane %v3078, 3
        %v3081 = vor.u32 %v3077, %v3080
        %v3082 = vsel %vm3011, %v3072, %v3081
        %v3084 = vshrl.u32 %v2689, 16
        %v3086 = vrot.slane %v3084, 2
        %v3087 = vshll.u32 %v2689, 16
        %v3089 = vrot.slane %v3087, 3
        %v3090 = vor.u32 %v3086, %v3089
        %v3091 = vsel %vm3011, %v3081, %v3090
        %v3093 = vshrl.u32 %v2690, 16
        %v3095 = vrot.slane %v3093, 2
        %v3096 = vshll.u32 %v2690, 16
        %v3098 = vrot.slane %v3096, 3
        %v3099 = vor.u32 %v3095, %v3098
        %v3100 = vsel %vm3011, %v3090, %v3099
        %v3102 = vshrl.u32 %v2691, 16
        %v3104 = vrot.slane %v3102, 2
        %v3105 = vshll.u32 %v2691, 16
        %v3107 = vrot.slane %v3105, 3
        %v3108 = vor.u32 %v3104, %v3107
        %v3109 = vsel %vm3011, %v3099, %v3108
        %v3111 = vshrl.u32 %v2692, 16
        %v3113 = vrot.slane %v3111, 2
        %v3114 = vshll.u32 %v2692, 16
        %v3116 = vrot.slane %v3114, 3
        %v3117 = vor.u32 %v3113, %v3116
        %v3118 = vsel %vm3011, %v3108, %v3117
        %v3120 = vshrl.u32 %v2693, 16
        %v3122 = vrot.slane %v3120, 2
        %v3123 = vshll.u32 %v2693, 16
        %v3125 = vrot.slane %v3123, 3
        %v3126 = vor.u32 %v3122, %v3125
        %v3127 = vsel %vm3011, %v3117, %v3126
        %v3129 = vshrl.u32 %v2694, 16
        %v3131 = vrot.slane %v3129, 2
        %v3132 = vshll.u32 %v2694, 16
        %v3134 = vrot.slane %v3132, 3
        %v3135 = vor.u32 %v3131, %v3134
        %v3136 = vsel %vm3011, %v3126, %v3135
        %v3138 = vshrl.u32 %v2695, 16
        %v3140 = vrot.slane %v3138, 2
        %v3141 = vshll.u32 %v2695, 16
        %v3143 = vrot.slane %v3141, 3
        %v3144 = vor.u32 %v3140, %v3143
        %v3145 = vsel %vm3011, %v3135, %v3144
        %v3147 = vshrl.u32 %v2696, 16
        %v3149 = vrot.slane %v3147, 2
        %v3150 = vshll.u32 %v2696, 16
        %v3152 = vrot.slane %v3150, 3
        %v3153 = vor.u32 %v3149, %v3152
        %v3154 = vsel %vm3011, %v3144, %v3153
        %v3156 = vshrl.u32 %v2697, 16
        %v3158 = vrot.slane %v3156, 2
        %v3159 = vshll.u32 %v2697, 16
        %v3161 = vrot.slane %v3159, 3
        %v3162 = vor.u32 %v3158, %v3161
        %v3163 = vsel %vm3011, %v3153, %v3162
        %v3165 = vshrl.u32 %v2698, 16
        %v3167 = vrot.slane %v3165, 2
        %v3168 = vshll.u32 %v2698, 16
        %v3170 = vrot.slane %v3168, 3
        %v3171 = vor.u32 %v3167, %v3170
        %v3172 = vsel %vm3011, %v3162, %v3171
        %v3174 = vshrl.u32 %v3010, 16
        %v3176 = vrot.slane %v3174, 2
        %v3177 = vshll.u32 %v3010, 16
        %v3179 = vrot.slane %v3177, 3
        %v3180 = vor.u32 %v3176, %v3179
        %v3181 = vsel %vm3011, %v3171, %v3180
        %v3183 = vsel %vm612, %v3028, 0
        %v3186 = vsel %vm612, %v3037, 0
        %v3189 = vsel %vm612, %v3046, 0
        %v3192 = vsel %vm612, %v3055, 0
        %v3195 = vsel %vm612, %v3064, 0
        %v3198 = vsel %vm612, %v3073, 0
        %v3201 = vsel %vm612, %v3082, 0
        %v3204 = vsel %vm612, %v3091, 0
        %v3207 = vsel %vm612, %v3100, 0
        %v3210 = vsel %vm612, %v3109, 0
        %v3213 = vsel %vm612, %v3118, 0
        %v3216 = vsel %vm612, %v3127, 0
        %v3219 = vsel %vm612, %v3136, 0
        %v3222 = vsel %vm612, %v3145, 0
        %v3225 = vsel %vm612, %v3154, 0
        %v3228 = vsel %vm612, %v3163, 0
        %v3231 = vsel %vm612, %v3172, 0
        %v3234 = vsel %vm612, %v3181, 0
        %v3237 = vsel %vm667, %v293, 0
        %3239 = vmatprep.subr.bf16.mxu0 0
        %3240 = vmatpush1.bf16.msra.mxu0 %v3237
        %3241 = vmatprep.subr.bf16.mxu0 0
        %3242 = vmatpush1.bf16.msra.mxu0 0
        %3243 = vmatprep.subr.bf16.mxu0 0
        %3244 = vmatpush1.bf16.msra.mxu0 0
        %3245 = vmatprep.subr.bf16.mxu0 0
        %3246 = vmatpush1.bf16.msra.mxu0 0
        %3247 = vmatprep.subr.bf16.mxu0 0
        %3248 = vmatpush1.bf16.msra.mxu0 0
        %3249 = vmatprep.subr.bf16.mxu0 0
        %3250 = vmatpush1.bf16.msra.mxu0 0
        %3251 = vmatprep.subr.bf16.mxu0 0
        %3252 = vmatpush1.bf16.msra.mxu0 0
        %3253 = vmatprep.subr.bf16.mxu0 0
        %3254 = vmatpush1.bf16.msra.mxu0 0
        %3255 = vmatprep.subr.bf16.mxu0 0
        %3256 = vmatpush1.bf16.msra.mxu0 0
        %3257 = vmatprep.subr.bf16.mxu0 0
        %3258 = vmatpush1.bf16.msra.mxu0 0
        %3259 = vmatprep.subr.bf16.mxu0 0
        %3260 = vmatpush1.bf16.msra.mxu0 0
        %3261 = vmatprep.subr.bf16.mxu0 0
        %3262 = vmatpush1.bf16.msra.mxu0 0
        %3263 = vmatprep.subr.bf16.mxu0 0
        %3264 = vmatpush1.bf16.msra.mxu0 0
        %3265 = vmatprep.subr.bf16.mxu0 0
        %3266 = vmatpush1.bf16.msra.mxu0 0
        %3267 = vmatprep.subr.bf16.mxu0 0
        %3268 = vmatpush1.bf16.msra.mxu0 0
        %3269 = vmatprep.subr.bf16.mxu0 0
        %3270 = vmatpush1.bf16.msra.mxu0 0
        %3271 = vmatprep.mubr.bf16.mxu0 0
        %3272 = vmatmul.mubr.bf16.gmra.mrb[0].mxu0 %v3183
        %v3273 = vpop.f32.mrb[0].mxu0
        %v3274 = vadd.f32 0.0, %v3273
        %v3275 = vpop.f32.mrb[0].mxu0
        %v3276 = vpop.f32.mrb[0].mxu0
        %v3277 = vadd.f32 0.0, %v3276
        %v3278 = vpop.f32.mrb[0].mxu0
        %3279 = vmatprep.mubr.bf16.mxu0 0
        %3280 = vmatmul.mubr.bf16.gmra.mrb[0].mxu0 %v3186
        %v3281 = vpop.f32.mrb[0].mxu0
        %v3282 = vadd.f32 0.0, %v3281
        %v3283 = vpop.f32.mrb[0].mxu0
        %v3284 = vpop.f32.mrb[0].mxu0
        %v3285 = vadd.f32 0.0, %v3284
        %v3286 = vpop.f32.mrb[0].mxu0
        %3287 = vmatprep.mubr.bf16.mxu0 0
        %3288 = vmatmul.mubr.bf16.gmra.mrb[0].mxu0 %v3189
        %v3289 = vpop.f32.mrb[0].mxu0
        %v3290 = vadd.f32 0.0, %v3289
        %v3291 = vpop.f32.mrb[0].mxu0
        %v3292 = vpop.f32.mrb[0].mxu0
        %v3293 = vadd.f32 0.0, %v3292
        %v3294 = vpop.f32.mrb[0].mxu0
        %3295 = vmatprep.mubr.bf16.mxu0 0
        %3296 = vmatmul.mubr.bf16.gmra.mrb[0].mxu0 %v3192
        %v3297 = vpop.f32.mrb[0].mxu0
        %v3298 = vadd.f32 0.0, %v3297
        %v3299 = vpop.f32.mrb[0].mxu0
        %v3300 = vpop.f32.mrb[0].mxu0
        %v3301 = vadd.f32 0.0, %v3300
        %v3302 = vpop.f32.mrb[0].mxu0
        %3303 = vmatprep.mubr.bf16.mxu0 0
        %3304 = vmatmul.mubr.bf16.gmra.mrb[0].mxu0 %v3195
        %v3305 = vpop.f32.mrb[0].mxu0
        %v3306 = vadd.f32 0.0, %v3305
        %v3307 = vpop.f32.mrb[0].mxu0
        %v3308 = vpop.f32.mrb[0].mxu0
        %v3309 = vadd.f32 0.0, %v3308
        %v3310 = vpop.f32.mrb[0].mxu0
        %3311 = vmatprep.mubr.bf16.mxu0 0
        %3312 = vmatmul.mubr.bf16.gmra.mrb[0].mxu0 %v3198
        %v3313 = vpop.f32.mrb[0].mxu0
        %v3314 = vadd.f32 0.0, %v3313
        %v3315 = vpop.f32.mrb[0].mxu0
        %v3316 = vpop.f32.mrb[0].mxu0
        %v3317 = vadd.f32 0.0, %v3316
        %v3318 = vpop.f32.mrb[0].mxu0
        %3319 = vmatprep.mubr.bf16.mxu0 0
        %3320 = vmatmul.mubr.bf16.gmra.mrb[0].mxu0 %v3201
        %v3321 = vpop.f32.mrb[0].mxu0
        %v3322 = vadd.f32 0.0, %v3321
        %v3323 = vpop.f32.mrb[0].mxu0
        %v3324 = vpop.f32.mrb[0].mxu0
        %v3325 = vadd.f32 0.0, %v3324
        %v3326 = vpop.f32.mrb[0].mxu0
        %3327 = vmatprep.mubr.bf16.mxu0 0
        %3328 = vmatmul.mubr.bf16.gmra.mrb[0].mxu0 %v3204
        %v3329 = vpop.f32.mrb[0].mxu0
        %v3330 = vadd.f32 0.0, %v3329
        %v3331 = vpop.f32.mrb[0].mxu0
        %v3332 = vpop.f32.mrb[0].mxu0
        %v3333 = vadd.f32 0.0, %v3332
        %v3334 = vpop.f32.mrb[0].mxu0
        %3335 = vmatprep.mubr.bf16.mxu0 0
        %3336 = vmatmul.mubr.bf16.gmra.mrb[0].mxu0 %v3207
        %v3337 = vpop.f32.mrb[0].mxu0
        %v3338 = vadd.f32 0.0, %v3337
        %v3339 = vpop.f32.mrb[0].mxu0
        %v3340 = vpop.f32.mrb[0].mxu0
        %v3341 = vadd.f32 0.0, %v3340
        %v3342 = vpop.f32.mrb[0].mxu0
        %3343 = vmatprep.mubr.bf16.mxu0 0
        %3344 = vmatmul.mubr.bf16.gmra.mrb[0].mxu0 %v3210
        %v3345 = vpop.f32.mrb[0].mxu0
        %v3346 = vadd.f32 0.0, %v3345
        %v3347 = vpop.f32.mrb[0].mxu0
        %v3348 = vpop.f32.mrb[0].mxu0
        %v3349 = vadd.f32 0.0, %v3348
        %v3350 = vpop.f32.mrb[0].mxu0
        %3351 = vmatprep.mubr.bf16.mxu0 0
        %3352 = vmatmul.mubr.bf16.gmra.mrb[0].mxu0 %v3213
        %v3353 = vpop.f32.mrb[0].mxu0
        %v3354 = vadd.f32 0.0, %v3353
        %v3355 = vpop.f32.mrb[0].mxu0
        %v3356 = vpop.f32.mrb[0].mxu0
        %v3357 = vadd.f32 0.0, %v3356
        %v3358 = vpop.f32.mrb[0].mxu0
        %3359 = vmatprep.mubr.bf16.mxu0 0
        %3360 = vmatmul.mubr.bf16.gmra.mrb[0].mxu0 %v3216
        %v3361 = vpop.f32.mrb[0].mxu0
        %v3362 = vadd.f32 0.0, %v3361
        %v3363 = vpop.f32.mrb[0].mxu0
        %v3364 = vpop.f32.mrb[0].mxu0
        %v3365 = vadd.f32 0.0, %v3364
        %v3366 = vpop.f32.mrb[0].mxu0
        %3367 = vmatprep.mubr.bf16.mxu0 0
        %3368 = vmatmul.mubr.bf16.gmra.mrb[0].mxu0 %v3219
        %v3369 = vpop.f32.mrb[0].mxu0
        %v3370 = vadd.f32 0.0, %v3369
        %v3371 = vpop.f32.mrb[0].mxu0
        %v3372 = vpop.f32.mrb[0].mxu0
        %v3373 = vadd.f32 0.0, %v3372
        %v3374 = vpop.f32.mrb[0].mxu0
        %3375 = vmatprep.mubr.bf16.mxu0 0
        %3376 = vmatmul.mubr.bf16.gmra.mrb[0].mxu0 %v3222
        %v3377 = vpop.f32.mrb[0].mxu0
        %v3378 = vadd.f32 0.0, %v3377
        %v3379 = vpop.f32.mrb[0].mxu0
        %v3380 = vpop.f32.mrb[0].mxu0
        %v3381 = vadd.f32 0.0, %v3380
        %v3382 = vpop.f32.mrb[0].mxu0
        %3383 = vmatprep.mubr.bf16.mxu0 0
        %3384 = vmatmul.mubr.bf16.gmra.mrb[0].mxu0 %v3225
        %v3385 = vpop.f32.mrb[0].mxu0
        %v3386 = vadd.f32 0.0, %v3385
        %v3387 = vpop.f32.mrb[0].mxu0
        %v3388 = vpop.f32.mrb[0].mxu0
        %v3389 = vadd.f32 0.0, %v3388
        %v3390 = vpop.f32.mrb[0].mxu0
        %3391 = vmatprep.mubr.bf16.mxu0 0
        %3392 = vmatmul.mubr.bf16.gmra.mrb[0].mxu0 %v3228
        %v3393 = vpop.f32.mrb[0].mxu0
        %v3394 = vadd.f32 0.0, %v3393
        %v3395 = vpop.f32.mrb[0].mxu0
        %v3396 = vpop.f32.mrb[0].mxu0
        %v3397 = vadd.f32 0.0, %v3396
        %v3398 = vpop.f32.mrb[0].mxu0
        %3399 = vmatprep.mubr.bf16.mxu0 0
        %3400 = vmatmul.mubr.bf16.gmra.mrb[0].mxu0 %v3231
        %v3401 = vpop.f32.mrb[0].mxu0
        %v3402 = vadd.f32 0.0, %v3401
        %v3403 = vpop.f32.mrb[0].mxu0
        %v3404 = vpop.f32.mrb[0].mxu0
        %v3405 = vadd.f32 0.0, %v3404
        %v3406 = vpop.f32.mrb[0].mxu0
        %3407 = vmatprep.mubr.bf16.mxu0 0
        %3408 = vmatmul.mubr.bf16.gmra.mrb[0].mxu0 %v3234
        %v3409 = vpop.f32.mrb[0].mxu0
        %v3410 = vadd.f32 0.0, %v3409
        %v3411 = vpop.f32.mrb[0].mxu0
        %v3412 = vpop.f32.mrb[0].mxu0
        %v3413 = vadd.f32 0.0, %v3412
        %v3414 = vpop.f32.mrb[0].mxu0
        %3415 = vdwg.mxu0
        %v3416 = vadd.f32 %v2971, %v3274
        %v3417 = vadd.f32 %v2972, %v3277
        %v3418 = vadd.f32 %v2973, %v3282
        %v3419 = vadd.f32 %v2974, %v3285
        %v3420 = vadd.f32 %v2975, %v3290
        %v3421 = vadd.f32 %v2976, %v3293
        %v3422 = vadd.f32 %v2977, %v3298
        %v3423 = vadd.f32 %v2978, %v3301
        %v3424 = vadd.f32 %v2979, %v3306
        %v3425 = vadd.f32 %v2980, %v3309
        %v3426 = vadd.f32 %v2981, %v3314
        %v3427 = vadd.f32 %v2982, %v3317
        %v3428 = vadd.f32 %v2983, %v3322
        %v3429 = vadd.f32 %v2984, %v3325
        %v3430 = vadd.f32 %v2985, %v3330
        %v3431 = vadd.f32 %v2986, %v3333
        %v3432 = vadd.f32 %v2987, %v3338
        %v3433 = vadd.f32 %v2988, %v3341
        %v3434 = vadd.f32 %v2989, %v3346
        %v3435 = vadd.f32 %v2990, %v3349
        %v3436 = vadd.f32 %v2991, %v3354
        %v3437 = vadd.f32 %v2992, %v3357
        %v3438 = vadd.f32 %v2993, %v3362
        %v3439 = vadd.f32 %v2994, %v3365
        %v3440 = vadd.f32 %v2995, %v3370
        %v3441 = vadd.f32 %v2996, %v3373
        %v3442 = vadd.f32 %v2997, %v3378
        %v3443 = vadd.f32 %v2998, %v3381
        %v3444 = vadd.f32 %v2999, %v3386
        %v3445 = vadd.f32 %v3000, %v3389
        %v3446 = vadd.f32 %v3001, %v3394
        %v3447 = vadd.f32 %v3002, %v3397
        %v3448 = vadd.f32 %v3003, %v3402
        %v3449 = vadd.f32 %v3004, %v3405
        %v3450 = vadd.f32 %v3005, %v3410
        %v3451 = vadd.f32 %v3006, %v3413
        %v3452 = vld [vmem:[%s267 + $0x10] sm:$0x8]
        %v3454 = vunpack.c.l.b16 %v3452
        %v3455 = vpack.c.b16 %v2645, %v3454
        %vm3456 = vcmask 1044480
        %v3457 = vrot.slane %v3455, 3
        %v3458 = vrot.slane %v2682, 3
        %v3459 = vsel %vm3456, %v3457, %v3458
        %v3460 = vrot.slane %v2683, 3
        %v3461 = vsel %vm3456, %v3458, %v3460
        %v3462 = vrot.slane %v2684, 3
        %v3463 = vsel %vm3456, %v3460, %v3462
        %v3464 = vrot.slane %v2685, 3
        %v3465 = vsel %vm3456, %v3462, %v3464
        %v3466 = vrot.slane %v2686, 3
        %v3467 = vsel %vm3456, %v3464, %v3466
        %v3468 = vrot.slane %v2687, 3
        %v3469 = vsel %vm3456, %v3466, %v3468
        %v3470 = vrot.slane %v2688, 3
        %v3471 = vsel %vm3456, %v3468, %v3470
        %v3472 = vrot.slane %v2689, 3
        %v3473 = vsel %vm3456, %v3470, %v3472
        %v3474 = vrot.slane %v2690, 3
        %v3475 = vsel %vm3456, %v3472, %v3474
        %v3476 = vrot.slane %v2691, 3
        %v3477 = vsel %vm3456, %v3474, %v3476
        %v3478 = vrot.slane %v2692, 3
        %v3479 = vsel %vm3456, %v3476, %v3478
        %v3480 = vrot.slane %v2693, 3
        %v3481 = vsel %vm3456, %v3478, %v3480
        %v3482 = vrot.slane %v2694, 3
        %v3483 = vsel %vm3456, %v3480, %v3482
        %v3484 = vrot.slane %v2695, 3
        %v3485 = vsel %vm3456, %v3482, %v3484
        %v3486 = vrot.slane %v2696, 3
        %v3487 = vsel %vm3456, %v3484, %v3486
        %v3488 = vrot.slane %v2697, 3
        %v3489 = vsel %vm3456, %v3486, %v3488
        %v3490 = vrot.slane %v2698, 3
        %v3491 = vsel %vm3456, %v3488, %v3490
        %v3492 = vrot.slane %v3010, 3
        %v3493 = vsel %vm3456, %v3490, %v3492
        %v3495 = vsel %vm612, %v3459, 0
        %v3498 = vsel %vm612, %v3461, 0
        %v3501 = vsel %vm612, %v3463, 0
        %v3504 = vsel %vm612, %v3465, 0
        %v3507 = vsel %vm612, %v3467, 0
        %v3510 = vsel %vm612, %v3469, 0
        %v3513 = vsel %vm612, %v3471, 0
        %v3516 = vsel %vm612, %v3473, 0
        %v3519 = vsel %vm612, %v3475, 0
        %v3522 = vsel %vm612, %v3477, 0
        %v3525 = vsel %vm612, %v3479, 0
        %v3528 = vsel %vm612, %v3481, 0
        %v3531 = vsel %vm612, %v3483, 0
        %v3534 = vsel %vm612, %v3485, 0
        %v3537 = vsel %vm612, %v3487, 0
        %v3540 = vsel %vm612, %v3489, 0
        %v3543 = vsel %vm612, %v3491, 0
        %v3546 = vsel %vm612, %v3493, 0
        %v3549 = vsel %vm667, %v295, 0
        %3551 = vmatprep.subr.bf16.mxu0 0
        %3552 = vmatpush1.bf16.msra.mxu0 %v3549
        %3553 = vmatprep.subr.bf16.mxu0 0
        %3554 = vmatpush1.bf16.msra.mxu0 0
        %3555 = vmatprep.subr.bf16.mxu0 0
        %3556 = vmatpush1.bf16.msra.mxu0 0
        %3557 = vmatprep.subr.bf16.mxu0 0
        %3558 = vmatpush1.bf16.msra.mxu0 0
        %3559 = vmatprep.subr.bf16.mxu0 0
        %3560 = vmatpush1.bf16.msra.mxu0 0
        %3561 = vmatprep.subr.bf16.mxu0 0
        %3562 = vmatpush1.bf16.msra.mxu0 0
        %3563 = vmatprep.subr.bf16.mxu0 0
        %3564 = vmatpush1.bf16.msra.mxu0 0
        %3565 = vmatprep.subr.bf16.mxu0 0
        %3566 = vmatpush1.bf16.msra.mxu0 0
        %3567 = vmatprep.subr.bf16.mxu0 0
        %3568 = vmatpush1.bf16.msra.mxu0 0
        %3569 = vmatprep.subr.bf16.mxu0 0
        %3570 = vmatpush1.bf16.msra.mxu0 0
        %3571 = vmatprep.subr.bf16.mxu0 0
        %3572 = vmatpush1.bf16.msra.mxu0 0
        %3573 = vmatprep.subr.bf16.mxu0 0
        %3574 = vmatpush1.bf16.msra.mxu0 0
        %3575 = vmatprep.subr.bf16.mxu0 0
        %3576 = vmatpush1.bf16.msra.mxu0 0
        %3577 = vmatprep.subr.bf16.mxu0 0
        %3578 = vmatpush1.bf16.msra.mxu0 0
        %3579 = vmatprep.subr.bf16.mxu0 0
        %3580 = vmatpush1.bf16.msra.mxu0 0
        %3581 = vmatprep.subr.bf16.mxu0 0
        %3582 = vmatpush1.bf16.msra.mxu0 0
        %3583 = vmatprep.mubr.bf16.mxu0 0
        %3584 = vmatmul.mubr.bf16.gmra.mrb[0].mxu0 %v3495
        %v3585 = vpop.f32.mrb[0].mxu0
        %v3586 = vadd.f32 0.0, %v3585
        %v3587 = vpop.f32.mrb[0].mxu0
        %v3588 = vpop.f32.mrb[0].mxu0
        %v3589 = vadd.f32 0.0, %v3588
        %v3590 = vpop.f32.mrb[0].mxu0
        %3591 = vmatprep.mubr.bf16.mxu0 0
        %3592 = vmatmul.mubr.bf16.gmra.mrb[0].mxu0 %v3498
        %v3593 = vpop.f32.mrb[0].mxu0
        %v3594 = vadd.f32 0.0, %v3593
        %v3595 = vpop.f32.mrb[0].mxu0
        %v3596 = vpop.f32.mrb[0].mxu0
        %v3597 = vadd.f32 0.0, %v3596
        %v3598 = vpop.f32.mrb[0].mxu0
        %3599 = vmatprep.mubr.bf16.mxu0 0
        %3600 = vmatmul.mubr.bf16.gmra.mrb[0].mxu0 %v3501
        %v3601 = vpop.f32.mrb[0].mxu0
        %v3602 = vadd.f32 0.0, %v3601
        %v3603 = vpop.f32.mrb[0].mxu0
        %v3604 = vpop.f32.mrb[0].mxu0
        %v3605 = vadd.f32 0.0, %v3604
        %v3606 = vpop.f32.mrb[0].mxu0
        %3607 = vmatprep.mubr.bf16.mxu0 0
        %3608 = vmatmul.mubr.bf16.gmra.mrb[0].mxu0 %v3504
        %v3609 = vpop.f32.mrb[0].mxu0
        %v3610 = vadd.f32 0.0, %v3609
        %v3611 = vpop.f32.mrb[0].mxu0
        %v3612 = vpop.f32.mrb[0].mxu0
        %v3613 = vadd.f32 0.0, %v3612
        %v3614 = vpop.f32.mrb[0].mxu0
        %3615 = vmatprep.mubr.bf16.mxu0 0
        %3616 = vmatmul.mubr.bf16.gmra.mrb[0].mxu0 %v3507
        %v3617 = vpop.f32.mrb[0].mxu0
        %v3618 = vadd.f32 0.0, %v3617
        %v3619 = vpop.f32.mrb[0].mxu0
        %v3620 = vpop.f32.mrb[0].mxu0
        %v3621 = vadd.f32 0.0, %v3620
        %v3622 = vpop.f32.mrb[0].mxu0
        %3623 = vmatprep.mubr.bf16.mxu0 0
        %3624 = vmatmul.mubr.bf16.gmra.mrb[0].mxu0 %v3510
        %v3625 = vpop.f32.mrb[0].mxu0
        %v3626 = vadd.f32 0.0, %v3625
        %v3627 = vpop.f32.mrb[0].mxu0
        %v3628 = vpop.f32.mrb[0].mxu0
        %v3629 = vadd.f32 0.0, %v3628
        %v3630 = vpop.f32.mrb[0].mxu0
        %3631 = vmatprep.mubr.bf16.mxu0 0
        %3632 = vmatmul.mubr.bf16.gmra.mrb[0].mxu0 %v3513
        %v3633 = vpop.f32.mrb[0].mxu0
        %v3634 = vadd.f32 0.0, %v3633
        %v3635 = vpop.f32.mrb[0].mxu0
        %v3636 = vpop.f32.mrb[0].mxu0
        %v3637 = vadd.f32 0.0, %v3636
        %v3638 = vpop.f32.mrb[0].mxu0
        %3639 = vmatprep.mubr.bf16.mxu0 0
        %3640 = vmatmul.mubr.bf16.gmra.mrb[0].mxu0 %v3516
        %v3641 = vpop.f32.mrb[0].mxu0
        %v3642 = vadd.f32 0.0, %v3641
        %v3643 = vpop.f32.mrb[0].mxu0
        %v3644 = vpop.f32.mrb[0].mxu0
        %v3645 = vadd.f32 0.0, %v3644
        %v3646 = vpop.f32.mrb[0].mxu0
        %3647 = vmatprep.mubr.bf16.mxu0 0
        %3648 = vmatmul.mubr.bf16.gmra.mrb[0].mxu0 %v3519
        %v3649 = vpop.f32.mrb[0].mxu0
        %v3650 = vadd.f32 0.0, %v3649
        %v3651 = vpop.f32.mrb[0].mxu0
        %v3652 = vpop.f32.mrb[0].mxu0
        %v3653 = vadd.f32 0.0, %v3652
        %v3654 = vpop.f32.mrb[0].mxu0
        %3655 = vmatprep.mubr.bf16.mxu0 0
        %3656 = vmatmul.mubr.bf16.gmra.mrb[0].mxu0 %v3522
        %v3657 = vpop.f32.mrb[0].mxu0
        %v3658 = vadd.f32 0.0, %v3657
        %v3659 = vpop.f32.mrb[0].mxu0
        %v3660 = vpop.f32.mrb[0].mxu0
        %v3661 = vadd.f32 0.0, %v3660
        %v3662 = vpop.f32.mrb[0].mxu0
        %3663 = vmatprep.mubr.bf16.mxu0 0
        %3664 = vmatmul.mubr.bf16.gmra.mrb[0].mxu0 %v3525
        %v3665 = vpop.f32.mrb[0].mxu0
        %v3666 = vadd.f32 0.0, %v3665
        %v3667 = vpop.f32.mrb[0].mxu0
        %v3668 = vpop.f32.mrb[0].mxu0
        %v3669 = vadd.f32 0.0, %v3668
        %v3670 = vpop.f32.mrb[0].mxu0
        %3671 = vmatprep.mubr.bf16.mxu0 0
        %3672 = vmatmul.mubr.bf16.gmra.mrb[0].mxu0 %v3528
        %v3673 = vpop.f32.mrb[0].mxu0
        %v3674 = vadd.f32 0.0, %v3673
        %v3675 = vpop.f32.mrb[0].mxu0
        %v3676 = vpop.f32.mrb[0].mxu0
        %v3677 = vadd.f32 0.0, %v3676
        %v3678 = vpop.f32.mrb[0].mxu0
        %3679 = vmatprep.mubr.bf16.mxu0 0
        %3680 = vmatmul.mubr.bf16.gmra.mrb[0].mxu0 %v3531
        %v3681 = vpop.f32.mrb[0].mxu0
        %v3682 = vadd.f32 0.0, %v3681
        %v3683 = vpop.f32.mrb[0].mxu0
        %v3684 = vpop.f32.mrb[0].mxu0
        %v3685 = vadd.f32 0.0, %v3684
        %v3686 = vpop.f32.mrb[0].mxu0
        %3687 = vmatprep.mubr.bf16.mxu0 0
        %3688 = vmatmul.mubr.bf16.gmra.mrb[0].mxu0 %v3534
        %v3689 = vpop.f32.mrb[0].mxu0
        %v3690 = vadd.f32 0.0, %v3689
        %v3691 = vpop.f32.mrb[0].mxu0
        %v3692 = vpop.f32.mrb[0].mxu0
        %v3693 = vadd.f32 0.0, %v3692
        %v3694 = vpop.f32.mrb[0].mxu0
        %3695 = vmatprep.mubr.bf16.mxu0 0
        %3696 = vmatmul.mubr.bf16.gmra.mrb[0].mxu0 %v3537
        %v3697 = vpop.f32.mrb[0].mxu0
        %v3698 = vadd.f32 0.0, %v3697
        %v3699 = vpop.f32.mrb[0].mxu0
        %v3700 = vpop.f32.mrb[0].mxu0
        %v3701 = vadd.f32 0.0, %v3700
        %v3702 = vpop.f32.mrb[0].mxu0
        %3703 = vmatprep.mubr.bf16.mxu0 0
        %3704 = vmatmul.mubr.bf16.gmra.mrb[0].mxu0 %v3540
        %v3705 = vpop.f32.mrb[0].mxu0
        %v3706 = vadd.f32 0.0, %v3705
        %v3707 = vpop.f32.mrb[0].mxu0
        %v3708 = vpop.f32.mrb[0].mxu0
        %v3709 = vadd.f32 0.0, %v3708
        %v3710 = vpop.f32.mrb[0].mxu0
        %3711 = vmatprep.mubr.bf16.mxu0 0
        %3712 = vmatmul.mubr.bf16.gmra.mrb[0].mxu0 %v3543
        %v3713 = vpop.f32.mrb[0].mxu0
        %v3714 = vadd.f32 0.0, %v3713
        %v3715 = vpop.f32.mrb[0].mxu0
        %v3716 = vpop.f32.mrb[0].mxu0
        %v3717 = vadd.f32 0.0, %v3716
        %v3718 = vpop.f32.mrb[0].mxu0
        %3719 = vmatprep.mubr.bf16.mxu0 0
        %3720 = vmatmul.mubr.bf16.gmra.mrb[0].mxu0 %v3546
        %v3721 = vpop.f32.mrb[0].mxu0
        %v3722 = vadd.f32 0.0, %v3721
        %v3723 = vpop.f32.mrb[0].mxu0
        %v3724 = vpop.f32.mrb[0].mxu0
        %v3725 = vadd.f32 0.0, %v3724
        %v3726 = vpop.f32.mrb[0].mxu0
        %3727 = vdwg.mxu0
        %v3728 = vadd.f32 %v3416, %v3586
        %v3729 = vadd.f32 %v3417, %v3589
        %v3730 = vadd.f32 %v3418, %v3594
        %v3731 = vadd.f32 %v3419, %v3597
        %v3732 = vadd.f32 %v3420, %v3602
        %v3733 = vadd.f32 %v3421, %v3605
        %v3734 = vadd.f32 %v3422, %v3610
        %v3735 = vadd.f32 %v3423, %v3613
        %v3736 = vadd.f32 %v3424, %v3618
        %v3737 = vadd.f32 %v3425, %v3621
        %v3738 = vadd.f32 %v3426, %v3626
        %v3739 = vadd.f32 %v3427, %v3629
        %v3740 = vadd.f32 %v3428, %v3634
        %v3741 = vadd.f32 %v3429, %v3637
        %v3742 = vadd.f32 %v3430, %v3642
        %v3743 = vadd.f32 %v3431, %v3645
        %v3744 = vadd.f32 %v3432, %v3650
        %v3745 = vadd.f32 %v3433, %v3653
        %v3746 = vadd.f32 %v3434, %v3658
        %v3747 = vadd.f32 %v3435, %v3661
        %v3748 = vadd.f32 %v3436, %v3666
        %v3749 = vadd.f32 %v3437, %v3669
        %v3750 = vadd.f32 %v3438, %v3674
        %v3751 = vadd.f32 %v3439, %v3677
        %v3752 = vadd.f32 %v3440, %v3682
        %v3753 = vadd.f32 %v3441, %v3685
        %v3754 = vadd.f32 %v3442, %v3690
        %v3755 = vadd.f32 %v3443, %v3693
        %v3756 = vadd.f32 %v3444, %v3698
        %v3757 = vadd.f32 %v3445, %v3701
        %v3758 = vadd.f32 %v3446, %v3706
        %v3759 = vadd.f32 %v3447, %v3709
        %v3760 = vadd.f32 %v3448, %v3714
        %v3761 = vadd.f32 %v3449, %v3717
        %v3762 = vadd.f32 %v3450, %v3722
        %v3763 = vadd.f32 %v3451, %v3725
        %v3765 = vlaneseq
        %v3766 = vshrl.u32 %v3765, 7
        %v3767 = vsub.s32 0, %v3766
        %v3768 = vrot.slane %v296, %v3767
        %v3770 = vadd.f32 %v3728, %v3768
        %v3771 = vadd.f32 %v3729, %v3768
        %v3772 = vadd.f32 %v3730, %v3768
        %v3773 = vadd.f32 %v3731, %v3768
        %v3774 = vadd.f32 %v3732, %v3768
        %v3775 = vadd.f32 %v3733, %v3768
        %v3776 = vadd.f32 %v3734, %v3768
        %v3777 = vadd.f32 %v3735, %v3768
        %v3778 = vadd.f32 %v3736, %v3768
        %v3779 = vadd.f32 %v3737, %v3768
        %v3780 = vadd.f32 %v3738, %v3768
        %v3781 = vadd.f32 %v3739, %v3768
        %v3782 = vadd.f32 %v3740, %v3768
        %v3783 = vadd.f32 %v3741, %v3768
        %v3784 = vadd.f32 %v3742, %v3768
        %v3785 = vadd.f32 %v3743, %v3768
        %v3786 = vadd.f32 %v3744, %v3768
        %v3787 = vadd.f32 %v3745, %v3768
        %v3788 = vadd.f32 %v3746, %v3768
        %v3789 = vadd.f32 %v3747, %v3768
        %v3790 = vadd.f32 %v3748, %v3768
        %v3791 = vadd.f32 %v3749, %v3768
        %v3792 = vadd.f32 %v3750, %v3768
        %v3793 = vadd.f32 %v3751, %v3768
        %v3794 = vadd.f32 %v3752, %v3768
        %v3795 = vadd.f32 %v3753, %v3768
        %v3796 = vadd.f32 %v3754, %v3768
        %v3797 = vadd.f32 %v3755, %v3768
        %v3798 = vadd.f32 %v3756, %v3768
        %v3799 = vadd.f32 %v3757, %v3768
        %v3800 = vadd.f32 %v3758, %v3768
        %v3801 = vadd.f32 %v3759, %v3768
        %v3802 = vadd.f32 %v3760, %v3768
        %v3803 = vadd.f32 %v3761, %v3768
        %v3804 = vadd.f32 %v3762, %v3768
        %v3805 = vadd.f32 %v3763, %v3768
        %v3806 = vmax.f32 %v3770, 0.0
        %v3807 = vmax.f32 %v3771, 0.0
        %v3808 = vmax.f32 %v3772, 0.0
        %v3809 = vmax.f32 %v3773, 0.0
        %v3810 = vmax.f32 %v3774, 0.0
        %v3811 = vmax.f32 %v3775, 0.0
        %v3812 = vmax.f32 %v3776, 0.0
        %v3813 = vmax.f32 %v3777, 0.0
        %v3814 = vmax.f32 %v3778, 0.0
        %v3815 = vmax.f32 %v3779, 0.0
        %v3816 = vmax.f32 %v3780, 0.0
        %v3817 = vmax.f32 %v3781, 0.0
        %v3818 = vmax.f32 %v3782, 0.0
        %v3819 = vmax.f32 %v3783, 0.0
        %v3820 = vmax.f32 %v3784, 0.0
        %v3821 = vmax.f32 %v3785, 0.0
        %v3822 = vmax.f32 %v3786, 0.0
        %v3823 = vmax.f32 %v3787, 0.0
        %v3824 = vmax.f32 %v3788, 0.0
        %v3825 = vmax.f32 %v3789, 0.0
        %v3826 = vmax.f32 %v3790, 0.0
        %v3827 = vmax.f32 %v3791, 0.0
        %v3828 = vmax.f32 %v3792, 0.0
        %v3829 = vmax.f32 %v3793, 0.0
        %v3830 = vmax.f32 %v3794, 0.0
        %v3831 = vmax.f32 %v3795, 0.0
        %v3832 = vmax.f32 %v3796, 0.0
        %v3833 = vmax.f32 %v3797, 0.0
        %v3834 = vmax.f32 %v3798, 0.0
        %v3835 = vmax.f32 %v3799, 0.0
        %v3836 = vmax.f32 %v3800, 0.0
        %v3837 = vmax.f32 %v3801, 0.0
        %v3838 = vmax.f32 %v3802, 0.0
        %v3839 = vmax.f32 %v3803, 0.0
        %v3840 = vmax.f32 %v3804, 0.0
        %v3841 = vmax.f32 %v3805, 0.0
        %3843 = vset.pattern.permute.xlu0 0
        %3844 = vperm.xlu0 %3843, %v297
        %v3845 = vpop.permute.xlu0 %3844
        %3848 = vset.pattern.permute.xlu0 0
        %3849 = vperm.xlu0 %3848, %v298
        %v3850 = vpop.permute.xlu0 %3849
        %3853 = vset.pattern.permute.xlu0 0
        %3854 = vperm.xlu0 %3853, %v299
        %v3855 = vpop.permute.xlu0 %3854
        %3858 = vset.pattern.permute.xlu0 0
        %3859 = vperm.xlu0 %3858, %v300
        %v3860 = vpop.permute.xlu0 %3859
        %3863 = vset.pattern.permute.xlu0 0
        %3864 = vperm.xlu0 %3863, %v301
        %v3865 = vpop.permute.xlu0 %3864
        %3868 = vset.pattern.permute.xlu0 0
        %3869 = vperm.xlu0 %3868, %v302
        %v3870 = vpop.permute.xlu0 %3869
        %3873 = vset.pattern.permute.xlu0 0
        %3874 = vperm.xlu0 %3873, %v303
        %v3875 = vpop.permute.xlu0 %3874
        %3878 = vset.pattern.permute.xlu0 0
        %3879 = vperm.xlu0 %3878, %v304
        %v3880 = vpop.permute.xlu0 %3879
        %3883 = vset.pattern.permute.xlu0 0
        %3884 = vperm.xlu0 %3883, %v305
        %v3885 = vpop.permute.xlu0 %3884
        %3888 = vset.pattern.permute.xlu0 0
        %3889 = vperm.xlu0 %3888, %v306
        %v3890 = vpop.permute.xlu0 %3889
        %3893 = vset.pattern.permute.xlu0 0
        %3894 = vperm.xlu0 %3893, %v307
        %v3895 = vpop.permute.xlu0 %3894
        %3898 = vset.pattern.permute.xlu0 0
        %3899 = vperm.xlu0 %3898, %v308
        %v3900 = vpop.permute.xlu0 %3899
        %3903 = vset.pattern.permute.xlu0 0
        %3904 = vperm.xlu0 %3903, %v309
        %v3905 = vpop.permute.xlu0 %3904
        %3908 = vset.pattern.permute.xlu0 0
        %3909 = vperm.xlu0 %3908, %v310
        %v3910 = vpop.permute.xlu0 %3909
        %3913 = vset.pattern.permute.xlu0 0
        %3914 = vperm.xlu0 %3913, %v311
        %v3915 = vpop.permute.xlu0 %3914
        %3918 = vset.pattern.permute.xlu0 0
        %3919 = vperm.xlu0 %3918, %v312
        %v3920 = vpop.permute.xlu0 %3919
        %3923 = vset.pattern.permute.xlu0 0
        %3924 = vperm.xlu0 %3923, %v313
        %v3925 = vpop.permute.xlu0 %3924
        %3928 = vset.pattern.permute.xlu0 0
        %3929 = vperm.xlu0 %3928, %v314
        %v3930 = vpop.permute.xlu0 %3929
        %3933 = vset.pattern.permute.xlu0 0
        %3934 = vperm.xlu0 %3933, %v315
        %v3935 = vpop.permute.xlu0 %3934
        %3938 = vset.pattern.permute.xlu0 0
        %3939 = vperm.xlu0 %3938, %v316
        %v3940 = vpop.permute.xlu0 %3939
        %3943 = vset.pattern.permute.xlu0 0
        %3944 = vperm.xlu0 %3943, %v317
        %v3945 = vpop.permute.xlu0 %3944
        %3948 = vset.pattern.permute.xlu0 0
        %3949 = vperm.xlu0 %3948, %v318
        %v3950 = vpop.permute.xlu0 %3949
        %3953 = vset.pattern.permute.xlu0 0
        %3954 = vperm.xlu0 %3953, %v319
        %v3955 = vpop.permute.xlu0 %3954
        %3958 = vset.pattern.permute.xlu0 0
        %3959 = vperm.xlu0 %3958, %v320
        %v3960 = vpop.permute.xlu0 %3959
        %3963 = vset.pattern.permute.xlu0 0
        %3964 = vperm.xlu0 %3963, %v321
        %v3965 = vpop.permute.xlu0 %3964
        %3968 = vset.pattern.permute.xlu0 0
        %3969 = vperm.xlu0 %3968, %v322
        %v3970 = vpop.permute.xlu0 %3969
        %3973 = vset.pattern.permute.xlu0 0
        %3974 = vperm.xlu0 %3973, %v323
        %v3975 = vpop.permute.xlu0 %3974
        %3978 = vset.pattern.permute.xlu0 0
        %3979 = vperm.xlu0 %3978, %v324
        %v3980 = vpop.permute.xlu0 %3979
        %3983 = vset.pattern.permute.xlu0 0
        %3984 = vperm.xlu0 %3983, %v325
        %v3985 = vpop.permute.xlu0 %3984
        %3988 = vset.pattern.permute.xlu0 0
        %3989 = vperm.xlu0 %3988, %v326
        %v3990 = vpop.permute.xlu0 %3989
        %3993 = vset.pattern.permute.xlu0 0
        %3994 = vperm.xlu0 %3993, %v327
        %v3995 = vpop.permute.xlu0 %3994
        %3998 = vset.pattern.permute.xlu0 0
        %3999 = vperm.xlu0 %3998, %v328
        %v4000 = vpop.permute.xlu0 %3999
        %4003 = vset.pattern.permute.xlu0 0
        %4004 = vperm.xlu0 %4003, %v329
        %v4005 = vpop.permute.xlu0 %4004
        %4008 = vset.pattern.permute.xlu0 0
        %4009 = vperm.xlu0 %4008, %v330
        %v4010 = vpop.permute.xlu0 %4009
        %4013 = vset.pattern.permute.xlu0 0
        %4014 = vperm.xlu0 %4013, %v331
        %v4015 = vpop.permute.xlu0 %4014
        %4018 = vset.pattern.permute.xlu0 0
        %4019 = vperm.xlu0 %4018, %v332
        %v4020 = vpop.permute.xlu0 %4019
        %v4022 = vmul.f32 %v3806, %v3845
        %v4023 = vmul.f32 %v3807, %v3850
        %v4024 = vmul.f32 %v3808, %v3855
        %v4025 = vmul.f32 %v3809, %v3860
        %v4026 = vmul.f32 %v3810, %v3865
        %v4027 = vmul.f32 %v3811, %v3870
        %v4028 = vmul.f32 %v3812, %v3875
        %v4029 = vmul.f32 %v3813, %v3880
        %v4030 = vmul.f32 %v3814, %v3885
        %v4031 = vmul.f32 %v3815, %v3890
        %v4032 = vmul.f32 %v3816, %v3895
        %v4033 = vmul.f32 %v3817, %v3900
        %v4034 = vmul.f32 %v3818, %v3905
        %v4035 = vmul.f32 %v3819, %v3910
        %v4036 = vmul.f32 %v3820, %v3915
        %v4037 = vmul.f32 %v3821, %v3920
        %v4038 = vmul.f32 %v3822, %v3925
        %v4039 = vmul.f32 %v3823, %v3930
        %v4040 = vmul.f32 %v3824, %v3935
        %v4041 = vmul.f32 %v3825, %v3940
        %v4042 = vmul.f32 %v3826, %v3945
        %v4043 = vmul.f32 %v3827, %v3950
        %v4044 = vmul.f32 %v3828, %v3955
        %v4045 = vmul.f32 %v3829, %v3960
        %v4046 = vmul.f32 %v3830, %v3965
        %v4047 = vmul.f32 %v3831, %v3970
        %v4048 = vmul.f32 %v3832, %v3975
        %v4049 = vmul.f32 %v3833, %v3980
        %v4050 = vmul.f32 %v3834, %v3985
        %v4051 = vmul.f32 %v3835, %v3990
        %v4052 = vmul.f32 %v3836, %v3995
        %v4053 = vmul.f32 %v3837, %v4000
        %v4054 = vmul.f32 %v3838, %v4005
        %v4055 = vmul.f32 %v3839, %v4010
        %v4056 = vmul.f32 %v3840, %v4015
        %v4057 = vmul.f32 %v3841, %v4020
        %v4058 = vpack.c.bf16 %v4023, %v4022
        %v4059 = vpack.c.bf16 %v4025, %v4024
        %v4060 = vpack.c.bf16 %v4027, %v4026
        %v4061 = vpack.c.bf16 %v4029, %v4028
        %v4062 = vpack.c.bf16 %v4031, %v4030
        %v4063 = vpack.c.bf16 %v4033, %v4032
        %v4064 = vpack.c.bf16 %v4035, %v4034
        %v4065 = vpack.c.bf16 %v4037, %v4036
        %v4066 = vpack.c.bf16 %v4039, %v4038
        %v4067 = vpack.c.bf16 %v4041, %v4040
        %v4068 = vpack.c.bf16 %v4043, %v4042
        %v4069 = vpack.c.bf16 %v4045, %v4044
        %v4070 = vpack.c.bf16 %v4047, %v4046
        %v4071 = vpack.c.bf16 %v4049, %v4048
        %v4072 = vpack.c.bf16 %v4051, %v4050
        %v4073 = vpack.c.bf16 %v4053, %v4052
        %v4074 = vpack.c.bf16 %v4055, %v4054
        %v4075 = vpack.c.bf16 %v4057, %v4056
        %4076 = vxpose.xlu0.c.b16.start [1/8] %v4058, 128
        %4077 = vxpose.xlu0.c.b16.cont [2/8] %v4059, 128
        %4078 = vxpose.xlu0.c.b16.cont [3/8] %v4060, 128
        %4079 = vxpose.xlu0.c.b16.cont [4/8] %v4061, 128
        %4080 = vxpose.xlu0.c.b16.cont [5/8] %v4062, 128
        %4081 = vxpose.xlu0.c.b16.cont [6/8] %v4063, 128
        %4082 = vxpose.xlu0.c.b16.cont [7/8] %v4064, 128
        %4083 = vxpose.xlu0.c.b16.end [8/8] %v4065, 128
        %v4084 = vpop.trf.xlu0
        %v4085 = vpop.trf.xlu0
        %v4086 = vpop.trf.xlu0
        %v4087 = vpop.trf.xlu0
        %v4088 = vpop.trf.xlu0
        %v4089 = vpop.trf.xlu0
        %v4090 = vpop.trf.xlu0
        %v4091 = vpop.trf.xlu0
        %4092 = vxpose.xlu0.c.b16.start [1/8] %v4066, 128
        %4093 = vxpose.xlu0.c.b16.cont [2/8] %v4067, 128
        %4094 = vxpose.xlu0.c.b16.cont [3/8] %v4068, 128
        %4095 = vxpose.xlu0.c.b16.cont [4/8] %v4069, 128
        %4096 = vxpose.xlu0.c.b16.cont [5/8] %v4070, 128
        %4097 = vxpose.xlu0.c.b16.cont [6/8] %v4071, 128
        %4098 = vxpose.xlu0.c.b16.cont [7/8] %v4072, 128
        %4099 = vxpose.xlu0.c.b16.end [8/8] %v4073, 128
        %v4100 = vpop.trf.xlu0
        %v4101 = vpop.trf.xlu0
        %v4102 = vpop.trf.xlu0
        %v4103 = vpop.trf.xlu0
        %v4104 = vpop.trf.xlu0
        %v4105 = vpop.trf.xlu0
        %v4106 = vpop.trf.xlu0
        %v4107 = vpop.trf.xlu0
        %4108 = vxpose.xlu0.c.b16.start [1/8] %v4074, 128
        %4109 = vxpose.xlu0.c.b16.cont [2/8] %v4075, 128
        %4110 = vxpose.xlu0.c.b16.cont [3/8] 0, 128
        %4111 = vxpose.xlu0.c.b16.cont [4/8] 0, 128
        %4112 = vxpose.xlu0.c.b16.cont [5/8] 0, 128
        %4113 = vxpose.xlu0.c.b16.cont [6/8] 0, 128
        %4114 = vxpose.xlu0.c.b16.cont [7/8] 0, 128
        %4115 = vxpose.xlu0.c.b16.end [8/8] 0, 128
        %v4116 = vpop.trf.xlu0
        %v4117 = vpop.trf.xlu0
        %v4118 = vpop.trf.xlu0
        %v4119 = vpop.trf.xlu0
        %v4120 = vpop.trf.xlu0
        %v4121 = vpop.trf.xlu0
        %v4122 = vpop.trf.xlu0
        %v4123 = vpop.trf.xlu0
        %vm4124 = vcmask 261120
        %v4126 = vsel %vm4124, %v4116, 0
        %v4129 = vsel %vm4124, %v4117, 0
        %v4132 = vsel %vm4124, %v4118, 0
        %v4135 = vsel %vm4124, %v4119, 0
        %v4138 = vsel %vm4124, %v4120, 0
        %v4141 = vsel %vm4124, %v4121, 0
        %v4144 = vsel %vm4124, %v4122, 0
        %v4147 = vsel %vm4124, %v4123, 0
        %4149 = vmatprep.subr.bf16.mxu0 0
        %4150 = vmatpush1.bf16.msra.mxu0 %v4058
        %4151 = vmatprep.subr.bf16.mxu0 0
        %4152 = vmatpush1.bf16.msra.mxu0 %v4059
        %4153 = vmatprep.subr.bf16.mxu0 0
        %4154 = vmatpush1.bf16.msra.mxu0 %v4060
        %4155 = vmatprep.subr.bf16.mxu0 0
        %4156 = vmatpush1.bf16.msra.mxu0 %v4061
        %4157 = vmatprep.subr.bf16.mxu0 0
        %4158 = vmatpush1.bf16.msra.mxu0 %v4062
        %4159 = vmatprep.subr.bf16.mxu0 0
        %4160 = vmatpush1.bf16.msra.mxu0 %v4063
        %4161 = vmatprep.subr.bf16.mxu0 0
        %4162 = vmatpush1.bf16.msra.mxu0 %v4064
        %4163 = vmatprep.subr.bf16.mxu0 0
        %4164 = vmatpush1.bf16.msra.mxu0 %v4065
        %4165 = vmatprep.subr.bf16.mxu0 0
        %4166 = vmatpush1.bf16.msra.mxu0 %v4066
        %4167 = vmatprep.subr.bf16.mxu0 0
        %4168 = vmatpush1.bf16.msra.mxu0 %v4067
        %4169 = vmatprep.subr.bf16.mxu0 0
        %4170 = vmatpush1.bf16.msra.mxu0 %v4068
        %4171 = vmatprep.subr.bf16.mxu0 0
        %4172 = vmatpush1.bf16.msra.mxu0 %v4069
        %4173 = vmatprep.subr.bf16.mxu0 0
        %4174 = vmatpush1.bf16.msra.mxu0 %v4070
        %4175 = vmatprep.subr.bf16.mxu0 0
        %4176 = vmatpush1.bf16.msra.mxu0 %v4071
        %4177 = vmatprep.subr.bf16.mxu0 0
        %4178 = vmatpush1.bf16.msra.mxu0 %v4072
        %4179 = vmatprep.subr.bf16.mxu0 0
        %4180 = vmatpush1.bf16.msra.mxu0 %v4073
        %4181 = vmatprep.mubr.bf16.mxu0 %v4100
        %4182 = vmatmul.mubr.bf16.gmra.mrb[0].mxu0 %v4084
        %v4183 = vpop.f32.mrb[0].mxu0
        %v4184 = vadd.f32 0.0, %v4183
        %v4185 = vpop.f32.mrb[0].mxu0
        %v4186 = vpop.f32.mrb[0].mxu0
        %v4187 = vadd.f32 0.0, %v4186
        %v4188 = vpop.f32.mrb[0].mxu0
        %4189 = vmatprep.mubr.bf16.mxu0 %v4101
        %4190 = vmatmul.mubr.bf16.gmra.mrb[0].mxu0 %v4085
        %v4191 = vpop.f32.mrb[0].mxu0
        %v4192 = vadd.f32 0.0, %v4191
        %v4193 = vpop.f32.mrb[0].mxu0
        %v4194 = vpop.f32.mrb[0].mxu0
        %v4195 = vadd.f32 0.0, %v4194
        %v4196 = vpop.f32.mrb[0].mxu0
        %4197 = vmatprep.mubr.bf16.mxu0 %v4102
        %4198 = vmatmul.mubr.bf16.gmra.mrb[0].mxu0 %v4086
        %v4199 = vpop.f32.mrb[0].mxu0
        %v4200 = vadd.f32 0.0, %v4199
        %v4201 = vpop.f32.mrb[0].mxu0
        %v4202 = vpop.f32.mrb[0].mxu0
        %v4203 = vadd.f32 0.0, %v4202
        %v4204 = vpop.f32.mrb[0].mxu0
        %4205 = vmatprep.mubr.bf16.mxu0 %v4103
        %4206 = vmatmul.mubr.bf16.gmra.mrb[0].mxu0 %v4087
        %v4207 = vpop.f32.mrb[0].mxu0
        %v4208 = vadd.f32 0.0, %v4207
        %v4209 = vpop.f32.mrb[0].mxu0
        %v4210 = vpop.f32.mrb[0].mxu0
        %v4211 = vadd.f32 0.0, %v4210
        %v4212 = vpop.f32.mrb[0].mxu0
        %4213 = vmatprep.mubr.bf16.mxu0 %v4104
        %4214 = vmatmul.mubr.bf16.gmra.mrb[0].mxu0 %v4088
        %v4215 = vpop.f32.mrb[0].mxu0
        %v4216 = vadd.f32 0.0, %v4215
        %v4217 = vpop.f32.mrb[0].mxu0
        %v4218 = vpop.f32.mrb[0].mxu0
        %v4219 = vadd.f32 0.0, %v4218
        %v4220 = vpop.f32.mrb[0].mxu0
        %4221 = vmatprep.mubr.bf16.mxu0 %v4105
        %4222 = vmatmul.mubr.bf16.gmra.mrb[0].mxu0 %v4089
        %v4223 = vpop.f32.mrb[0].mxu0
        %v4224 = vadd.f32 0.0, %v4223
        %v4225 = vpop.f32.mrb[0].mxu0
        %v4226 = vpop.f32.mrb[0].mxu0
        %v4227 = vadd.f32 0.0, %v4226
        %v4228 = vpop.f32.mrb[0].mxu0
        %4229 = vmatprep.mubr.bf16.mxu0 %v4106
        %4230 = vmatmul.mubr.bf16.gmra.mrb[0].mxu0 %v4090
        %v4231 = vpop.f32.mrb[0].mxu0
        %v4232 = vadd.f32 0.0, %v4231
        %v4233 = vpop.f32.mrb[0].mxu0
        %v4234 = vpop.f32.mrb[0].mxu0
        %v4235 = vadd.f32 0.0, %v4234
        %v4236 = vpop.f32.mrb[0].mxu0
        %4237 = vmatprep.mubr.bf16.mxu0 %v4107
        %4238 = vmatmul.mubr.bf16.gmra.mrb[0].mxu0 %v4091
        %v4239 = vpop.f32.mrb[0].mxu0
        %v4240 = vadd.f32 0.0, %v4239
        %v4241 = vpop.f32.mrb[0].mxu0
        %v4242 = vpop.f32.mrb[0].mxu0
        %v4243 = vadd.f32 0.0, %v4242
        %v4244 = vpop.f32.mrb[0].mxu0
        %4245 = vdwg.mxu0
        %4246 = vmatprep.subr.bf16.mxu0 0
        %4247 = vmatpush1.bf16.msra.mxu0 %v4074
        %4248 = vmatprep.subr.bf16.mxu0 0
        %4249 = vmatpush1.bf16.msra.mxu0 %v4075
        %4250 = vmatprep.subr.bf16.mxu0 0
        %4251 = vmatpush1.bf16.msra.mxu0 0
        %4252 = vmatprep.subr.bf16.mxu0 0
        %4253 = vmatpush1.bf16.msra.mxu0 0
        %4254 = vmatprep.subr.bf16.mxu0 0
        %4255 = vmatpush1.bf16.msra.mxu0 0
        %4256 = vmatprep.subr.bf16.mxu0 0
        %4257 = vmatpush1.bf16.msra.mxu0 0
        %4258 = vmatprep.subr.bf16.mxu0 0
        %4259 = vmatpush1.bf16.msra.mxu0 0
        %4260 = vmatprep.subr.bf16.mxu0 0
        %4261 = vmatpush1.bf16.msra.mxu0 0
        %4262 = vmatprep.subr.bf16.mxu0 0
        %4263 = vmatpush1.bf16.msra.mxu0 0
        %4264 = vmatprep.subr.bf16.mxu0 0
        %4265 = vmatpush1.bf16.msra.mxu0 0
        %4266 = vmatprep.subr.bf16.mxu0 0
        %4267 = vmatpush1.bf16.msra.mxu0 0
        %4268 = vmatprep.subr.bf16.mxu0 0
        %4269 = vmatpush1.bf16.msra.mxu0 0
        %4270 = vmatprep.subr.bf16.mxu0 0
        %4271 = vmatpush1.bf16.msra.mxu0 0
        %4272 = vmatprep.subr.bf16.mxu0 0
        %4273 = vmatpush1.bf16.msra.mxu0 0
        %4274 = vmatprep.subr.bf16.mxu0 0
        %4275 = vmatpush1.bf16.msra.mxu0 0
        %4276 = vmatprep.subr.bf16.mxu0 0
        %4277 = vmatpush1.bf16.msra.mxu0 0
        %4278 = vmatprep.mubr.bf16.mxu0 0
        %4279 = vmatmul.mubr.bf16.gmra.mrb[0].mxu0 %v4126
        %v4280 = vpop.f32.mrb[0].mxu0
        %v4281 = vadd.f32 %v4184, %v4280
        %v4282 = vpop.f32.mrb[0].mxu0
        %v4283 = vpop.f32.mrb[0].mxu0
        %v4284 = vadd.f32 %v4187, %v4283
        %v4285 = vpop.f32.mrb[0].mxu0
        %4286 = vmatprep.mubr.bf16.mxu0 0
        %4287 = vmatmul.mubr.bf16.gmra.mrb[0].mxu0 %v4129
        %v4288 = vpop.f32.mrb[0].mxu0
        %v4289 = vadd.f32 %v4192, %v4288
        %v4290 = vpop.f32.mrb[0].mxu0
        %v4291 = vpop.f32.mrb[0].mxu0
        %v4292 = vadd.f32 %v4195, %v4291
        %v4293 = vpop.f32.mrb[0].mxu0
        %4294 = vmatprep.mubr.bf16.mxu0 0
        %4295 = vmatmul.mubr.bf16.gmra.mrb[0].mxu0 %v4132
        %v4296 = vpop.f32.mrb[0].mxu0
        %v4297 = vadd.f32 %v4200, %v4296
        %v4298 = vpop.f32.mrb[0].mxu0
        %v4299 = vpop.f32.mrb[0].mxu0
        %v4300 = vadd.f32 %v4203, %v4299
        %v4301 = vpop.f32.mrb[0].mxu0
        %4302 = vmatprep.mubr.bf16.mxu0 0
        %4303 = vmatmul.mubr.bf16.gmra.mrb[0].mxu0 %v4135
        %v4304 = vpop.f32.mrb[0].mxu0
        %v4305 = vadd.f32 %v4208, %v4304
        %v4306 = vpop.f32.mrb[0].mxu0
        %v4307 = vpop.f32.mrb[0].mxu0
        %v4308 = vadd.f32 %v4211, %v4307
        %v4309 = vpop.f32.mrb[0].mxu0
        %4310 = vmatprep.mubr.bf16.mxu0 0
        %4311 = vmatmul.mubr.bf16.gmra.mrb[0].mxu0 %v4138
        %v4312 = vpop.f32.mrb[0].mxu0
        %v4313 = vadd.f32 %v4216, %v4312
        %v4314 = vpop.f32.mrb[0].mxu0
        %v4315 = vpop.f32.mrb[0].mxu0
        %v4316 = vadd.f32 %v4219, %v4315
        %v4317 = vpop.f32.mrb[0].mxu0
        %4318 = vmatprep.mubr.bf16.mxu0 0
        %4319 = vmatmul.mubr.bf16.gmra.mrb[0].mxu0 %v4141
        %v4320 = vpop.f32.mrb[0].mxu0
        %v4321 = vadd.f32 %v4224, %v4320
        %v4322 = vpop.f32.mrb[0].mxu0
        %v4323 = vpop.f32.mrb[0].mxu0
        %v4324 = vadd.f32 %v4227, %v4323
        %v4325 = vpop.f32.mrb[0].mxu0
        %4326 = vmatprep.mubr.bf16.mxu0 0
        %4327 = vmatmul.mubr.bf16.gmra.mrb[0].mxu0 %v4144
        %v4328 = vpop.f32.mrb[0].mxu0
        %v4329 = vadd.f32 %v4232, %v4328
        %v4330 = vpop.f32.mrb[0].mxu0
        %v4331 = vpop.f32.mrb[0].mxu0
        %v4332 = vadd.f32 %v4235, %v4331
        %v4333 = vpop.f32.mrb[0].mxu0
        %4334 = vmatprep.mubr.bf16.mxu0 0
        %4335 = vmatmul.mubr.bf16.gmra.mrb[0].mxu0 %v4147
        %v4336 = vpop.f32.mrb[0].mxu0
        %v4337 = vadd.f32 %v4240, %v4336
        %v4338 = vpop.f32.mrb[0].mxu0
        %v4339 = vpop.f32.mrb[0].mxu0
        %v4340 = vadd.f32 %v4243, %v4339
        %v4341 = vpop.f32.mrb[0].mxu0
        %4342 = vdwg.mxu0
        %v4343 = vmul.f32 %v4281, 0.00048828125
        %v4344 = vmul.f32 %v4284, 0.00048828125
        %v4345 = vmul.f32 %v4289, 0.00048828125
        %v4346 = vmul.f32 %v4292, 0.00048828125
        %v4347 = vmul.f32 %v4297, 0.00048828125
        %v4348 = vmul.f32 %v4300, 0.00048828125
        %v4349 = vmul.f32 %v4305, 0.00048828125
        %v4350 = vmul.f32 %v4308, 0.00048828125
        %v4351 = vmul.f32 %v4313, 0.00048828125
        %v4352 = vmul.f32 %v4316, 0.00048828125
        %v4353 = vmul.f32 %v4321, 0.00048828125
        %v4354 = vmul.f32 %v4324, 0.00048828125
        %v4355 = vmul.f32 %v4329, 0.00048828125
        %v4356 = vmul.f32 %v4332, 0.00048828125
        %v4357 = vmul.f32 %v4337, 0.00048828125
        %v4358 = vmul.f32 %v4340, 0.00048828125
        %v4359 = vld [vmem:[%s272] sm:$0xf]
        %v4360 = vld [vmem:[%s272 + $0x4] sm:$0xf]
        %v4361 = vld [vmem:[%s272 + $0x8] sm:$0xf]
        %v4362 = vld [vmem:[%s272 + $0xc] sm:$0xf]
        %v4363 = vld [vmem:[%s272 + $0x10] sm:$0xf]
        %v4364 = vld [vmem:[%s272 + $0x14] sm:$0xf]
        %v4365 = vld [vmem:[%s272 + $0x18] sm:$0xf]
        %v4366 = vld [vmem:[%s272 + $0x1c] sm:$0xf]
        %v4367 = vld [vmem:[%s272 + $0x20] sm:$0xf]
        %v4368 = vld [vmem:[%s272 + $0x24] sm:$0xf]
        %v4369 = vld [vmem:[%s272 + $0x28] sm:$0xf]
        %v4370 = vld [vmem:[%s272 + $0x2c] sm:$0xf]
        %v4371 = vld [vmem:[%s272 + $0x30] sm:$0xf]
        %v4372 = vld [vmem:[%s272 + $0x34] sm:$0xf]
        %v4373 = vld [vmem:[%s272 + $0x38] sm:$0xf]
        %v4374 = vld [vmem:[%s272 + $0x3c] sm:$0xf]
        %v4375 = vld [vmem:[%s272 + $0x40] sm:$0xf]
        %v4376 = vld [vmem:[%s272 + $0x44] sm:$0xf]
        %v4377 = vld [vmem:[%s272 + $0x48] sm:$0xf]
        %v4378 = vld [vmem:[%s272 + $0x4c] sm:$0xf]
        %v4379 = vld [vmem:[%s272 + $0x50] sm:$0xf]
        %v4380 = vld [vmem:[%s272 + $0x54] sm:$0xf]
        %v4381 = vld [vmem:[%s272 + $0x58] sm:$0xf]
        %v4382 = vld [vmem:[%s272 + $0x5c] sm:$0xf]
        %v4383 = vld [vmem:[%s272 + $0x60] sm:$0xf]
        %v4384 = vld [vmem:[%s272 + $0x64] sm:$0xf]
        %v4385 = vld [vmem:[%s272 + $0x68] sm:$0xf]
        %v4386 = vld [vmem:[%s272 + $0x6c] sm:$0xf]
        %v4387 = vld [vmem:[%s272 + $0x70] sm:$0xf]
        %v4388 = vld [vmem:[%s272 + $0x74] sm:$0xf]
        %v4389 = vld [vmem:[%s272 + $0x78] sm:$0xf]
        %v4390 = vld [vmem:[%s272 + $0x7c] sm:$0xf]
        %v4391 = vld [vmem:[%s272 + $0x80] sm:$0xf]
        %v4392 = vld [vmem:[%s272 + $0x84] sm:$0xf]
        %v4393 = vld [vmem:[%s272 + $0x88] sm:$0xf]
        %v4394 = vld [vmem:[%s272 + $0x8c] sm:$0xf]
        %v4395 = vld [vmem:[%s272 + $0x90] sm:$0x1]
        %v4433 = vunpack.c.l.b16 %v4359
        %v4434 = vunpack.c.l.b16 %v4360
        %v4435 = vunpack.c.l.b16 %v4361
        %v4436 = vunpack.c.l.b16 %v4362
        %v4437 = vunpack.c.l.b16 %v4363
        %v4438 = vunpack.c.l.b16 %v4364
        %v4439 = vunpack.c.l.b16 %v4365
        %v4440 = vunpack.c.l.b16 %v4366
        %v4441 = vunpack.c.l.b16 %v4367
        %v4442 = vunpack.c.l.b16 %v4368
        %v4443 = vunpack.c.l.b16 %v4369
        %v4444 = vunpack.c.l.b16 %v4370
        %v4445 = vunpack.c.l.b16 %v4371
        %v4446 = vunpack.c.l.b16 %v4372
        %v4447 = vunpack.c.l.b16 %v4373
        %v4448 = vunpack.c.l.b16 %v4374
        %v4449 = vunpack.c.l.b16 %v4375
        %v4450 = vunpack.c.l.b16 %v4376
        %v4451 = vunpack.c.l.b16 %v4377
        %v4452 = vunpack.c.l.b16 %v4378
        %v4453 = vunpack.c.l.b16 %v4379
        %v4454 = vunpack.c.l.b16 %v4380
        %v4455 = vunpack.c.l.b16 %v4381
        %v4456 = vunpack.c.l.b16 %v4382
        %v4457 = vunpack.c.l.b16 %v4383
        %v4458 = vunpack.c.l.b16 %v4384
        %v4459 = vunpack.c.l.b16 %v4385
        %v4460 = vunpack.c.l.b16 %v4386
        %v4461 = vunpack.c.l.b16 %v4387
        %v4462 = vunpack.c.l.b16 %v4388
        %v4463 = vunpack.c.l.b16 %v4389
        %v4464 = vunpack.c.l.b16 %v4390
        %v4465 = vunpack.c.l.b16 %v4391
        %v4466 = vunpack.c.l.b16 %v4392
        %v4467 = vunpack.c.l.b16 %v4393
        %v4468 = vunpack.c.l.b16 %v4394
        %v4469 = vunpack.c.l.b16 %v4395
        %v4470 = vpack.c.b16 %v4434, %v4433
        %v4471 = vpack.c.b16 %v4436, %v4435
        %v4472 = vpack.c.b16 %v4438, %v4437
        %v4473 = vpack.c.b16 %v4440, %v4439
        %v4474 = vpack.c.b16 %v4442, %v4441
        %v4475 = vpack.c.b16 %v4444, %v4443
        %v4476 = vpack.c.b16 %v4446, %v4445
        %v4477 = vpack.c.b16 %v4448, %v4447
        %v4478 = vpack.c.b16 %v4450, %v4449
        %v4479 = vpack.c.b16 %v4452, %v4451
        %v4480 = vpack.c.b16 %v4454, %v4453
        %v4481 = vpack.c.b16 %v4456, %v4455
        %v4482 = vpack.c.b16 %v4458, %v4457
        %v4483 = vpack.c.b16 %v4460, %v4459
        %v4484 = vpack.c.b16 %v4462, %v4461
        %v4485 = vpack.c.b16 %v4464, %v4463
        %v4486 = vpack.c.b16 %v4466, %v4465
        %v4487 = vpack.c.b16 %v4468, %v4467
        %v4488 = vpack.c.b16 %v4469, %v4469
        %v4490 = vshrl.u32 %v4470, 16
        %v4492 = vshll.u32 %v4470, 16
        %v4494 = vrot.slane %v4492, 1
        %v4495 = vor.u32 %v4490, %v4494
        %v4497 = vshll.u32 %v4471, 16
        %v4499 = vrot.slane %v4497, 1
        %v4500 = vsel %vm463, %v4495, %v4499
        %v4501 = vshrl.u32 %v4471, 16
        %v4503 = vor.u32 %v4501, %v4499
        %v4505 = vshll.u32 %v4472, 16
        %v4507 = vrot.slane %v4505, 1
        %v4508 = vsel %vm463, %v4503, %v4507
        %v4509 = vshrl.u32 %v4472, 16
        %v4511 = vor.u32 %v4509, %v4507
        %v4513 = vshll.u32 %v4473, 16
        %v4515 = vrot.slane %v4513, 1
        %v4516 = vsel %vm463, %v4511, %v4515
        %v4517 = vshrl.u32 %v4473, 16
        %v4519 = vor.u32 %v4517, %v4515
        %v4521 = vshll.u32 %v4474, 16
        %v4523 = vrot.slane %v4521, 1
        %v4524 = vsel %vm463, %v4519, %v4523
        %v4525 = vshrl.u32 %v4474, 16
        %v4527 = vor.u32 %v4525, %v4523
        %v4529 = vshll.u32 %v4475, 16
        %v4531 = vrot.slane %v4529, 1
        %v4532 = vsel %vm463, %v4527, %v4531
        %v4533 = vshrl.u32 %v4475, 16
        %v4535 = vor.u32 %v4533, %v4531
        %v4537 = vshll.u32 %v4476, 16
        %v4539 = vrot.slane %v4537, 1
        %v4540 = vsel %vm463, %v4535, %v4539
        %v4541 = vshrl.u32 %v4476, 16
        %v4543 = vor.u32 %v4541, %v4539
        %v4545 = vshll.u32 %v4477, 16
        %v4547 = vrot.slane %v4545, 1
        %v4548 = vsel %vm463, %v4543, %v4547
        %v4549 = vshrl.u32 %v4477, 16
        %v4551 = vor.u32 %v4549, %v4547
        %v4553 = vshll.u32 %v4478, 16
        %v4555 = vrot.slane %v4553, 1
        %v4556 = vsel %vm463, %v4551, %v4555
        %v4557 = vshrl.u32 %v4478, 16
        %v4559 = vor.u32 %v4557, %v4555
        %v4561 = vshll.u32 %v4479, 16
        %v4563 = vrot.slane %v4561, 1
        %v4564 = vsel %vm463, %v4559, %v4563
        %v4565 = vshrl.u32 %v4479, 16
        %v4567 = vor.u32 %v4565, %v4563
        %v4569 = vshll.u32 %v4480, 16
        %v4571 = vrot.slane %v4569, 1
        %v4572 = vsel %vm463, %v4567, %v4571
        %v4573 = vshrl.u32 %v4480, 16
        %v4575 = vor.u32 %v4573, %v4571
        %v4577 = vshll.u32 %v4481, 16
        %v4579 = vrot.slane %v4577, 1
        %v4580 = vsel %vm463, %v4575, %v4579
        %v4581 = vshrl.u32 %v4481, 16
        %v4583 = vor.u32 %v4581, %v4579
        %v4585 = vshll.u32 %v4482, 16
        %v4587 = vrot.slane %v4585, 1
        %v4588 = vsel %vm463, %v4583, %v4587
        %v4589 = vshrl.u32 %v4482, 16
        %v4591 = vor.u32 %v4589, %v4587
        %v4593 = vshll.u32 %v4483, 16
        %v4595 = vrot.slane %v4593, 1
        %v4596 = vsel %vm463, %v4591, %v4595
        %v4597 = vshrl.u32 %v4483, 16
        %v4599 = vor.u32 %v4597, %v4595
        %v4601 = vshll.u32 %v4484, 16
        %v4603 = vrot.slane %v4601, 1
        %v4604 = vsel %vm463, %v4599, %v4603
        %v4605 = vshrl.u32 %v4484, 16
        %v4607 = vor.u32 %v4605, %v4603
        %v4609 = vshll.u32 %v4485, 16
        %v4611 = vrot.slane %v4609, 1
        %v4612 = vsel %vm463, %v4607, %v4611
        %v4613 = vshrl.u32 %v4485, 16
        %v4615 = vor.u32 %v4613, %v4611
        %v4617 = vshll.u32 %v4486, 16
        %v4619 = vrot.slane %v4617, 1
        %v4620 = vsel %vm463, %v4615, %v4619
        %v4621 = vshrl.u32 %v4486, 16
        %v4623 = vor.u32 %v4621, %v4619
        %v4625 = vshll.u32 %v4487, 16
        %v4627 = vrot.slane %v4625, 1
        %v4628 = vsel %vm463, %v4623, %v4627
        %v4629 = vshrl.u32 %v4487, 16
        %v4631 = vor.u32 %v4629, %v4627
        %v4633 = vshll.u32 %v4488, 16
        %v4635 = vrot.slane %v4633, 1
        %v4636 = vsel %vm463, %v4631, %v4635
        %v4638 = vsel %vm612, %v4500, 0
        %v4641 = vsel %vm612, %v4508, 0
        %v4644 = vsel %vm612, %v4516, 0
        %v4647 = vsel %vm612, %v4524, 0
        %v4650 = vsel %vm612, %v4532, 0
        %v4653 = vsel %vm612, %v4540, 0
        %v4656 = vsel %vm612, %v4548, 0
        %v4659 = vsel %vm612, %v4556, 0
        %v4662 = vsel %vm612, %v4564, 0
        %v4665 = vsel %vm612, %v4572, 0
        %v4668 = vsel %vm612, %v4580, 0
        %v4671 = vsel %vm612, %v4588, 0
        %v4674 = vsel %vm612, %v4596, 0
        %v4677 = vsel %vm612, %v4604, 0
        %v4680 = vsel %vm612, %v4612, 0
        %v4683 = vsel %vm612, %v4620, 0
        %v4686 = vsel %vm612, %v4628, 0
        %v4689 = vsel %vm612, %v4636, 0
        %4691 = vmatprep.subr.bf16.mxu0 0
        %4692 = vmatpush1.bf16.msra.mxu0 %v669
        %4693 = vmatprep.subr.bf16.mxu0 0
        %4694 = vmatpush1.bf16.msra.mxu0 0
        %4695 = vmatprep.subr.bf16.mxu0 0
        %4696 = vmatpush1.bf16.msra.mxu0 0
        %4697 = vmatprep.subr.bf16.mxu0 0
        %4698 = vmatpush1.bf16.msra.mxu0 0
        %4699 = vmatprep.subr.bf16.mxu0 0
        %4700 = vmatpush1.bf16.msra.mxu0 0
        %4701 = vmatprep.subr.bf16.mxu0 0
        %4702 = vmatpush1.bf16.msra.mxu0 0
        %4703 = vmatprep.subr.bf16.mxu0 0
        %4704 = vmatpush1.bf16.msra.mxu0 0
        %4705 = vmatprep.subr.bf16.mxu0 0
        %4706 = vmatpush1.bf16.msra.mxu0 0
        %4707 = vmatprep.subr.bf16.mxu0 0
        %4708 = vmatpush1.bf16.msra.mxu0 0
        %4709 = vmatprep.subr.bf16.mxu0 0
        %4710 = vmatpush1.bf16.msra.mxu0 0
        %4711 = vmatprep.subr.bf16.mxu0 0
        %4712 = vmatpush1.bf16.msra.mxu0 0
        %4713 = vmatprep.subr.bf16.mxu0 0
        %4714 = vmatpush1.bf16.msra.mxu0 0
        %4715 = vmatprep.subr.bf16.mxu0 0
        %4716 = vmatpush1.bf16.msra.mxu0 0
        %4717 = vmatprep.subr.bf16.mxu0 0
        %4718 = vmatpush1.bf16.msra.mxu0 0
        %4719 = vmatprep.subr.bf16.mxu0 0
        %4720 = vmatpush1.bf16.msra.mxu0 0
        %4721 = vmatprep.subr.bf16.mxu0 0
        %4722 = vmatpush1.bf16.msra.mxu0 0
        %4723 = vmatprep.mubr.bf16.mxu0 0
        %4724 = vmatmul.mubr.bf16.gmra.mrb[0].mxu0 %v4638
        %v4725 = vpop.f32.mrb[0].mxu0
        %v4726 = vadd.f32 0.0, %v4725
        %v4727 = vpop.f32.mrb[0].mxu0
        %v4728 = vpop.f32.mrb[0].mxu0
        %v4729 = vadd.f32 0.0, %v4728
        %v4730 = vpop.f32.mrb[0].mxu0
        %4731 = vmatprep.mubr.bf16.mxu0 0
        %4732 = vmatmul.mubr.bf16.gmra.mrb[0].mxu0 %v4641
        %v4733 = vpop.f32.mrb[0].mxu0
        %v4734 = vadd.f32 0.0, %v4733
        %v4735 = vpop.f32.mrb[0].mxu0
        %v4736 = vpop.f32.mrb[0].mxu0
        %v4737 = vadd.f32 0.0, %v4736
        %v4738 = vpop.f32.mrb[0].mxu0
        %4739 = vmatprep.mubr.bf16.mxu0 0
        %4740 = vmatmul.mubr.bf16.gmra.mrb[0].mxu0 %v4644
        %v4741 = vpop.f32.mrb[0].mxu0
        %v4742 = vadd.f32 0.0, %v4741
        %v4743 = vpop.f32.mrb[0].mxu0
        %v4744 = vpop.f32.mrb[0].mxu0
        %v4745 = vadd.f32 0.0, %v4744
        %v4746 = vpop.f32.mrb[0].mxu0
        %4747 = vmatprep.mubr.bf16.mxu0 0
        %4748 = vmatmul.mubr.bf16.gmra.mrb[0].mxu0 %v4647
        %v4749 = vpop.f32.mrb[0].mxu0
        %v4750 = vadd.f32 0.0, %v4749
        %v4751 = vpop.f32.mrb[0].mxu0
        %v4752 = vpop.f32.mrb[0].mxu0
        %v4753 = vadd.f32 0.0, %v4752
        %v4754 = vpop.f32.mrb[0].mxu0
        %4755 = vmatprep.mubr.bf16.mxu0 0
        %4756 = vmatmul.mubr.bf16.gmra.mrb[0].mxu0 %v4650
        %v4757 = vpop.f32.mrb[0].mxu0
        %v4758 = vadd.f32 0.0, %v4757
        %v4759 = vpop.f32.mrb[0].mxu0
        %v4760 = vpop.f32.mrb[0].mxu0
        %v4761 = vadd.f32 0.0, %v4760
        %v4762 = vpop.f32.mrb[0].mxu0
        %4763 = vmatprep.mubr.bf16.mxu0 0
        %4764 = vmatmul.mubr.bf16.gmra.mrb[0].mxu0 %v4653
        %v4765 = vpop.f32.mrb[0].mxu0
        %v4766 = vadd.f32 0.0, %v4765
        %v4767 = vpop.f32.mrb[0].mxu0
        %v4768 = vpop.f32.mrb[0].mxu0
        %v4769 = vadd.f32 0.0, %v4768
        %v4770 = vpop.f32.mrb[0].mxu0
        %4771 = vmatprep.mubr.bf16.mxu0 0
        %4772 = vmatmul.mubr.bf16.gmra.mrb[0].mxu0 %v4656
        %v4773 = vpop.f32.mrb[0].mxu0
        %v4774 = vadd.f32 0.0, %v4773
        %v4775 = vpop.f32.mrb[0].mxu0
        %v4776 = vpop.f32.mrb[0].mxu0
        %v4777 = vadd.f32 0.0, %v4776
        %v4778 = vpop.f32.mrb[0].mxu0
        %4779 = vmatprep.mubr.bf16.mxu0 0
        %4780 = vmatmul.mubr.bf16.gmra.mrb[0].mxu0 %v4659
        %v4781 = vpop.f32.mrb[0].mxu0
        %v4782 = vadd.f32 0.0, %v4781
        %v4783 = vpop.f32.mrb[0].mxu0
        %v4784 = vpop.f32.mrb[0].mxu0
        %v4785 = vadd.f32 0.0, %v4784
        %v4786 = vpop.f32.mrb[0].mxu0
        %4787 = vmatprep.mubr.bf16.mxu0 0
        %4788 = vmatmul.mubr.bf16.gmra.mrb[0].mxu0 %v4662
        %v4789 = vpop.f32.mrb[0].mxu0
        %v4790 = vadd.f32 0.0, %v4789
        %v4791 = vpop.f32.mrb[0].mxu0
        %v4792 = vpop.f32.mrb[0].mxu0
        %v4793 = vadd.f32 0.0, %v4792
        %v4794 = vpop.f32.mrb[0].mxu0
        %4795 = vmatprep.mubr.bf16.mxu0 0
        %4796 = vmatmul.mubr.bf16.gmra.mrb[0].mxu0 %v4665
        %v4797 = vpop.f32.mrb[0].mxu0
        %v4798 = vadd.f32 0.0, %v4797
        %v4799 = vpop.f32.mrb[0].mxu0
        %v4800 = vpop.f32.mrb[0].mxu0
        %v4801 = vadd.f32 0.0, %v4800
        %v4802 = vpop.f32.mrb[0].mxu0
        %4803 = vmatprep.mubr.bf16.mxu0 0
        %4804 = vmatmul.mubr.bf16.gmra.mrb[0].mxu0 %v4668
        %v4805 = vpop.f32.mrb[0].mxu0
        %v4806 = vadd.f32 0.0, %v4805
        %v4807 = vpop.f32.mrb[0].mxu0
        %v4808 = vpop.f32.mrb[0].mxu0
        %v4809 = vadd.f32 0.0, %v4808
        %v4810 = vpop.f32.mrb[0].mxu0
        %4811 = vmatprep.mubr.bf16.mxu0 0
        %4812 = vmatmul.mubr.bf16.gmra.mrb[0].mxu0 %v4671
        %v4813 = vpop.f32.mrb[0].mxu0
        %v4814 = vadd.f32 0.0, %v4813
        %v4815 = vpop.f32.mrb[0].mxu0
        %v4816 = vpop.f32.mrb[0].mxu0
        %v4817 = vadd.f32 0.0, %v4816
        %v4818 = vpop.f32.mrb[0].mxu0
        %4819 = vmatprep.mubr.bf16.mxu0 0
        %4820 = vmatmul.mubr.bf16.gmra.mrb[0].mxu0 %v4674
        %v4821 = vpop.f32.mrb[0].mxu0
        %v4822 = vadd.f32 0.0, %v4821
        %v4823 = vpop.f32.mrb[0].mxu0
        %v4824 = vpop.f32.mrb[0].mxu0
        %v4825 = vadd.f32 0.0, %v4824
        %v4826 = vpop.f32.mrb[0].mxu0
        %4827 = vmatprep.mubr.bf16.mxu0 0
        %4828 = vmatmul.mubr.bf16.gmra.mrb[0].mxu0 %v4677
        %v4829 = vpop.f32.mrb[0].mxu0
        %v4830 = vadd.f32 0.0, %v4829
        %v4831 = vpop.f32.mrb[0].mxu0
        %v4832 = vpop.f32.mrb[0].mxu0
        %v4833 = vadd.f32 0.0, %v4832
        %v4834 = vpop.f32.mrb[0].mxu0
        %4835 = vmatprep.mubr.bf16.mxu0 0
        %4836 = vmatmul.mubr.bf16.gmra.mrb[0].mxu0 %v4680
        %v4837 = vpop.f32.mrb[0].mxu0
        %v4838 = vadd.f32 0.0, %v4837
        %v4839 = vpop.f32.mrb[0].mxu0
        %v4840 = vpop.f32.mrb[0].mxu0
        %v4841 = vadd.f32 0.0, %v4840
        %v4842 = vpop.f32.mrb[0].mxu0
        %4843 = vmatprep.mubr.bf16.mxu0 0
        %4844 = vmatmul.mubr.bf16.gmra.mrb[0].mxu0 %v4683
        %v4845 = vpop.f32.mrb[0].mxu0
        %v4846 = vadd.f32 0.0, %v4845
        %v4847 = vpop.f32.mrb[0].mxu0
        %v4848 = vpop.f32.mrb[0].mxu0
        %v4849 = vadd.f32 0.0, %v4848
        %v4850 = vpop.f32.mrb[0].mxu0
        %4851 = vmatprep.mubr.bf16.mxu0 0
        %4852 = vmatmul.mubr.bf16.gmra.mrb[0].mxu0 %v4686
        %v4853 = vpop.f32.mrb[0].mxu0
        %v4854 = vadd.f32 0.0, %v4853
        %v4855 = vpop.f32.mrb[0].mxu0
        %v4856 = vpop.f32.mrb[0].mxu0
        %v4857 = vadd.f32 0.0, %v4856
        %v4858 = vpop.f32.mrb[0].mxu0
        %4859 = vmatprep.mubr.bf16.mxu0 0
        %4860 = vmatmul.mubr.bf16.gmra.mrb[0].mxu0 %v4689
        %v4861 = vpop.f32.mrb[0].mxu0
        %v4862 = vadd.f32 0.0, %v4861
        %v4863 = vpop.f32.mrb[0].mxu0
        %v4864 = vpop.f32.mrb[0].mxu0
        %v4865 = vadd.f32 0.0, %v4864
        %v4866 = vpop.f32.mrb[0].mxu0
        %4867 = vdwg.mxu0
        %v4868 = vsel %vm612, %v4470, 0
        %v4870 = vsel %vm612, %v4471, 0
        %v4872 = vsel %vm612, %v4472, 0
        %v4874 = vsel %vm612, %v4473, 0
        %v4876 = vsel %vm612, %v4474, 0
        %v4878 = vsel %vm612, %v4475, 0
        %v4880 = vsel %vm612, %v4476, 0
        %v4882 = vsel %vm612, %v4477, 0
        %v4884 = vsel %vm612, %v4478, 0
        %v4886 = vsel %vm612, %v4479, 0
        %v4888 = vsel %vm612, %v4480, 0
        %v4890 = vsel %vm612, %v4481, 0
        %v4892 = vsel %vm612, %v4482, 0
        %v4894 = vsel %vm612, %v4483, 0
        %v4896 = vsel %vm612, %v4484, 0
        %v4898 = vsel %vm612, %v4485, 0
        %v4900 = vsel %vm612, %v4486, 0
        %v4902 = vsel %vm612, %v4487, 0
        %4904 = vmatprep.subr.bf16.mxu0 0
        %4905 = vmatpush1.bf16.msra.mxu0 %v885
        %4906 = vmatprep.subr.bf16.mxu0 0
        %4907 = vmatpush1.bf16.msra.mxu0 0
        %4908 = vmatprep.subr.bf16.mxu0 0
        %4909 = vmatpush1.bf16.msra.mxu0 0
        %4910 = vmatprep.subr.bf16.mxu0 0
        %4911 = vmatpush1.bf16.msra.mxu0 0
        %4912 = vmatprep.subr.bf16.mxu0 0
        %4913 = vmatpush1.bf16.msra.mxu0 0
        %4914 = vmatprep.subr.bf16.mxu0 0
        %4915 = vmatpush1.bf16.msra.mxu0 0
        %4916 = vmatprep.subr.bf16.mxu0 0
        %4917 = vmatpush1.bf16.msra.mxu0 0
        %4918 = vmatprep.subr.bf16.mxu0 0
        %4919 = vmatpush1.bf16.msra.mxu0 0
        %4920 = vmatprep.subr.bf16.mxu0 0
        %4921 = vmatpush1.bf16.msra.mxu0 0
        %4922 = vmatprep.subr.bf16.mxu0 0
        %4923 = vmatpush1.bf16.msra.mxu0 0
        %4924 = vmatprep.subr.bf16.mxu0 0
        %4925 = vmatpush1.bf16.msra.mxu0 0
        %4926 = vmatprep.subr.bf16.mxu0 0
        %4927 = vmatpush1.bf16.msra.mxu0 0
        %4928 = vmatprep.subr.bf16.mxu0 0
        %4929 = vmatpush1.bf16.msra.mxu0 0
        %4930 = vmatprep.subr.bf16.mxu0 0
        %4931 = vmatpush1.bf16.msra.mxu0 0
        %4932 = vmatprep.subr.bf16.mxu0 0
        %4933 = vmatpush1.bf16.msra.mxu0 0
        %4934 = vmatprep.subr.bf16.mxu0 0
        %4935 = vmatpush1.bf16.msra.mxu0 0
        %4936 = vmatprep.mubr.bf16.mxu0 0
        %4937 = vmatmul.mubr.bf16.gmra.mrb[0].mxu0 %v4868
        %v4938 = vpop.f32.mrb[0].mxu0
        %v4939 = vadd.f32 %v4726, %v4938
        %v4940 = vpop.f32.mrb[0].mxu0
        %v4941 = vpop.f32.mrb[0].mxu0
        %v4942 = vadd.f32 %v4729, %v4941
        %v4943 = vpop.f32.mrb[0].mxu0
        %4944 = vmatprep.mubr.bf16.mxu0 0
        %4945 = vmatmul.mubr.bf16.gmra.mrb[0].mxu0 %v4870
        %v4946 = vpop.f32.mrb[0].mxu0
        %v4947 = vadd.f32 %v4734, %v4946
        %v4948 = vpop.f32.mrb[0].mxu0
        %v4949 = vpop.f32.mrb[0].mxu0
        %v4950 = vadd.f32 %v4737, %v4949
        %v4951 = vpop.f32.mrb[0].mxu0
        %4952 = vmatprep.mubr.bf16.mxu0 0
        %4953 = vmatmul.mubr.bf16.gmra.mrb[0].mxu0 %v4872
        %v4954 = vpop.f32.mrb[0].mxu0
        %v4955 = vadd.f32 %v4742, %v4954
        %v4956 = vpop.f32.mrb[0].mxu0
        %v4957 = vpop.f32.mrb[0].mxu0
        %v4958 = vadd.f32 %v4745, %v4957
        %v4959 = vpop.f32.mrb[0].mxu0
        %4960 = vmatprep.mubr.bf16.mxu0 0
        %4961 = vmatmul.mubr.bf16.gmra.mrb[0].mxu0 %v4874
        %v4962 = vpop.f32.mrb[0].mxu0
        %v4963 = vadd.f32 %v4750, %v4962
        %v4964 = vpop.f32.mrb[0].mxu0
        %v4965 = vpop.f32.mrb[0].mxu0
        %v4966 = vadd.f32 %v4753, %v4965
        %v4967 = vpop.f32.mrb[0].mxu0
        %4968 = vmatprep.mubr.bf16.mxu0 0
        %4969 = vmatmul.mubr.bf16.gmra.mrb[0].mxu0 %v4876
        %v4970 = vpop.f32.mrb[0].mxu0
        %v4971 = vadd.f32 %v4758, %v4970
        %v4972 = vpop.f32.mrb[0].mxu0
        %v4973 = vpop.f32.mrb[0].mxu0
        %v4974 = vadd.f32 %v4761, %v4973
        %v4975 = vpop.f32.mrb[0].mxu0
        %4976 = vmatprep.mubr.bf16.mxu0 0
        %4977 = vmatmul.mubr.bf16.gmra.mrb[0].mxu0 %v4878
        %v4978 = vpop.f32.mrb[0].mxu0
        %v4979 = vadd.f32 %v4766, %v4978
        %v4980 = vpop.f32.mrb[0].mxu0
        %v4981 = vpop.f32.mrb[0].mxu0
        %v4982 = vadd.f32 %v4769, %v4981
        %v4983 = vpop.f32.mrb[0].mxu0
        %4984 = vmatprep.mubr.bf16.mxu0 0
        %4985 = vmatmul.mubr.bf16.gmra.mrb[0].mxu0 %v4880
        %v4986 = vpop.f32.mrb[0].mxu0
        %v4987 = vadd.f32 %v4774, %v4986
        %v4988 = vpop.f32.mrb[0].mxu0
        %v4989 = vpop.f32.mrb[0].mxu0
        %v4990 = vadd.f32 %v4777, %v4989
        %v4991 = vpop.f32.mrb[0].mxu0
        %4992 = vmatprep.mubr.bf16.mxu0 0
        %4993 = vmatmul.mubr.bf16.gmra.mrb[0].mxu0 %v4882
        %v4994 = vpop.f32.mrb[0].mxu0
        %v4995 = vadd.f32 %v4782, %v4994
        %v4996 = vpop.f32.mrb[0].mxu0
        %v4997 = vpop.f32.mrb[0].mxu0
        %v4998 = vadd.f32 %v4785, %v4997
        %v4999 = vpop.f32.mrb[0].mxu0
        %5000 = vmatprep.mubr.bf16.mxu0 0
        %5001 = vmatmul.mubr.bf16.gmra.mrb[0].mxu0 %v4884
        %v5002 = vpop.f32.mrb[0].mxu0
        %v5003 = vadd.f32 %v4790, %v5002
        %v5004 = vpop.f32.mrb[0].mxu0
        %v5005 = vpop.f32.mrb[0].mxu0
        %v5006 = vadd.f32 %v4793, %v5005
        %v5007 = vpop.f32.mrb[0].mxu0
        %5008 = vmatprep.mubr.bf16.mxu0 0
        %5009 = vmatmul.mubr.bf16.gmra.mrb[0].mxu0 %v4886
        %v5010 = vpop.f32.mrb[0].mxu0
        %v5011 = vadd.f32 %v4798, %v5010
        %v5012 = vpop.f32.mrb[0].mxu0
        %v5013 = vpop.f32.mrb[0].mxu0
        %v5014 = vadd.f32 %v4801, %v5013
        %v5015 = vpop.f32.mrb[0].mxu0
        %5016 = vmatprep.mubr.bf16.mxu0 0
        %5017 = vmatmul.mubr.bf16.gmra.mrb[0].mxu0 %v4888
        %v5018 = vpop.f32.mrb[0].mxu0
        %v5019 = vadd.f32 %v4806, %v5018
        %v5020 = vpop.f32.mrb[0].mxu0
        %v5021 = vpop.f32.mrb[0].mxu0
        %v5022 = vadd.f32 %v4809, %v5021
        %v5023 = vpop.f32.mrb[0].mxu0
        %5024 = vmatprep.mubr.bf16.mxu0 0
        %5025 = vmatmul.mubr.bf16.gmra.mrb[0].mxu0 %v4890
        %v5026 = vpop.f32.mrb[0].mxu0
        %v5027 = vadd.f32 %v4814, %v5026
        %v5028 = vpop.f32.mrb[0].mxu0
        %v5029 = vpop.f32.mrb[0].mxu0
        %v5030 = vadd.f32 %v4817, %v5029
        %v5031 = vpop.f32.mrb[0].mxu0
        %5032 = vmatprep.mubr.bf16.mxu0 0
        %5033 = vmatmul.mubr.bf16.gmra.mrb[0].mxu0 %v4892
        %v5034 = vpop.f32.mrb[0].mxu0
        %v5035 = vadd.f32 %v4822, %v5034
        %v5036 = vpop.f32.mrb[0].mxu0
        %v5037 = vpop.f32.mrb[0].mxu0
        %v5038 = vadd.f32 %v4825, %v5037
        %v5039 = vpop.f32.mrb[0].mxu0
        %5040 = vmatprep.mubr.bf16.mxu0 0
        %5041 = vmatmul.mubr.bf16.gmra.mrb[0].mxu0 %v4894
        %v5042 = vpop.f32.mrb[0].mxu0
        %v5043 = vadd.f32 %v4830, %v5042
        %v5044 = vpop.f32.mrb[0].mxu0
        %v5045 = vpop.f32.mrb[0].mxu0
        %v5046 = vadd.f32 %v4833, %v5045
        %v5047 = vpop.f32.mrb[0].mxu0
        %5048 = vmatprep.mubr.bf16.mxu0 0
        %5049 = vmatmul.mubr.bf16.gmra.mrb[0].mxu0 %v4896
        %v5050 = vpop.f32.mrb[0].mxu0
        %v5051 = vadd.f32 %v4838, %v5050
        %v5052 = vpop.f32.mrb[0].mxu0
        %v5053 = vpop.f32.mrb[0].mxu0
        %v5054 = vadd.f32 %v4841, %v5053
        %v5055 = vpop.f32.mrb[0].mxu0
        %5056 = vmatprep.mubr.bf16.mxu0 0
        %5057 = vmatmul.mubr.bf16.gmra.mrb[0].mxu0 %v4898
        %v5058 = vpop.f32.mrb[0].mxu0
        %v5059 = vadd.f32 %v4846, %v5058
        %v5060 = vpop.f32.mrb[0].mxu0
        %v5061 = vpop.f32.mrb[0].mxu0
        %v5062 = vadd.f32 %v4849, %v5061
        %v5063 = vpop.f32.mrb[0].mxu0
        %5064 = vmatprep.mubr.bf16.mxu0 0
        %5065 = vmatmul.mubr.bf16.gmra.mrb[0].mxu0 %v4900
        %v5066 = vpop.f32.mrb[0].mxu0
        %v5067 = vadd.f32 %v4854, %v5066
        %v5068 = vpop.f32.mrb[0].mxu0
        %v5069 = vpop.f32.mrb[0].mxu0
        %v5070 = vadd.f32 %v4857, %v5069
        %v5071 = vpop.f32.mrb[0].mxu0
        %5072 = vmatprep.mubr.bf16.mxu0 0
        %5073 = vmatmul.mubr.bf16.gmra.mrb[0].mxu0 %v4902
        %v5074 = vpop.f32.mrb[0].mxu0
        %v5075 = vadd.f32 %v4862, %v5074
        %v5076 = vpop.f32.mrb[0].mxu0
        %v5077 = vpop.f32.mrb[0].mxu0
        %v5078 = vadd.f32 %v4865, %v5077
        %v5079 = vpop.f32.mrb[0].mxu0
        %5080 = vdwg.mxu0
        %v5081 = vld [vmem:[%s272] sm:$0xe]
        %v5083 = vunpack.c.l.b16 %v5081
        %v5084 = vpack.c.b16 %v4434, %v5083
        %v5085 = vrot.slane %v5084, 1
        %v5086 = vrot.slane %v4471, 1
        %v5087 = vsel %vm1068, %v5085, %v5086
        %v5088 = vrot.slane %v4472, 1
        %v5089 = vsel %vm1068, %v5086, %v5088
        %v5090 = vrot.slane %v4473, 1
        %v5091 = vsel %vm1068, %v5088, %v5090
        %v5092 = vrot.slane %v4474, 1
        %v5093 = vsel %vm1068, %v5090, %v5092
        %v5094 = vrot.slane %v4475, 1
        %v5095 = vsel %vm1068, %v5092, %v5094
        %v5096 = vrot.slane %v4476, 1
        %v5097 = vsel %vm1068, %v5094, %v5096
        %v5098 = vrot.slane %v4477, 1
        %v5099 = vsel %vm1068, %v5096, %v5098
        %v5100 = vrot.slane %v4478, 1
        %v5101 = vsel %vm1068, %v5098, %v5100
        %v5102 = vrot.slane %v4479, 1
        %v5103 = vsel %vm1068, %v5100, %v5102
        %v5104 = vrot.slane %v4480, 1
        %v5105 = vsel %vm1068, %v5102, %v5104
        %v5106 = vrot.slane %v4481, 1
        %v5107 = vsel %vm1068, %v5104, %v5106
        %v5108 = vrot.slane %v4482, 1
        %v5109 = vsel %vm1068, %v5106, %v5108
        %v5110 = vrot.slane %v4483, 1
        %v5111 = vsel %vm1068, %v5108, %v5110
        %v5112 = vrot.slane %v4484, 1
        %v5113 = vsel %vm1068, %v5110, %v5112
        %v5114 = vrot.slane %v4485, 1
        %v5115 = vsel %vm1068, %v5112, %v5114
        %v5116 = vrot.slane %v4486, 1
        %v5117 = vsel %vm1068, %v5114, %v5116
        %v5118 = vrot.slane %v4487, 1
        %v5119 = vsel %vm1068, %v5116, %v5118
        %v5120 = vrot.slane %v4488, 1
        %v5121 = vsel %vm1068, %v5118, %v5120
        %v5123 = vsel %vm612, %v5087, 0
        %v5126 = vsel %vm612, %v5089, 0
        %v5129 = vsel %vm612, %v5091, 0
        %v5132 = vsel %vm612, %v5093, 0
        %v5135 = vsel %vm612, %v5095, 0
        %v5138 = vsel %vm612, %v5097, 0
        %v5141 = vsel %vm612, %v5099, 0
        %v5144 = vsel %vm612, %v5101, 0
        %v5147 = vsel %vm612, %v5103, 0
        %v5150 = vsel %vm612, %v5105, 0
        %v5153 = vsel %vm612, %v5107, 0
        %v5156 = vsel %vm612, %v5109, 0
        %v5159 = vsel %vm612, %v5111, 0
        %v5162 = vsel %vm612, %v5113, 0
        %v5165 = vsel %vm612, %v5115, 0
        %v5168 = vsel %vm612, %v5117, 0
        %v5171 = vsel %vm612, %v5119, 0
        %v5174 = vsel %vm612, %v5121, 0
        %5176 = vmatprep.subr.bf16.mxu0 0
        %5177 = vmatpush1.bf16.msra.mxu0 %v1161
        %5178 = vmatprep.subr.bf16.mxu0 0
        %5179 = vmatpush1.bf16.msra.mxu0 0
        %5180 = vmatprep.subr.bf16.mxu0 0
        %5181 = vmatpush1.bf16.msra.mxu0 0
        %5182 = vmatprep.subr.bf16.mxu0 0
        %5183 = vmatpush1.bf16.msra.mxu0 0
        %5184 = vmatprep.subr.bf16.mxu0 0
        %5185 = vmatpush1.bf16.msra.mxu0 0
        %5186 = vmatprep.subr.bf16.mxu0 0
        %5187 = vmatpush1.bf16.msra.mxu0 0
        %5188 = vmatprep.subr.bf16.mxu0 0
        %5189 = vmatpush1.bf16.msra.mxu0 0
        %5190 = vmatprep.subr.bf16.mxu0 0
        %5191 = vmatpush1.bf16.msra.mxu0 0
        %5192 = vmatprep.subr.bf16.mxu0 0
        %5193 = vmatpush1.bf16.msra.mxu0 0
        %5194 = vmatprep.subr.bf16.mxu0 0
        %5195 = vmatpush1.bf16.msra.mxu0 0
        %5196 = vmatprep.subr.bf16.mxu0 0
        %5197 = vmatpush1.bf16.msra.mxu0 0
        %5198 = vmatprep.subr.bf16.mxu0 0
        %5199 = vmatpush1.bf16.msra.mxu0 0
        %5200 = vmatprep.subr.bf16.mxu0 0
        %5201 = vmatpush1.bf16.msra.mxu0 0
        %5202 = vmatprep.subr.bf16.mxu0 0
        %5203 = vmatpush1.bf16.msra.mxu0 0
        %5204 = vmatprep.subr.bf16.mxu0 0
        %5205 = vmatpush1.bf16.msra.mxu0 0
        %5206 = vmatprep.subr.bf16.mxu0 0
        %5207 = vmatpush1.bf16.msra.mxu0 0
        %5208 = vmatprep.mubr.bf16.mxu0 0
        %5209 = vmatmul.mubr.bf16.gmra.mrb[0].mxu0 %v5123
        %v5210 = vpop.f32.mrb[0].mxu0
        %v5211 = vadd.f32 0.0, %v5210
        %v5212 = vpop.f32.mrb[0].mxu0
        %v5213 = vpop.f32.mrb[0].mxu0
        %v5214 = vadd.f32 0.0, %v5213
        %v5215 = vpop.f32.mrb[0].mxu0
        %5216 = vmatprep.mubr.bf16.mxu0 0
        %5217 = vmatmul.mubr.bf16.gmra.mrb[0].mxu0 %v5126
        %v5218 = vpop.f32.mrb[0].mxu0
        %v5219 = vadd.f32 0.0, %v5218
        %v5220 = vpop.f32.mrb[0].mxu0
        %v5221 = vpop.f32.mrb[0].mxu0
        %v5222 = vadd.f32 0.0, %v5221
        %v5223 = vpop.f32.mrb[0].mxu0
        %5224 = vmatprep.mubr.bf16.mxu0 0
        %5225 = vmatmul.mubr.bf16.gmra.mrb[0].mxu0 %v5129
        %v5226 = vpop.f32.mrb[0].mxu0
        %v5227 = vadd.f32 0.0, %v5226
        %v5228 = vpop.f32.mrb[0].mxu0
        %v5229 = vpop.f32.mrb[0].mxu0
        %v5230 = vadd.f32 0.0, %v5229
        %v5231 = vpop.f32.mrb[0].mxu0
        %5232 = vmatprep.mubr.bf16.mxu0 0
        %5233 = vmatmul.mubr.bf16.gmra.mrb[0].mxu0 %v5132
        %v5234 = vpop.f32.mrb[0].mxu0
        %v5235 = vadd.f32 0.0, %v5234
        %v5236 = vpop.f32.mrb[0].mxu0
        %v5237 = vpop.f32.mrb[0].mxu0
        %v5238 = vadd.f32 0.0, %v5237
        %v5239 = vpop.f32.mrb[0].mxu0
        %5240 = vmatprep.mubr.bf16.mxu0 0
        %5241 = vmatmul.mubr.bf16.gmra.mrb[0].mxu0 %v5135
        %v5242 = vpop.f32.mrb[0].mxu0
        %v5243 = vadd.f32 0.0, %v5242
        %v5244 = vpop.f32.mrb[0].mxu0
        %v5245 = vpop.f32.mrb[0].mxu0
        %v5246 = vadd.f32 0.0, %v5245
        %v5247 = vpop.f32.mrb[0].mxu0
        %5248 = vmatprep.mubr.bf16.mxu0 0
        %5249 = vmatmul.mubr.bf16.gmra.mrb[0].mxu0 %v5138
        %v5250 = vpop.f32.mrb[0].mxu0
        %v5251 = vadd.f32 0.0, %v5250
        %v5252 = vpop.f32.mrb[0].mxu0
        %v5253 = vpop.f32.mrb[0].mxu0
        %v5254 = vadd.f32 0.0, %v5253
        %v5255 = vpop.f32.mrb[0].mxu0
        %5256 = vmatprep.mubr.bf16.mxu0 0
        %5257 = vmatmul.mubr.bf16.gmra.mrb[0].mxu0 %v5141
        %v5258 = vpop.f32.mrb[0].mxu0
        %v5259 = vadd.f32 0.0, %v5258
        %v5260 = vpop.f32.mrb[0].mxu0
        %v5261 = vpop.f32.mrb[0].mxu0
        %v5262 = vadd.f32 0.0, %v5261
        %v5263 = vpop.f32.mrb[0].mxu0
        %5264 = vmatprep.mubr.bf16.mxu0 0
        %5265 = vmatmul.mubr.bf16.gmra.mrb[0].mxu0 %v5144
        %v5266 = vpop.f32.mrb[0].mxu0
        %v5267 = vadd.f32 0.0, %v5266
        %v5268 = vpop.f32.mrb[0].mxu0
        %v5269 = vpop.f32.mrb[0].mxu0
        %v5270 = vadd.f32 0.0, %v5269
        %v5271 = vpop.f32.mrb[0].mxu0
        %5272 = vmatprep.mubr.bf16.mxu0 0
        %5273 = vmatmul.mubr.bf16.gmra.mrb[0].mxu0 %v5147
        %v5274 = vpop.f32.mrb[0].mxu0
        %v5275 = vadd.f32 0.0, %v5274
        %v5276 = vpop.f32.mrb[0].mxu0
        %v5277 = vpop.f32.mrb[0].mxu0
        %v5278 = vadd.f32 0.0, %v5277
        %v5279 = vpop.f32.mrb[0].mxu0
        %5280 = vmatprep.mubr.bf16.mxu0 0
        %5281 = vmatmul.mubr.bf16.gmra.mrb[0].mxu0 %v5150
        %v5282 = vpop.f32.mrb[0].mxu0
        %v5283 = vadd.f32 0.0, %v5282
        %v5284 = vpop.f32.mrb[0].mxu0
        %v5285 = vpop.f32.mrb[0].mxu0
        %v5286 = vadd.f32 0.0, %v5285
        %v5287 = vpop.f32.mrb[0].mxu0
        %5288 = vmatprep.mubr.bf16.mxu0 0
        %5289 = vmatmul.mubr.bf16.gmra.mrb[0].mxu0 %v5153
        %v5290 = vpop.f32.mrb[0].mxu0
        %v5291 = vadd.f32 0.0, %v5290
        %v5292 = vpop.f32.mrb[0].mxu0
        %v5293 = vpop.f32.mrb[0].mxu0
        %v5294 = vadd.f32 0.0, %v5293
        %v5295 = vpop.f32.mrb[0].mxu0
        %5296 = vmatprep.mubr.bf16.mxu0 0
        %5297 = vmatmul.mubr.bf16.gmra.mrb[0].mxu0 %v5156
        %v5298 = vpop.f32.mrb[0].mxu0
        %v5299 = vadd.f32 0.0, %v5298
        %v5300 = vpop.f32.mrb[0].mxu0
        %v5301 = vpop.f32.mrb[0].mxu0
        %v5302 = vadd.f32 0.0, %v5301
        %v5303 = vpop.f32.mrb[0].mxu0
        %5304 = vmatprep.mubr.bf16.mxu0 0
        %5305 = vmatmul.mubr.bf16.gmra.mrb[0].mxu0 %v5159
        %v5306 = vpop.f32.mrb[0].mxu0
        %v5307 = vadd.f32 0.0, %v5306
        %v5308 = vpop.f32.mrb[0].mxu0
        %v5309 = vpop.f32.mrb[0].mxu0
        %v5310 = vadd.f32 0.0, %v5309
        %v5311 = vpop.f32.mrb[0].mxu0
        %5312 = vmatprep.mubr.bf16.mxu0 0
        %5313 = vmatmul.mubr.bf16.gmra.mrb[0].mxu0 %v5162
        %v5314 = vpop.f32.mrb[0].mxu0
        %v5315 = vadd.f32 0.0, %v5314
        %v5316 = vpop.f32.mrb[0].mxu0
        %v5317 = vpop.f32.mrb[0].mxu0
        %v5318 = vadd.f32 0.0, %v5317
        %v5319 = vpop.f32.mrb[0].mxu0
        %5320 = vmatprep.mubr.bf16.mxu0 0
        %5321 = vmatmul.mubr.bf16.gmra.mrb[0].mxu0 %v5165
        %v5322 = vpop.f32.mrb[0].mxu0
        %v5323 = vadd.f32 0.0, %v5322
        %v5324 = vpop.f32.mrb[0].mxu0
        %v5325 = vpop.f32.mrb[0].mxu0
        %v5326 = vadd.f32 0.0, %v5325
        %v5327 = vpop.f32.mrb[0].mxu0
        %5328 = vmatprep.mubr.bf16.mxu0 0
        %5329 = vmatmul.mubr.bf16.gmra.mrb[0].mxu0 %v5168
        %v5330 = vpop.f32.mrb[0].mxu0
        %v5331 = vadd.f32 0.0, %v5330
        %v5332 = vpop.f32.mrb[0].mxu0
        %v5333 = vpop.f32.mrb[0].mxu0
        %v5334 = vadd.f32 0.0, %v5333
        %v5335 = vpop.f32.mrb[0].mxu0
        %5336 = vmatprep.mubr.bf16.mxu0 0
        %5337 = vmatmul.mubr.bf16.gmra.mrb[0].mxu0 %v5171
        %v5338 = vpop.f32.mrb[0].mxu0
        %v5339 = vadd.f32 0.0, %v5338
        %v5340 = vpop.f32.mrb[0].mxu0
        %v5341 = vpop.f32.mrb[0].mxu0
        %v5342 = vadd.f32 0.0, %v5341
        %v5343 = vpop.f32.mrb[0].mxu0
        %5344 = vmatprep.mubr.bf16.mxu0 0
        %5345 = vmatmul.mubr.bf16.gmra.mrb[0].mxu0 %v5174
        %v5346 = vpop.f32.mrb[0].mxu0
        %v5347 = vadd.f32 0.0, %v5346
        %v5348 = vpop.f32.mrb[0].mxu0
        %v5349 = vpop.f32.mrb[0].mxu0
        %v5350 = vadd.f32 0.0, %v5349
        %v5351 = vpop.f32.mrb[0].mxu0
        %5352 = vdwg.mxu0
        %v5353 = vadd.f32 %v4939, %v5211
        %v5354 = vadd.f32 %v4942, %v5214
        %v5355 = vadd.f32 %v4947, %v5219
        %v5356 = vadd.f32 %v4950, %v5222
        %v5357 = vadd.f32 %v4955, %v5227
        %v5358 = vadd.f32 %v4958, %v5230
        %v5359 = vadd.f32 %v4963, %v5235
        %v5360 = vadd.f32 %v4966, %v5238
        %v5361 = vadd.f32 %v4971, %v5243
        %v5362 = vadd.f32 %v4974, %v5246
        %v5363 = vadd.f32 %v4979, %v5251
        %v5364 = vadd.f32 %v4982, %v5254
        %v5365 = vadd.f32 %v4987, %v5259
        %v5366 = vadd.f32 %v4990, %v5262
        %v5367 = vadd.f32 %v4995, %v5267
        %v5368 = vadd.f32 %v4998, %v5270
        %v5369 = vadd.f32 %v5003, %v5275
        %v5370 = vadd.f32 %v5006, %v5278
        %v5371 = vadd.f32 %v5011, %v5283
        %v5372 = vadd.f32 %v5014, %v5286
        %v5373 = vadd.f32 %v5019, %v5291
        %v5374 = vadd.f32 %v5022, %v5294
        %v5375 = vadd.f32 %v5027, %v5299
        %v5376 = vadd.f32 %v5030, %v5302
        %v5377 = vadd.f32 %v5035, %v5307
        %v5378 = vadd.f32 %v5038, %v5310
        %v5379 = vadd.f32 %v5043, %v5315
        %v5380 = vadd.f32 %v5046, %v5318
        %v5381 = vadd.f32 %v5051, %v5323
        %v5382 = vadd.f32 %v5054, %v5326
        %v5383 = vadd.f32 %v5059, %v5331
        %v5384 = vadd.f32 %v5062, %v5334
        %v5385 = vadd.f32 %v5067, %v5339
        %v5386 = vadd.f32 %v5070, %v5342
        %v5387 = vadd.f32 %v5075, %v5347
        %v5388 = vadd.f32 %v5078, %v5350
        %v5389 = vld [vmem:[%s272 + $0x8] sm:$0xe]
        %v5390 = vld [vmem:[%s272 + $0xc] sm:$0xf]
        %v5391 = vld [vmem:[%s272 + $0x10] sm:$0xf]
        %v5392 = vld [vmem:[%s272 + $0x14] sm:$0xf]
        %v5393 = vld [vmem:[%s272 + $0x18] sm:$0xf]
        %v5394 = vld [vmem:[%s272 + $0x1c] sm:$0xf]
        %v5395 = vld [vmem:[%s272 + $0x20] sm:$0xf]
        %v5396 = vld [vmem:[%s272 + $0x24] sm:$0xf]
        %v5397 = vld [vmem:[%s272 + $0x28] sm:$0xf]
        %v5398 = vld [vmem:[%s272 + $0x2c] sm:$0xf]
        %v5399 = vld [vmem:[%s272 + $0x30] sm:$0xf]
        %v5400 = vld [vmem:[%s272 + $0x34] sm:$0xf]
        %v5401 = vld [vmem:[%s272 + $0x38] sm:$0xf]
        %v5402 = vld [vmem:[%s272 + $0x3c] sm:$0xf]
        %v5403 = vld [vmem:[%s272 + $0x40] sm:$0xf]
        %v5404 = vld [vmem:[%s272 + $0x44] sm:$0xf]
        %v5405 = vld [vmem:[%s272 + $0x48] sm:$0xf]
        %v5406 = vld [vmem:[%s272 + $0x4c] sm:$0xf]
        %v5407 = vld [vmem:[%s272 + $0x50] sm:$0xf]
        %v5408 = vld [vmem:[%s272 + $0x54] sm:$0xf]
        %v5409 = vld [vmem:[%s272 + $0x58] sm:$0xf]
        %v5410 = vld [vmem:[%s272 + $0x5c] sm:$0xf]
        %v5411 = vld [vmem:[%s272 + $0x60] sm:$0xf]
        %v5412 = vld [vmem:[%s272 + $0x64] sm:$0xf]
        %v5413 = vld [vmem:[%s272 + $0x68] sm:$0xf]
        %v5414 = vld [vmem:[%s272 + $0x6c] sm:$0xf]
        %v5415 = vld [vmem:[%s272 + $0x70] sm:$0xf]
        %v5416 = vld [vmem:[%s272 + $0x74] sm:$0xf]
        %v5417 = vld [vmem:[%s272 + $0x78] sm:$0xf]
        %v5418 = vld [vmem:[%s272 + $0x7c] sm:$0xf]
        %v5419 = vld [vmem:[%s272 + $0x80] sm:$0xf]
        %v5420 = vld [vmem:[%s272 + $0x84] sm:$0xf]
        %v5421 = vld [vmem:[%s272 + $0x88] sm:$0xf]
        %v5422 = vld [vmem:[%s272 + $0x8c] sm:$0xf]
        %v5423 = vld [vmem:[%s272 + $0x90] sm:$0xf]
        %v5424 = vld [vmem:[%s272 + $0x94] sm:$0xf]
        %v5425 = vld [vmem:[%s272 + $0x98] sm:$0x1]
        %v5463 = vunpack.c.l.b16 %v5389
        %v5464 = vunpack.c.l.b16 %v5390
        %v5465 = vunpack.c.l.b16 %v5391
        %v5466 = vunpack.c.l.b16 %v5392
        %v5467 = vunpack.c.l.b16 %v5393
        %v5468 = vunpack.c.l.b16 %v5394
        %v5469 = vunpack.c.l.b16 %v5395
        %v5470 = vunpack.c.l.b16 %v5396
        %v5471 = vunpack.c.l.b16 %v5397
        %v5472 = vunpack.c.l.b16 %v5398
        %v5473 = vunpack.c.l.b16 %v5399
        %v5474 = vunpack.c.l.b16 %v5400
        %v5475 = vunpack.c.l.b16 %v5401
        %v5476 = vunpack.c.l.b16 %v5402
        %v5477 = vunpack.c.l.b16 %v5403
        %v5478 = vunpack.c.l.b16 %v5404
        %v5479 = vunpack.c.l.b16 %v5405
        %v5480 = vunpack.c.l.b16 %v5406
        %v5481 = vunpack.c.l.b16 %v5407
        %v5482 = vunpack.c.l.b16 %v5408
        %v5483 = vunpack.c.l.b16 %v5409
        %v5484 = vunpack.c.l.b16 %v5410
        %v5485 = vunpack.c.l.b16 %v5411
        %v5486 = vunpack.c.l.b16 %v5412
        %v5487 = vunpack.c.l.b16 %v5413
        %v5488 = vunpack.c.l.b16 %v5414
        %v5489 = vunpack.c.l.b16 %v5415
        %v5490 = vunpack.c.l.b16 %v5416
        %v5491 = vunpack.c.l.b16 %v5417
        %v5492 = vunpack.c.l.b16 %v5418
        %v5493 = vunpack.c.l.b16 %v5419
        %v5494 = vunpack.c.l.b16 %v5420
        %v5495 = vunpack.c.l.b16 %v5421
        %v5496 = vunpack.c.l.b16 %v5422
        %v5497 = vunpack.c.l.b16 %v5423
        %v5498 = vunpack.c.l.b16 %v5424
        %v5499 = vunpack.c.l.b16 %v5425
        %v5500 = vpack.c.b16 %v5464, %v5463
        %v5501 = vpack.c.b16 %v5466, %v5465
        %v5502 = vpack.c.b16 %v5468, %v5467
        %v5503 = vpack.c.b16 %v5470, %v5469
        %v5504 = vpack.c.b16 %v5472, %v5471
        %v5505 = vpack.c.b16 %v5474, %v5473
        %v5506 = vpack.c.b16 %v5476, %v5475
        %v5507 = vpack.c.b16 %v5478, %v5477
        %v5508 = vpack.c.b16 %v5480, %v5479
        %v5509 = vpack.c.b16 %v5482, %v5481
        %v5510 = vpack.c.b16 %v5484, %v5483
        %v5511 = vpack.c.b16 %v5486, %v5485
        %v5512 = vpack.c.b16 %v5488, %v5487
        %v5513 = vpack.c.b16 %v5490, %v5489
        %v5514 = vpack.c.b16 %v5492, %v5491
        %v5515 = vpack.c.b16 %v5494, %v5493
        %v5516 = vpack.c.b16 %v5496, %v5495
        %v5517 = vpack.c.b16 %v5498, %v5497
        %v5518 = vpack.c.b16 %v5499, %v5499
        %v5519 = vrot.slane %v5500, 1
        %v5520 = vrot.slane %v5501, 1
        %v5521 = vsel %vm1068, %v5519, %v5520
        %v5522 = vrot.slane %v5502, 1
        %v5523 = vsel %vm1068, %v5520, %v5522
        %v5524 = vrot.slane %v5503, 1
        %v5525 = vsel %vm1068, %v5522, %v5524
        %v5526 = vrot.slane %v5504, 1
        %v5527 = vsel %vm1068, %v5524, %v5526
        %v5528 = vrot.slane %v5505, 1
        %v5529 = vsel %vm1068, %v5526, %v5528
        %v5530 = vrot.slane %v5506, 1
        %v5531 = vsel %vm1068, %v5528, %v5530
        %v5532 = vrot.slane %v5507, 1
        %v5533 = vsel %vm1068, %v5530, %v5532
        %v5534 = vrot.slane %v5508, 1
        %v5535 = vsel %vm1068, %v5532, %v5534
        %v5536 = vrot.slane %v5509, 1
        %v5537 = vsel %vm1068, %v5534, %v5536
        %v5538 = vrot.slane %v5510, 1
        %v5539 = vsel %vm1068, %v5536, %v5538
        %v5540 = vrot.slane %v5511, 1
        %v5541 = vsel %vm1068, %v5538, %v5540
        %v5542 = vrot.slane %v5512, 1
        %v5543 = vsel %vm1068, %v5540, %v5542
        %v5544 = vrot.slane %v5513, 1
        %v5545 = vsel %vm1068, %v5542, %v5544
        %v5546 = vrot.slane %v5514, 1
        %v5547 = vsel %vm1068, %v5544, %v5546
        %v5548 = vrot.slane %v5515, 1
        %v5549 = vsel %vm1068, %v5546, %v5548
        %v5550 = vrot.slane %v5516, 1
        %v5551 = vsel %vm1068, %v5548, %v5550
        %v5552 = vrot.slane %v5517, 1
        %v5553 = vsel %vm1068, %v5550, %v5552
        %v5554 = vrot.slane %v5518, 1
        %v5555 = vsel %vm1068, %v5552, %v5554
        %v5557 = vsel %vm612, %v5521, 0
        %v5560 = vsel %vm612, %v5523, 0
        %v5563 = vsel %vm612, %v5525, 0
        %v5566 = vsel %vm612, %v5527, 0
        %v5569 = vsel %vm612, %v5529, 0
        %v5572 = vsel %vm612, %v5531, 0
        %v5575 = vsel %vm612, %v5533, 0
        %v5578 = vsel %vm612, %v5535, 0
        %v5581 = vsel %vm612, %v5537, 0
        %v5584 = vsel %vm612, %v5539, 0
        %v5587 = vsel %vm612, %v5541, 0
        %v5590 = vsel %vm612, %v5543, 0
        %v5593 = vsel %vm612, %v5545, 0
        %v5596 = vsel %vm612, %v5547, 0
        %v5599 = vsel %vm612, %v5549, 0
        %v5602 = vsel %vm612, %v5551, 0
        %v5605 = vsel %vm612, %v5553, 0
        %v5608 = vsel %vm612, %v5555, 0
        %5610 = vmatprep.subr.bf16.mxu0 0
        %5611 = vmatpush1.bf16.msra.mxu0 %v1598
        %5612 = vmatprep.subr.bf16.mxu0 0
        %5613 = vmatpush1.bf16.msra.mxu0 0
        %5614 = vmatprep.subr.bf16.mxu0 0
        %5615 = vmatpush1.bf16.msra.mxu0 0
        %5616 = vmatprep.subr.bf16.mxu0 0
        %5617 = vmatpush1.bf16.msra.mxu0 0
        %5618 = vmatprep.subr.bf16.mxu0 0
        %5619 = vmatpush1.bf16.msra.mxu0 0
        %5620 = vmatprep.subr.bf16.mxu0 0
        %5621 = vmatpush1.bf16.msra.mxu0 0
        %5622 = vmatprep.subr.bf16.mxu0 0
        %5623 = vmatpush1.bf16.msra.mxu0 0
        %5624 = vmatprep.subr.bf16.mxu0 0
        %5625 = vmatpush1.bf16.msra.mxu0 0
        %5626 = vmatprep.subr.bf16.mxu0 0
        %5627 = vmatpush1.bf16.msra.mxu0 0
        %5628 = vmatprep.subr.bf16.mxu0 0
        %5629 = vmatpush1.bf16.msra.mxu0 0
        %5630 = vmatprep.subr.bf16.mxu0 0
        %5631 = vmatpush1.bf16.msra.mxu0 0
        %5632 = vmatprep.subr.bf16.mxu0 0
        %5633 = vmatpush1.bf16.msra.mxu0 0
        %5634 = vmatprep.subr.bf16.mxu0 0
        %5635 = vmatpush1.bf16.msra.mxu0 0
        %5636 = vmatprep.subr.bf16.mxu0 0
        %5637 = vmatpush1.bf16.msra.mxu0 0
        %5638 = vmatprep.subr.bf16.mxu0 0
        %5639 = vmatpush1.bf16.msra.mxu0 0
        %5640 = vmatprep.subr.bf16.mxu0 0
        %5641 = vmatpush1.bf16.msra.mxu0 0
        %5642 = vmatprep.mubr.bf16.mxu0 0
        %5643 = vmatmul.mubr.bf16.gmra.mrb[0].mxu0 %v5557
        %v5644 = vpop.f32.mrb[0].mxu0
        %v5645 = vadd.f32 0.0, %v5644
        %v5646 = vpop.f32.mrb[0].mxu0
        %v5647 = vpop.f32.mrb[0].mxu0
        %v5648 = vadd.f32 0.0, %v5647
        %v5649 = vpop.f32.mrb[0].mxu0
        %5650 = vmatprep.mubr.bf16.mxu0 0
        %5651 = vmatmul.mubr.bf16.gmra.mrb[0].mxu0 %v5560
        %v5652 = vpop.f32.mrb[0].mxu0
        %v5653 = vadd.f32 0.0, %v5652
        %v5654 = vpop.f32.mrb[0].mxu0
        %v5655 = vpop.f32.mrb[0].mxu0
        %v5656 = vadd.f32 0.0, %v5655
        %v5657 = vpop.f32.mrb[0].mxu0
        %5658 = vmatprep.mubr.bf16.mxu0 0
        %5659 = vmatmul.mubr.bf16.gmra.mrb[0].mxu0 %v5563
        %v5660 = vpop.f32.mrb[0].mxu0
        %v5661 = vadd.f32 0.0, %v5660
        %v5662 = vpop.f32.mrb[0].mxu0
        %v5663 = vpop.f32.mrb[0].mxu0
        %v5664 = vadd.f32 0.0, %v5663
        %v5665 = vpop.f32.mrb[0].mxu0
        %5666 = vmatprep.mubr.bf16.mxu0 0
        %5667 = vmatmul.mubr.bf16.gmra.mrb[0].mxu0 %v5566
        %v5668 = vpop.f32.mrb[0].mxu0
        %v5669 = vadd.f32 0.0, %v5668
        %v5670 = vpop.f32.mrb[0].mxu0
        %v5671 = vpop.f32.mrb[0].mxu0
        %v5672 = vadd.f32 0.0, %v5671
        %v5673 = vpop.f32.mrb[0].mxu0
        %5674 = vmatprep.mubr.bf16.mxu0 0
        %5675 = vmatmul.mubr.bf16.gmra.mrb[0].mxu0 %v5569
        %v5676 = vpop.f32.mrb[0].mxu0
        %v5677 = vadd.f32 0.0, %v5676
        %v5678 = vpop.f32.mrb[0].mxu0
        %v5679 = vpop.f32.mrb[0].mxu0
        %v5680 = vadd.f32 0.0, %v5679
        %v5681 = vpop.f32.mrb[0].mxu0
        %5682 = vmatprep.mubr.bf16.mxu0 0
        %5683 = vmatmul.mubr.bf16.gmra.mrb[0].mxu0 %v5572
        %v5684 = vpop.f32.mrb[0].mxu0
        %v5685 = vadd.f32 0.0, %v5684
        %v5686 = vpop.f32.mrb[0].mxu0
        %v5687 = vpop.f32.mrb[0].mxu0
        %v5688 = vadd.f32 0.0, %v5687
        %v5689 = vpop.f32.mrb[0].mxu0
        %5690 = vmatprep.mubr.bf16.mxu0 0
        %5691 = vmatmul.mubr.bf16.gmra.mrb[0].mxu0 %v5575
        %v5692 = vpop.f32.mrb[0].mxu0
        %v5693 = vadd.f32 0.0, %v5692
        %v5694 = vpop.f32.mrb[0].mxu0
        %v5695 = vpop.f32.mrb[0].mxu0
        %v5696 = vadd.f32 0.0, %v5695
        %v5697 = vpop.f32.mrb[0].mxu0
        %5698 = vmatprep.mubr.bf16.mxu0 0
        %5699 = vmatmul.mubr.bf16.gmra.mrb[0].mxu0 %v5578
        %v5700 = vpop.f32.mrb[0].mxu0
        %v5701 = vadd.f32 0.0, %v5700
        %v5702 = vpop.f32.mrb[0].mxu0
        %v5703 = vpop.f32.mrb[0].mxu0
        %v5704 = vadd.f32 0.0, %v5703
        %v5705 = vpop.f32.mrb[0].mxu0
        %5706 = vmatprep.mubr.bf16.mxu0 0
        %5707 = vmatmul.mubr.bf16.gmra.mrb[0].mxu0 %v5581
        %v5708 = vpop.f32.mrb[0].mxu0
        %v5709 = vadd.f32 0.0, %v5708
        %v5710 = vpop.f32.mrb[0].mxu0
        %v5711 = vpop.f32.mrb[0].mxu0
        %v5712 = vadd.f32 0.0, %v5711
        %v5713 = vpop.f32.mrb[0].mxu0
        %5714 = vmatprep.mubr.bf16.mxu0 0
        %5715 = vmatmul.mubr.bf16.gmra.mrb[0].mxu0 %v5584
        %v5716 = vpop.f32.mrb[0].mxu0
        %v5717 = vadd.f32 0.0, %v5716
        %v5718 = vpop.f32.mrb[0].mxu0
        %v5719 = vpop.f32.mrb[0].mxu0
        %v5720 = vadd.f32 0.0, %v5719
        %v5721 = vpop.f32.mrb[0].mxu0
        %5722 = vmatprep.mubr.bf16.mxu0 0
        %5723 = vmatmul.mubr.bf16.gmra.mrb[0].mxu0 %v5587
        %v5724 = vpop.f32.mrb[0].mxu0
        %v5725 = vadd.f32 0.0, %v5724
        %v5726 = vpop.f32.mrb[0].mxu0
        %v5727 = vpop.f32.mrb[0].mxu0
        %v5728 = vadd.f32 0.0, %v5727
        %v5729 = vpop.f32.mrb[0].mxu0
        %5730 = vmatprep.mubr.bf16.mxu0 0
        %5731 = vmatmul.mubr.bf16.gmra.mrb[0].mxu0 %v5590
        %v5732 = vpop.f32.mrb[0].mxu0
        %v5733 = vadd.f32 0.0, %v5732
        %v5734 = vpop.f32.mrb[0].mxu0
        %v5735 = vpop.f32.mrb[0].mxu0
        %v5736 = vadd.f32 0.0, %v5735
        %v5737 = vpop.f32.mrb[0].mxu0
        %5738 = vmatprep.mubr.bf16.mxu0 0
        %5739 = vmatmul.mubr.bf16.gmra.mrb[0].mxu0 %v5593
        %v5740 = vpop.f32.mrb[0].mxu0
        %v5741 = vadd.f32 0.0, %v5740
        %v5742 = vpop.f32.mrb[0].mxu0
        %v5743 = vpop.f32.mrb[0].mxu0
        %v5744 = vadd.f32 0.0, %v5743
        %v5745 = vpop.f32.mrb[0].mxu0
        %5746 = vmatprep.mubr.bf16.mxu0 0
        %5747 = vmatmul.mubr.bf16.gmra.mrb[0].mxu0 %v5596
        %v5748 = vpop.f32.mrb[0].mxu0
        %v5749 = vadd.f32 0.0, %v5748
        %v5750 = vpop.f32.mrb[0].mxu0
        %v5751 = vpop.f32.mrb[0].mxu0
        %v5752 = vadd.f32 0.0, %v5751
        %v5753 = vpop.f32.mrb[0].mxu0
        %5754 = vmatprep.mubr.bf16.mxu0 0
        %5755 = vmatmul.mubr.bf16.gmra.mrb[0].mxu0 %v5599
        %v5756 = vpop.f32.mrb[0].mxu0
        %v5757 = vadd.f32 0.0, %v5756
        %v5758 = vpop.f32.mrb[0].mxu0
        %v5759 = vpop.f32.mrb[0].mxu0
        %v5760 = vadd.f32 0.0, %v5759
        %v5761 = vpop.f32.mrb[0].mxu0
        %5762 = vmatprep.mubr.bf16.mxu0 0
        %5763 = vmatmul.mubr.bf16.gmra.mrb[0].mxu0 %v5602
        %v5764 = vpop.f32.mrb[0].mxu0
        %v5765 = vadd.f32 0.0, %v5764
        %v5766 = vpop.f32.mrb[0].mxu0
        %v5767 = vpop.f32.mrb[0].mxu0
        %v5768 = vadd.f32 0.0, %v5767
        %v5769 = vpop.f32.mrb[0].mxu0
        %5770 = vmatprep.mubr.bf16.mxu0 0
        %5771 = vmatmul.mubr.bf16.gmra.mrb[0].mxu0 %v5605
        %v5772 = vpop.f32.mrb[0].mxu0
        %v5773 = vadd.f32 0.0, %v5772
        %v5774 = vpop.f32.mrb[0].mxu0
        %v5775 = vpop.f32.mrb[0].mxu0
        %v5776 = vadd.f32 0.0, %v5775
        %v5777 = vpop.f32.mrb[0].mxu0
        %5778 = vmatprep.mubr.bf16.mxu0 0
        %5779 = vmatmul.mubr.bf16.gmra.mrb[0].mxu0 %v5608
        %v5780 = vpop.f32.mrb[0].mxu0
        %v5781 = vadd.f32 0.0, %v5780
        %v5782 = vpop.f32.mrb[0].mxu0
        %v5783 = vpop.f32.mrb[0].mxu0
        %v5784 = vadd.f32 0.0, %v5783
        %v5785 = vpop.f32.mrb[0].mxu0
        %5786 = vdwg.mxu0
        %v5787 = vadd.f32 %v5353, %v5645
        %v5788 = vadd.f32 %v5354, %v5648
        %v5789 = vadd.f32 %v5355, %v5653
        %v5790 = vadd.f32 %v5356, %v5656
        %v5791 = vadd.f32 %v5357, %v5661
        %v5792 = vadd.f32 %v5358, %v5664
        %v5793 = vadd.f32 %v5359, %v5669
        %v5794 = vadd.f32 %v5360, %v5672
        %v5795 = vadd.f32 %v5361, %v5677
        %v5796 = vadd.f32 %v5362, %v5680
        %v5797 = vadd.f32 %v5363, %v5685
        %v5798 = vadd.f32 %v5364, %v5688
        %v5799 = vadd.f32 %v5365, %v5693
        %v5800 = vadd.f32 %v5366, %v5696
        %v5801 = vadd.f32 %v5367, %v5701
        %v5802 = vadd.f32 %v5368, %v5704
        %v5803 = vadd.f32 %v5369, %v5709
        %v5804 = vadd.f32 %v5370, %v5712
        %v5805 = vadd.f32 %v5371, %v5717
        %v5806 = vadd.f32 %v5372, %v5720
        %v5807 = vadd.f32 %v5373, %v5725
        %v5808 = vadd.f32 %v5374, %v5728
        %v5809 = vadd.f32 %v5375, %v5733
        %v5810 = vadd.f32 %v5376, %v5736
        %v5811 = vadd.f32 %v5377, %v5741
        %v5812 = vadd.f32 %v5378, %v5744
        %v5813 = vadd.f32 %v5379, %v5749
        %v5814 = vadd.f32 %v5380, %v5752
        %v5815 = vadd.f32 %v5381, %v5757
        %v5816 = vadd.f32 %v5382, %v5760
        %v5817 = vadd.f32 %v5383, %v5765
        %v5818 = vadd.f32 %v5384, %v5768
        %v5819 = vadd.f32 %v5385, %v5773
        %v5820 = vadd.f32 %v5386, %v5776
        %v5821 = vadd.f32 %v5387, %v5781
        %v5822 = vadd.f32 %v5388, %v5784
        %v5823 = vld [vmem:[%s272 + $0x98] sm:$0x3]
        %v5825 = vunpack.c.l.b16 %v5823
        %v5826 = vpack.c.b16 %v5825, %v5825
        %v5828 = vshrl.u32 %v5500, 16
        %v5830 = vrot.slane %v5828, 1
        %v5831 = vshll.u32 %v5500, 16
        %v5833 = vrot.slane %v5831, 2
        %v5834 = vor.u32 %v5830, %v5833
        %v5836 = vshrl.u32 %v5501, 16
        %v5838 = vrot.slane %v5836, 1
        %v5839 = vshll.u32 %v5501, 16
        %v5841 = vrot.slane %v5839, 2
        %v5842 = vor.u32 %v5838, %v5841
        %v5843 = vsel %vm1817, %v5834, %v5842
        %v5845 = vshrl.u32 %v5502, 16
        %v5847 = vrot.slane %v5845, 1
        %v5848 = vshll.u32 %v5502, 16
        %v5850 = vrot.slane %v5848, 2
        %v5851 = vor.u32 %v5847, %v5850
        %v5852 = vsel %vm1817, %v5842, %v5851
        %v5854 = vshrl.u32 %v5503, 16
        %v5856 = vrot.slane %v5854, 1
        %v5857 = vshll.u32 %v5503, 16
        %v5859 = vrot.slane %v5857, 2
        %v5860 = vor.u32 %v5856, %v5859
        %v5861 = vsel %vm1817, %v5851, %v5860
        %v5863 = vshrl.u32 %v5504, 16
        %v5865 = vrot.slane %v5863, 1
        %v5866 = vshll.u32 %v5504, 16
        %v5868 = vrot.slane %v5866, 2
        %v5869 = vor.u32 %v5865, %v5868
        %v5870 = vsel %vm1817, %v5860, %v5869
        %v5872 = vshrl.u32 %v5505, 16
        %v5874 = vrot.slane %v5872, 1
        %v5875 = vshll.u32 %v5505, 16
        %v5877 = vrot.slane %v5875, 2
        %v5878 = vor.u32 %v5874, %v5877
        %v5879 = vsel %vm1817, %v5869, %v5878
        %v5881 = vshrl.u32 %v5506, 16
        %v5883 = vrot.slane %v5881, 1
        %v5884 = vshll.u32 %v5506, 16
        %v5886 = vrot.slane %v5884, 2
        %v5887 = vor.u32 %v5883, %v5886
        %v5888 = vsel %vm1817, %v5878, %v5887
        %v5890 = vshrl.u32 %v5507, 16
        %v5892 = vrot.slane %v5890, 1
        %v5893 = vshll.u32 %v5507, 16
        %v5895 = vrot.slane %v5893, 2
        %v5896 = vor.u32 %v5892, %v5895
        %v5897 = vsel %vm1817, %v5887, %v5896
        %v5899 = vshrl.u32 %v5508, 16
        %v5901 = vrot.slane %v5899, 1
        %v5902 = vshll.u32 %v5508, 16
        %v5904 = vrot.slane %v5902, 2
        %v5905 = vor.u32 %v5901, %v5904
        %v5906 = vsel %vm1817, %v5896, %v5905
        %v5908 = vshrl.u32 %v5509, 16
        %v5910 = vrot.slane %v5908, 1
        %v5911 = vshll.u32 %v5509, 16
        %v5913 = vrot.slane %v5911, 2
        %v5914 = vor.u32 %v5910, %v5913
        %v5915 = vsel %vm1817, %v5905, %v5914
        %v5917 = vshrl.u32 %v5510, 16
        %v5919 = vrot.slane %v5917, 1
        %v5920 = vshll.u32 %v5510, 16
        %v5922 = vrot.slane %v5920, 2
        %v5923 = vor.u32 %v5919, %v5922
        %v5924 = vsel %vm1817, %v5914, %v5923
        %v5926 = vshrl.u32 %v5511, 16
        %v5928 = vrot.slane %v5926, 1
        %v5929 = vshll.u32 %v5511, 16
        %v5931 = vrot.slane %v5929, 2
        %v5932 = vor.u32 %v5928, %v5931
        %v5933 = vsel %vm1817, %v5923, %v5932
        %v5935 = vshrl.u32 %v5512, 16
        %v5937 = vrot.slane %v5935, 1
        %v5938 = vshll.u32 %v5512, 16
        %v5940 = vrot.slane %v5938, 2
        %v5941 = vor.u32 %v5937, %v5940
        %v5942 = vsel %vm1817, %v5932, %v5941
        %v5944 = vshrl.u32 %v5513, 16
        %v5946 = vrot.slane %v5944, 1
        %v5947 = vshll.u32 %v5513, 16
        %v5949 = vrot.slane %v5947, 2
        %v5950 = vor.u32 %v5946, %v5949
        %v5951 = vsel %vm1817, %v5941, %v5950
        %v5953 = vshrl.u32 %v5514, 16
        %v5955 = vrot.slane %v5953, 1
        %v5956 = vshll.u32 %v5514, 16
        %v5958 = vrot.slane %v5956, 2
        %v5959 = vor.u32 %v5955, %v5958
        %v5960 = vsel %vm1817, %v5950, %v5959
        %v5962 = vshrl.u32 %v5515, 16
        %v5964 = vrot.slane %v5962, 1
        %v5965 = vshll.u32 %v5515, 16
        %v5967 = vrot.slane %v5965, 2
        %v5968 = vor.u32 %v5964, %v5967
        %v5969 = vsel %vm1817, %v5959, %v5968
        %v5971 = vshrl.u32 %v5516, 16
        %v5973 = vrot.slane %v5971, 1
        %v5974 = vshll.u32 %v5516, 16
        %v5976 = vrot.slane %v5974, 2
        %v5977 = vor.u32 %v5973, %v5976
        %v5978 = vsel %vm1817, %v5968, %v5977
        %v5980 = vshrl.u32 %v5517, 16
        %v5982 = vrot.slane %v5980, 1
        %v5983 = vshll.u32 %v5517, 16
        %v5985 = vrot.slane %v5983, 2
        %v5986 = vor.u32 %v5982, %v5985
        %v5987 = vsel %vm1817, %v5977, %v5986
        %v5989 = vshrl.u32 %v5826, 16
        %v5991 = vrot.slane %v5989, 1
        %v5992 = vshll.u32 %v5826, 16
        %v5994 = vrot.slane %v5992, 2
        %v5995 = vor.u32 %v5991, %v5994
        %v5996 = vsel %vm1817, %v5986, %v5995
        %v5998 = vsel %vm612, %v5843, 0
        %v6001 = vsel %vm612, %v5852, 0
        %v6004 = vsel %vm612, %v5861, 0
        %v6007 = vsel %vm612, %v5870, 0
        %v6010 = vsel %vm612, %v5879, 0
        %v6013 = vsel %vm612, %v5888, 0
        %v6016 = vsel %vm612, %v5897, 0
        %v6019 = vsel %vm612, %v5906, 0
        %v6022 = vsel %vm612, %v5915, 0
        %v6025 = vsel %vm612, %v5924, 0
        %v6028 = vsel %vm612, %v5933, 0
        %v6031 = vsel %vm612, %v5942, 0
        %v6034 = vsel %vm612, %v5951, 0
        %v6037 = vsel %vm612, %v5960, 0
        %v6040 = vsel %vm612, %v5969, 0
        %v6043 = vsel %vm612, %v5978, 0
        %v6046 = vsel %vm612, %v5987, 0
        %v6049 = vsel %vm612, %v5996, 0
        %6051 = vmatprep.subr.bf16.mxu0 0
        %6052 = vmatpush1.bf16.msra.mxu0 %v2043
        %6053 = vmatprep.subr.bf16.mxu0 0
        %6054 = vmatpush1.bf16.msra.mxu0 0
        %6055 = vmatprep.subr.bf16.mxu0 0
        %6056 = vmatpush1.bf16.msra.mxu0 0
        %6057 = vmatprep.subr.bf16.mxu0 0
        %6058 = vmatpush1.bf16.msra.mxu0 0
        %6059 = vmatprep.subr.bf16.mxu0 0
        %6060 = vmatpush1.bf16.msra.mxu0 0
        %6061 = vmatprep.subr.bf16.mxu0 0
        %6062 = vmatpush1.bf16.msra.mxu0 0
        %6063 = vmatprep.subr.bf16.mxu0 0
        %6064 = vmatpush1.bf16.msra.mxu0 0
        %6065 = vmatprep.subr.bf16.mxu0 0
        %6066 = vmatpush1.bf16.msra.mxu0 0
        %6067 = vmatprep.subr.bf16.mxu0 0
        %6068 = vmatpush1.bf16.msra.mxu0 0
        %6069 = vmatprep.subr.bf16.mxu0 0
        %6070 = vmatpush1.bf16.msra.mxu0 0
        %6071 = vmatprep.subr.bf16.mxu0 0
        %6072 = vmatpush1.bf16.msra.mxu0 0
        %6073 = vmatprep.subr.bf16.mxu0 0
        %6074 = vmatpush1.bf16.msra.mxu0 0
        %6075 = vmatprep.subr.bf16.mxu0 0
        %6076 = vmatpush1.bf16.msra.mxu0 0
        %6077 = vmatprep.subr.bf16.mxu0 0
        %6078 = vmatpush1.bf16.msra.mxu0 0
        %6079 = vmatprep.subr.bf16.mxu0 0
        %6080 = vmatpush1.bf16.msra.mxu0 0
        %6081 = vmatprep.subr.bf16.mxu0 0
        %6082 = vmatpush1.bf16.msra.mxu0 0
        %6083 = vmatprep.mubr.bf16.mxu0 0
        %6084 = vmatmul.mubr.bf16.gmra.mrb[0].mxu0 %v5998
        %v6085 = vpop.f32.mrb[0].mxu0
        %v6086 = vadd.f32 0.0, %v6085
        %v6087 = vpop.f32.mrb[0].mxu0
        %v6088 = vpop.f32.mrb[0].mxu0
        %v6089 = vadd.f32 0.0, %v6088
        %v6090 = vpop.f32.mrb[0].mxu0
        %6091 = vmatprep.mubr.bf16.mxu0 0
        %6092 = vmatmul.mubr.bf16.gmra.mrb[0].mxu0 %v6001
        %v6093 = vpop.f32.mrb[0].mxu0
        %v6094 = vadd.f32 0.0, %v6093
        %v6095 = vpop.f32.mrb[0].mxu0
        %v6096 = vpop.f32.mrb[0].mxu0
        %v6097 = vadd.f32 0.0, %v6096
        %v6098 = vpop.f32.mrb[0].mxu0
        %6099 = vmatprep.mubr.bf16.mxu0 0
        %6100 = vmatmul.mubr.bf16.gmra.mrb[0].mxu0 %v6004
        %v6101 = vpop.f32.mrb[0].mxu0
        %v6102 = vadd.f32 0.0, %v6101
        %v6103 = vpop.f32.mrb[0].mxu0
        %v6104 = vpop.f32.mrb[0].mxu0
        %v6105 = vadd.f32 0.0, %v6104
        %v6106 = vpop.f32.mrb[0].mxu0
        %6107 = vmatprep.mubr.bf16.mxu0 0
        %6108 = vmatmul.mubr.bf16.gmra.mrb[0].mxu0 %v6007
        %v6109 = vpop.f32.mrb[0].mxu0
        %v6110 = vadd.f32 0.0, %v6109
        %v6111 = vpop.f32.mrb[0].mxu0
        %v6112 = vpop.f32.mrb[0].mxu0
        %v6113 = vadd.f32 0.0, %v6112
        %v6114 = vpop.f32.mrb[0].mxu0
        %6115 = vmatprep.mubr.bf16.mxu0 0
        %6116 = vmatmul.mubr.bf16.gmra.mrb[0].mxu0 %v6010
        %v6117 = vpop.f32.mrb[0].mxu0
        %v6118 = vadd.f32 0.0, %v6117
        %v6119 = vpop.f32.mrb[0].mxu0
        %v6120 = vpop.f32.mrb[0].mxu0
        %v6121 = vadd.f32 0.0, %v6120
        %v6122 = vpop.f32.mrb[0].mxu0
        %6123 = vmatprep.mubr.bf16.mxu0 0
        %6124 = vmatmul.mubr.bf16.gmra.mrb[0].mxu0 %v6013
        %v6125 = vpop.f32.mrb[0].mxu0
        %v6126 = vadd.f32 0.0, %v6125
        %v6127 = vpop.f32.mrb[0].mxu0
        %v6128 = vpop.f32.mrb[0].mxu0
        %v6129 = vadd.f32 0.0, %v6128
        %v6130 = vpop.f32.mrb[0].mxu0
        %6131 = vmatprep.mubr.bf16.mxu0 0
        %6132 = vmatmul.mubr.bf16.gmra.mrb[0].mxu0 %v6016
        %v6133 = vpop.f32.mrb[0].mxu0
        %v6134 = vadd.f32 0.0, %v6133
        %v6135 = vpop.f32.mrb[0].mxu0
        %v6136 = vpop.f32.mrb[0].mxu0
        %v6137 = vadd.f32 0.0, %v6136
        %v6138 = vpop.f32.mrb[0].mxu0
        %6139 = vmatprep.mubr.bf16.mxu0 0
        %6140 = vmatmul.mubr.bf16.gmra.mrb[0].mxu0 %v6019
        %v6141 = vpop.f32.mrb[0].mxu0
        %v6142 = vadd.f32 0.0, %v6141
        %v6143 = vpop.f32.mrb[0].mxu0
        %v6144 = vpop.f32.mrb[0].mxu0
        %v6145 = vadd.f32 0.0, %v6144
        %v6146 = vpop.f32.mrb[0].mxu0
        %6147 = vmatprep.mubr.bf16.mxu0 0
        %6148 = vmatmul.mubr.bf16.gmra.mrb[0].mxu0 %v6022
        %v6149 = vpop.f32.mrb[0].mxu0
        %v6150 = vadd.f32 0.0, %v6149
        %v6151 = vpop.f32.mrb[0].mxu0
        %v6152 = vpop.f32.mrb[0].mxu0
        %v6153 = vadd.f32 0.0, %v6152
        %v6154 = vpop.f32.mrb[0].mxu0
        %6155 = vmatprep.mubr.bf16.mxu0 0
        %6156 = vmatmul.mubr.bf16.gmra.mrb[0].mxu0 %v6025
        %v6157 = vpop.f32.mrb[0].mxu0
        %v6158 = vadd.f32 0.0, %v6157
        %v6159 = vpop.f32.mrb[0].mxu0
        %v6160 = vpop.f32.mrb[0].mxu0
        %v6161 = vadd.f32 0.0, %v6160
        %v6162 = vpop.f32.mrb[0].mxu0
        %6163 = vmatprep.mubr.bf16.mxu0 0
        %6164 = vmatmul.mubr.bf16.gmra.mrb[0].mxu0 %v6028
        %v6165 = vpop.f32.mrb[0].mxu0
        %v6166 = vadd.f32 0.0, %v6165
        %v6167 = vpop.f32.mrb[0].mxu0
        %v6168 = vpop.f32.mrb[0].mxu0
        %v6169 = vadd.f32 0.0, %v6168
        %v6170 = vpop.f32.mrb[0].mxu0
        %6171 = vmatprep.mubr.bf16.mxu0 0
        %6172 = vmatmul.mubr.bf16.gmra.mrb[0].mxu0 %v6031
        %v6173 = vpop.f32.mrb[0].mxu0
        %v6174 = vadd.f32 0.0, %v6173
        %v6175 = vpop.f32.mrb[0].mxu0
        %v6176 = vpop.f32.mrb[0].mxu0
        %v6177 = vadd.f32 0.0, %v6176
        %v6178 = vpop.f32.mrb[0].mxu0
        %6179 = vmatprep.mubr.bf16.mxu0 0
        %6180 = vmatmul.mubr.bf16.gmra.mrb[0].mxu0 %v6034
        %v6181 = vpop.f32.mrb[0].mxu0
        %v6182 = vadd.f32 0.0, %v6181
        %v6183 = vpop.f32.mrb[0].mxu0
        %v6184 = vpop.f32.mrb[0].mxu0
        %v6185 = vadd.f32 0.0, %v6184
        %v6186 = vpop.f32.mrb[0].mxu0
        %6187 = vmatprep.mubr.bf16.mxu0 0
        %6188 = vmatmul.mubr.bf16.gmra.mrb[0].mxu0 %v6037
        %v6189 = vpop.f32.mrb[0].mxu0
        %v6190 = vadd.f32 0.0, %v6189
        %v6191 = vpop.f32.mrb[0].mxu0
        %v6192 = vpop.f32.mrb[0].mxu0
        %v6193 = vadd.f32 0.0, %v6192
        %v6194 = vpop.f32.mrb[0].mxu0
        %6195 = vmatprep.mubr.bf16.mxu0 0
        %6196 = vmatmul.mubr.bf16.gmra.mrb[0].mxu0 %v6040
        %v6197 = vpop.f32.mrb[0].mxu0
        %v6198 = vadd.f32 0.0, %v6197
        %v6199 = vpop.f32.mrb[0].mxu0
        %v6200 = vpop.f32.mrb[0].mxu0
        %v6201 = vadd.f32 0.0, %v6200
        %v6202 = vpop.f32.mrb[0].mxu0
        %6203 = vmatprep.mubr.bf16.mxu0 0
        %6204 = vmatmul.mubr.bf16.gmra.mrb[0].mxu0 %v6043
        %v6205 = vpop.f32.mrb[0].mxu0
        %v6206 = vadd.f32 0.0, %v6205
        %v6207 = vpop.f32.mrb[0].mxu0
        %v6208 = vpop.f32.mrb[0].mxu0
        %v6209 = vadd.f32 0.0, %v6208
        %v6210 = vpop.f32.mrb[0].mxu0
        %6211 = vmatprep.mubr.bf16.mxu0 0
        %6212 = vmatmul.mubr.bf16.gmra.mrb[0].mxu0 %v6046
        %v6213 = vpop.f32.mrb[0].mxu0
        %v6214 = vadd.f32 0.0, %v6213
        %v6215 = vpop.f32.mrb[0].mxu0
        %v6216 = vpop.f32.mrb[0].mxu0
        %v6217 = vadd.f32 0.0, %v6216
        %v6218 = vpop.f32.mrb[0].mxu0
        %6219 = vmatprep.mubr.bf16.mxu0 0
        %6220 = vmatmul.mubr.bf16.gmra.mrb[0].mxu0 %v6049
        %v6221 = vpop.f32.mrb[0].mxu0
        %v6222 = vadd.f32 0.0, %v6221
        %v6223 = vpop.f32.mrb[0].mxu0
        %v6224 = vpop.f32.mrb[0].mxu0
        %v6225 = vadd.f32 0.0, %v6224
        %v6226 = vpop.f32.mrb[0].mxu0
        %6227 = vdwg.mxu0
        %v6228 = vadd.f32 %v5787, %v6086
        %v6229 = vadd.f32 %v5788, %v6089
        %v6230 = vadd.f32 %v5789, %v6094
        %v6231 = vadd.f32 %v5790, %v6097
        %v6232 = vadd.f32 %v5791, %v6102
        %v6233 = vadd.f32 %v5792, %v6105
        %v6234 = vadd.f32 %v5793, %v6110
        %v6235 = vadd.f32 %v5794, %v6113
        %v6236 = vadd.f32 %v5795, %v6118
        %v6237 = vadd.f32 %v5796, %v6121
        %v6238 = vadd.f32 %v5797, %v6126
        %v6239 = vadd.f32 %v5798, %v6129
        %v6240 = vadd.f32 %v5799, %v6134
        %v6241 = vadd.f32 %v5800, %v6137
        %v6242 = vadd.f32 %v5801, %v6142
        %v6243 = vadd.f32 %v5802, %v6145
        %v6244 = vadd.f32 %v5803, %v6150
        %v6245 = vadd.f32 %v5804, %v6153
        %v6246 = vadd.f32 %v5805, %v6158
        %v6247 = vadd.f32 %v5806, %v6161
        %v6248 = vadd.f32 %v5807, %v6166
        %v6249 = vadd.f32 %v5808, %v6169
        %v6250 = vadd.f32 %v5809, %v6174
        %v6251 = vadd.f32 %v5810, %v6177
        %v6252 = vadd.f32 %v5811, %v6182
        %v6253 = vadd.f32 %v5812, %v6185
        %v6254 = vadd.f32 %v5813, %v6190
        %v6255 = vadd.f32 %v5814, %v6193
        %v6256 = vadd.f32 %v5815, %v6198
        %v6257 = vadd.f32 %v5816, %v6201
        %v6258 = vadd.f32 %v5817, %v6206
        %v6259 = vadd.f32 %v5818, %v6209
        %v6260 = vadd.f32 %v5819, %v6214
        %v6261 = vadd.f32 %v5820, %v6217
        %v6262 = vadd.f32 %v5821, %v6222
        %v6263 = vadd.f32 %v5822, %v6225
        %v6264 = vld [vmem:[%s272 + $0x8] sm:$0xc]
        %v6266 = vunpack.c.l.b16 %v6264
        %v6267 = vpack.c.b16 %v5464, %v6266
        %v6268 = vrot.slane %v6267, 2
        %v6269 = vrot.slane %v5501, 2
        %v6270 = vsel %vm2262, %v6268, %v6269
        %v6271 = vrot.slane %v5502, 2
        %v6272 = vsel %vm2262, %v6269, %v6271
        %v6273 = vrot.slane %v5503, 2
        %v6274 = vsel %vm2262, %v6271, %v6273
        %v6275 = vrot.slane %v5504, 2
        %v6276 = vsel %vm2262, %v6273, %v6275
        %v6277 = vrot.slane %v5505, 2
        %v6278 = vsel %vm2262, %v6275, %v6277
        %v6279 = vrot.slane %v5506, 2
        %v6280 = vsel %vm2262, %v6277, %v6279
        %v6281 = vrot.slane %v5507, 2
        %v6282 = vsel %vm2262, %v6279, %v6281
        %v6283 = vrot.slane %v5508, 2
        %v6284 = vsel %vm2262, %v6281, %v6283
        %v6285 = vrot.slane %v5509, 2
        %v6286 = vsel %vm2262, %v6283, %v6285
        %v6287 = vrot.slane %v5510, 2
        %v6288 = vsel %vm2262, %v6285, %v6287
        %v6289 = vrot.slane %v5511, 2
        %v6290 = vsel %vm2262, %v6287, %v6289
        %v6291 = vrot.slane %v5512, 2
        %v6292 = vsel %vm2262, %v6289, %v6291
        %v6293 = vrot.slane %v5513, 2
        %v6294 = vsel %vm2262, %v6291, %v6293
        %v6295 = vrot.slane %v5514, 2
        %v6296 = vsel %vm2262, %v6293, %v6295
        %v6297 = vrot.slane %v5515, 2
        %v6298 = vsel %vm2262, %v6295, %v6297
        %v6299 = vrot.slane %v5516, 2
        %v6300 = vsel %vm2262, %v6297, %v6299
        %v6301 = vrot.slane %v5517, 2
        %v6302 = vsel %vm2262, %v6299, %v6301
        %v6303 = vrot.slane %v5826, 2
        %v6304 = vsel %vm2262, %v6301, %v6303
        %v6306 = vsel %vm612, %v6270, 0
        %v6309 = vsel %vm612, %v6272, 0
        %v6312 = vsel %vm612, %v6274, 0
        %v6315 = vsel %vm612, %v6276, 0
        %v6318 = vsel %vm612, %v6278, 0
        %v6321 = vsel %vm612, %v6280, 0
        %v6324 = vsel %vm612, %v6282, 0
        %v6327 = vsel %vm612, %v6284, 0
        %v6330 = vsel %vm612, %v6286, 0
        %v6333 = vsel %vm612, %v6288, 0
        %v6336 = vsel %vm612, %v6290, 0
        %v6339 = vsel %vm612, %v6292, 0
        %v6342 = vsel %vm612, %v6294, 0
        %v6345 = vsel %vm612, %v6296, 0
        %v6348 = vsel %vm612, %v6298, 0
        %v6351 = vsel %vm612, %v6300, 0
        %v6354 = vsel %vm612, %v6302, 0
        %v6357 = vsel %vm612, %v6304, 0
        %6359 = vmatprep.subr.bf16.mxu0 0
        %6360 = vmatpush1.bf16.msra.mxu0 %v2355
        %6361 = vmatprep.subr.bf16.mxu0 0
        %6362 = vmatpush1.bf16.msra.mxu0 0
        %6363 = vmatprep.subr.bf16.mxu0 0
        %6364 = vmatpush1.bf16.msra.mxu0 0
        %6365 = vmatprep.subr.bf16.mxu0 0
        %6366 = vmatpush1.bf16.msra.mxu0 0
        %6367 = vmatprep.subr.bf16.mxu0 0
        %6368 = vmatpush1.bf16.msra.mxu0 0
        %6369 = vmatprep.subr.bf16.mxu0 0
        %6370 = vmatpush1.bf16.msra.mxu0 0
        %6371 = vmatprep.subr.bf16.mxu0 0
        %6372 = vmatpush1.bf16.msra.mxu0 0
        %6373 = vmatprep.subr.bf16.mxu0 0
        %6374 = vmatpush1.bf16.msra.mxu0 0
        %6375 = vmatprep.subr.bf16.mxu0 0
        %6376 = vmatpush1.bf16.msra.mxu0 0
        %6377 = vmatprep.subr.bf16.mxu0 0
        %6378 = vmatpush1.bf16.msra.mxu0 0
        %6379 = vmatprep.subr.bf16.mxu0 0
        %6380 = vmatpush1.bf16.msra.mxu0 0
        %6381 = vmatprep.subr.bf16.mxu0 0
        %6382 = vmatpush1.bf16.msra.mxu0 0
        %6383 = vmatprep.subr.bf16.mxu0 0
        %6384 = vmatpush1.bf16.msra.mxu0 0
        %6385 = vmatprep.subr.bf16.mxu0 0
        %6386 = vmatpush1.bf16.msra.mxu0 0
        %6387 = vmatprep.subr.bf16.mxu0 0
        %6388 = vmatpush1.bf16.msra.mxu0 0
        %6389 = vmatprep.subr.bf16.mxu0 0
        %6390 = vmatpush1.bf16.msra.mxu0 0
        %6391 = vmatprep.mubr.bf16.mxu0 0
        %6392 = vmatmul.mubr.bf16.gmra.mrb[0].mxu0 %v6306
        %v6393 = vpop.f32.mrb[0].mxu0
        %v6394 = vadd.f32 0.0, %v6393
        %v6395 = vpop.f32.mrb[0].mxu0
        %v6396 = vpop.f32.mrb[0].mxu0
        %v6397 = vadd.f32 0.0, %v6396
        %v6398 = vpop.f32.mrb[0].mxu0
        %6399 = vmatprep.mubr.bf16.mxu0 0
        %6400 = vmatmul.mubr.bf16.gmra.mrb[0].mxu0 %v6309
        %v6401 = vpop.f32.mrb[0].mxu0
        %v6402 = vadd.f32 0.0, %v6401
        %v6403 = vpop.f32.mrb[0].mxu0
        %v6404 = vpop.f32.mrb[0].mxu0
        %v6405 = vadd.f32 0.0, %v6404
        %v6406 = vpop.f32.mrb[0].mxu0
        %6407 = vmatprep.mubr.bf16.mxu0 0
        %6408 = vmatmul.mubr.bf16.gmra.mrb[0].mxu0 %v6312
        %v6409 = vpop.f32.mrb[0].mxu0
        %v6410 = vadd.f32 0.0, %v6409
        %v6411 = vpop.f32.mrb[0].mxu0
        %v6412 = vpop.f32.mrb[0].mxu0
        %v6413 = vadd.f32 0.0, %v6412
        %v6414 = vpop.f32.mrb[0].mxu0
        %6415 = vmatprep.mubr.bf16.mxu0 0
        %6416 = vmatmul.mubr.bf16.gmra.mrb[0].mxu0 %v6315
        %v6417 = vpop.f32.mrb[0].mxu0
        %v6418 = vadd.f32 0.0, %v6417
        %v6419 = vpop.f32.mrb[0].mxu0
        %v6420 = vpop.f32.mrb[0].mxu0
        %v6421 = vadd.f32 0.0, %v6420
        %v6422 = vpop.f32.mrb[0].mxu0
        %6423 = vmatprep.mubr.bf16.mxu0 0
        %6424 = vmatmul.mubr.bf16.gmra.mrb[0].mxu0 %v6318
        %v6425 = vpop.f32.mrb[0].mxu0
        %v6426 = vadd.f32 0.0, %v6425
        %v6427 = vpop.f32.mrb[0].mxu0
        %v6428 = vpop.f32.mrb[0].mxu0
        %v6429 = vadd.f32 0.0, %v6428
        %v6430 = vpop.f32.mrb[0].mxu0
        %6431 = vmatprep.mubr.bf16.mxu0 0
        %6432 = vmatmul.mubr.bf16.gmra.mrb[0].mxu0 %v6321
        %v6433 = vpop.f32.mrb[0].mxu0
        %v6434 = vadd.f32 0.0, %v6433
        %v6435 = vpop.f32.mrb[0].mxu0
        %v6436 = vpop.f32.mrb[0].mxu0
        %v6437 = vadd.f32 0.0, %v6436
        %v6438 = vpop.f32.mrb[0].mxu0
        %6439 = vmatprep.mubr.bf16.mxu0 0
        %6440 = vmatmul.mubr.bf16.gmra.mrb[0].mxu0 %v6324
        %v6441 = vpop.f32.mrb[0].mxu0
        %v6442 = vadd.f32 0.0, %v6441
        %v6443 = vpop.f32.mrb[0].mxu0
        %v6444 = vpop.f32.mrb[0].mxu0
        %v6445 = vadd.f32 0.0, %v6444
        %v6446 = vpop.f32.mrb[0].mxu0
        %6447 = vmatprep.mubr.bf16.mxu0 0
        %6448 = vmatmul.mubr.bf16.gmra.mrb[0].mxu0 %v6327
        %v6449 = vpop.f32.mrb[0].mxu0
        %v6450 = vadd.f32 0.0, %v6449
        %v6451 = vpop.f32.mrb[0].mxu0
        %v6452 = vpop.f32.mrb[0].mxu0
        %v6453 = vadd.f32 0.0, %v6452
        %v6454 = vpop.f32.mrb[0].mxu0
        %6455 = vmatprep.mubr.bf16.mxu0 0
        %6456 = vmatmul.mubr.bf16.gmra.mrb[0].mxu0 %v6330
        %v6457 = vpop.f32.mrb[0].mxu0
        %v6458 = vadd.f32 0.0, %v6457
        %v6459 = vpop.f32.mrb[0].mxu0
        %v6460 = vpop.f32.mrb[0].mxu0
        %v6461 = vadd.f32 0.0, %v6460
        %v6462 = vpop.f32.mrb[0].mxu0
        %6463 = vmatprep.mubr.bf16.mxu0 0
        %6464 = vmatmul.mubr.bf16.gmra.mrb[0].mxu0 %v6333
        %v6465 = vpop.f32.mrb[0].mxu0
        %v6466 = vadd.f32 0.0, %v6465
        %v6467 = vpop.f32.mrb[0].mxu0
        %v6468 = vpop.f32.mrb[0].mxu0
        %v6469 = vadd.f32 0.0, %v6468
        %v6470 = vpop.f32.mrb[0].mxu0
        %6471 = vmatprep.mubr.bf16.mxu0 0
        %6472 = vmatmul.mubr.bf16.gmra.mrb[0].mxu0 %v6336
        %v6473 = vpop.f32.mrb[0].mxu0
        %v6474 = vadd.f32 0.0, %v6473
        %v6475 = vpop.f32.mrb[0].mxu0
        %v6476 = vpop.f32.mrb[0].mxu0
        %v6477 = vadd.f32 0.0, %v6476
        %v6478 = vpop.f32.mrb[0].mxu0
        %6479 = vmatprep.mubr.bf16.mxu0 0
        %6480 = vmatmul.mubr.bf16.gmra.mrb[0].mxu0 %v6339
        %v6481 = vpop.f32.mrb[0].mxu0
        %v6482 = vadd.f32 0.0, %v6481
        %v6483 = vpop.f32.mrb[0].mxu0
        %v6484 = vpop.f32.mrb[0].mxu0
        %v6485 = vadd.f32 0.0, %v6484
        %v6486 = vpop.f32.mrb[0].mxu0
        %6487 = vmatprep.mubr.bf16.mxu0 0
        %6488 = vmatmul.mubr.bf16.gmra.mrb[0].mxu0 %v6342
        %v6489 = vpop.f32.mrb[0].mxu0
        %v6490 = vadd.f32 0.0, %v6489
        %v6491 = vpop.f32.mrb[0].mxu0
        %v6492 = vpop.f32.mrb[0].mxu0
        %v6493 = vadd.f32 0.0, %v6492
        %v6494 = vpop.f32.mrb[0].mxu0
        %6495 = vmatprep.mubr.bf16.mxu0 0
        %6496 = vmatmul.mubr.bf16.gmra.mrb[0].mxu0 %v6345
        %v6497 = vpop.f32.mrb[0].mxu0
        %v6498 = vadd.f32 0.0, %v6497
        %v6499 = vpop.f32.mrb[0].mxu0
        %v6500 = vpop.f32.mrb[0].mxu0
        %v6501 = vadd.f32 0.0, %v6500
        %v6502 = vpop.f32.mrb[0].mxu0
        %6503 = vmatprep.mubr.bf16.mxu0 0
        %6504 = vmatmul.mubr.bf16.gmra.mrb[0].mxu0 %v6348
        %v6505 = vpop.f32.mrb[0].mxu0
        %v6506 = vadd.f32 0.0, %v6505
        %v6507 = vpop.f32.mrb[0].mxu0
        %v6508 = vpop.f32.mrb[0].mxu0
        %v6509 = vadd.f32 0.0, %v6508
        %v6510 = vpop.f32.mrb[0].mxu0
        %6511 = vmatprep.mubr.bf16.mxu0 0
        %6512 = vmatmul.mubr.bf16.gmra.mrb[0].mxu0 %v6351
        %v6513 = vpop.f32.mrb[0].mxu0
        %v6514 = vadd.f32 0.0, %v6513
        %v6515 = vpop.f32.mrb[0].mxu0
        %v6516 = vpop.f32.mrb[0].mxu0
        %v6517 = vadd.f32 0.0, %v6516
        %v6518 = vpop.f32.mrb[0].mxu0
        %6519 = vmatprep.mubr.bf16.mxu0 0
        %6520 = vmatmul.mubr.bf16.gmra.mrb[0].mxu0 %v6354
        %v6521 = vpop.f32.mrb[0].mxu0
        %v6522 = vadd.f32 0.0, %v6521
        %v6523 = vpop.f32.mrb[0].mxu0
        %v6524 = vpop.f32.mrb[0].mxu0
        %v6525 = vadd.f32 0.0, %v6524
        %v6526 = vpop.f32.mrb[0].mxu0
        %6527 = vmatprep.mubr.bf16.mxu0 0
        %6528 = vmatmul.mubr.bf16.gmra.mrb[0].mxu0 %v6357
        %v6529 = vpop.f32.mrb[0].mxu0
        %v6530 = vadd.f32 0.0, %v6529
        %v6531 = vpop.f32.mrb[0].mxu0
        %v6532 = vpop.f32.mrb[0].mxu0
        %v6533 = vadd.f32 0.0, %v6532
        %v6534 = vpop.f32.mrb[0].mxu0
        %6535 = vdwg.mxu0
        %v6536 = vadd.f32 %v6228, %v6394
        %v6537 = vadd.f32 %v6229, %v6397
        %v6538 = vadd.f32 %v6230, %v6402
        %v6539 = vadd.f32 %v6231, %v6405
        %v6540 = vadd.f32 %v6232, %v6410
        %v6541 = vadd.f32 %v6233, %v6413
        %v6542 = vadd.f32 %v6234, %v6418
        %v6543 = vadd.f32 %v6235, %v6421
        %v6544 = vadd.f32 %v6236, %v6426
        %v6545 = vadd.f32 %v6237, %v6429
        %v6546 = vadd.f32 %v6238, %v6434
        %v6547 = vadd.f32 %v6239, %v6437
        %v6548 = vadd.f32 %v6240, %v6442
        %v6549 = vadd.f32 %v6241, %v6445
        %v6550 = vadd.f32 %v6242, %v6450
        %v6551 = vadd.f32 %v6243, %v6453
        %v6552 = vadd.f32 %v6244, %v6458
        %v6553 = vadd.f32 %v6245, %v6461
        %v6554 = vadd.f32 %v6246, %v6466
        %v6555 = vadd.f32 %v6247, %v6469
        %v6556 = vadd.f32 %v6248, %v6474
        %v6557 = vadd.f32 %v6249, %v6477
        %v6558 = vadd.f32 %v6250, %v6482
        %v6559 = vadd.f32 %v6251, %v6485
        %v6560 = vadd.f32 %v6252, %v6490
        %v6561 = vadd.f32 %v6253, %v6493
        %v6562 = vadd.f32 %v6254, %v6498
        %v6563 = vadd.f32 %v6255, %v6501
        %v6564 = vadd.f32 %v6256, %v6506
        %v6565 = vadd.f32 %v6257, %v6509
        %v6566 = vadd.f32 %v6258, %v6514
        %v6567 = vadd.f32 %v6259, %v6517
        %v6568 = vadd.f32 %v6260, %v6522
        %v6569 = vadd.f32 %v6261, %v6525
        %v6570 = vadd.f32 %v6262, %v6530
        %v6571 = vadd.f32 %v6263, %v6533
        %v6572 = vld [vmem:[%s272 + $0x10] sm:$0xc]
        %v6573 = vld [vmem:[%s272 + $0x14] sm:$0xf]
        %v6574 = vld [vmem:[%s272 + $0x18] sm:$0xf]
        %v6575 = vld [vmem:[%s272 + $0x1c] sm:$0xf]
        %v6576 = vld [vmem:[%s272 + $0x20] sm:$0xf]
        %v6577 = vld [vmem:[%s272 + $0x24] sm:$0xf]
        %v6578 = vld [vmem:[%s272 + $0x28] sm:$0xf]
        %v6579 = vld [vmem:[%s272 + $0x2c] sm:$0xf]
        %v6580 = vld [vmem:[%s272 + $0x30] sm:$0xf]
        %v6581 = vld [vmem:[%s272 + $0x34] sm:$0xf]
        %v6582 = vld [vmem:[%s272 + $0x38] sm:$0xf]
        %v6583 = vld [vmem:[%s272 + $0x3c] sm:$0xf]
        %v6584 = vld [vmem:[%s272 + $0x40] sm:$0xf]
        %v6585 = vld [vmem:[%s272 + $0x44] sm:$0xf]
        %v6586 = vld [vmem:[%s272 + $0x48] sm:$0xf]
        %v6587 = vld [vmem:[%s272 + $0x4c] sm:$0xf]
        %v6588 = vld [vmem:[%s272 + $0x50] sm:$0xf]
        %v6589 = vld [vmem:[%s272 + $0x54] sm:$0xf]
        %v6590 = vld [vmem:[%s272 + $0x58] sm:$0xf]
        %v6591 = vld [vmem:[%s272 + $0x5c] sm:$0xf]
        %v6592 = vld [vmem:[%s272 + $0x60] sm:$0xf]
        %v6593 = vld [vmem:[%s272 + $0x64] sm:$0xf]
        %v6594 = vld [vmem:[%s272 + $0x68] sm:$0xf]
        %v6595 = vld [vmem:[%s272 + $0x6c] sm:$0xf]
        %v6596 = vld [vmem:[%s272 + $0x70] sm:$0xf]
        %v6597 = vld [vmem:[%s272 + $0x74] sm:$0xf]
        %v6598 = vld [vmem:[%s272 + $0x78] sm:$0xf]
        %v6599 = vld [vmem:[%s272 + $0x7c] sm:$0xf]
        %v6600 = vld [vmem:[%s272 + $0x80] sm:$0xf]
        %v6601 = vld [vmem:[%s272 + $0x84] sm:$0xf]
        %v6602 = vld [vmem:[%s272 + $0x88] sm:$0xf]
        %v6603 = vld [vmem:[%s272 + $0x8c] sm:$0xf]
        %v6604 = vld [vmem:[%s272 + $0x90] sm:$0xf]
        %v6605 = vld [vmem:[%s272 + $0x94] sm:$0xf]
        %v6606 = vld [vmem:[%s272 + $0x98] sm:$0xf]
        %v6607 = vld [vmem:[%s272 + $0x9c] sm:$0xf]
        %v6608 = vld [vmem:[%s272 + $0xa0] sm:$0x3]
        %v6646 = vunpack.c.l.b16 %v6572
        %v6647 = vunpack.c.l.b16 %v6573
        %v6648 = vunpack.c.l.b16 %v6574
        %v6649 = vunpack.c.l.b16 %v6575
        %v6650 = vunpack.c.l.b16 %v6576
        %v6651 = vunpack.c.l.b16 %v6577
        %v6652 = vunpack.c.l.b16 %v6578
        %v6653 = vunpack.c.l.b16 %v6579
        %v6654 = vunpack.c.l.b16 %v6580
        %v6655 = vunpack.c.l.b16 %v6581
        %v6656 = vunpack.c.l.b16 %v6582
        %v6657 = vunpack.c.l.b16 %v6583
        %v6658 = vunpack.c.l.b16 %v6584
        %v6659 = vunpack.c.l.b16 %v6585
        %v6660 = vunpack.c.l.b16 %v6586
        %v6661 = vunpack.c.l.b16 %v6587
        %v6662 = vunpack.c.l.b16 %v6588
        %v6663 = vunpack.c.l.b16 %v6589
        %v6664 = vunpack.c.l.b16 %v6590
        %v6665 = vunpack.c.l.b16 %v6591
        %v6666 = vunpack.c.l.b16 %v6592
        %v6667 = vunpack.c.l.b16 %v6593
        %v6668 = vunpack.c.l.b16 %v6594
        %v6669 = vunpack.c.l.b16 %v6595
        %v6670 = vunpack.c.l.b16 %v6596
        %v6671 = vunpack.c.l.b16 %v6597
        %v6672 = vunpack.c.l.b16 %v6598
        %v6673 = vunpack.c.l.b16 %v6599
        %v6674 = vunpack.c.l.b16 %v6600
        %v6675 = vunpack.c.l.b16 %v6601
        %v6676 = vunpack.c.l.b16 %v6602
        %v6677 = vunpack.c.l.b16 %v6603
        %v6678 = vunpack.c.l.b16 %v6604
        %v6679 = vunpack.c.l.b16 %v6605
        %v6680 = vunpack.c.l.b16 %v6606
        %v6681 = vunpack.c.l.b16 %v6607
        %v6682 = vunpack.c.l.b16 %v6608
        %v6683 = vpack.c.b16 %v6647, %v6646
        %v6684 = vpack.c.b16 %v6649, %v6648
        %v6685 = vpack.c.b16 %v6651, %v6650
        %v6686 = vpack.c.b16 %v6653, %v6652
        %v6687 = vpack.c.b16 %v6655, %v6654
        %v6688 = vpack.c.b16 %v6657, %v6656
        %v6689 = vpack.c.b16 %v6659, %v6658
        %v6690 = vpack.c.b16 %v6661, %v6660
        %v6691 = vpack.c.b16 %v6663, %v6662
        %v6692 = vpack.c.b16 %v6665, %v6664
        %v6693 = vpack.c.b16 %v6667, %v6666
        %v6694 = vpack.c.b16 %v6669, %v6668
        %v6695 = vpack.c.b16 %v6671, %v6670
        %v6696 = vpack.c.b16 %v6673, %v6672
        %v6697 = vpack.c.b16 %v6675, %v6674
        %v6698 = vpack.c.b16 %v6677, %v6676
        %v6699 = vpack.c.b16 %v6679, %v6678
        %v6700 = vpack.c.b16 %v6681, %v6680
        %v6701 = vpack.c.b16 %v6682, %v6682
        %v6702 = vrot.slane %v6683, 2
        %v6703 = vrot.slane %v6684, 2
        %v6704 = vsel %vm2262, %v6702, %v6703
        %v6705 = vrot.slane %v6685, 2
        %v6706 = vsel %vm2262, %v6703, %v6705
        %v6707 = vrot.slane %v6686, 2
        %v6708 = vsel %vm2262, %v6705, %v6707
        %v6709 = vrot.slane %v6687, 2
        %v6710 = vsel %vm2262, %v6707, %v6709
        %v6711 = vrot.slane %v6688, 2
        %v6712 = vsel %vm2262, %v6709, %v6711
        %v6713 = vrot.slane %v6689, 2
        %v6714 = vsel %vm2262, %v6711, %v6713
        %v6715 = vrot.slane %v6690, 2
        %v6716 = vsel %vm2262, %v6713, %v6715
        %v6717 = vrot.slane %v6691, 2
        %v6718 = vsel %vm2262, %v6715, %v6717
        %v6719 = vrot.slane %v6692, 2
        %v6720 = vsel %vm2262, %v6717, %v6719
        %v6721 = vrot.slane %v6693, 2
        %v6722 = vsel %vm2262, %v6719, %v6721
        %v6723 = vrot.slane %v6694, 2
        %v6724 = vsel %vm2262, %v6721, %v6723
        %v6725 = vrot.slane %v6695, 2
        %v6726 = vsel %vm2262, %v6723, %v6725
        %v6727 = vrot.slane %v6696, 2
        %v6728 = vsel %vm2262, %v6725, %v6727
        %v6729 = vrot.slane %v6697, 2
        %v6730 = vsel %vm2262, %v6727, %v6729
        %v6731 = vrot.slane %v6698, 2
        %v6732 = vsel %vm2262, %v6729, %v6731
        %v6733 = vrot.slane %v6699, 2
        %v6734 = vsel %vm2262, %v6731, %v6733
        %v6735 = vrot.slane %v6700, 2
        %v6736 = vsel %vm2262, %v6733, %v6735
        %v6737 = vrot.slane %v6701, 2
        %v6738 = vsel %vm2262, %v6735, %v6737
        %v6740 = vsel %vm612, %v6704, 0
        %v6743 = vsel %vm612, %v6706, 0
        %v6746 = vsel %vm612, %v6708, 0
        %v6749 = vsel %vm612, %v6710, 0
        %v6752 = vsel %vm612, %v6712, 0
        %v6755 = vsel %vm612, %v6714, 0
        %v6758 = vsel %vm612, %v6716, 0
        %v6761 = vsel %vm612, %v6718, 0
        %v6764 = vsel %vm612, %v6720, 0
        %v6767 = vsel %vm612, %v6722, 0
        %v6770 = vsel %vm612, %v6724, 0
        %v6773 = vsel %vm612, %v6726, 0
        %v6776 = vsel %vm612, %v6728, 0
        %v6779 = vsel %vm612, %v6730, 0
        %v6782 = vsel %vm612, %v6732, 0
        %v6785 = vsel %vm612, %v6734, 0
        %v6788 = vsel %vm612, %v6736, 0
        %v6791 = vsel %vm612, %v6738, 0
        %6793 = vmatprep.subr.bf16.mxu0 0
        %6794 = vmatpush1.bf16.msra.mxu0 %v2792
        %6795 = vmatprep.subr.bf16.mxu0 0
        %6796 = vmatpush1.bf16.msra.mxu0 0
        %6797 = vmatprep.subr.bf16.mxu0 0
        %6798 = vmatpush1.bf16.msra.mxu0 0
        %6799 = vmatprep.subr.bf16.mxu0 0
        %6800 = vmatpush1.bf16.msra.mxu0 0
        %6801 = vmatprep.subr.bf16.mxu0 0
        %6802 = vmatpush1.bf16.msra.mxu0 0
        %6803 = vmatprep.subr.bf16.mxu0 0
        %6804 = vmatpush1.bf16.msra.mxu0 0
        %6805 = vmatprep.subr.bf16.mxu0 0
        %6806 = vmatpush1.bf16.msra.mxu0 0
        %6807 = vmatprep.subr.bf16.mxu0 0
        %6808 = vmatpush1.bf16.msra.mxu0 0
        %6809 = vmatprep.subr.bf16.mxu0 0
        %6810 = vmatpush1.bf16.msra.mxu0 0
        %6811 = vmatprep.subr.bf16.mxu0 0
        %6812 = vmatpush1.bf16.msra.mxu0 0
        %6813 = vmatprep.subr.bf16.mxu0 0
        %6814 = vmatpush1.bf16.msra.mxu0 0
        %6815 = vmatprep.subr.bf16.mxu0 0
        %6816 = vmatpush1.bf16.msra.mxu0 0
        %6817 = vmatprep.subr.bf16.mxu0 0
        %6818 = vmatpush1.bf16.msra.mxu0 0
        %6819 = vmatprep.subr.bf16.mxu0 0
        %6820 = vmatpush1.bf16.msra.mxu0 0
        %6821 = vmatprep.subr.bf16.mxu0 0
        %6822 = vmatpush1.bf16.msra.mxu0 0
        %6823 = vmatprep.subr.bf16.mxu0 0
        %6824 = vmatpush1.bf16.msra.mxu0 0
        %6825 = vmatprep.mubr.bf16.mxu0 0
        %6826 = vmatmul.mubr.bf16.gmra.mrb[0].mxu0 %v6740
        %v6827 = vpop.f32.mrb[0].mxu0
        %v6828 = vadd.f32 0.0, %v6827
        %v6829 = vpop.f32.mrb[0].mxu0
        %v6830 = vpop.f32.mrb[0].mxu0
        %v6831 = vadd.f32 0.0, %v6830
        %v6832 = vpop.f32.mrb[0].mxu0
        %6833 = vmatprep.mubr.bf16.mxu0 0
        %6834 = vmatmul.mubr.bf16.gmra.mrb[0].mxu0 %v6743
        %v6835 = vpop.f32.mrb[0].mxu0
        %v6836 = vadd.f32 0.0, %v6835
        %v6837 = vpop.f32.mrb[0].mxu0
        %v6838 = vpop.f32.mrb[0].mxu0
        %v6839 = vadd.f32 0.0, %v6838
        %v6840 = vpop.f32.mrb[0].mxu0
        %6841 = vmatprep.mubr.bf16.mxu0 0
        %6842 = vmatmul.mubr.bf16.gmra.mrb[0].mxu0 %v6746
        %v6843 = vpop.f32.mrb[0].mxu0
        %v6844 = vadd.f32 0.0, %v6843
        %v6845 = vpop.f32.mrb[0].mxu0
        %v6846 = vpop.f32.mrb[0].mxu0
        %v6847 = vadd.f32 0.0, %v6846
        %v6848 = vpop.f32.mrb[0].mxu0
        %6849 = vmatprep.mubr.bf16.mxu0 0
        %6850 = vmatmul.mubr.bf16.gmra.mrb[0].mxu0 %v6749
        %v6851 = vpop.f32.mrb[0].mxu0
        %v6852 = vadd.f32 0.0, %v6851
        %v6853 = vpop.f32.mrb[0].mxu0
        %v6854 = vpop.f32.mrb[0].mxu0
        %v6855 = vadd.f32 0.0, %v6854
        %v6856 = vpop.f32.mrb[0].mxu0
        %6857 = vmatprep.mubr.bf16.mxu0 0
        %6858 = vmatmul.mubr.bf16.gmra.mrb[0].mxu0 %v6752
        %v6859 = vpop.f32.mrb[0].mxu0
        %v6860 = vadd.f32 0.0, %v6859
        %v6861 = vpop.f32.mrb[0].mxu0
        %v6862 = vpop.f32.mrb[0].mxu0
        %v6863 = vadd.f32 0.0, %v6862
        %v6864 = vpop.f32.mrb[0].mxu0
        %6865 = vmatprep.mubr.bf16.mxu0 0
        %6866 = vmatmul.mubr.bf16.gmra.mrb[0].mxu0 %v6755
        %v6867 = vpop.f32.mrb[0].mxu0
        %v6868 = vadd.f32 0.0, %v6867
        %v6869 = vpop.f32.mrb[0].mxu0
        %v6870 = vpop.f32.mrb[0].mxu0
        %v6871 = vadd.f32 0.0, %v6870
        %v6872 = vpop.f32.mrb[0].mxu0
        %6873 = vmatprep.mubr.bf16.mxu0 0
        %6874 = vmatmul.mubr.bf16.gmra.mrb[0].mxu0 %v6758
        %v6875 = vpop.f32.mrb[0].mxu0
        %v6876 = vadd.f32 0.0, %v6875
        %v6877 = vpop.f32.mrb[0].mxu0
        %v6878 = vpop.f32.mrb[0].mxu0
        %v6879 = vadd.f32 0.0, %v6878
        %v6880 = vpop.f32.mrb[0].mxu0
        %6881 = vmatprep.mubr.bf16.mxu0 0
        %6882 = vmatmul.mubr.bf16.gmra.mrb[0].mxu0 %v6761
        %v6883 = vpop.f32.mrb[0].mxu0
        %v6884 = vadd.f32 0.0, %v6883
        %v6885 = vpop.f32.mrb[0].mxu0
        %v6886 = vpop.f32.mrb[0].mxu0
        %v6887 = vadd.f32 0.0, %v6886
        %v6888 = vpop.f32.mrb[0].mxu0
        %6889 = vmatprep.mubr.bf16.mxu0 0
        %6890 = vmatmul.mubr.bf16.gmra.mrb[0].mxu0 %v6764
        %v6891 = vpop.f32.mrb[0].mxu0
        %v6892 = vadd.f32 0.0, %v6891
        %v6893 = vpop.f32.mrb[0].mxu0
        %v6894 = vpop.f32.mrb[0].mxu0
        %v6895 = vadd.f32 0.0, %v6894
        %v6896 = vpop.f32.mrb[0].mxu0
        %6897 = vmatprep.mubr.bf16.mxu0 0
        %6898 = vmatmul.mubr.bf16.gmra.mrb[0].mxu0 %v6767
        %v6899 = vpop.f32.mrb[0].mxu0
        %v6900 = vadd.f32 0.0, %v6899
        %v6901 = vpop.f32.mrb[0].mxu0
        %v6902 = vpop.f32.mrb[0].mxu0
        %v6903 = vadd.f32 0.0, %v6902
        %v6904 = vpop.f32.mrb[0].mxu0
        %6905 = vmatprep.mubr.bf16.mxu0 0
        %6906 = vmatmul.mubr.bf16.gmra.mrb[0].mxu0 %v6770
        %v6907 = vpop.f32.mrb[0].mxu0
        %v6908 = vadd.f32 0.0, %v6907
        %v6909 = vpop.f32.mrb[0].mxu0
        %v6910 = vpop.f32.mrb[0].mxu0
        %v6911 = vadd.f32 0.0, %v6910
        %v6912 = vpop.f32.mrb[0].mxu0
        %6913 = vmatprep.mubr.bf16.mxu0 0
        %6914 = vmatmul.mubr.bf16.gmra.mrb[0].mxu0 %v6773
        %v6915 = vpop.f32.mrb[0].mxu0
        %v6916 = vadd.f32 0.0, %v6915
        %v6917 = vpop.f32.mrb[0].mxu0
        %v6918 = vpop.f32.mrb[0].mxu0
        %v6919 = vadd.f32 0.0, %v6918
        %v6920 = vpop.f32.mrb[0].mxu0
        %6921 = vmatprep.mubr.bf16.mxu0 0
        %6922 = vmatmul.mubr.bf16.gmra.mrb[0].mxu0 %v6776
        %v6923 = vpop.f32.mrb[0].mxu0
        %v6924 = vadd.f32 0.0, %v6923
        %v6925 = vpop.f32.mrb[0].mxu0
        %v6926 = vpop.f32.mrb[0].mxu0
        %v6927 = vadd.f32 0.0, %v6926
        %v6928 = vpop.f32.mrb[0].mxu0
        %6929 = vmatprep.mubr.bf16.mxu0 0
        %6930 = vmatmul.mubr.bf16.gmra.mrb[0].mxu0 %v6779
        %v6931 = vpop.f32.mrb[0].mxu0
        %v6932 = vadd.f32 0.0, %v6931
        %v6933 = vpop.f32.mrb[0].mxu0
        %v6934 = vpop.f32.mrb[0].mxu0
        %v6935 = vadd.f32 0.0, %v6934
        %v6936 = vpop.f32.mrb[0].mxu0
        %6937 = vmatprep.mubr.bf16.mxu0 0
        %6938 = vmatmul.mubr.bf16.gmra.mrb[0].mxu0 %v6782
        %v6939 = vpop.f32.mrb[0].mxu0
        %v6940 = vadd.f32 0.0, %v6939
        %v6941 = vpop.f32.mrb[0].mxu0
        %v6942 = vpop.f32.mrb[0].mxu0
        %v6943 = vadd.f32 0.0, %v6942
        %v6944 = vpop.f32.mrb[0].mxu0
        %6945 = vmatprep.mubr.bf16.mxu0 0
        %6946 = vmatmul.mubr.bf16.gmra.mrb[0].mxu0 %v6785
        %v6947 = vpop.f32.mrb[0].mxu0
        %v6948 = vadd.f32 0.0, %v6947
        %v6949 = vpop.f32.mrb[0].mxu0
        %v6950 = vpop.f32.mrb[0].mxu0
        %v6951 = vadd.f32 0.0, %v6950
        %v6952 = vpop.f32.mrb[0].mxu0
        %6953 = vmatprep.mubr.bf16.mxu0 0
        %6954 = vmatmul.mubr.bf16.gmra.mrb[0].mxu0 %v6788
        %v6955 = vpop.f32.mrb[0].mxu0
        %v6956 = vadd.f32 0.0, %v6955
        %v6957 = vpop.f32.mrb[0].mxu0
        %v6958 = vpop.f32.mrb[0].mxu0
        %v6959 = vadd.f32 0.0, %v6958
        %v6960 = vpop.f32.mrb[0].mxu0
        %6961 = vmatprep.mubr.bf16.mxu0 0
        %6962 = vmatmul.mubr.bf16.gmra.mrb[0].mxu0 %v6791
        %v6963 = vpop.f32.mrb[0].mxu0
        %v6964 = vadd.f32 0.0, %v6963
        %v6965 = vpop.f32.mrb[0].mxu0
        %v6966 = vpop.f32.mrb[0].mxu0
        %v6967 = vadd.f32 0.0, %v6966
        %v6968 = vpop.f32.mrb[0].mxu0
        %6969 = vdwg.mxu0
        %v6970 = vadd.f32 %v6536, %v6828
        %v6971 = vadd.f32 %v6537, %v6831
        %v6972 = vadd.f32 %v6538, %v6836
        %v6973 = vadd.f32 %v6539, %v6839
        %v6974 = vadd.f32 %v6540, %v6844
        %v6975 = vadd.f32 %v6541, %v6847
        %v6976 = vadd.f32 %v6542, %v6852
        %v6977 = vadd.f32 %v6543, %v6855
        %v6978 = vadd.f32 %v6544, %v6860
        %v6979 = vadd.f32 %v6545, %v6863
        %v6980 = vadd.f32 %v6546, %v6868
        %v6981 = vadd.f32 %v6547, %v6871
        %v6982 = vadd.f32 %v6548, %v6876
        %v6983 = vadd.f32 %v6549, %v6879
        %v6984 = vadd.f32 %v6550, %v6884
        %v6985 = vadd.f32 %v6551, %v6887
        %v6986 = vadd.f32 %v6552, %v6892
        %v6987 = vadd.f32 %v6553, %v6895
        %v6988 = vadd.f32 %v6554, %v6900
        %v6989 = vadd.f32 %v6555, %v6903
        %v6990 = vadd.f32 %v6556, %v6908
        %v6991 = vadd.f32 %v6557, %v6911
        %v6992 = vadd.f32 %v6558, %v6916
        %v6993 = vadd.f32 %v6559, %v6919
        %v6994 = vadd.f32 %v6560, %v6924
        %v6995 = vadd.f32 %v6561, %v6927
        %v6996 = vadd.f32 %v6562, %v6932
        %v6997 = vadd.f32 %v6563, %v6935
        %v6998 = vadd.f32 %v6564, %v6940
        %v6999 = vadd.f32 %v6565, %v6943
        %v7000 = vadd.f32 %v6566, %v6948
        %v7001 = vadd.f32 %v6567, %v6951
        %v7002 = vadd.f32 %v6568, %v6956
        %v7003 = vadd.f32 %v6569, %v6959
        %v7004 = vadd.f32 %v6570, %v6964
        %v7005 = vadd.f32 %v6571, %v6967
        %v7006 = vld [vmem:[%s272 + $0xa0] sm:$0x7]
        %v7008 = vunpack.c.l.b16 %v7006
        %v7009 = vpack.c.b16 %v7008, %v7008
        %v7011 = vshrl.u32 %v6683, 16
        %v7013 = vrot.slane %v7011, 2
        %v7014 = vshll.u32 %v6683, 16
        %v7016 = vrot.slane %v7014, 3
        %v7017 = vor.u32 %v7013, %v7016
        %v7019 = vshrl.u32 %v6684, 16
        %v7021 = vrot.slane %v7019, 2
        %v7022 = vshll.u32 %v6684, 16
        %v7024 = vrot.slane %v7022, 3
        %v7025 = vor.u32 %v7021, %v7024
        %v7026 = vsel %vm3011, %v7017, %v7025
        %v7028 = vshrl.u32 %v6685, 16
        %v7030 = vrot.slane %v7028, 2
        %v7031 = vshll.u32 %v6685, 16
        %v7033 = vrot.slane %v7031, 3
        %v7034 = vor.u32 %v7030, %v7033
        %v7035 = vsel %vm3011, %v7025, %v7034
        %v7037 = vshrl.u32 %v6686, 16
        %v7039 = vrot.slane %v7037, 2
        %v7040 = vshll.u32 %v6686, 16
        %v7042 = vrot.slane %v7040, 3
        %v7043 = vor.u32 %v7039, %v7042
        %v7044 = vsel %vm3011, %v7034, %v7043
        %v7046 = vshrl.u32 %v6687, 16
        %v7048 = vrot.slane %v7046, 2
        %v7049 = vshll.u32 %v6687, 16
        %v7051 = vrot.slane %v7049, 3
        %v7052 = vor.u32 %v7048, %v7051
        %v7053 = vsel %vm3011, %v7043, %v7052
        %v7055 = vshrl.u32 %v6688, 16
        %v7057 = vrot.slane %v7055, 2
        %v7058 = vshll.u32 %v6688, 16
        %v7060 = vrot.slane %v7058, 3
        %v7061 = vor.u32 %v7057, %v7060
        %v7062 = vsel %vm3011, %v7052, %v7061
        %v7064 = vshrl.u32 %v6689, 16
        %v7066 = vrot.slane %v7064, 2
        %v7067 = vshll.u32 %v6689, 16
        %v7069 = vrot.slane %v7067, 3
        %v7070 = vor.u32 %v7066, %v7069
        %v7071 = vsel %vm3011, %v7061, %v7070
        %v7073 = vshrl.u32 %v6690, 16
        %v7075 = vrot.slane %v7073, 2
        %v7076 = vshll.u32 %v6690, 16
        %v7078 = vrot.slane %v7076, 3
        %v7079 = vor.u32 %v7075, %v7078
        %v7080 = vsel %vm3011, %v7070, %v7079
        %v7082 = vshrl.u32 %v6691, 16
        %v7084 = vrot.slane %v7082, 2
        %v7085 = vshll.u32 %v6691, 16
        %v7087 = vrot.slane %v7085, 3
        %v7088 = vor.u32 %v7084, %v7087
        %v7089 = vsel %vm3011, %v7079, %v7088
        %v7091 = vshrl.u32 %v6692, 16
        %v7093 = vrot.slane %v7091, 2
        %v7094 = vshll.u32 %v6692, 16
        %v7096 = vrot.slane %v7094, 3
        %v7097 = vor.u32 %v7093, %v7096
        %v7098 = vsel %vm3011, %v7088, %v7097
        %v7100 = vshrl.u32 %v6693, 16
        %v7102 = vrot.slane %v7100, 2
        %v7103 = vshll.u32 %v6693, 16
        %v7105 = vrot.slane %v7103, 3
        %v7106 = vor.u32 %v7102, %v7105
        %v7107 = vsel %vm3011, %v7097, %v7106
        %v7109 = vshrl.u32 %v6694, 16
        %v7111 = vrot.slane %v7109, 2
        %v7112 = vshll.u32 %v6694, 16
        %v7114 = vrot.slane %v7112, 3
        %v7115 = vor.u32 %v7111, %v7114
        %v7116 = vsel %vm3011, %v7106, %v7115
        %v7118 = vshrl.u32 %v6695, 16
        %v7120 = vrot.slane %v7118, 2
        %v7121 = vshll.u32 %v6695, 16
        %v7123 = vrot.slane %v7121, 3
        %v7124 = vor.u32 %v7120, %v7123
        %v7125 = vsel %vm3011, %v7115, %v7124
        %v7127 = vshrl.u32 %v6696, 16
        %v7129 = vrot.slane %v7127, 2
        %v7130 = vshll.u32 %v6696, 16
        %v7132 = vrot.slane %v7130, 3
        %v7133 = vor.u32 %v7129, %v7132
        %v7134 = vsel %vm3011, %v7124, %v7133
        %v7136 = vshrl.u32 %v6697, 16
        %v7138 = vrot.slane %v7136, 2
        %v7139 = vshll.u32 %v6697, 16
        %v7141 = vrot.slane %v7139, 3
        %v7142 = vor.u32 %v7138, %v7141
        %v7143 = vsel %vm3011, %v7133, %v7142
        %v7145 = vshrl.u32 %v6698, 16
        %v7147 = vrot.slane %v7145, 2
        %v7148 = vshll.u32 %v6698, 16
        %v7150 = vrot.slane %v7148, 3
        %v7151 = vor.u32 %v7147, %v7150
        %v7152 = vsel %vm3011, %v7142, %v7151
        %v7154 = vshrl.u32 %v6699, 16
        %v7156 = vrot.slane %v7154, 2
        %v7157 = vshll.u32 %v6699, 16
        %v7159 = vrot.slane %v7157, 3
        %v7160 = vor.u32 %v7156, %v7159
        %v7161 = vsel %vm3011, %v7151, %v7160
        %v7163 = vshrl.u32 %v6700, 16
        %v7165 = vrot.slane %v7163, 2
        %v7166 = vshll.u32 %v6700, 16
        %v7168 = vrot.slane %v7166, 3
        %v7169 = vor.u32 %v7165, %v7168
        %v7170 = vsel %vm3011, %v7160, %v7169
        %v7172 = vshrl.u32 %v7009, 16
        %v7174 = vrot.slane %v7172, 2
        %v7175 = vshll.u32 %v7009, 16
        %v7177 = vrot.slane %v7175, 3
        %v7178 = vor.u32 %v7174, %v7177
        %v7179 = vsel %vm3011, %v7169, %v7178
        %v7181 = vsel %vm612, %v7026, 0
        %v7184 = vsel %vm612, %v7035, 0
        %v7187 = vsel %vm612, %v7044, 0
        %v7190 = vsel %vm612, %v7053, 0
        %v7193 = vsel %vm612, %v7062, 0
        %v7196 = vsel %vm612, %v7071, 0
        %v7199 = vsel %vm612, %v7080, 0
        %v7202 = vsel %vm612, %v7089, 0
        %v7205 = vsel %vm612, %v7098, 0
        %v7208 = vsel %vm612, %v7107, 0
        %v7211 = vsel %vm612, %v7116, 0
        %v7214 = vsel %vm612, %v7125, 0
        %v7217 = vsel %vm612, %v7134, 0
        %v7220 = vsel %vm612, %v7143, 0
        %v7223 = vsel %vm612, %v7152, 0
        %v7226 = vsel %vm612, %v7161, 0
        %v7229 = vsel %vm612, %v7170, 0
        %v7232 = vsel %vm612, %v7179, 0
        %7234 = vmatprep.subr.bf16.mxu0 0
        %7235 = vmatpush1.bf16.msra.mxu0 %v3237
        %7236 = vmatprep.subr.bf16.mxu0 0
        %7237 = vmatpush1.bf16.msra.mxu0 0
        %7238 = vmatprep.subr.bf16.mxu0 0
        %7239 = vmatpush1.bf16.msra.mxu0 0
        %7240 = vmatprep.subr.bf16.mxu0 0
        %7241 = vmatpush1.bf16.msra.mxu0 0
        %7242 = vmatprep.subr.bf16.mxu0 0
        %7243 = vmatpush1.bf16.msra.mxu0 0
        %7244 = vmatprep.subr.bf16.mxu0 0
        %7245 = vmatpush1.bf16.msra.mxu0 0
        %7246 = vmatprep.subr.bf16.mxu0 0
        %7247 = vmatpush1.bf16.msra.mxu0 0
        %7248 = vmatprep.subr.bf16.mxu0 0
        %7249 = vmatpush1.bf16.msra.mxu0 0
        %7250 = vmatprep.subr.bf16.mxu0 0
        %7251 = vmatpush1.bf16.msra.mxu0 0
        %7252 = vmatprep.subr.bf16.mxu0 0
        %7253 = vmatpush1.bf16.msra.mxu0 0
        %7254 = vmatprep.subr.bf16.mxu0 0
        %7255 = vmatpush1.bf16.msra.mxu0 0
        %7256 = vmatprep.subr.bf16.mxu0 0
        %7257 = vmatpush1.bf16.msra.mxu0 0
        %7258 = vmatprep.subr.bf16.mxu0 0
        %7259 = vmatpush1.bf16.msra.mxu0 0
        %7260 = vmatprep.subr.bf16.mxu0 0
        %7261 = vmatpush1.bf16.msra.mxu0 0
        %7262 = vmatprep.subr.bf16.mxu0 0
        %7263 = vmatpush1.bf16.msra.mxu0 0
        %7264 = vmatprep.subr.bf16.mxu0 0
        %7265 = vmatpush1.bf16.msra.mxu0 0
        %7266 = vmatprep.mubr.bf16.mxu0 0
        %7267 = vmatmul.mubr.bf16.gmra.mrb[0].mxu0 %v7181
        %v7268 = vpop.f32.mrb[0].mxu0
        %v7269 = vadd.f32 0.0, %v7268
        %v7270 = vpop.f32.mrb[0].mxu0
        %v7271 = vpop.f32.mrb[0].mxu0
        %v7272 = vadd.f32 0.0, %v7271
        %v7273 = vpop.f32.mrb[0].mxu0
        %7274 = vmatprep.mubr.bf16.mxu0 0
        %7275 = vmatmul.mubr.bf16.gmra.mrb[0].mxu0 %v7184
        %v7276 = vpop.f32.mrb[0].mxu0
        %v7277 = vadd.f32 0.0, %v7276
        %v7278 = vpop.f32.mrb[0].mxu0
        %v7279 = vpop.f32.mrb[0].mxu0
        %v7280 = vadd.f32 0.0, %v7279
        %v7281 = vpop.f32.mrb[0].mxu0
        %7282 = vmatprep.mubr.bf16.mxu0 0
        %7283 = vmatmul.mubr.bf16.gmra.mrb[0].mxu0 %v7187
        %v7284 = vpop.f32.mrb[0].mxu0
        %v7285 = vadd.f32 0.0, %v7284
        %v7286 = vpop.f32.mrb[0].mxu0
        %v7287 = vpop.f32.mrb[0].mxu0
        %v7288 = vadd.f32 0.0, %v7287
        %v7289 = vpop.f32.mrb[0].mxu0
        %7290 = vmatprep.mubr.bf16.mxu0 0
        %7291 = vmatmul.mubr.bf16.gmra.mrb[0].mxu0 %v7190
        %v7292 = vpop.f32.mrb[0].mxu0
        %v7293 = vadd.f32 0.0, %v7292
        %v7294 = vpop.f32.mrb[0].mxu0
        %v7295 = vpop.f32.mrb[0].mxu0
        %v7296 = vadd.f32 0.0, %v7295
        %v7297 = vpop.f32.mrb[0].mxu0
        %7298 = vmatprep.mubr.bf16.mxu0 0
        %7299 = vmatmul.mubr.bf16.gmra.mrb[0].mxu0 %v7193
        %v7300 = vpop.f32.mrb[0].mxu0
        %v7301 = vadd.f32 0.0, %v7300
        %v7302 = vpop.f32.mrb[0].mxu0
        %v7303 = vpop.f32.mrb[0].mxu0
        %v7304 = vadd.f32 0.0, %v7303
        %v7305 = vpop.f32.mrb[0].mxu0
        %7306 = vmatprep.mubr.bf16.mxu0 0
        %7307 = vmatmul.mubr.bf16.gmra.mrb[0].mxu0 %v7196
        %v7308 = vpop.f32.mrb[0].mxu0
        %v7309 = vadd.f32 0.0, %v7308
        %v7310 = vpop.f32.mrb[0].mxu0
        %v7311 = vpop.f32.mrb[0].mxu0
        %v7312 = vadd.f32 0.0, %v7311
        %v7313 = vpop.f32.mrb[0].mxu0
        %7314 = vmatprep.mubr.bf16.mxu0 0
        %7315 = vmatmul.mubr.bf16.gmra.mrb[0].mxu0 %v7199
        %v7316 = vpop.f32.mrb[0].mxu0
        %v7317 = vadd.f32 0.0, %v7316
        %v7318 = vpop.f32.mrb[0].mxu0
        %v7319 = vpop.f32.mrb[0].mxu0
        %v7320 = vadd.f32 0.0, %v7319
        %v7321 = vpop.f32.mrb[0].mxu0
        %7322 = vmatprep.mubr.bf16.mxu0 0
        %7323 = vmatmul.mubr.bf16.gmra.mrb[0].mxu0 %v7202
        %v7324 = vpop.f32.mrb[0].mxu0
        %v7325 = vadd.f32 0.0, %v7324
        %v7326 = vpop.f32.mrb[0].mxu0
        %v7327 = vpop.f32.mrb[0].mxu0
        %v7328 = vadd.f32 0.0, %v7327
        %v7329 = vpop.f32.mrb[0].mxu0
        %7330 = vmatprep.mubr.bf16.mxu0 0
        %7331 = vmatmul.mubr.bf16.gmra.mrb[0].mxu0 %v7205
        %v7332 = vpop.f32.mrb[0].mxu0
        %v7333 = vadd.f32 0.0, %v7332
        %v7334 = vpop.f32.mrb[0].mxu0
        %v7335 = vpop.f32.mrb[0].mxu0
        %v7336 = vadd.f32 0.0, %v7335
        %v7337 = vpop.f32.mrb[0].mxu0
        %7338 = vmatprep.mubr.bf16.mxu0 0
        %7339 = vmatmul.mubr.bf16.gmra.mrb[0].mxu0 %v7208
        %v7340 = vpop.f32.mrb[0].mxu0
        %v7341 = vadd.f32 0.0, %v7340
        %v7342 = vpop.f32.mrb[0].mxu0
        %v7343 = vpop.f32.mrb[0].mxu0
        %v7344 = vadd.f32 0.0, %v7343
        %v7345 = vpop.f32.mrb[0].mxu0
        %7346 = vmatprep.mubr.bf16.mxu0 0
        %7347 = vmatmul.mubr.bf16.gmra.mrb[0].mxu0 %v7211
        %v7348 = vpop.f32.mrb[0].mxu0
        %v7349 = vadd.f32 0.0, %v7348
        %v7350 = vpop.f32.mrb[0].mxu0
        %v7351 = vpop.f32.mrb[0].mxu0
        %v7352 = vadd.f32 0.0, %v7351
        %v7353 = vpop.f32.mrb[0].mxu0
        %7354 = vmatprep.mubr.bf16.mxu0 0
        %7355 = vmatmul.mubr.bf16.gmra.mrb[0].mxu0 %v7214
        %v7356 = vpop.f32.mrb[0].mxu0
        %v7357 = vadd.f32 0.0, %v7356
        %v7358 = vpop.f32.mrb[0].mxu0
        %v7359 = vpop.f32.mrb[0].mxu0
        %v7360 = vadd.f32 0.0, %v7359
        %v7361 = vpop.f32.mrb[0].mxu0
        %7362 = vmatprep.mubr.bf16.mxu0 0
        %7363 = vmatmul.mubr.bf16.gmra.mrb[0].mxu0 %v7217
        %v7364 = vpop.f32.mrb[0].mxu0
        %v7365 = vadd.f32 0.0, %v7364
        %v7366 = vpop.f32.mrb[0].mxu0
        %v7367 = vpop.f32.mrb[0].mxu0
        %v7368 = vadd.f32 0.0, %v7367
        %v7369 = vpop.f32.mrb[0].mxu0
        %7370 = vmatprep.mubr.bf16.mxu0 0
        %7371 = vmatmul.mubr.bf16.gmra.mrb[0].mxu0 %v7220
        %v7372 = vpop.f32.mrb[0].mxu0
        %v7373 = vadd.f32 0.0, %v7372
        %v7374 = vpop.f32.mrb[0].mxu0
        %v7375 = vpop.f32.mrb[0].mxu0
        %v7376 = vadd.f32 0.0, %v7375
        %v7377 = vpop.f32.mrb[0].mxu0
        %7378 = vmatprep.mubr.bf16.mxu0 0
        %7379 = vmatmul.mubr.bf16.gmra.mrb[0].mxu0 %v7223
        %v7380 = vpop.f32.mrb[0].mxu0
        %v7381 = vadd.f32 0.0, %v7380
        %v7382 = vpop.f32.mrb[0].mxu0
        %v7383 = vpop.f32.mrb[0].mxu0
        %v7384 = vadd.f32 0.0, %v7383
        %v7385 = vpop.f32.mrb[0].mxu0
        %7386 = vmatprep.mubr.bf16.mxu0 0
        %7387 = vmatmul.mubr.bf16.gmra.mrb[0].mxu0 %v7226
        %v7388 = vpop.f32.mrb[0].mxu0
        %v7389 = vadd.f32 0.0, %v7388
        %v7390 = vpop.f32.mrb[0].mxu0
        %v7391 = vpop.f32.mrb[0].mxu0
        %v7392 = vadd.f32 0.0, %v7391
        %v7393 = vpop.f32.mrb[0].mxu0
        %7394 = vmatprep.mubr.bf16.mxu0 0
        %7395 = vmatmul.mubr.bf16.gmra.mrb[0].mxu0 %v7229
        %v7396 = vpop.f32.mrb[0].mxu0
        %v7397 = vadd.f32 0.0, %v7396
        %v7398 = vpop.f32.mrb[0].mxu0
        %v7399 = vpop.f32.mrb[0].mxu0
        %v7400 = vadd.f32 0.0, %v7399
        %v7401 = vpop.f32.mrb[0].mxu0
        %7402 = vmatprep.mubr.bf16.mxu0 0
        %7403 = vmatmul.mubr.bf16.gmra.mrb[0].mxu0 %v7232
        %v7404 = vpop.f32.mrb[0].mxu0
        %v7405 = vadd.f32 0.0, %v7404
        %v7406 = vpop.f32.mrb[0].mxu0
        %v7407 = vpop.f32.mrb[0].mxu0
        %v7408 = vadd.f32 0.0, %v7407
        %v7409 = vpop.f32.mrb[0].mxu0
        %7410 = vdwg.mxu0
        %v7411 = vadd.f32 %v6970, %v7269
        %v7412 = vadd.f32 %v6971, %v7272
        %v7413 = vadd.f32 %v6972, %v7277
        %v7414 = vadd.f32 %v6973, %v7280
        %v7415 = vadd.f32 %v6974, %v7285
        %v7416 = vadd.f32 %v6975, %v7288
        %v7417 = vadd.f32 %v6976, %v7293
        %v7418 = vadd.f32 %v6977, %v7296
        %v7419 = vadd.f32 %v6978, %v7301
        %v7420 = vadd.f32 %v6979, %v7304
        %v7421 = vadd.f32 %v6980, %v7309
        %v7422 = vadd.f32 %v6981, %v7312
        %v7423 = vadd.f32 %v6982, %v7317
        %v7424 = vadd.f32 %v6983, %v7320
        %v7425 = vadd.f32 %v6984, %v7325
        %v7426 = vadd.f32 %v6985, %v7328
        %v7427 = vadd.f32 %v6986, %v7333
        %v7428 = vadd.f32 %v6987, %v7336
        %v7429 = vadd.f32 %v6988, %v7341
        %v7430 = vadd.f32 %v6989, %v7344
        %v7431 = vadd.f32 %v6990, %v7349
        %v7432 = vadd.f32 %v6991, %v7352
        %v7433 = vadd.f32 %v6992, %v7357
        %v7434 = vadd.f32 %v6993, %v7360
        %v7435 = vadd.f32 %v6994, %v7365
        %v7436 = vadd.f32 %v6995, %v7368
        %v7437 = vadd.f32 %v6996, %v7373
        %v7438 = vadd.f32 %v6997, %v7376
        %v7439 = vadd.f32 %v6998, %v7381
        %v7440 = vadd.f32 %v6999, %v7384
        %v7441 = vadd.f32 %v7000, %v7389
        %v7442 = vadd.f32 %v7001, %v7392
        %v7443 = vadd.f32 %v7002, %v7397
        %v7444 = vadd.f32 %v7003, %v7400
        %v7445 = vadd.f32 %v7004, %v7405
        %v7446 = vadd.f32 %v7005, %v7408
        %v7447 = vld [vmem:[%s272 + $0x10] sm:$0x8]
        %v7449 = vunpack.c.l.b16 %v7447
        %v7450 = vpack.c.b16 %v6647, %v7449
        %v7451 = vrot.slane %v7450, 3
        %v7452 = vrot.slane %v6684, 3
        %v7453 = vsel %vm3456, %v7451, %v7452
        %v7454 = vrot.slane %v6685, 3
        %v7455 = vsel %vm3456, %v7452, %v7454
        %v7456 = vrot.slane %v6686, 3
        %v7457 = vsel %vm3456, %v7454, %v7456
        %v7458 = vrot.slane %v6687, 3
        %v7459 = vsel %vm3456, %v7456, %v7458
        %v7460 = vrot.slane %v6688, 3
        %v7461 = vsel %vm3456, %v7458, %v7460
        %v7462 = vrot.slane %v6689, 3
        %v7463 = vsel %vm3456, %v7460, %v7462
        %v7464 = vrot.slane %v6690, 3
        %v7465 = vsel %vm3456, %v7462, %v7464
        %v7466 = vrot.slane %v6691, 3
        %v7467 = vsel %vm3456, %v7464, %v7466
        %v7468 = vrot.slane %v6692, 3
        %v7469 = vsel %vm3456, %v7466, %v7468
        %v7470 = vrot.slane %v6693, 3
        %v7471 = vsel %vm3456, %v7468, %v7470
        %v7472 = vrot.slane %v6694, 3
        %v7473 = vsel %vm3456, %v7470, %v7472
        %v7474 = vrot.slane %v6695, 3
        %v7475 = vsel %vm3456, %v7472, %v7474
        %v7476 = vrot.slane %v6696, 3
        %v7477 = vsel %vm3456, %v7474, %v7476
        %v7478 = vrot.slane %v6697, 3
        %v7479 = vsel %vm3456, %v7476, %v7478
        %v7480 = vrot.slane %v6698, 3
        %v7481 = vsel %vm3456, %v7478, %v7480
        %v7482 = vrot.slane %v6699, 3
        %v7483 = vsel %vm3456, %v7480, %v7482
        %v7484 = vrot.slane %v6700, 3
        %v7485 = vsel %vm3456, %v7482, %v7484
        %v7486 = vrot.slane %v7009, 3
        %v7487 = vsel %vm3456, %v7484, %v7486
        %v7489 = vsel %vm612, %v7453, 0
        %v7492 = vsel %vm612, %v7455, 0
        %v7495 = vsel %vm612, %v7457, 0
        %v7498 = vsel %vm612, %v7459, 0
        %v7501 = vsel %vm612, %v7461, 0
        %v7504 = vsel %vm612, %v7463, 0
        %v7507 = vsel %vm612, %v7465, 0
        %v7510 = vsel %vm612, %v7467, 0
        %v7513 = vsel %vm612, %v7469, 0
        %v7516 = vsel %vm612, %v7471, 0
        %v7519 = vsel %vm612, %v7473, 0
        %v7522 = vsel %vm612, %v7475, 0
        %v7525 = vsel %vm612, %v7477, 0
        %v7528 = vsel %vm612, %v7479, 0
        %v7531 = vsel %vm612, %v7481, 0
        %v7534 = vsel %vm612, %v7483, 0
        %v7537 = vsel %vm612, %v7485, 0
        %v7540 = vsel %vm612, %v7487, 0
        %7542 = vmatprep.subr.bf16.mxu0 0
        %7543 = vmatpush1.bf16.msra.mxu0 %v3549
        %7544 = vmatprep.subr.bf16.mxu0 0
        %7545 = vmatpush1.bf16.msra.mxu0 0
        %7546 = vmatprep.subr.bf16.mxu0 0
        %7547 = vmatpush1.bf16.msra.mxu0 0
        %7548 = vmatprep.subr.bf16.mxu0 0
        %7549 = vmatpush1.bf16.msra.mxu0 0
        %7550 = vmatprep.subr.bf16.mxu0 0
        %7551 = vmatpush1.bf16.msra.mxu0 0
        %7552 = vmatprep.subr.bf16.mxu0 0
        %7553 = vmatpush1.bf16.msra.mxu0 0
        %7554 = vmatprep.subr.bf16.mxu0 0
        %7555 = vmatpush1.bf16.msra.mxu0 0
        %7556 = vmatprep.subr.bf16.mxu0 0
        %7557 = vmatpush1.bf16.msra.mxu0 0
        %7558 = vmatprep.subr.bf16.mxu0 0
        %7559 = vmatpush1.bf16.msra.mxu0 0
        %7560 = vmatprep.subr.bf16.mxu0 0
        %7561 = vmatpush1.bf16.msra.mxu0 0
        %7562 = vmatprep.subr.bf16.mxu0 0
        %7563 = vmatpush1.bf16.msra.mxu0 0
        %7564 = vmatprep.subr.bf16.mxu0 0
        %7565 = vmatpush1.bf16.msra.mxu0 0
        %7566 = vmatprep.subr.bf16.mxu0 0
        %7567 = vmatpush1.bf16.msra.mxu0 0
        %7568 = vmatprep.subr.bf16.mxu0 0
        %7569 = vmatpush1.bf16.msra.mxu0 0
        %7570 = vmatprep.subr.bf16.mxu0 0
        %7571 = vmatpush1.bf16.msra.mxu0 0
        %7572 = vmatprep.subr.bf16.mxu0 0
        %7573 = vmatpush1.bf16.msra.mxu0 0
        %7574 = vmatprep.mubr.bf16.mxu0 0
        %7575 = vmatmul.mubr.bf16.gmra.mrb[0].mxu0 %v7489
        %v7576 = vpop.f32.mrb[0].mxu0
        %v7577 = vadd.f32 0.0, %v7576
        %v7578 = vpop.f32.mrb[0].mxu0
        %v7579 = vpop.f32.mrb[0].mxu0
        %v7580 = vadd.f32 0.0, %v7579
        %v7581 = vpop.f32.mrb[0].mxu0
        %7582 = vmatprep.mubr.bf16.mxu0 0
        %7583 = vmatmul.mubr.bf16.gmra.mrb[0].mxu0 %v7492
        %v7584 = vpop.f32.mrb[0].mxu0
        %v7585 = vadd.f32 0.0, %v7584
        %v7586 = vpop.f32.mrb[0].mxu0
        %v7587 = vpop.f32.mrb[0].mxu0
        %v7588 = vadd.f32 0.0, %v7587
        %v7589 = vpop.f32.mrb[0].mxu0
        %7590 = vmatprep.mubr.bf16.mxu0 0
        %7591 = vmatmul.mubr.bf16.gmra.mrb[0].mxu0 %v7495
        %v7592 = vpop.f32.mrb[0].mxu0
        %v7593 = vadd.f32 0.0, %v7592
        %v7594 = vpop.f32.mrb[0].mxu0
        %v7595 = vpop.f32.mrb[0].mxu0
        %v7596 = vadd.f32 0.0, %v7595
        %v7597 = vpop.f32.mrb[0].mxu0
        %7598 = vmatprep.mubr.bf16.mxu0 0
        %7599 = vmatmul.mubr.bf16.gmra.mrb[0].mxu0 %v7498
        %v7600 = vpop.f32.mrb[0].mxu0
        %v7601 = vadd.f32 0.0, %v7600
        %v7602 = vpop.f32.mrb[0].mxu0
        %v7603 = vpop.f32.mrb[0].mxu0
        %v7604 = vadd.f32 0.0, %v7603
        %v7605 = vpop.f32.mrb[0].mxu0
        %7606 = vmatprep.mubr.bf16.mxu0 0
        %7607 = vmatmul.mubr.bf16.gmra.mrb[0].mxu0 %v7501
        %v7608 = vpop.f32.mrb[0].mxu0
        %v7609 = vadd.f32 0.0, %v7608
        %v7610 = vpop.f32.mrb[0].mxu0
        %v7611 = vpop.f32.mrb[0].mxu0
        %v7612 = vadd.f32 0.0, %v7611
        %v7613 = vpop.f32.mrb[0].mxu0
        %7614 = vmatprep.mubr.bf16.mxu0 0
        %7615 = vmatmul.mubr.bf16.gmra.mrb[0].mxu0 %v7504
        %v7616 = vpop.f32.mrb[0].mxu0
        %v7617 = vadd.f32 0.0, %v7616
        %v7618 = vpop.f32.mrb[0].mxu0
        %v7619 = vpop.f32.mrb[0].mxu0
        %v7620 = vadd.f32 0.0, %v7619
        %v7621 = vpop.f32.mrb[0].mxu0
        %7622 = vmatprep.mubr.bf16.mxu0 0
        %7623 = vmatmul.mubr.bf16.gmra.mrb[0].mxu0 %v7507
        %v7624 = vpop.f32.mrb[0].mxu0
        %v7625 = vadd.f32 0.0, %v7624
        %v7626 = vpop.f32.mrb[0].mxu0
        %v7627 = vpop.f32.mrb[0].mxu0
        %v7628 = vadd.f32 0.0, %v7627
        %v7629 = vpop.f32.mrb[0].mxu0
        %7630 = vmatprep.mubr.bf16.mxu0 0
        %7631 = vmatmul.mubr.bf16.gmra.mrb[0].mxu0 %v7510
        %v7632 = vpop.f32.mrb[0].mxu0
        %v7633 = vadd.f32 0.0, %v7632
        %v7634 = vpop.f32.mrb[0].mxu0
        %v7635 = vpop.f32.mrb[0].mxu0
        %v7636 = vadd.f32 0.0, %v7635
        %v7637 = vpop.f32.mrb[0].mxu0
        %7638 = vmatprep.mubr.bf16.mxu0 0
        %7639 = vmatmul.mubr.bf16.gmra.mrb[0].mxu0 %v7513
        %v7640 = vpop.f32.mrb[0].mxu0
        %v7641 = vadd.f32 0.0, %v7640
        %v7642 = vpop.f32.mrb[0].mxu0
        %v7643 = vpop.f32.mrb[0].mxu0
        %v7644 = vadd.f32 0.0, %v7643
        %v7645 = vpop.f32.mrb[0].mxu0
        %7646 = vmatprep.mubr.bf16.mxu0 0
        %7647 = vmatmul.mubr.bf16.gmra.mrb[0].mxu0 %v7516
        %v7648 = vpop.f32.mrb[0].mxu0
        %v7649 = vadd.f32 0.0, %v7648
        %v7650 = vpop.f32.mrb[0].mxu0
        %v7651 = vpop.f32.mrb[0].mxu0
        %v7652 = vadd.f32 0.0, %v7651
        %v7653 = vpop.f32.mrb[0].mxu0
        %7654 = vmatprep.mubr.bf16.mxu0 0
        %7655 = vmatmul.mubr.bf16.gmra.mrb[0].mxu0 %v7519
        %v7656 = vpop.f32.mrb[0].mxu0
        %v7657 = vadd.f32 0.0, %v7656
        %v7658 = vpop.f32.mrb[0].mxu0
        %v7659 = vpop.f32.mrb[0].mxu0
        %v7660 = vadd.f32 0.0, %v7659
        %v7661 = vpop.f32.mrb[0].mxu0
        %7662 = vmatprep.mubr.bf16.mxu0 0
        %7663 = vmatmul.mubr.bf16.gmra.mrb[0].mxu0 %v7522
        %v7664 = vpop.f32.mrb[0].mxu0
        %v7665 = vadd.f32 0.0, %v7664
        %v7666 = vpop.f32.mrb[0].mxu0
        %v7667 = vpop.f32.mrb[0].mxu0
        %v7668 = vadd.f32 0.0, %v7667
        %v7669 = vpop.f32.mrb[0].mxu0
        %7670 = vmatprep.mubr.bf16.mxu0 0
        %7671 = vmatmul.mubr.bf16.gmra.mrb[0].mxu0 %v7525
        %v7672 = vpop.f32.mrb[0].mxu0
        %v7673 = vadd.f32 0.0, %v7672
        %v7674 = vpop.f32.mrb[0].mxu0
        %v7675 = vpop.f32.mrb[0].mxu0
        %v7676 = vadd.f32 0.0, %v7675
        %v7677 = vpop.f32.mrb[0].mxu0
        %7678 = vmatprep.mubr.bf16.mxu0 0
        %7679 = vmatmul.mubr.bf16.gmra.mrb[0].mxu0 %v7528
        %v7680 = vpop.f32.mrb[0].mxu0
        %v7681 = vadd.f32 0.0, %v7680
        %v7682 = vpop.f32.mrb[0].mxu0
        %v7683 = vpop.f32.mrb[0].mxu0
        %v7684 = vadd.f32 0.0, %v7683
        %v7685 = vpop.f32.mrb[0].mxu0
        %7686 = vmatprep.mubr.bf16.mxu0 0
        %7687 = vmatmul.mubr.bf16.gmra.mrb[0].mxu0 %v7531
        %v7688 = vpop.f32.mrb[0].mxu0
        %v7689 = vadd.f32 0.0, %v7688
        %v7690 = vpop.f32.mrb[0].mxu0
        %v7691 = vpop.f32.mrb[0].mxu0
        %v7692 = vadd.f32 0.0, %v7691
        %v7693 = vpop.f32.mrb[0].mxu0
        %7694 = vmatprep.mubr.bf16.mxu0 0
        %7695 = vmatmul.mubr.bf16.gmra.mrb[0].mxu0 %v7534
        %v7696 = vpop.f32.mrb[0].mxu0
        %v7697 = vadd.f32 0.0, %v7696
        %v7698 = vpop.f32.mrb[0].mxu0
        %v7699 = vpop.f32.mrb[0].mxu0
        %v7700 = vadd.f32 0.0, %v7699
        %v7701 = vpop.f32.mrb[0].mxu0
        %7702 = vmatprep.mubr.bf16.mxu0 0
        %7703 = vmatmul.mubr.bf16.gmra.mrb[0].mxu0 %v7537
        %v7704 = vpop.f32.mrb[0].mxu0
        %v7705 = vadd.f32 0.0, %v7704
        %v7706 = vpop.f32.mrb[0].mxu0
        %v7707 = vpop.f32.mrb[0].mxu0
        %v7708 = vadd.f32 0.0, %v7707
        %v7709 = vpop.f32.mrb[0].mxu0
        %7710 = vmatprep.mubr.bf16.mxu0 0
        %7711 = vmatmul.mubr.bf16.gmra.mrb[0].mxu0 %v7540
        %v7712 = vpop.f32.mrb[0].mxu0
        %v7713 = vadd.f32 0.0, %v7712
        %v7714 = vpop.f32.mrb[0].mxu0
        %v7715 = vpop.f32.mrb[0].mxu0
        %v7716 = vadd.f32 0.0, %v7715
        %v7717 = vpop.f32.mrb[0].mxu0
        %7718 = vdwg.mxu0
        %v7719 = vadd.f32 %v7411, %v7577
        %v7720 = vadd.f32 %v7412, %v7580
        %v7721 = vadd.f32 %v7413, %v7585
        %v7722 = vadd.f32 %v7414, %v7588
        %v7723 = vadd.f32 %v7415, %v7593
        %v7724 = vadd.f32 %v7416, %v7596
        %v7725 = vadd.f32 %v7417, %v7601
        %v7726 = vadd.f32 %v7418, %v7604
        %v7727 = vadd.f32 %v7419, %v7609
        %v7728 = vadd.f32 %v7420, %v7612
        %v7729 = vadd.f32 %v7421, %v7617
        %v7730 = vadd.f32 %v7422, %v7620
        %v7731 = vadd.f32 %v7423, %v7625
        %v7732 = vadd.f32 %v7424, %v7628
        %v7733 = vadd.f32 %v7425, %v7633
        %v7734 = vadd.f32 %v7426, %v7636
        %v7735 = vadd.f32 %v7427, %v7641
        %v7736 = vadd.f32 %v7428, %v7644
        %v7737 = vadd.f32 %v7429, %v7649
        %v7738 = vadd.f32 %v7430, %v7652
        %v7739 = vadd.f32 %v7431, %v7657
        %v7740 = vadd.f32 %v7432, %v7660
        %v7741 = vadd.f32 %v7433, %v7665
        %v7742 = vadd.f32 %v7434, %v7668
        %v7743 = vadd.f32 %v7435, %v7673
        %v7744 = vadd.f32 %v7436, %v7676
        %v7745 = vadd.f32 %v7437, %v7681
        %v7746 = vadd.f32 %v7438, %v7684
        %v7747 = vadd.f32 %v7439, %v7689
        %v7748 = vadd.f32 %v7440, %v7692
        %v7749 = vadd.f32 %v7441, %v7697
        %v7750 = vadd.f32 %v7442, %v7700
        %v7751 = vadd.f32 %v7443, %v7705
        %v7752 = vadd.f32 %v7444, %v7708
        %v7753 = vadd.f32 %v7445, %v7713
        %v7754 = vadd.f32 %v7446, %v7716
        %v7755 = vadd.f32 %v7719, %v3768
        %v7756 = vadd.f32 %v7720, %v3768
        %v7757 = vadd.f32 %v7721, %v3768
        %v7758 = vadd.f32 %v7722, %v3768
        %v7759 = vadd.f32 %v7723, %v3768
        %v7760 = vadd.f32 %v7724, %v3768
        %v7761 = vadd.f32 %v7725, %v3768
        %v7762 = vadd.f32 %v7726, %v3768
        %v7763 = vadd.f32 %v7727, %v3768
        %v7764 = vadd.f32 %v7728, %v3768
        %v7765 = vadd.f32 %v7729, %v3768
        %v7766 = vadd.f32 %v7730, %v3768
        %v7767 = vadd.f32 %v7731, %v3768
        %v7768 = vadd.f32 %v7732, %v3768
        %v7769 = vadd.f32 %v7733, %v3768
        %v7770 = vadd.f32 %v7734, %v3768
        %v7771 = vadd.f32 %v7735, %v3768
        %v7772 = vadd.f32 %v7736, %v3768
        %v7773 = vadd.f32 %v7737, %v3768
        %v7774 = vadd.f32 %v7738, %v3768
        %v7775 = vadd.f32 %v7739, %v3768
        %v7776 = vadd.f32 %v7740, %v3768
        %v7777 = vadd.f32 %v7741, %v3768
        %v7778 = vadd.f32 %v7742, %v3768
        %v7779 = vadd.f32 %v7743, %v3768
        %v7780 = vadd.f32 %v7744, %v3768
        %v7781 = vadd.f32 %v7745, %v3768
        %v7782 = vadd.f32 %v7746, %v3768
        %v7783 = vadd.f32 %v7747, %v3768
        %v7784 = vadd.f32 %v7748, %v3768
        %v7785 = vadd.f32 %v7749, %v3768
        %v7786 = vadd.f32 %v7750, %v3768
        %v7787 = vadd.f32 %v7751, %v3768
        %v7788 = vadd.f32 %v7752, %v3768
        %v7789 = vadd.f32 %v7753, %v3768
        %v7790 = vadd.f32 %v7754, %v3768
        %v7791 = vmax.f32 %v7755, 0.0
        %v7792 = vmax.f32 %v7756, 0.0
        %v7793 = vmax.f32 %v7757, 0.0
        %v7794 = vmax.f32 %v7758, 0.0
        %v7795 = vmax.f32 %v7759, 0.0
        %v7796 = vmax.f32 %v7760, 0.0
        %v7797 = vmax.f32 %v7761, 0.0
        %v7798 = vmax.f32 %v7762, 0.0
        %v7799 = vmax.f32 %v7763, 0.0
        %v7800 = vmax.f32 %v7764, 0.0
        %v7801 = vmax.f32 %v7765, 0.0
        %v7802 = vmax.f32 %v7766, 0.0
        %v7803 = vmax.f32 %v7767, 0.0
        %v7804 = vmax.f32 %v7768, 0.0
        %v7805 = vmax.f32 %v7769, 0.0
        %v7806 = vmax.f32 %v7770, 0.0
        %v7807 = vmax.f32 %v7771, 0.0
        %v7808 = vmax.f32 %v7772, 0.0
        %v7809 = vmax.f32 %v7773, 0.0
        %v7810 = vmax.f32 %v7774, 0.0
        %v7811 = vmax.f32 %v7775, 0.0
        %v7812 = vmax.f32 %v7776, 0.0
        %v7813 = vmax.f32 %v7777, 0.0
        %v7814 = vmax.f32 %v7778, 0.0
        %v7815 = vmax.f32 %v7779, 0.0
        %v7816 = vmax.f32 %v7780, 0.0
        %v7817 = vmax.f32 %v7781, 0.0
        %v7818 = vmax.f32 %v7782, 0.0
        %v7819 = vmax.f32 %v7783, 0.0
        %v7820 = vmax.f32 %v7784, 0.0
        %v7821 = vmax.f32 %v7785, 0.0
        %v7822 = vmax.f32 %v7786, 0.0
        %v7823 = vmax.f32 %v7787, 0.0
        %v7824 = vmax.f32 %v7788, 0.0
        %v7825 = vmax.f32 %v7789, 0.0
        %v7826 = vmax.f32 %v7790, 0.0
        %v7827 = vmul.f32 %v7791, %v3845
        %v7828 = vmul.f32 %v7792, %v3850
        %v7829 = vmul.f32 %v7793, %v3855
        %v7830 = vmul.f32 %v7794, %v3860
        %v7831 = vmul.f32 %v7795, %v3865
        %v7832 = vmul.f32 %v7796, %v3870
        %v7833 = vmul.f32 %v7797, %v3875
        %v7834 = vmul.f32 %v7798, %v3880
        %v7835 = vmul.f32 %v7799, %v3885
        %v7836 = vmul.f32 %v7800, %v3890
        %v7837 = vmul.f32 %v7801, %v3895
        %v7838 = vmul.f32 %v7802, %v3900
        %v7839 = vmul.f32 %v7803, %v3905
        %v7840 = vmul.f32 %v7804, %v3910
        %v7841 = vmul.f32 %v7805, %v3915
        %v7842 = vmul.f32 %v7806, %v3920
        %v7843 = vmul.f32 %v7807, %v3925
        %v7844 = vmul.f32 %v7808, %v3930
        %v7845 = vmul.f32 %v7809, %v3935
        %v7846 = vmul.f32 %v7810, %v3940
        %v7847 = vmul.f32 %v7811, %v3945
        %v7848 = vmul.f32 %v7812, %v3950
        %v7849 = vmul.f32 %v7813, %v3955
        %v7850 = vmul.f32 %v7814, %v3960
        %v7851 = vmul.f32 %v7815, %v3965
        %v7852 = vmul.f32 %v7816, %v3970
        %v7853 = vmul.f32 %v7817, %v3975
        %v7854 = vmul.f32 %v7818, %v3980
        %v7855 = vmul.f32 %v7819, %v3985
        %v7856 = vmul.f32 %v7820, %v3990
        %v7857 = vmul.f32 %v7821, %v3995
        %v7858 = vmul.f32 %v7822, %v4000
        %v7859 = vmul.f32 %v7823, %v4005
        %v7860 = vmul.f32 %v7824, %v4010
        %v7861 = vmul.f32 %v7825, %v4015
        %v7862 = vmul.f32 %v7826, %v4020
        %v7863 = vpack.c.bf16 %v7828, %v7827
        %v7864 = vpack.c.bf16 %v7830, %v7829
        %v7865 = vpack.c.bf16 %v7832, %v7831
        %v7866 = vpack.c.bf16 %v7834, %v7833
        %v7867 = vpack.c.bf16 %v7836, %v7835
        %v7868 = vpack.c.bf16 %v7838, %v7837
        %v7869 = vpack.c.bf16 %v7840, %v7839
        %v7870 = vpack.c.bf16 %v7842, %v7841
        %v7871 = vpack.c.bf16 %v7844, %v7843
        %v7872 = vpack.c.bf16 %v7846, %v7845
        %v7873 = vpack.c.bf16 %v7848, %v7847
        %v7874 = vpack.c.bf16 %v7850, %v7849
        %v7875 = vpack.c.bf16 %v7852, %v7851
        %v7876 = vpack.c.bf16 %v7854, %v7853
        %v7877 = vpack.c.bf16 %v7856, %v7855
        %v7878 = vpack.c.bf16 %v7858, %v7857
        %v7879 = vpack.c.bf16 %v7860, %v7859
        %v7880 = vpack.c.bf16 %v7862, %v7861
        %7881 = vxpose.xlu0.c.b16.start [1/8] %v7863, 128
        %7882 = vxpose.xlu0.c.b16.cont [2/8] %v7864, 128
        %7883 = vxpose.xlu0.c.b16.cont [3/8] %v7865, 128
        %7884 = vxpose.xlu0.c.b16.cont [4/8] %v7866, 128
        %7885 = vxpose.xlu0.c.b16.cont [5/8] %v7867, 128
        %7886 = vxpose.xlu0.c.b16.cont [6/8] %v7868, 128
        %7887 = vxpose.xlu0.c.b16.cont [7/8] %v7869, 128
        %7888 = vxpose.xlu0.c.b16.end [8/8] %v7870, 128
        %v7889 = vpop.trf.xlu0
        %v7890 = vpop.trf.xlu0
        %v7891 = vpop.trf.xlu0
        %v7892 = vpop.trf.xlu0
        %v7893 = vpop.trf.xlu0
        %v7894 = vpop.trf.xlu0
        %v7895 = vpop.trf.xlu0
        %v7896 = vpop.trf.xlu0
        %7897 = vxpose.xlu0.c.b16.start [1/8] %v7871, 128
        %7898 = vxpose.xlu0.c.b16.cont [2/8] %v7872, 128
        %7899 = vxpose.xlu0.c.b16.cont [3/8] %v7873, 128
        %7900 = vxpose.xlu0.c.b16.cont [4/8] %v7874, 128
        %7901 = vxpose.xlu0.c.b16.cont [5/8] %v7875, 128
        %7902 = vxpose.xlu0.c.b16.cont [6/8] %v7876, 128
        %7903 = vxpose.xlu0.c.b16.cont [7/8] %v7877, 128
        %7904 = vxpose.xlu0.c.b16.end [8/8] %v7878, 128
        %v7905 = vpop.trf.xlu0
        %v7906 = vpop.trf.xlu0
        %v7907 = vpop.trf.xlu0
        %v7908 = vpop.trf.xlu0
        %v7909 = vpop.trf.xlu0
        %v7910 = vpop.trf.xlu0
        %v7911 = vpop.trf.xlu0
        %v7912 = vpop.trf.xlu0
        %7913 = vxpose.xlu0.c.b16.start [1/8] %v7879, 128
        %7914 = vxpose.xlu0.c.b16.cont [2/8] %v7880, 128
        %7915 = vxpose.xlu0.c.b16.cont [3/8] 0, 128
        %7916 = vxpose.xlu0.c.b16.cont [4/8] 0, 128
        %7917 = vxpose.xlu0.c.b16.cont [5/8] 0, 128
        %7918 = vxpose.xlu0.c.b16.cont [6/8] 0, 128
        %7919 = vxpose.xlu0.c.b16.cont [7/8] 0, 128
        %7920 = vxpose.xlu0.c.b16.end [8/8] 0, 128
        %v7921 = vpop.trf.xlu0
        %v7922 = vpop.trf.xlu0
        %v7923 = vpop.trf.xlu0
        %v7924 = vpop.trf.xlu0
        %v7925 = vpop.trf.xlu0
        %v7926 = vpop.trf.xlu0
        %v7927 = vpop.trf.xlu0
        %v7928 = vpop.trf.xlu0
        %v7930 = vsel %vm4124, %v7921, 0
        %v7933 = vsel %vm4124, %v7922, 0
        %v7936 = vsel %vm4124, %v7923, 0
        %v7939 = vsel %vm4124, %v7924, 0
        %v7942 = vsel %vm4124, %v7925, 0
        %v7945 = vsel %vm4124, %v7926, 0
        %v7948 = vsel %vm4124, %v7927, 0
        %v7951 = vsel %vm4124, %v7928, 0
        %7953 = vmatprep.subr.bf16.mxu0 0
        %7954 = vmatpush1.bf16.msra.mxu0 %v7863
        %7955 = vmatprep.subr.bf16.mxu0 0
        %7956 = vmatpush1.bf16.msra.mxu0 %v7864
        %7957 = vmatprep.subr.bf16.mxu0 0
        %7958 = vmatpush1.bf16.msra.mxu0 %v7865
        %7959 = vmatprep.subr.bf16.mxu0 0
        %7960 = vmatpush1.bf16.msra.mxu0 %v7866
        %7961 = vmatprep.subr.bf16.mxu0 0
        %7962 = vmatpush1.bf16.msra.mxu0 %v7867
        %7963 = vmatprep.subr.bf16.mxu0 0
        %7964 = vmatpush1.bf16.msra.mxu0 %v7868
        %7965 = vmatprep.subr.bf16.mxu0 0
        %7966 = vmatpush1.bf16.msra.mxu0 %v7869
        %7967 = vmatprep.subr.bf16.mxu0 0
        %7968 = vmatpush1.bf16.msra.mxu0 %v7870
        %7969 = vmatprep.subr.bf16.mxu0 0
        %7970 = vmatpush1.bf16.msra.mxu0 %v7871
        %7971 = vmatprep.subr.bf16.mxu0 0
        %7972 = vmatpush1.bf16.msra.mxu0 %v7872
        %7973 = vmatprep.subr.bf16.mxu0 0
        %7974 = vmatpush1.bf16.msra.mxu0 %v7873
        %7975 = vmatprep.subr.bf16.mxu0 0
        %7976 = vmatpush1.bf16.msra.mxu0 %v7874
        %7977 = vmatprep.subr.bf16.mxu0 0
        %7978 = vmatpush1.bf16.msra.mxu0 %v7875
        %7979 = vmatprep.subr.bf16.mxu0 0
        %7980 = vmatpush1.bf16.msra.mxu0 %v7876
        %7981 = vmatprep.subr.bf16.mxu0 0
        %7982 = vmatpush1.bf16.msra.mxu0 %v7877
        %7983 = vmatprep.subr.bf16.mxu0 0
        %7984 = vmatpush1.bf16.msra.mxu0 %v7878
        %7985 = vmatprep.mubr.bf16.mxu0 %v7905
        %7986 = vmatmul.mubr.bf16.gmra.mrb[0].mxu0 %v7889
        %v7987 = vpop.f32.mrb[0].mxu0
        %v7988 = vadd.f32 0.0, %v7987
        %v7989 = vpop.f32.mrb[0].mxu0
        %v7990 = vpop.f32.mrb[0].mxu0
        %v7991 = vadd.f32 0.0, %v7990
        %v7992 = vpop.f32.mrb[0].mxu0
        %7993 = vmatprep.mubr.bf16.mxu0 %v7906
        %7994 = vmatmul.mubr.bf16.gmra.mrb[0].mxu0 %v7890
        %v7995 = vpop.f32.mrb[0].mxu0
        %v7996 = vadd.f32 0.0, %v7995
        %v7997 = vpop.f32.mrb[0].mxu0
        %v7998 = vpop.f32.mrb[0].mxu0
        %v7999 = vadd.f32 0.0, %v7998
        %v8000 = vpop.f32.mrb[0].mxu0
        %8001 = vmatprep.mubr.bf16.mxu0 %v7907
        %8002 = vmatmul.mubr.bf16.gmra.mrb[0].mxu0 %v7891
        %v8003 = vpop.f32.mrb[0].mxu0
        %v8004 = vadd.f32 0.0, %v8003
        %v8005 = vpop.f32.mrb[0].mxu0
        %v8006 = vpop.f32.mrb[0].mxu0
        %v8007 = vadd.f32 0.0, %v8006
        %v8008 = vpop.f32.mrb[0].mxu0
        %8009 = vmatprep.mubr.bf16.mxu0 %v7908
        %8010 = vmatmul.mubr.bf16.gmra.mrb[0].mxu0 %v7892
        %v8011 = vpop.f32.mrb[0].mxu0
        %v8012 = vadd.f32 0.0, %v8011
        %v8013 = vpop.f32.mrb[0].mxu0
        %v8014 = vpop.f32.mrb[0].mxu0
        %v8015 = vadd.f32 0.0, %v8014
        %v8016 = vpop.f32.mrb[0].mxu0
        %8017 = vmatprep.mubr.bf16.mxu0 %v7909
        %8018 = vmatmul.mubr.bf16.gmra.mrb[0].mxu0 %v7893
        %v8019 = vpop.f32.mrb[0].mxu0
        %v8020 = vadd.f32 0.0, %v8019
        %v8021 = vpop.f32.mrb[0].mxu0
        %v8022 = vpop.f32.mrb[0].mxu0
        %v8023 = vadd.f32 0.0, %v8022
        %v8024 = vpop.f32.mrb[0].mxu0
        %8025 = vmatprep.mubr.bf16.mxu0 %v7910
        %8026 = vmatmul.mubr.bf16.gmra.mrb[0].mxu0 %v7894
        %v8027 = vpop.f32.mrb[0].mxu0
        %v8028 = vadd.f32 0.0, %v8027
        %v8029 = vpop.f32.mrb[0].mxu0
        %v8030 = vpop.f32.mrb[0].mxu0
        %v8031 = vadd.f32 0.0, %v8030
        %v8032 = vpop.f32.mrb[0].mxu0
        %8033 = vmatprep.mubr.bf16.mxu0 %v7911
        %8034 = vmatmul.mubr.bf16.gmra.mrb[0].mxu0 %v7895
        %v8035 = vpop.f32.mrb[0].mxu0
        %v8036 = vadd.f32 0.0, %v8035
        %v8037 = vpop.f32.mrb[0].mxu0
        %v8038 = vpop.f32.mrb[0].mxu0
        %v8039 = vadd.f32 0.0, %v8038
        %v8040 = vpop.f32.mrb[0].mxu0
        %8041 = vmatprep.mubr.bf16.mxu0 %v7912
        %8042 = vmatmul.mubr.bf16.gmra.mrb[0].mxu0 %v7896
        %v8043 = vpop.f32.mrb[0].mxu0
        %v8044 = vadd.f32 0.0, %v8043
        %v8045 = vpop.f32.mrb[0].mxu0
        %v8046 = vpop.f32.mrb[0].mxu0
        %v8047 = vadd.f32 0.0, %v8046
        %v8048 = vpop.f32.mrb[0].mxu0
        %8049 = vdwg.mxu0
        %8050 = vmatprep.subr.bf16.mxu0 0
        %8051 = vmatpush1.bf16.msra.mxu0 %v7879
        %8052 = vmatprep.subr.bf16.mxu0 0
        %8053 = vmatpush1.bf16.msra.mxu0 %v7880
        %8054 = vmatprep.subr.bf16.mxu0 0
        %8055 = vmatpush1.bf16.msra.mxu0 0
        %8056 = vmatprep.subr.bf16.mxu0 0
        %8057 = vmatpush1.bf16.msra.mxu0 0
        %8058 = vmatprep.subr.bf16.mxu0 0
        %8059 = vmatpush1.bf16.msra.mxu0 0
        %8060 = vmatprep.subr.bf16.mxu0 0
        %8061 = vmatpush1.bf16.msra.mxu0 0
        %8062 = vmatprep.subr.bf16.mxu0 0
        %8063 = vmatpush1.bf16.msra.mxu0 0
        %8064 = vmatprep.subr.bf16.mxu0 0
        %8065 = vmatpush1.bf16.msra.mxu0 0
        %8066 = vmatprep.subr.bf16.mxu0 0
        %8067 = vmatpush1.bf16.msra.mxu0 0
        %8068 = vmatprep.subr.bf16.mxu0 0
        %8069 = vmatpush1.bf16.msra.mxu0 0
        %8070 = vmatprep.subr.bf16.mxu0 0
        %8071 = vmatpush1.bf16.msra.mxu0 0
        %8072 = vmatprep.subr.bf16.mxu0 0
        %8073 = vmatpush1.bf16.msra.mxu0 0
        %8074 = vmatprep.subr.bf16.mxu0 0
        %8075 = vmatpush1.bf16.msra.mxu0 0
        %8076 = vmatprep.subr.bf16.mxu0 0
        %8077 = vmatpush1.bf16.msra.mxu0 0
        %8078 = vmatprep.subr.bf16.mxu0 0
        %8079 = vmatpush1.bf16.msra.mxu0 0
        %8080 = vmatprep.subr.bf16.mxu0 0
        %8081 = vmatpush1.bf16.msra.mxu0 0
        %8082 = vmatprep.mubr.bf16.mxu0 0
        %8083 = vmatmul.mubr.bf16.gmra.mrb[0].mxu0 %v7930
        %v8084 = vpop.f32.mrb[0].mxu0
        %v8085 = vadd.f32 %v7988, %v8084
        %v8086 = vpop.f32.mrb[0].mxu0
        %v8087 = vpop.f32.mrb[0].mxu0
        %v8088 = vadd.f32 %v7991, %v8087
        %v8089 = vpop.f32.mrb[0].mxu0
        %8090 = vmatprep.mubr.bf16.mxu0 0
        %8091 = vmatmul.mubr.bf16.gmra.mrb[0].mxu0 %v7933
        %v8092 = vpop.f32.mrb[0].mxu0
        %v8093 = vadd.f32 %v7996, %v8092
        %v8094 = vpop.f32.mrb[0].mxu0
        %v8095 = vpop.f32.mrb[0].mxu0
        %v8096 = vadd.f32 %v7999, %v8095
        %v8097 = vpop.f32.mrb[0].mxu0
        %8098 = vmatprep.mubr.bf16.mxu0 0
        %8099 = vmatmul.mubr.bf16.gmra.mrb[0].mxu0 %v7936
        %v8100 = vpop.f32.mrb[0].mxu0
        %v8101 = vadd.f32 %v8004, %v8100
        %v8102 = vpop.f32.mrb[0].mxu0
        %v8103 = vpop.f32.mrb[0].mxu0
        %v8104 = vadd.f32 %v8007, %v8103
        %v8105 = vpop.f32.mrb[0].mxu0
        %8106 = vmatprep.mubr.bf16.mxu0 0
        %8107 = vmatmul.mubr.bf16.gmra.mrb[0].mxu0 %v7939
        %v8108 = vpop.f32.mrb[0].mxu0
        %v8109 = vadd.f32 %v8012, %v8108
        %v8110 = vpop.f32.mrb[0].mxu0
        %v8111 = vpop.f32.mrb[0].mxu0
        %v8112 = vadd.f32 %v8015, %v8111
        %v8113 = vpop.f32.mrb[0].mxu0
        %8114 = vmatprep.mubr.bf16.mxu0 0
        %8115 = vmatmul.mubr.bf16.gmra.mrb[0].mxu0 %v7942
        %v8116 = vpop.f32.mrb[0].mxu0
        %v8117 = vadd.f32 %v8020, %v8116
        %v8118 = vpop.f32.mrb[0].mxu0
        %v8119 = vpop.f32.mrb[0].mxu0
        %v8120 = vadd.f32 %v8023, %v8119
        %v8121 = vpop.f32.mrb[0].mxu0
        %8122 = vmatprep.mubr.bf16.mxu0 0
        %8123 = vmatmul.mubr.bf16.gmra.mrb[0].mxu0 %v7945
        %v8124 = vpop.f32.mrb[0].mxu0
        %v8125 = vadd.f32 %v8028, %v8124
        %v8126 = vpop.f32.mrb[0].mxu0
        %v8127 = vpop.f32.mrb[0].mxu0
        %v8128 = vadd.f32 %v8031, %v8127
        %v8129 = vpop.f32.mrb[0].mxu0
        %8130 = vmatprep.mubr.bf16.mxu0 0
        %8131 = vmatmul.mubr.bf16.gmra.mrb[0].mxu0 %v7948
        %v8132 = vpop.f32.mrb[0].mxu0
        %v8133 = vadd.f32 %v8036, %v8132
        %v8134 = vpop.f32.mrb[0].mxu0
        %v8135 = vpop.f32.mrb[0].mxu0
        %v8136 = vadd.f32 %v8039, %v8135
        %v8137 = vpop.f32.mrb[0].mxu0
        %8138 = vmatprep.mubr.bf16.mxu0 0
        %8139 = vmatmul.mubr.bf16.gmra.mrb[0].mxu0 %v7951
        %v8140 = vpop.f32.mrb[0].mxu0
        %v8141 = vadd.f32 %v8044, %v8140
        %v8142 = vpop.f32.mrb[0].mxu0
        %v8143 = vpop.f32.mrb[0].mxu0
        %v8144 = vadd.f32 %v8047, %v8143
        %v8145 = vpop.f32.mrb[0].mxu0
        %8146 = vdwg.mxu0
        %v8147 = vmul.f32 %v8085, 0.00048828125
        %v8148 = vmul.f32 %v8088, 0.00048828125
        %v8149 = vmul.f32 %v8093, 0.00048828125
        %v8150 = vmul.f32 %v8096, 0.00048828125
        %v8151 = vmul.f32 %v8101, 0.00048828125
        %v8152 = vmul.f32 %v8104, 0.00048828125
        %v8153 = vmul.f32 %v8109, 0.00048828125
        %v8154 = vmul.f32 %v8112, 0.00048828125
        %v8155 = vmul.f32 %v8117, 0.00048828125
        %v8156 = vmul.f32 %v8120, 0.00048828125
        %v8157 = vmul.f32 %v8125, 0.00048828125
        %v8158 = vmul.f32 %v8128, 0.00048828125
        %v8159 = vmul.f32 %v8133, 0.00048828125
        %v8160 = vmul.f32 %v8136, 0.00048828125
        %v8161 = vmul.f32 %v8141, 0.00048828125
        %v8162 = vmul.f32 %v8144, 0.00048828125
        %v8163 = vsub.f32 %v4343, %v8147
        %v8164 = vsub.f32 %v4344, %v8148
        %v8165 = vsub.f32 %v4345, %v8149
        %v8166 = vsub.f32 %v4346, %v8150
        %v8167 = vsub.f32 %v4347, %v8151
        %v8168 = vsub.f32 %v4348, %v8152
        %v8169 = vsub.f32 %v4349, %v8153
        %v8170 = vsub.f32 %v4350, %v8154
        %v8171 = vsub.f32 %v4351, %v8155
        %v8172 = vsub.f32 %v4352, %v8156
        %v8173 = vsub.f32 %v4353, %v8157
        %v8174 = vsub.f32 %v4354, %v8158
        %v8175 = vsub.f32 %v4355, %v8159
        %v8176 = vsub.f32 %v4356, %v8160
        %v8177 = vsub.f32 %v4357, %v8161
        %v8178 = vsub.f32 %v4358, %v8162
        %v8179 = vand.u32 2147483647, %v8163
        %v8180 = vand.u32 2147483647, %v8164
        %v8181 = vand.u32 2147483647, %v8165
        %v8182 = vand.u32 2147483647, %v8166
        %v8183 = vand.u32 2147483647, %v8167
        %v8184 = vand.u32 2147483647, %v8168
        %v8185 = vand.u32 2147483647, %v8169
        %v8186 = vand.u32 2147483647, %v8170
        %v8187 = vand.u32 2147483647, %v8171
        %v8188 = vand.u32 2147483647, %v8172
        %v8189 = vand.u32 2147483647, %v8173
        %v8190 = vand.u32 2147483647, %v8174
        %v8191 = vand.u32 2147483647, %v8175
        %v8192 = vand.u32 2147483647, %v8176
        %v8193 = vand.u32 2147483647, %v8177
        %v8194 = vand.u32 2147483647, %v8178
        %v8195 = vadd.f32 %v8179, %v8180
        %v8196 = vadd.f32 %v8195, %v8181
        %v8197 = vadd.f32 %v8196, %v8182
        %v8198 = vadd.f32 %v8197, %v8183
        %v8199 = vadd.f32 %v8198, %v8184
        %v8200 = vadd.f32 %v8199, %v8185
        %v8201 = vadd.f32 %v8200, %v8186
        %v8202 = vadd.f32 %v8201, %v8187
        %v8203 = vadd.f32 %v8202, %v8188
        %v8204 = vadd.f32 %v8203, %v8189
        %v8205 = vadd.f32 %v8204, %v8190
        %v8206 = vadd.f32 %v8205, %v8191
        %v8207 = vadd.f32 %v8206, %v8192
        %v8208 = vadd.f32 %v8207, %v8193
        %v8209 = vadd.f32 %v8208, %v8194
        %8210 = vadd.xlane.f32.xlu0 %v8209
        %v8211 = vpop.xlane.xlu0 %8210
        %v8212 = vrot.slane %v8211, 4
        %v8213 = vadd.f32 %v8211, %v8212
        %v8214 = vrot.slane %v8213, 2
        %v8215 = vadd.f32 %v8213, %v8214
        %v8216 = vrot.slane %v8215, 1
        %v8217 = vadd.f32 %v8215, %v8216
        %s8218 = vtos %v8217
        %s8219 = smul.f32 %s8218, 0.00390625
        %s8220 = sadd.f32 %s8219, 0.0
        %v8221 = vld [vmem:[%s277] sm:$0xf]
        %v8222 = vld [vmem:[%s277 + $0x4] sm:$0xf]
        %v8223 = vld [vmem:[%s277 + $0x8] sm:$0xf]
        %v8224 = vld [vmem:[%s277 + $0xc] sm:$0xf]
        %v8225 = vld [vmem:[%s277 + $0x10] sm:$0xf]
        %v8226 = vld [vmem:[%s277 + $0x14] sm:$0xf]
        %v8227 = vld [vmem:[%s277 + $0x18] sm:$0xf]
        %v8228 = vld [vmem:[%s277 + $0x1c] sm:$0xf]
        %v8229 = vld [vmem:[%s277 + $0x20] sm:$0xf]
        %v8230 = vld [vmem:[%s277 + $0x24] sm:$0xf]
        %v8231 = vld [vmem:[%s277 + $0x28] sm:$0xf]
        %v8232 = vld [vmem:[%s277 + $0x2c] sm:$0xf]
        %v8233 = vld [vmem:[%s277 + $0x30] sm:$0xf]
        %v8234 = vld [vmem:[%s277 + $0x34] sm:$0xf]
        %v8235 = vld [vmem:[%s277 + $0x38] sm:$0xf]
        %v8236 = vld [vmem:[%s277 + $0x3c] sm:$0xf]
        %v8237 = vld [vmem:[%s277 + $0x40] sm:$0xf]
        %v8238 = vld [vmem:[%s277 + $0x44] sm:$0xf]
        %v8239 = vld [vmem:[%s277 + $0x48] sm:$0xf]
        %v8240 = vld [vmem:[%s277 + $0x4c] sm:$0xf]
        %v8241 = vld [vmem:[%s277 + $0x50] sm:$0xf]
        %v8242 = vld [vmem:[%s277 + $0x54] sm:$0xf]
        %v8243 = vld [vmem:[%s277 + $0x58] sm:$0xf]
        %v8244 = vld [vmem:[%s277 + $0x5c] sm:$0xf]
        %v8245 = vld [vmem:[%s277 + $0x60] sm:$0xf]
        %v8246 = vld [vmem:[%s277 + $0x64] sm:$0xf]
        %v8247 = vld [vmem:[%s277 + $0x68] sm:$0xf]
        %v8248 = vld [vmem:[%s277 + $0x6c] sm:$0xf]
        %v8249 = vld [vmem:[%s277 + $0x70] sm:$0xf]
        %v8250 = vld [vmem:[%s277 + $0x74] sm:$0xf]
        %v8251 = vld [vmem:[%s277 + $0x78] sm:$0xf]
        %v8252 = vld [vmem:[%s277 + $0x7c] sm:$0xf]
        %v8253 = vld [vmem:[%s277 + $0x80] sm:$0xf]
        %v8254 = vld [vmem:[%s277 + $0x84] sm:$0xf]
        %v8255 = vld [vmem:[%s277 + $0x88] sm:$0xf]
        %v8256 = vld [vmem:[%s277 + $0x8c] sm:$0xf]
        %v8257 = vld [vmem:[%s277 + $0x90] sm:$0x1]
        %v8295 = vunpack.c.l.b16 %v8221
        %v8296 = vunpack.c.l.b16 %v8222
        %v8297 = vunpack.c.l.b16 %v8223
        %v8298 = vunpack.c.l.b16 %v8224
        %v8299 = vunpack.c.l.b16 %v8225
        %v8300 = vunpack.c.l.b16 %v8226
        %v8301 = vunpack.c.l.b16 %v8227
        %v8302 = vunpack.c.l.b16 %v8228
        %v8303 = vunpack.c.l.b16 %v8229
        %v8304 = vunpack.c.l.b16 %v8230
        %v8305 = vunpack.c.l.b16 %v8231
        %v8306 = vunpack.c.l.b16 %v8232
        %v8307 = vunpack.c.l.b16 %v8233
        %v8308 = vunpack.c.l.b16 %v8234
        %v8309 = vunpack.c.l.b16 %v8235
        %v8310 = vunpack.c.l.b16 %v8236
        %v8311 = vunpack.c.l.b16 %v8237
        %v8312 = vunpack.c.l.b16 %v8238
        %v8313 = vunpack.c.l.b16 %v8239
        %v8314 = vunpack.c.l.b16 %v8240
        %v8315 = vunpack.c.l.b16 %v8241
        %v8316 = vunpack.c.l.b16 %v8242
        %v8317 = vunpack.c.l.b16 %v8243
        %v8318 = vunpack.c.l.b16 %v8244
        %v8319 = vunpack.c.l.b16 %v8245
        %v8320 = vunpack.c.l.b16 %v8246
        %v8321 = vunpack.c.l.b16 %v8247
        %v8322 = vunpack.c.l.b16 %v8248
        %v8323 = vunpack.c.l.b16 %v8249
        %v8324 = vunpack.c.l.b16 %v8250
        %v8325 = vunpack.c.l.b16 %v8251
        %v8326 = vunpack.c.l.b16 %v8252
        %v8327 = vunpack.c.l.b16 %v8253
        %v8328 = vunpack.c.l.b16 %v8254
        %v8329 = vunpack.c.l.b16 %v8255
        %v8330 = vunpack.c.l.b16 %v8256
        %v8331 = vunpack.c.l.b16 %v8257
        %v8332 = vpack.c.b16 %v8296, %v8295
        %v8333 = vpack.c.b16 %v8298, %v8297
        %v8334 = vpack.c.b16 %v8300, %v8299
        %v8335 = vpack.c.b16 %v8302, %v8301
        %v8336 = vpack.c.b16 %v8304, %v8303
        %v8337 = vpack.c.b16 %v8306, %v8305
        %v8338 = vpack.c.b16 %v8308, %v8307
        %v8339 = vpack.c.b16 %v8310, %v8309
        %v8340 = vpack.c.b16 %v8312, %v8311
        %v8341 = vpack.c.b16 %v8314, %v8313
        %v8342 = vpack.c.b16 %v8316, %v8315
        %v8343 = vpack.c.b16 %v8318, %v8317
        %v8344 = vpack.c.b16 %v8320, %v8319
        %v8345 = vpack.c.b16 %v8322, %v8321
        %v8346 = vpack.c.b16 %v8324, %v8323
        %v8347 = vpack.c.b16 %v8326, %v8325
        %v8348 = vpack.c.b16 %v8328, %v8327
        %v8349 = vpack.c.b16 %v8330, %v8329
        %v8350 = vpack.c.b16 %v8331, %v8331
        %v8352 = vshrl.u32 %v8332, 16
        %v8354 = vshll.u32 %v8332, 16
        %v8356 = vrot.slane %v8354, 1
        %v8357 = vor.u32 %v8352, %v8356
        %v8359 = vshll.u32 %v8333, 16
        %v8361 = vrot.slane %v8359, 1
        %v8362 = vsel %vm463, %v8357, %v8361
        %v8363 = vshrl.u32 %v8333, 16
        %v8365 = vor.u32 %v8363, %v8361
        %v8367 = vshll.u32 %v8334, 16
        %v8369 = vrot.slane %v8367, 1
        %v8370 = vsel %vm463, %v8365, %v8369
        %v8371 = vshrl.u32 %v8334, 16
        %v8373 = vor.u32 %v8371, %v8369
        %v8375 = vshll.u32 %v8335, 16
        %v8377 = vrot.slane %v8375, 1
        %v8378 = vsel %vm463, %v8373, %v8377
        %v8379 = vshrl.u32 %v8335, 16
        %v8381 = vor.u32 %v8379, %v8377
        %v8383 = vshll.u32 %v8336, 16
        %v8385 = vrot.slane %v8383, 1
        %v8386 = vsel %vm463, %v8381, %v8385
        %v8387 = vshrl.u32 %v8336, 16
        %v8389 = vor.u32 %v8387, %v8385
        %v8391 = vshll.u32 %v8337, 16
        %v8393 = vrot.slane %v8391, 1
        %v8394 = vsel %vm463, %v8389, %v8393
        %v8395 = vshrl.u32 %v8337, 16
        %v8397 = vor.u32 %v8395, %v8393
        %v8399 = vshll.u32 %v8338, 16
        %v8401 = vrot.slane %v8399, 1
        %v8402 = vsel %vm463, %v8397, %v8401
        %v8403 = vshrl.u32 %v8338, 16
        %v8405 = vor.u32 %v8403, %v8401
        %v8407 = vshll.u32 %v8339, 16
        %v8409 = vrot.slane %v8407, 1
        %v8410 = vsel %vm463, %v8405, %v8409
        %v8411 = vshrl.u32 %v8339, 16
        %v8413 = vor.u32 %v8411, %v8409
        %v8415 = vshll.u32 %v8340, 16
        %v8417 = vrot.slane %v8415, 1
        %v8418 = vsel %vm463, %v8413, %v8417
        %v8419 = vshrl.u32 %v8340, 16
        %v8421 = vor.u32 %v8419, %v8417
        %v8423 = vshll.u32 %v8341, 16
        %v8425 = vrot.slane %v8423, 1
        %v8426 = vsel %vm463, %v8421, %v8425
        %v8427 = vshrl.u32 %v8341, 16
        %v8429 = vor.u32 %v8427, %v8425
        %v8431 = vshll.u32 %v8342, 16
        %v8433 = vrot.slane %v8431, 1
        %v8434 = vsel %vm463, %v8429, %v8433
        %v8435 = vshrl.u32 %v8342, 16
        %v8437 = vor.u32 %v8435, %v8433
        %v8439 = vshll.u32 %v8343, 16
        %v8441 = vrot.slane %v8439, 1
        %v8442 = vsel %vm463, %v8437, %v8441
        %v8443 = vshrl.u32 %v8343, 16
        %v8445 = vor.u32 %v8443, %v8441
        %v8447 = vshll.u32 %v8344, 16
        %v8449 = vrot.slane %v8447, 1
        %v8450 = vsel %vm463, %v8445, %v8449
        %v8451 = vshrl.u32 %v8344, 16
        %v8453 = vor.u32 %v8451, %v8449
        %v8455 = vshll.u32 %v8345, 16
        %v8457 = vrot.slane %v8455, 1
        %v8458 = vsel %vm463, %v8453, %v8457
        %v8459 = vshrl.u32 %v8345, 16
        %v8461 = vor.u32 %v8459, %v8457
        %v8463 = vshll.u32 %v8346, 16
        %v8465 = vrot.slane %v8463, 1
        %v8466 = vsel %vm463, %v8461, %v8465
        %v8467 = vshrl.u32 %v8346, 16
        %v8469 = vor.u32 %v8467, %v8465
        %v8471 = vshll.u32 %v8347, 16
        %v8473 = vrot.slane %v8471, 1
        %v8474 = vsel %vm463, %v8469, %v8473
        %v8475 = vshrl.u32 %v8347, 16
        %v8477 = vor.u32 %v8475, %v8473
        %v8479 = vshll.u32 %v8348, 16
        %v8481 = vrot.slane %v8479, 1
        %v8482 = vsel %vm463, %v8477, %v8481
        %v8483 = vshrl.u32 %v8348, 16
        %v8485 = vor.u32 %v8483, %v8481
        %v8487 = vshll.u32 %v8349, 16
        %v8489 = vrot.slane %v8487, 1
        %v8490 = vsel %vm463, %v8485, %v8489
        %v8491 = vshrl.u32 %v8349, 16
        %v8493 = vor.u32 %v8491, %v8489
        %v8495 = vshll.u32 %v8350, 16
        %v8497 = vrot.slane %v8495, 1
        %v8498 = vsel %vm463, %v8493, %v8497
        %v8500 = vsel %vm612, %v8362, 0
        %v8503 = vsel %vm612, %v8370, 0
        %v8506 = vsel %vm612, %v8378, 0
        %v8509 = vsel %vm612, %v8386, 0
        %v8512 = vsel %vm612, %v8394, 0
        %v8515 = vsel %vm612, %v8402, 0
        %v8518 = vsel %vm612, %v8410, 0
        %v8521 = vsel %vm612, %v8418, 0
        %v8524 = vsel %vm612, %v8426, 0
        %v8527 = vsel %vm612, %v8434, 0
        %v8530 = vsel %vm612, %v8442, 0
        %v8533 = vsel %vm612, %v8450, 0
        %v8536 = vsel %vm612, %v8458, 0
        %v8539 = vsel %vm612, %v8466, 0
        %v8542 = vsel %vm612, %v8474, 0
        %v8545 = vsel %vm612, %v8482, 0
        %v8548 = vsel %vm612, %v8490, 0
        %v8551 = vsel %vm612, %v8498, 0
        %8553 = vmatprep.subr.bf16.mxu0 0
        %8554 = vmatpush1.bf16.msra.mxu0 %v669
        %8555 = vmatprep.subr.bf16.mxu0 0
        %8556 = vmatpush1.bf16.msra.mxu0 0
        %8557 = vmatprep.subr.bf16.mxu0 0
        %8558 = vmatpush1.bf16.msra.mxu0 0
        %8559 = vmatprep.subr.bf16.mxu0 0
        %8560 = vmatpush1.bf16.msra.mxu0 0
        %8561 = vmatprep.subr.bf16.mxu0 0
        %8562 = vmatpush1.bf16.msra.mxu0 0
        %8563 = vmatprep.subr.bf16.mxu0 0
        %8564 = vmatpush1.bf16.msra.mxu0 0
        %8565 = vmatprep.subr.bf16.mxu0 0
        %8566 = vmatpush1.bf16.msra.mxu0 0
        %8567 = vmatprep.subr.bf16.mxu0 0
        %8568 = vmatpush1.bf16.msra.mxu0 0
        %8569 = vmatprep.subr.bf16.mxu0 0
        %8570 = vmatpush1.bf16.msra.mxu0 0
        %8571 = vmatprep.subr.bf16.mxu0 0
        %8572 = vmatpush1.bf16.msra.mxu0 0
        %8573 = vmatprep.subr.bf16.mxu0 0
        %8574 = vmatpush1.bf16.msra.mxu0 0
        %8575 = vmatprep.subr.bf16.mxu0 0
        %8576 = vmatpush1.bf16.msra.mxu0 0
        %8577 = vmatprep.subr.bf16.mxu0 0
        %8578 = vmatpush1.bf16.msra.mxu0 0
        %8579 = vmatprep.subr.bf16.mxu0 0
        %8580 = vmatpush1.bf16.msra.mxu0 0
        %8581 = vmatprep.subr.bf16.mxu0 0
        %8582 = vmatpush1.bf16.msra.mxu0 0
        %8583 = vmatprep.subr.bf16.mxu0 0
        %8584 = vmatpush1.bf16.msra.mxu0 0
        %8585 = vmatprep.mubr.bf16.mxu0 0
        %8586 = vmatmul.mubr.bf16.gmra.mrb[0].mxu0 %v8500
        %v8587 = vpop.f32.mrb[0].mxu0
        %v8588 = vadd.f32 0.0, %v8587
        %v8589 = vpop.f32.mrb[0].mxu0
        %v8590 = vpop.f32.mrb[0].mxu0
        %v8591 = vadd.f32 0.0, %v8590
        %v8592 = vpop.f32.mrb[0].mxu0
        %8593 = vmatprep.mubr.bf16.mxu0 0
        %8594 = vmatmul.mubr.bf16.gmra.mrb[0].mxu0 %v8503
        %v8595 = vpop.f32.mrb[0].mxu0
        %v8596 = vadd.f32 0.0, %v8595
        %v8597 = vpop.f32.mrb[0].mxu0
        %v8598 = vpop.f32.mrb[0].mxu0
        %v8599 = vadd.f32 0.0, %v8598
        %v8600 = vpop.f32.mrb[0].mxu0
        %8601 = vmatprep.mubr.bf16.mxu0 0
        %8602 = vmatmul.mubr.bf16.gmra.mrb[0].mxu0 %v8506
        %v8603 = vpop.f32.mrb[0].mxu0
        %v8604 = vadd.f32 0.0, %v8603
        %v8605 = vpop.f32.mrb[0].mxu0
        %v8606 = vpop.f32.mrb[0].mxu0
        %v8607 = vadd.f32 0.0, %v8606
        %v8608 = vpop.f32.mrb[0].mxu0
        %8609 = vmatprep.mubr.bf16.mxu0 0
        %8610 = vmatmul.mubr.bf16.gmra.mrb[0].mxu0 %v8509
        %v8611 = vpop.f32.mrb[0].mxu0
        %v8612 = vadd.f32 0.0, %v8611
        %v8613 = vpop.f32.mrb[0].mxu0
        %v8614 = vpop.f32.mrb[0].mxu0
        %v8615 = vadd.f32 0.0, %v8614
        %v8616 = vpop.f32.mrb[0].mxu0
        %8617 = vmatprep.mubr.bf16.mxu0 0
        %8618 = vmatmul.mubr.bf16.gmra.mrb[0].mxu0 %v8512
        %v8619 = vpop.f32.mrb[0].mxu0
        %v8620 = vadd.f32 0.0, %v8619
        %v8621 = vpop.f32.mrb[0].mxu0
        %v8622 = vpop.f32.mrb[0].mxu0
        %v8623 = vadd.f32 0.0, %v8622
        %v8624 = vpop.f32.mrb[0].mxu0
        %8625 = vmatprep.mubr.bf16.mxu0 0
        %8626 = vmatmul.mubr.bf16.gmra.mrb[0].mxu0 %v8515
        %v8627 = vpop.f32.mrb[0].mxu0
        %v8628 = vadd.f32 0.0, %v8627
        %v8629 = vpop.f32.mrb[0].mxu0
        %v8630 = vpop.f32.mrb[0].mxu0
        %v8631 = vadd.f32 0.0, %v8630
        %v8632 = vpop.f32.mrb[0].mxu0
        %8633 = vmatprep.mubr.bf16.mxu0 0
        %8634 = vmatmul.mubr.bf16.gmra.mrb[0].mxu0 %v8518
        %v8635 = vpop.f32.mrb[0].mxu0
        %v8636 = vadd.f32 0.0, %v8635
        %v8637 = vpop.f32.mrb[0].mxu0
        %v8638 = vpop.f32.mrb[0].mxu0
        %v8639 = vadd.f32 0.0, %v8638
        %v8640 = vpop.f32.mrb[0].mxu0
        %8641 = vmatprep.mubr.bf16.mxu0 0
        %8642 = vmatmul.mubr.bf16.gmra.mrb[0].mxu0 %v8521
        %v8643 = vpop.f32.mrb[0].mxu0
        %v8644 = vadd.f32 0.0, %v8643
        %v8645 = vpop.f32.mrb[0].mxu0
        %v8646 = vpop.f32.mrb[0].mxu0
        %v8647 = vadd.f32 0.0, %v8646
        %v8648 = vpop.f32.mrb[0].mxu0
        %8649 = vmatprep.mubr.bf16.mxu0 0
        %8650 = vmatmul.mubr.bf16.gmra.mrb[0].mxu0 %v8524
        %v8651 = vpop.f32.mrb[0].mxu0
        %v8652 = vadd.f32 0.0, %v8651
        %v8653 = vpop.f32.mrb[0].mxu0
        %v8654 = vpop.f32.mrb[0].mxu0
        %v8655 = vadd.f32 0.0, %v8654
        %v8656 = vpop.f32.mrb[0].mxu0
        %8657 = vmatprep.mubr.bf16.mxu0 0
        %8658 = vmatmul.mubr.bf16.gmra.mrb[0].mxu0 %v8527
        %v8659 = vpop.f32.mrb[0].mxu0
        %v8660 = vadd.f32 0.0, %v8659
        %v8661 = vpop.f32.mrb[0].mxu0
        %v8662 = vpop.f32.mrb[0].mxu0
        %v8663 = vadd.f32 0.0, %v8662
        %v8664 = vpop.f32.mrb[0].mxu0
        %8665 = vmatprep.mubr.bf16.mxu0 0
        %8666 = vmatmul.mubr.bf16.gmra.mrb[0].mxu0 %v8530
        %v8667 = vpop.f32.mrb[0].mxu0
        %v8668 = vadd.f32 0.0, %v8667
        %v8669 = vpop.f32.mrb[0].mxu0
        %v8670 = vpop.f32.mrb[0].mxu0
        %v8671 = vadd.f32 0.0, %v8670
        %v8672 = vpop.f32.mrb[0].mxu0
        %8673 = vmatprep.mubr.bf16.mxu0 0
        %8674 = vmatmul.mubr.bf16.gmra.mrb[0].mxu0 %v8533
        %v8675 = vpop.f32.mrb[0].mxu0
        %v8676 = vadd.f32 0.0, %v8675
        %v8677 = vpop.f32.mrb[0].mxu0
        %v8678 = vpop.f32.mrb[0].mxu0
        %v8679 = vadd.f32 0.0, %v8678
        %v8680 = vpop.f32.mrb[0].mxu0
        %8681 = vmatprep.mubr.bf16.mxu0 0
        %8682 = vmatmul.mubr.bf16.gmra.mrb[0].mxu0 %v8536
        %v8683 = vpop.f32.mrb[0].mxu0
        %v8684 = vadd.f32 0.0, %v8683
        %v8685 = vpop.f32.mrb[0].mxu0
        %v8686 = vpop.f32.mrb[0].mxu0
        %v8687 = vadd.f32 0.0, %v8686
        %v8688 = vpop.f32.mrb[0].mxu0
        %8689 = vmatprep.mubr.bf16.mxu0 0
        %8690 = vmatmul.mubr.bf16.gmra.mrb[0].mxu0 %v8539
        %v8691 = vpop.f32.mrb[0].mxu0
        %v8692 = vadd.f32 0.0, %v8691
        %v8693 = vpop.f32.mrb[0].mxu0
        %v8694 = vpop.f32.mrb[0].mxu0
        %v8695 = vadd.f32 0.0, %v8694
        %v8696 = vpop.f32.mrb[0].mxu0
        %8697 = vmatprep.mubr.bf16.mxu0 0
        %8698 = vmatmul.mubr.bf16.gmra.mrb[0].mxu0 %v8542
        %v8699 = vpop.f32.mrb[0].mxu0
        %v8700 = vadd.f32 0.0, %v8699
        %v8701 = vpop.f32.mrb[0].mxu0
        %v8702 = vpop.f32.mrb[0].mxu0
        %v8703 = vadd.f32 0.0, %v8702
        %v8704 = vpop.f32.mrb[0].mxu0
        %8705 = vmatprep.mubr.bf16.mxu0 0
        %8706 = vmatmul.mubr.bf16.gmra.mrb[0].mxu0 %v8545
        %v8707 = vpop.f32.mrb[0].mxu0
        %v8708 = vadd.f32 0.0, %v8707
        %v8709 = vpop.f32.mrb[0].mxu0
        %v8710 = vpop.f32.mrb[0].mxu0
        %v8711 = vadd.f32 0.0, %v8710
        %v8712 = vpop.f32.mrb[0].mxu0
        %8713 = vmatprep.mubr.bf16.mxu0 0
        %8714 = vmatmul.mubr.bf16.gmra.mrb[0].mxu0 %v8548
        %v8715 = vpop.f32.mrb[0].mxu0
        %v8716 = vadd.f32 0.0, %v8715
        %v8717 = vpop.f32.mrb[0].mxu0
        %v8718 = vpop.f32.mrb[0].mxu0
        %v8719 = vadd.f32 0.0, %v8718
        %v8720 = vpop.f32.mrb[0].mxu0
        %8721 = vmatprep.mubr.bf16.mxu0 0
        %8722 = vmatmul.mubr.bf16.gmra.mrb[0].mxu0 %v8551
        %v8723 = vpop.f32.mrb[0].mxu0
        %v8724 = vadd.f32 0.0, %v8723
        %v8725 = vpop.f32.mrb[0].mxu0
        %v8726 = vpop.f32.mrb[0].mxu0
        %v8727 = vadd.f32 0.0, %v8726
        %v8728 = vpop.f32.mrb[0].mxu0
        %8729 = vdwg.mxu0
        %v8730 = vsel %vm612, %v8332, 0
        %v8732 = vsel %vm612, %v8333, 0
        %v8734 = vsel %vm612, %v8334, 0
        %v8736 = vsel %vm612, %v8335, 0
        %v8738 = vsel %vm612, %v8336, 0
        %v8740 = vsel %vm612, %v8337, 0
        %v8742 = vsel %vm612, %v8338, 0
        %v8744 = vsel %vm612, %v8339, 0
        %v8746 = vsel %vm612, %v8340, 0
        %v8748 = vsel %vm612, %v8341, 0
        %v8750 = vsel %vm612, %v8342, 0
        %v8752 = vsel %vm612, %v8343, 0
        %v8754 = vsel %vm612, %v8344, 0
        %v8756 = vsel %vm612, %v8345, 0
        %v8758 = vsel %vm612, %v8346, 0
        %v8760 = vsel %vm612, %v8347, 0
        %v8762 = vsel %vm612, %v8348, 0
        %v8764 = vsel %vm612, %v8349, 0
        %8766 = vmatprep.subr.bf16.mxu0 0
        %8767 = vmatpush1.bf16.msra.mxu0 %v885
        %8768 = vmatprep.subr.bf16.mxu0 0
        %8769 = vmatpush1.bf16.msra.mxu0 0
        %8770 = vmatprep.subr.bf16.mxu0 0
        %8771 = vmatpush1.bf16.msra.mxu0 0
        %8772 = vmatprep.subr.bf16.mxu0 0
        %8773 = vmatpush1.bf16.msra.mxu0 0
        %8774 = vmatprep.subr.bf16.mxu0 0
        %8775 = vmatpush1.bf16.msra.mxu0 0
        %8776 = vmatprep.subr.bf16.mxu0 0
        %8777 = vmatpush1.bf16.msra.mxu0 0
        %8778 = vmatprep.subr.bf16.mxu0 0
        %8779 = vmatpush1.bf16.msra.mxu0 0
        %8780 = vmatprep.subr.bf16.mxu0 0
        %8781 = vmatpush1.bf16.msra.mxu0 0
        %8782 = vmatprep.subr.bf16.mxu0 0
        %8783 = vmatpush1.bf16.msra.mxu0 0
        %8784 = vmatprep.subr.bf16.mxu0 0
        %8785 = vmatpush1.bf16.msra.mxu0 0
        %8786 = vmatprep.subr.bf16.mxu0 0
        %8787 = vmatpush1.bf16.msra.mxu0 0
        %8788 = vmatprep.subr.bf16.mxu0 0
        %8789 = vmatpush1.bf16.msra.mxu0 0
        %8790 = vmatprep.subr.bf16.mxu0 0
        %8791 = vmatpush1.bf16.msra.mxu0 0
        %8792 = vmatprep.subr.bf16.mxu0 0
        %8793 = vmatpush1.bf16.msra.mxu0 0
        %8794 = vmatprep.subr.bf16.mxu0 0
        %8795 = vmatpush1.bf16.msra.mxu0 0
        %8796 = vmatprep.subr.bf16.mxu0 0
        %8797 = vmatpush1.bf16.msra.mxu0 0
        %8798 = vmatprep.mubr.bf16.mxu0 0
        %8799 = vmatmul.mubr.bf16.gmra.mrb[0].mxu0 %v8730
        %v8800 = vpop.f32.mrb[0].mxu0
        %v8801 = vadd.f32 %v8588, %v8800
        %v8802 = vpop.f32.mrb[0].mxu0
        %v8803 = vpop.f32.mrb[0].mxu0
        %v8804 = vadd.f32 %v8591, %v8803
        %v8805 = vpop.f32.mrb[0].mxu0
        %8806 = vmatprep.mubr.bf16.mxu0 0
        %8807 = vmatmul.mubr.bf16.gmra.mrb[0].mxu0 %v8732
        %v8808 = vpop.f32.mrb[0].mxu0
        %v8809 = vadd.f32 %v8596, %v8808
        %v8810 = vpop.f32.mrb[0].mxu0
        %v8811 = vpop.f32.mrb[0].mxu0
        %v8812 = vadd.f32 %v8599, %v8811
        %v8813 = vpop.f32.mrb[0].mxu0
        %8814 = vmatprep.mubr.bf16.mxu0 0
        %8815 = vmatmul.mubr.bf16.gmra.mrb[0].mxu0 %v8734
        %v8816 = vpop.f32.mrb[0].mxu0
        %v8817 = vadd.f32 %v8604, %v8816
        %v8818 = vpop.f32.mrb[0].mxu0
        %v8819 = vpop.f32.mrb[0].mxu0
        %v8820 = vadd.f32 %v8607, %v8819
        %v8821 = vpop.f32.mrb[0].mxu0
        %8822 = vmatprep.mubr.bf16.mxu0 0
        %8823 = vmatmul.mubr.bf16.gmra.mrb[0].mxu0 %v8736
        %v8824 = vpop.f32.mrb[0].mxu0
        %v8825 = vadd.f32 %v8612, %v8824
        %v8826 = vpop.f32.mrb[0].mxu0
        %v8827 = vpop.f32.mrb[0].mxu0
        %v8828 = vadd.f32 %v8615, %v8827
        %v8829 = vpop.f32.mrb[0].mxu0
        %8830 = vmatprep.mubr.bf16.mxu0 0
        %8831 = vmatmul.mubr.bf16.gmra.mrb[0].mxu0 %v8738
        %v8832 = vpop.f32.mrb[0].mxu0
        %v8833 = vadd.f32 %v8620, %v8832
        %v8834 = vpop.f32.mrb[0].mxu0
        %v8835 = vpop.f32.mrb[0].mxu0
        %v8836 = vadd.f32 %v8623, %v8835
        %v8837 = vpop.f32.mrb[0].mxu0
        %8838 = vmatprep.mubr.bf16.mxu0 0
        %8839 = vmatmul.mubr.bf16.gmra.mrb[0].mxu0 %v8740
        %v8840 = vpop.f32.mrb[0].mxu0
        %v8841 = vadd.f32 %v8628, %v8840
        %v8842 = vpop.f32.mrb[0].mxu0
        %v8843 = vpop.f32.mrb[0].mxu0
        %v8844 = vadd.f32 %v8631, %v8843
        %v8845 = vpop.f32.mrb[0].mxu0
        %8846 = vmatprep.mubr.bf16.mxu0 0
        %8847 = vmatmul.mubr.bf16.gmra.mrb[0].mxu0 %v8742
        %v8848 = vpop.f32.mrb[0].mxu0
        %v8849 = vadd.f32 %v8636, %v8848
        %v8850 = vpop.f32.mrb[0].mxu0
        %v8851 = vpop.f32.mrb[0].mxu0
        %v8852 = vadd.f32 %v8639, %v8851
        %v8853 = vpop.f32.mrb[0].mxu0
        %8854 = vmatprep.mubr.bf16.mxu0 0
        %8855 = vmatmul.mubr.bf16.gmra.mrb[0].mxu0 %v8744
        %v8856 = vpop.f32.mrb[0].mxu0
        %v8857 = vadd.f32 %v8644, %v8856
        %v8858 = vpop.f32.mrb[0].mxu0
        %v8859 = vpop.f32.mrb[0].mxu0
        %v8860 = vadd.f32 %v8647, %v8859
        %v8861 = vpop.f32.mrb[0].mxu0
        %8862 = vmatprep.mubr.bf16.mxu0 0
        %8863 = vmatmul.mubr.bf16.gmra.mrb[0].mxu0 %v8746
        %v8864 = vpop.f32.mrb[0].mxu0
        %v8865 = vadd.f32 %v8652, %v8864
        %v8866 = vpop.f32.mrb[0].mxu0
        %v8867 = vpop.f32.mrb[0].mxu0
        %v8868 = vadd.f32 %v8655, %v8867
        %v8869 = vpop.f32.mrb[0].mxu0
        %8870 = vmatprep.mubr.bf16.mxu0 0
        %8871 = vmatmul.mubr.bf16.gmra.mrb[0].mxu0 %v8748
        %v8872 = vpop.f32.mrb[0].mxu0
        %v8873 = vadd.f32 %v8660, %v8872
        %v8874 = vpop.f32.mrb[0].mxu0
        %v8875 = vpop.f32.mrb[0].mxu0
        %v8876 = vadd.f32 %v8663, %v8875
        %v8877 = vpop.f32.mrb[0].mxu0
        %8878 = vmatprep.mubr.bf16.mxu0 0
        %8879 = vmatmul.mubr.bf16.gmra.mrb[0].mxu0 %v8750
        %v8880 = vpop.f32.mrb[0].mxu0
        %v8881 = vadd.f32 %v8668, %v8880
        %v8882 = vpop.f32.mrb[0].mxu0
        %v8883 = vpop.f32.mrb[0].mxu0
        %v8884 = vadd.f32 %v8671, %v8883
        %v8885 = vpop.f32.mrb[0].mxu0
        %8886 = vmatprep.mubr.bf16.mxu0 0
        %8887 = vmatmul.mubr.bf16.gmra.mrb[0].mxu0 %v8752
        %v8888 = vpop.f32.mrb[0].mxu0
        %v8889 = vadd.f32 %v8676, %v8888
        %v8890 = vpop.f32.mrb[0].mxu0
        %v8891 = vpop.f32.mrb[0].mxu0
        %v8892 = vadd.f32 %v8679, %v8891
        %v8893 = vpop.f32.mrb[0].mxu0
        %8894 = vmatprep.mubr.bf16.mxu0 0
        %8895 = vmatmul.mubr.bf16.gmra.mrb[0].mxu0 %v8754
        %v8896 = vpop.f32.mrb[0].mxu0
        %v8897 = vadd.f32 %v8684, %v8896
        %v8898 = vpop.f32.mrb[0].mxu0
        %v8899 = vpop.f32.mrb[0].mxu0
        %v8900 = vadd.f32 %v8687, %v8899
        %v8901 = vpop.f32.mrb[0].mxu0
        %8902 = vmatprep.mubr.bf16.mxu0 0
        %8903 = vmatmul.mubr.bf16.gmra.mrb[0].mxu0 %v8756
        %v8904 = vpop.f32.mrb[0].mxu0
        %v8905 = vadd.f32 %v8692, %v8904
        %v8906 = vpop.f32.mrb[0].mxu0
        %v8907 = vpop.f32.mrb[0].mxu0
        %v8908 = vadd.f32 %v8695, %v8907
        %v8909 = vpop.f32.mrb[0].mxu0
        %8910 = vmatprep.mubr.bf16.mxu0 0
        %8911 = vmatmul.mubr.bf16.gmra.mrb[0].mxu0 %v8758
        %v8912 = vpop.f32.mrb[0].mxu0
        %v8913 = vadd.f32 %v8700, %v8912
        %v8914 = vpop.f32.mrb[0].mxu0
        %v8915 = vpop.f32.mrb[0].mxu0
        %v8916 = vadd.f32 %v8703, %v8915
        %v8917 = vpop.f32.mrb[0].mxu0
        %8918 = vmatprep.mubr.bf16.mxu0 0
        %8919 = vmatmul.mubr.bf16.gmra.mrb[0].mxu0 %v8760
        %v8920 = vpop.f32.mrb[0].mxu0
        %v8921 = vadd.f32 %v8708, %v8920
        %v8922 = vpop.f32.mrb[0].mxu0
        %v8923 = vpop.f32.mrb[0].mxu0
        %v8924 = vadd.f32 %v8711, %v8923
        %v8925 = vpop.f32.mrb[0].mxu0
        %8926 = vmatprep.mubr.bf16.mxu0 0
        %8927 = vmatmul.mubr.bf16.gmra.mrb[0].mxu0 %v8762
        %v8928 = vpop.f32.mrb[0].mxu0
        %v8929 = vadd.f32 %v8716, %v8928
        %v8930 = vpop.f32.mrb[0].mxu0
        %v8931 = vpop.f32.mrb[0].mxu0
        %v8932 = vadd.f32 %v8719, %v8931
        %v8933 = vpop.f32.mrb[0].mxu0
        %8934 = vmatprep.mubr.bf16.mxu0 0
        %8935 = vmatmul.mubr.bf16.gmra.mrb[0].mxu0 %v8764
        %v8936 = vpop.f32.mrb[0].mxu0
        %v8937 = vadd.f32 %v8724, %v8936
        %v8938 = vpop.f32.mrb[0].mxu0
        %v8939 = vpop.f32.mrb[0].mxu0
        %v8940 = vadd.f32 %v8727, %v8939
        %v8941 = vpop.f32.mrb[0].mxu0
        %8942 = vdwg.mxu0
        %v8943 = vld [vmem:[%s277] sm:$0xe]
        %v8945 = vunpack.c.l.b16 %v8943
        %v8946 = vpack.c.b16 %v8296, %v8945
        %v8947 = vrot.slane %v8946, 1
        %v8948 = vrot.slane %v8333, 1
        %v8949 = vsel %vm1068, %v8947, %v8948
        %v8950 = vrot.slane %v8334, 1
        %v8951 = vsel %vm1068, %v8948, %v8950
        %v8952 = vrot.slane %v8335, 1
        %v8953 = vsel %vm1068, %v8950, %v8952
        %v8954 = vrot.slane %v8336, 1
        %v8955 = vsel %vm1068, %v8952, %v8954
        %v8956 = vrot.slane %v8337, 1
        %v8957 = vsel %vm1068, %v8954, %v8956
        %v8958 = vrot.slane %v8338, 1
        %v8959 = vsel %vm1068, %v8956, %v8958
        %v8960 = vrot.slane %v8339, 1
        %v8961 = vsel %vm1068, %v8958, %v8960
        %v8962 = vrot.slane %v8340, 1
        %v8963 = vsel %vm1068, %v8960, %v8962
        %v8964 = vrot.slane %v8341, 1
        %v8965 = vsel %vm1068, %v8962, %v8964
        %v8966 = vrot.slane %v8342, 1
        %v8967 = vsel %vm1068, %v8964, %v8966
        %v8968 = vrot.slane %v8343, 1
        %v8969 = vsel %vm1068, %v8966, %v8968
        %v8970 = vrot.slane %v8344, 1
        %v8971 = vsel %vm1068, %v8968, %v8970
        %v8972 = vrot.slane %v8345, 1
        %v8973 = vsel %vm1068, %v8970, %v8972
        %v8974 = vrot.slane %v8346, 1
        %v8975 = vsel %vm1068, %v8972, %v8974
        %v8976 = vrot.slane %v8347, 1
        %v8977 = vsel %vm1068, %v8974, %v8976
        %v8978 = vrot.slane %v8348, 1
        %v8979 = vsel %vm1068, %v8976, %v8978
        %v8980 = vrot.slane %v8349, 1
        %v8981 = vsel %vm1068, %v8978, %v8980
        %v8982 = vrot.slane %v8350, 1
        %v8983 = vsel %vm1068, %v8980, %v8982
        %v8985 = vsel %vm612, %v8949, 0
        %v8988 = vsel %vm612, %v8951, 0
        %v8991 = vsel %vm612, %v8953, 0
        %v8994 = vsel %vm612, %v8955, 0
        %v8997 = vsel %vm612, %v8957, 0
        %v9000 = vsel %vm612, %v8959, 0
        %v9003 = vsel %vm612, %v8961, 0
        %v9006 = vsel %vm612, %v8963, 0
        %v9009 = vsel %vm612, %v8965, 0
        %v9012 = vsel %vm612, %v8967, 0
        %v9015 = vsel %vm612, %v8969, 0
        %v9018 = vsel %vm612, %v8971, 0
        %v9021 = vsel %vm612, %v8973, 0
        %v9024 = vsel %vm612, %v8975, 0
        %v9027 = vsel %vm612, %v8977, 0
        %v9030 = vsel %vm612, %v8979, 0
        %v9033 = vsel %vm612, %v8981, 0
        %v9036 = vsel %vm612, %v8983, 0
        %9038 = vmatprep.subr.bf16.mxu0 0
        %9039 = vmatpush1.bf16.msra.mxu0 %v1161
        %9040 = vmatprep.subr.bf16.mxu0 0
        %9041 = vmatpush1.bf16.msra.mxu0 0
        %9042 = vmatprep.subr.bf16.mxu0 0
        %9043 = vmatpush1.bf16.msra.mxu0 0
        %9044 = vmatprep.subr.bf16.mxu0 0
        %9045 = vmatpush1.bf16.msra.mxu0 0
        %9046 = vmatprep.subr.bf16.mxu0 0
        %9047 = vmatpush1.bf16.msra.mxu0 0
        %9048 = vmatprep.subr.bf16.mxu0 0
        %9049 = vmatpush1.bf16.msra.mxu0 0
        %9050 = vmatprep.subr.bf16.mxu0 0
        %9051 = vmatpush1.bf16.msra.mxu0 0
        %9052 = vmatprep.subr.bf16.mxu0 0
        %9053 = vmatpush1.bf16.msra.mxu0 0
        %9054 = vmatprep.subr.bf16.mxu0 0
        %9055 = vmatpush1.bf16.msra.mxu0 0
        %9056 = vmatprep.subr.bf16.mxu0 0
        %9057 = vmatpush1.bf16.msra.mxu0 0
        %9058 = vmatprep.subr.bf16.mxu0 0
        %9059 = vmatpush1.bf16.msra.mxu0 0
        %9060 = vmatprep.subr.bf16.mxu0 0
        %9061 = vmatpush1.bf16.msra.mxu0 0
        %9062 = vmatprep.subr.bf16.mxu0 0
        %9063 = vmatpush1.bf16.msra.mxu0 0
        %9064 = vmatprep.subr.bf16.mxu0 0
        %9065 = vmatpush1.bf16.msra.mxu0 0
        %9066 = vmatprep.subr.bf16.mxu0 0
        %9067 = vmatpush1.bf16.msra.mxu0 0
        %9068 = vmatprep.subr.bf16.mxu0 0
        %9069 = vmatpush1.bf16.msra.mxu0 0
        %9070 = vmatprep.mubr.bf16.mxu0 0
        %9071 = vmatmul.mubr.bf16.gmra.mrb[0].mxu0 %v8985
        %v9072 = vpop.f32.mrb[0].mxu0
        %v9073 = vadd.f32 0.0, %v9072
        %v9074 = vpop.f32.mrb[0].mxu0
        %v9075 = vpop.f32.mrb[0].mxu0
        %v9076 = vadd.f32 0.0, %v9075
        %v9077 = vpop.f32.mrb[0].mxu0
        %9078 = vmatprep.mubr.bf16.mxu0 0
        %9079 = vmatmul.mubr.bf16.gmra.mrb[0].mxu0 %v8988
        %v9080 = vpop.f32.mrb[0].mxu0
        %v9081 = vadd.f32 0.0, %v9080
        %v9082 = vpop.f32.mrb[0].mxu0
        %v9083 = vpop.f32.mrb[0].mxu0
        %v9084 = vadd.f32 0.0, %v9083
        %v9085 = vpop.f32.mrb[0].mxu0
        %9086 = vmatprep.mubr.bf16.mxu0 0
        %9087 = vmatmul.mubr.bf16.gmra.mrb[0].mxu0 %v8991
        %v9088 = vpop.f32.mrb[0].mxu0
        %v9089 = vadd.f32 0.0, %v9088
        %v9090 = vpop.f32.mrb[0].mxu0
        %v9091 = vpop.f32.mrb[0].mxu0
        %v9092 = vadd.f32 0.0, %v9091
        %v9093 = vpop.f32.mrb[0].mxu0
        %9094 = vmatprep.mubr.bf16.mxu0 0
        %9095 = vmatmul.mubr.bf16.gmra.mrb[0].mxu0 %v8994
        %v9096 = vpop.f32.mrb[0].mxu0
        %v9097 = vadd.f32 0.0, %v9096
        %v9098 = vpop.f32.mrb[0].mxu0
        %v9099 = vpop.f32.mrb[0].mxu0
        %v9100 = vadd.f32 0.0, %v9099
        %v9101 = vpop.f32.mrb[0].mxu0
        %9102 = vmatprep.mubr.bf16.mxu0 0
        %9103 = vmatmul.mubr.bf16.gmra.mrb[0].mxu0 %v8997
        %v9104 = vpop.f32.mrb[0].mxu0
        %v9105 = vadd.f32 0.0, %v9104
        %v9106 = vpop.f32.mrb[0].mxu0
        %v9107 = vpop.f32.mrb[0].mxu0
        %v9108 = vadd.f32 0.0, %v9107
        %v9109 = vpop.f32.mrb[0].mxu0
        %9110 = vmatprep.mubr.bf16.mxu0 0
        %9111 = vmatmul.mubr.bf16.gmra.mrb[0].mxu0 %v9000
        %v9112 = vpop.f32.mrb[0].mxu0
        %v9113 = vadd.f32 0.0, %v9112
        %v9114 = vpop.f32.mrb[0].mxu0
        %v9115 = vpop.f32.mrb[0].mxu0
        %v9116 = vadd.f32 0.0, %v9115
        %v9117 = vpop.f32.mrb[0].mxu0
        %9118 = vmatprep.mubr.bf16.mxu0 0
        %9119 = vmatmul.mubr.bf16.gmra.mrb[0].mxu0 %v9003
        %v9120 = vpop.f32.mrb[0].mxu0
        %v9121 = vadd.f32 0.0, %v9120
        %v9122 = vpop.f32.mrb[0].mxu0
        %v9123 = vpop.f32.mrb[0].mxu0
        %v9124 = vadd.f32 0.0, %v9123
        %v9125 = vpop.f32.mrb[0].mxu0
        %9126 = vmatprep.mubr.bf16.mxu0 0
        %9127 = vmatmul.mubr.bf16.gmra.mrb[0].mxu0 %v9006
        %v9128 = vpop.f32.mrb[0].mxu0
        %v9129 = vadd.f32 0.0, %v9128
        %v9130 = vpop.f32.mrb[0].mxu0
        %v9131 = vpop.f32.mrb[0].mxu0
        %v9132 = vadd.f32 0.0, %v9131
        %v9133 = vpop.f32.mrb[0].mxu0
        %9134 = vmatprep.mubr.bf16.mxu0 0
        %9135 = vmatmul.mubr.bf16.gmra.mrb[0].mxu0 %v9009
        %v9136 = vpop.f32.mrb[0].mxu0
        %v9137 = vadd.f32 0.0, %v9136
        %v9138 = vpop.f32.mrb[0].mxu0
        %v9139 = vpop.f32.mrb[0].mxu0
        %v9140 = vadd.f32 0.0, %v9139
        %v9141 = vpop.f32.mrb[0].mxu0
        %9142 = vmatprep.mubr.bf16.mxu0 0
        %9143 = vmatmul.mubr.bf16.gmra.mrb[0].mxu0 %v9012
        %v9144 = vpop.f32.mrb[0].mxu0
        %v9145 = vadd.f32 0.0, %v9144
        %v9146 = vpop.f32.mrb[0].mxu0
        %v9147 = vpop.f32.mrb[0].mxu0
        %v9148 = vadd.f32 0.0, %v9147
        %v9149 = vpop.f32.mrb[0].mxu0
        %9150 = vmatprep.mubr.bf16.mxu0 0
        %9151 = vmatmul.mubr.bf16.gmra.mrb[0].mxu0 %v9015
        %v9152 = vpop.f32.mrb[0].mxu0
        %v9153 = vadd.f32 0.0, %v9152
        %v9154 = vpop.f32.mrb[0].mxu0
        %v9155 = vpop.f32.mrb[0].mxu0
        %v9156 = vadd.f32 0.0, %v9155
        %v9157 = vpop.f32.mrb[0].mxu0
        %9158 = vmatprep.mubr.bf16.mxu0 0
        %9159 = vmatmul.mubr.bf16.gmra.mrb[0].mxu0 %v9018
        %v9160 = vpop.f32.mrb[0].mxu0
        %v9161 = vadd.f32 0.0, %v9160
        %v9162 = vpop.f32.mrb[0].mxu0
        %v9163 = vpop.f32.mrb[0].mxu0
        %v9164 = vadd.f32 0.0, %v9163
        %v9165 = vpop.f32.mrb[0].mxu0
        %9166 = vmatprep.mubr.bf16.mxu0 0
        %9167 = vmatmul.mubr.bf16.gmra.mrb[0].mxu0 %v9021
        %v9168 = vpop.f32.mrb[0].mxu0
        %v9169 = vadd.f32 0.0, %v9168
        %v9170 = vpop.f32.mrb[0].mxu0
        %v9171 = vpop.f32.mrb[0].mxu0
        %v9172 = vadd.f32 0.0, %v9171
        %v9173 = vpop.f32.mrb[0].mxu0
        %9174 = vmatprep.mubr.bf16.mxu0 0
        %9175 = vmatmul.mubr.bf16.gmra.mrb[0].mxu0 %v9024
        %v9176 = vpop.f32.mrb[0].mxu0
        %v9177 = vadd.f32 0.0, %v9176
        %v9178 = vpop.f32.mrb[0].mxu0
        %v9179 = vpop.f32.mrb[0].mxu0
        %v9180 = vadd.f32 0.0, %v9179
        %v9181 = vpop.f32.mrb[0].mxu0
        %9182 = vmatprep.mubr.bf16.mxu0 0
        %9183 = vmatmul.mubr.bf16.gmra.mrb[0].mxu0 %v9027
        %v9184 = vpop.f32.mrb[0].mxu0
        %v9185 = vadd.f32 0.0, %v9184
        %v9186 = vpop.f32.mrb[0].mxu0
        %v9187 = vpop.f32.mrb[0].mxu0
        %v9188 = vadd.f32 0.0, %v9187
        %v9189 = vpop.f32.mrb[0].mxu0
        %9190 = vmatprep.mubr.bf16.mxu0 0
        %9191 = vmatmul.mubr.bf16.gmra.mrb[0].mxu0 %v9030
        %v9192 = vpop.f32.mrb[0].mxu0
        %v9193 = vadd.f32 0.0, %v9192
        %v9194 = vpop.f32.mrb[0].mxu0
        %v9195 = vpop.f32.mrb[0].mxu0
        %v9196 = vadd.f32 0.0, %v9195
        %v9197 = vpop.f32.mrb[0].mxu0
        %9198 = vmatprep.mubr.bf16.mxu0 0
        %9199 = vmatmul.mubr.bf16.gmra.mrb[0].mxu0 %v9033
        %v9200 = vpop.f32.mrb[0].mxu0
        %v9201 = vadd.f32 0.0, %v9200
        %v9202 = vpop.f32.mrb[0].mxu0
        %v9203 = vpop.f32.mrb[0].mxu0
        %v9204 = vadd.f32 0.0, %v9203
        %v9205 = vpop.f32.mrb[0].mxu0
        %9206 = vmatprep.mubr.bf16.mxu0 0
        %9207 = vmatmul.mubr.bf16.gmra.mrb[0].mxu0 %v9036
        %v9208 = vpop.f32.mrb[0].mxu0
        %v9209 = vadd.f32 0.0, %v9208
        %v9210 = vpop.f32.mrb[0].mxu0
        %v9211 = vpop.f32.mrb[0].mxu0
        %v9212 = vadd.f32 0.0, %v9211
        %v9213 = vpop.f32.mrb[0].mxu0
        %9214 = vdwg.mxu0
        %v9215 = vadd.f32 %v8801, %v9073
        %v9216 = vadd.f32 %v8804, %v9076
        %v9217 = vadd.f32 %v8809, %v9081
        %v9218 = vadd.f32 %v8812, %v9084
        %v9219 = vadd.f32 %v8817, %v9089
        %v9220 = vadd.f32 %v8820, %v9092
        %v9221 = vadd.f32 %v8825, %v9097
        %v9222 = vadd.f32 %v8828, %v9100
        %v9223 = vadd.f32 %v8833, %v9105
        %v9224 = vadd.f32 %v8836, %v9108
        %v9225 = vadd.f32 %v8841, %v9113
        %v9226 = vadd.f32 %v8844, %v9116
        %v9227 = vadd.f32 %v8849, %v9121
        %v9228 = vadd.f32 %v8852, %v9124
        %v9229 = vadd.f32 %v8857, %v9129
        %v9230 = vadd.f32 %v8860, %v9132
        %v9231 = vadd.f32 %v8865, %v9137
        %v9232 = vadd.f32 %v8868, %v9140
        %v9233 = vadd.f32 %v8873, %v9145
        %v9234 = vadd.f32 %v8876, %v9148
        %v9235 = vadd.f32 %v8881, %v9153
        %v9236 = vadd.f32 %v8884, %v9156
        %v9237 = vadd.f32 %v8889, %v9161
        %v9238 = vadd.f32 %v8892, %v9164
        %v9239 = vadd.f32 %v8897, %v9169
        %v9240 = vadd.f32 %v8900, %v9172
        %v9241 = vadd.f32 %v8905, %v9177
        %v9242 = vadd.f32 %v8908, %v9180
        %v9243 = vadd.f32 %v8913, %v9185
        %v9244 = vadd.f32 %v8916, %v9188
        %v9245 = vadd.f32 %v8921, %v9193
        %v9246 = vadd.f32 %v8924, %v9196
        %v9247 = vadd.f32 %v8929, %v9201
        %v9248 = vadd.f32 %v8932, %v9204
        %v9249 = vadd.f32 %v8937, %v9209
        %v9250 = vadd.f32 %v8940, %v9212
        %v9251 = vld [vmem:[%s277 + $0x8] sm:$0xe]
        %v9252 = vld [vmem:[%s277 + $0xc] sm:$0xf]
        %v9253 = vld [vmem:[%s277 + $0x10] sm:$0xf]
        %v9254 = vld [vmem:[%s277 + $0x14] sm:$0xf]
        %v9255 = vld [vmem:[%s277 + $0x18] sm:$0xf]
        %v9256 = vld [vmem:[%s277 + $0x1c] sm:$0xf]
        %v9257 = vld [vmem:[%s277 + $0x20] sm:$0xf]
        %v9258 = vld [vmem:[%s277 + $0x24] sm:$0xf]
        %v9259 = vld [vmem:[%s277 + $0x28] sm:$0xf]
        %v9260 = vld [vmem:[%s277 + $0x2c] sm:$0xf]
        %v9261 = vld [vmem:[%s277 + $0x30] sm:$0xf]
        %v9262 = vld [vmem:[%s277 + $0x34] sm:$0xf]
        %v9263 = vld [vmem:[%s277 + $0x38] sm:$0xf]
        %v9264 = vld [vmem:[%s277 + $0x3c] sm:$0xf]
        %v9265 = vld [vmem:[%s277 + $0x40] sm:$0xf]
        %v9266 = vld [vmem:[%s277 + $0x44] sm:$0xf]
        %v9267 = vld [vmem:[%s277 + $0x48] sm:$0xf]
        %v9268 = vld [vmem:[%s277 + $0x4c] sm:$0xf]
        %v9269 = vld [vmem:[%s277 + $0x50] sm:$0xf]
        %v9270 = vld [vmem:[%s277 + $0x54] sm:$0xf]
        %v9271 = vld [vmem:[%s277 + $0x58] sm:$0xf]
        %v9272 = vld [vmem:[%s277 + $0x5c] sm:$0xf]
        %v9273 = vld [vmem:[%s277 + $0x60] sm:$0xf]
        %v9274 = vld [vmem:[%s277 + $0x64] sm:$0xf]
        %v9275 = vld [vmem:[%s277 + $0x68] sm:$0xf]
        %v9276 = vld [vmem:[%s277 + $0x6c] sm:$0xf]
        %v9277 = vld [vmem:[%s277 + $0x70] sm:$0xf]
        %v9278 = vld [vmem:[%s277 + $0x74] sm:$0xf]
        %v9279 = vld [vmem:[%s277 + $0x78] sm:$0xf]
        %v9280 = vld [vmem:[%s277 + $0x7c] sm:$0xf]
        %v9281 = vld [vmem:[%s277 + $0x80] sm:$0xf]
        %v9282 = vld [vmem:[%s277 + $0x84] sm:$0xf]
        %v9283 = vld [vmem:[%s277 + $0x88] sm:$0xf]
        %v9284 = vld [vmem:[%s277 + $0x8c] sm:$0xf]
        %v9285 = vld [vmem:[%s277 + $0x90] sm:$0xf]
        %v9286 = vld [vmem:[%s277 + $0x94] sm:$0xf]
        %v9287 = vld [vmem:[%s277 + $0x98] sm:$0x1]
        %v9325 = vunpack.c.l.b16 %v9251
        %v9326 = vunpack.c.l.b16 %v9252
        %v9327 = vunpack.c.l.b16 %v9253
        %v9328 = vunpack.c.l.b16 %v9254
        %v9329 = vunpack.c.l.b16 %v9255
        %v9330 = vunpack.c.l.b16 %v9256
        %v9331 = vunpack.c.l.b16 %v9257
        %v9332 = vunpack.c.l.b16 %v9258
        %v9333 = vunpack.c.l.b16 %v9259
        %v9334 = vunpack.c.l.b16 %v9260
        %v9335 = vunpack.c.l.b16 %v9261
        %v9336 = vunpack.c.l.b16 %v9262
        %v9337 = vunpack.c.l.b16 %v9263
        %v9338 = vunpack.c.l.b16 %v9264
        %v9339 = vunpack.c.l.b16 %v9265
        %v9340 = vunpack.c.l.b16 %v9266
        %v9341 = vunpack.c.l.b16 %v9267
        %v9342 = vunpack.c.l.b16 %v9268
        %v9343 = vunpack.c.l.b16 %v9269
        %v9344 = vunpack.c.l.b16 %v9270
        %v9345 = vunpack.c.l.b16 %v9271
        %v9346 = vunpack.c.l.b16 %v9272
        %v9347 = vunpack.c.l.b16 %v9273
        %v9348 = vunpack.c.l.b16 %v9274
        %v9349 = vunpack.c.l.b16 %v9275
        %v9350 = vunpack.c.l.b16 %v9276
        %v9351 = vunpack.c.l.b16 %v9277
        %v9352 = vunpack.c.l.b16 %v9278
        %v9353 = vunpack.c.l.b16 %v9279
        %v9354 = vunpack.c.l.b16 %v9280
        %v9355 = vunpack.c.l.b16 %v9281
        %v9356 = vunpack.c.l.b16 %v9282
        %v9357 = vunpack.c.l.b16 %v9283
        %v9358 = vunpack.c.l.b16 %v9284
        %v9359 = vunpack.c.l.b16 %v9285
        %v9360 = vunpack.c.l.b16 %v9286
        %v9361 = vunpack.c.l.b16 %v9287
        %v9362 = vpack.c.b16 %v9326, %v9325
        %v9363 = vpack.c.b16 %v9328, %v9327
        %v9364 = vpack.c.b16 %v9330, %v9329
        %v9365 = vpack.c.b16 %v9332, %v9331
        %v9366 = vpack.c.b16 %v9334, %v9333
        %v9367 = vpack.c.b16 %v9336, %v9335
        %v9368 = vpack.c.b16 %v9338, %v9337
        %v9369 = vpack.c.b16 %v9340, %v9339
        %v9370 = vpack.c.b16 %v9342, %v9341
        %v9371 = vpack.c.b16 %v9344, %v9343
        %v9372 = vpack.c.b16 %v9346, %v9345
        %v9373 = vpack.c.b16 %v9348, %v9347
        %v9374 = vpack.c.b16 %v9350, %v9349
        %v9375 = vpack.c.b16 %v9352, %v9351
        %v9376 = vpack.c.b16 %v9354, %v9353
        %v9377 = vpack.c.b16 %v9356, %v9355
        %v9378 = vpack.c.b16 %v9358, %v9357
        %v9379 = vpack.c.b16 %v9360, %v9359
        %v9380 = vpack.c.b16 %v9361, %v9361
        %v9381 = vrot.slane %v9362, 1
        %v9382 = vrot.slane %v9363, 1
        %v9383 = vsel %vm1068, %v9381, %v9382
        %v9384 = vrot.slane %v9364, 1
        %v9385 = vsel %vm1068, %v9382, %v9384
        %v9386 = vrot.slane %v9365, 1
        %v9387 = vsel %vm1068, %v9384, %v9386
        %v9388 = vrot.slane %v9366, 1
        %v9389 = vsel %vm1068, %v9386, %v9388
        %v9390 = vrot.slane %v9367, 1
        %v9391 = vsel %vm1068, %v9388, %v9390
        %v9392 = vrot.slane %v9368, 1
        %v9393 = vsel %vm1068, %v9390, %v9392
        %v9394 = vrot.slane %v9369, 1
        %v9395 = vsel %vm1068, %v9392, %v9394
        %v9396 = vrot.slane %v9370, 1
        %v9397 = vsel %vm1068, %v9394, %v9396
        %v9398 = vrot.slane %v9371, 1
        %v9399 = vsel %vm1068, %v9396, %v9398
        %v9400 = vrot.slane %v9372, 1
        %v9401 = vsel %vm1068, %v9398, %v9400
        %v9402 = vrot.slane %v9373, 1
        %v9403 = vsel %vm1068, %v9400, %v9402
        %v9404 = vrot.slane %v9374, 1
        %v9405 = vsel %vm1068, %v9402, %v9404
        %v9406 = vrot.slane %v9375, 1
        %v9407 = vsel %vm1068, %v9404, %v9406
        %v9408 = vrot.slane %v9376, 1
        %v9409 = vsel %vm1068, %v9406, %v9408
        %v9410 = vrot.slane %v9377, 1
        %v9411 = vsel %vm1068, %v9408, %v9410
        %v9412 = vrot.slane %v9378, 1
        %v9413 = vsel %vm1068, %v9410, %v9412
        %v9414 = vrot.slane %v9379, 1
        %v9415 = vsel %vm1068, %v9412, %v9414
        %v9416 = vrot.slane %v9380, 1
        %v9417 = vsel %vm1068, %v9414, %v9416
        %v9419 = vsel %vm612, %v9383, 0
        %v9422 = vsel %vm612, %v9385, 0
        %v9425 = vsel %vm612, %v9387, 0
        %v9428 = vsel %vm612, %v9389, 0
        %v9431 = vsel %vm612, %v9391, 0
        %v9434 = vsel %vm612, %v9393, 0
        %v9437 = vsel %vm612, %v9395, 0
        %v9440 = vsel %vm612, %v9397, 0
        %v9443 = vsel %vm612, %v9399, 0
        %v9446 = vsel %vm612, %v9401, 0
        %v9449 = vsel %vm612, %v9403, 0
        %v9452 = vsel %vm612, %v9405, 0
        %v9455 = vsel %vm612, %v9407, 0
        %v9458 = vsel %vm612, %v9409, 0
        %v9461 = vsel %vm612, %v9411, 0
        %v9464 = vsel %vm612, %v9413, 0
        %v9467 = vsel %vm612, %v9415, 0
        %v9470 = vsel %vm612, %v9417, 0
        %9472 = vmatprep.subr.bf16.mxu0 0
        %9473 = vmatpush1.bf16.msra.mxu0 %v1598
        %9474 = vmatprep.subr.bf16.mxu0 0
        %9475 = vmatpush1.bf16.msra.mxu0 0
        %9476 = vmatprep.subr.bf16.mxu0 0
        %9477 = vmatpush1.bf16.msra.mxu0 0
        %9478 = vmatprep.subr.bf16.mxu0 0
        %9479 = vmatpush1.bf16.msra.mxu0 0
        %9480 = vmatprep.subr.bf16.mxu0 0
        %9481 = vmatpush1.bf16.msra.mxu0 0
        %9482 = vmatprep.subr.bf16.mxu0 0
        %9483 = vmatpush1.bf16.msra.mxu0 0
        %9484 = vmatprep.subr.bf16.mxu0 0
        %9485 = vmatpush1.bf16.msra.mxu0 0
        %9486 = vmatprep.subr.bf16.mxu0 0
        %9487 = vmatpush1.bf16.msra.mxu0 0
        %9488 = vmatprep.subr.bf16.mxu0 0
        %9489 = vmatpush1.bf16.msra.mxu0 0
        %9490 = vmatprep.subr.bf16.mxu0 0
        %9491 = vmatpush1.bf16.msra.mxu0 0
        %9492 = vmatprep.subr.bf16.mxu0 0
        %9493 = vmatpush1.bf16.msra.mxu0 0
        %9494 = vmatprep.subr.bf16.mxu0 0
        %9495 = vmatpush1.bf16.msra.mxu0 0
        %9496 = vmatprep.subr.bf16.mxu0 0
        %9497 = vmatpush1.bf16.msra.mxu0 0
        %9498 = vmatprep.subr.bf16.mxu0 0
        %9499 = vmatpush1.bf16.msra.mxu0 0
        %9500 = vmatprep.subr.bf16.mxu0 0
        %9501 = vmatpush1.bf16.msra.mxu0 0
        %9502 = vmatprep.subr.bf16.mxu0 0
        %9503 = vmatpush1.bf16.msra.mxu0 0
        %9504 = vmatprep.mubr.bf16.mxu0 0
        %9505 = vmatmul.mubr.bf16.gmra.mrb[0].mxu0 %v9419
        %v9506 = vpop.f32.mrb[0].mxu0
        %v9507 = vadd.f32 0.0, %v9506
        %v9508 = vpop.f32.mrb[0].mxu0
        %v9509 = vpop.f32.mrb[0].mxu0
        %v9510 = vadd.f32 0.0, %v9509
        %v9511 = vpop.f32.mrb[0].mxu0
        %9512 = vmatprep.mubr.bf16.mxu0 0
        %9513 = vmatmul.mubr.bf16.gmra.mrb[0].mxu0 %v9422
        %v9514 = vpop.f32.mrb[0].mxu0
        %v9515 = vadd.f32 0.0, %v9514
        %v9516 = vpop.f32.mrb[0].mxu0
        %v9517 = vpop.f32.mrb[0].mxu0
        %v9518 = vadd.f32 0.0, %v9517
        %v9519 = vpop.f32.mrb[0].mxu0
        %9520 = vmatprep.mubr.bf16.mxu0 0
        %9521 = vmatmul.mubr.bf16.gmra.mrb[0].mxu0 %v9425
        %v9522 = vpop.f32.mrb[0].mxu0
        %v9523 = vadd.f32 0.0, %v9522
        %v9524 = vpop.f32.mrb[0].mxu0
        %v9525 = vpop.f32.mrb[0].mxu0
        %v9526 = vadd.f32 0.0, %v9525
        %v9527 = vpop.f32.mrb[0].mxu0
        %9528 = vmatprep.mubr.bf16.mxu0 0
        %9529 = vmatmul.mubr.bf16.gmra.mrb[0].mxu0 %v9428
        %v9530 = vpop.f32.mrb[0].mxu0
        %v9531 = vadd.f32 0.0, %v9530
        %v9532 = vpop.f32.mrb[0].mxu0
        %v9533 = vpop.f32.mrb[0].mxu0
        %v9534 = vadd.f32 0.0, %v9533
        %v9535 = vpop.f32.mrb[0].mxu0
        %9536 = vmatprep.mubr.bf16.mxu0 0
        %9537 = vmatmul.mubr.bf16.gmra.mrb[0].mxu0 %v9431
        %v9538 = vpop.f32.mrb[0].mxu0
        %v9539 = vadd.f32 0.0, %v9538
        %v9540 = vpop.f32.mrb[0].mxu0
        %v9541 = vpop.f32.mrb[0].mxu0
        %v9542 = vadd.f32 0.0, %v9541
        %v9543 = vpop.f32.mrb[0].mxu0
        %9544 = vmatprep.mubr.bf16.mxu0 0
        %9545 = vmatmul.mubr.bf16.gmra.mrb[0].mxu0 %v9434
        %v9546 = vpop.f32.mrb[0].mxu0
        %v9547 = vadd.f32 0.0, %v9546
        %v9548 = vpop.f32.mrb[0].mxu0
        %v9549 = vpop.f32.mrb[0].mxu0
        %v9550 = vadd.f32 0.0, %v9549
        %v9551 = vpop.f32.mrb[0].mxu0
        %9552 = vmatprep.mubr.bf16.mxu0 0
        %9553 = vmatmul.mubr.bf16.gmra.mrb[0].mxu0 %v9437
        %v9554 = vpop.f32.mrb[0].mxu0
        %v9555 = vadd.f32 0.0, %v9554
        %v9556 = vpop.f32.mrb[0].mxu0
        %v9557 = vpop.f32.mrb[0].mxu0
        %v9558 = vadd.f32 0.0, %v9557
        %v9559 = vpop.f32.mrb[0].mxu0
        %9560 = vmatprep.mubr.bf16.mxu0 0
        %9561 = vmatmul.mubr.bf16.gmra.mrb[0].mxu0 %v9440
        %v9562 = vpop.f32.mrb[0].mxu0
        %v9563 = vadd.f32 0.0, %v9562
        %v9564 = vpop.f32.mrb[0].mxu0
        %v9565 = vpop.f32.mrb[0].mxu0
        %v9566 = vadd.f32 0.0, %v9565
        %v9567 = vpop.f32.mrb[0].mxu0
        %9568 = vmatprep.mubr.bf16.mxu0 0
        %9569 = vmatmul.mubr.bf16.gmra.mrb[0].mxu0 %v9443
        %v9570 = vpop.f32.mrb[0].mxu0
        %v9571 = vadd.f32 0.0, %v9570
        %v9572 = vpop.f32.mrb[0].mxu0
        %v9573 = vpop.f32.mrb[0].mxu0
        %v9574 = vadd.f32 0.0, %v9573
        %v9575 = vpop.f32.mrb[0].mxu0
        %9576 = vmatprep.mubr.bf16.mxu0 0
        %9577 = vmatmul.mubr.bf16.gmra.mrb[0].mxu0 %v9446
        %v9578 = vpop.f32.mrb[0].mxu0
        %v9579 = vadd.f32 0.0, %v9578
        %v9580 = vpop.f32.mrb[0].mxu0
        %v9581 = vpop.f32.mrb[0].mxu0
        %v9582 = vadd.f32 0.0, %v9581
        %v9583 = vpop.f32.mrb[0].mxu0
        %9584 = vmatprep.mubr.bf16.mxu0 0
        %9585 = vmatmul.mubr.bf16.gmra.mrb[0].mxu0 %v9449
        %v9586 = vpop.f32.mrb[0].mxu0
        %v9587 = vadd.f32 0.0, %v9586
        %v9588 = vpop.f32.mrb[0].mxu0
        %v9589 = vpop.f32.mrb[0].mxu0
        %v9590 = vadd.f32 0.0, %v9589
        %v9591 = vpop.f32.mrb[0].mxu0
        %9592 = vmatprep.mubr.bf16.mxu0 0
        %9593 = vmatmul.mubr.bf16.gmra.mrb[0].mxu0 %v9452
        %v9594 = vpop.f32.mrb[0].mxu0
        %v9595 = vadd.f32 0.0, %v9594
        %v9596 = vpop.f32.mrb[0].mxu0
        %v9597 = vpop.f32.mrb[0].mxu0
        %v9598 = vadd.f32 0.0, %v9597
        %v9599 = vpop.f32.mrb[0].mxu0
        %9600 = vmatprep.mubr.bf16.mxu0 0
        %9601 = vmatmul.mubr.bf16.gmra.mrb[0].mxu0 %v9455
        %v9602 = vpop.f32.mrb[0].mxu0
        %v9603 = vadd.f32 0.0, %v9602
        %v9604 = vpop.f32.mrb[0].mxu0
        %v9605 = vpop.f32.mrb[0].mxu0
        %v9606 = vadd.f32 0.0, %v9605
        %v9607 = vpop.f32.mrb[0].mxu0
        %9608 = vmatprep.mubr.bf16.mxu0 0
        %9609 = vmatmul.mubr.bf16.gmra.mrb[0].mxu0 %v9458
        %v9610 = vpop.f32.mrb[0].mxu0
        %v9611 = vadd.f32 0.0, %v9610
        %v9612 = vpop.f32.mrb[0].mxu0
        %v9613 = vpop.f32.mrb[0].mxu0
        %v9614 = vadd.f32 0.0, %v9613
        %v9615 = vpop.f32.mrb[0].mxu0
        %9616 = vmatprep.mubr.bf16.mxu0 0
        %9617 = vmatmul.mubr.bf16.gmra.mrb[0].mxu0 %v9461
        %v9618 = vpop.f32.mrb[0].mxu0
        %v9619 = vadd.f32 0.0, %v9618
        %v9620 = vpop.f32.mrb[0].mxu0
        %v9621 = vpop.f32.mrb[0].mxu0
        %v9622 = vadd.f32 0.0, %v9621
        %v9623 = vpop.f32.mrb[0].mxu0
        %9624 = vmatprep.mubr.bf16.mxu0 0
        %9625 = vmatmul.mubr.bf16.gmra.mrb[0].mxu0 %v9464
        %v9626 = vpop.f32.mrb[0].mxu0
        %v9627 = vadd.f32 0.0, %v9626
        %v9628 = vpop.f32.mrb[0].mxu0
        %v9629 = vpop.f32.mrb[0].mxu0
        %v9630 = vadd.f32 0.0, %v9629
        %v9631 = vpop.f32.mrb[0].mxu0
        %9632 = vmatprep.mubr.bf16.mxu0 0
        %9633 = vmatmul.mubr.bf16.gmra.mrb[0].mxu0 %v9467
        %v9634 = vpop.f32.mrb[0].mxu0
        %v9635 = vadd.f32 0.0, %v9634
        %v9636 = vpop.f32.mrb[0].mxu0
        %v9637 = vpop.f32.mrb[0].mxu0
        %v9638 = vadd.f32 0.0, %v9637
        %v9639 = vpop.f32.mrb[0].mxu0
        %9640 = vmatprep.mubr.bf16.mxu0 0
        %9641 = vmatmul.mubr.bf16.gmra.mrb[0].mxu0 %v9470
        %v9642 = vpop.f32.mrb[0].mxu0
        %v9643 = vadd.f32 0.0, %v9642
        %v9644 = vpop.f32.mrb[0].mxu0
        %v9645 = vpop.f32.mrb[0].mxu0
        %v9646 = vadd.f32 0.0, %v9645
        %v9647 = vpop.f32.mrb[0].mxu0
        %9648 = vdwg.mxu0
        %v9649 = vadd.f32 %v9215, %v9507
        %v9650 = vadd.f32 %v9216, %v9510
        %v9651 = vadd.f32 %v9217, %v9515
        %v9652 = vadd.f32 %v9218, %v9518
        %v9653 = vadd.f32 %v9219, %v9523
        %v9654 = vadd.f32 %v9220, %v9526
        %v9655 = vadd.f32 %v9221, %v9531
        %v9656 = vadd.f32 %v9222, %v9534
        %v9657 = vadd.f32 %v9223, %v9539
        %v9658 = vadd.f32 %v9224, %v9542
        %v9659 = vadd.f32 %v9225, %v9547
        %v9660 = vadd.f32 %v9226, %v9550
        %v9661 = vadd.f32 %v9227, %v9555
        %v9662 = vadd.f32 %v9228, %v9558
        %v9663 = vadd.f32 %v9229, %v9563
        %v9664 = vadd.f32 %v9230, %v9566
        %v9665 = vadd.f32 %v9231, %v9571
        %v9666 = vadd.f32 %v9232, %v9574
        %v9667 = vadd.f32 %v9233, %v9579
        %v9668 = vadd.f32 %v9234, %v9582
        %v9669 = vadd.f32 %v9235, %v9587
        %v9670 = vadd.f32 %v9236, %v9590
        %v9671 = vadd.f32 %v9237, %v9595
        %v9672 = vadd.f32 %v9238, %v9598
        %v9673 = vadd.f32 %v9239, %v9603
        %v9674 = vadd.f32 %v9240, %v9606
        %v9675 = vadd.f32 %v9241, %v9611
        %v9676 = vadd.f32 %v9242, %v9614
        %v9677 = vadd.f32 %v9243, %v9619
        %v9678 = vadd.f32 %v9244, %v9622
        %v9679 = vadd.f32 %v9245, %v9627
        %v9680 = vadd.f32 %v9246, %v9630
        %v9681 = vadd.f32 %v9247, %v9635
        %v9682 = vadd.f32 %v9248, %v9638
        %v9683 = vadd.f32 %v9249, %v9643
        %v9684 = vadd.f32 %v9250, %v9646
        %v9685 = vld [vmem:[%s277 + $0x98] sm:$0x3]
        %v9687 = vunpack.c.l.b16 %v9685
        %v9688 = vpack.c.b16 %v9687, %v9687
        %v9690 = vshrl.u32 %v9362, 16
        %v9692 = vrot.slane %v9690, 1
        %v9693 = vshll.u32 %v9362, 16
        %v9695 = vrot.slane %v9693, 2
        %v9696 = vor.u32 %v9692, %v9695
        %v9698 = vshrl.u32 %v9363, 16
        %v9700 = vrot.slane %v9698, 1
        %v9701 = vshll.u32 %v9363, 16
        %v9703 = vrot.slane %v9701, 2
        %v9704 = vor.u32 %v9700, %v9703
        %v9705 = vsel %vm1817, %v9696, %v9704
        %v9707 = vshrl.u32 %v9364, 16
        %v9709 = vrot.slane %v9707, 1
        %v9710 = vshll.u32 %v9364, 16
        %v9712 = vrot.slane %v9710, 2
        %v9713 = vor.u32 %v9709, %v9712
        %v9714 = vsel %vm1817, %v9704, %v9713
        %v9716 = vshrl.u32 %v9365, 16
        %v9718 = vrot.slane %v9716, 1
        %v9719 = vshll.u32 %v9365, 16
        %v9721 = vrot.slane %v9719, 2
        %v9722 = vor.u32 %v9718, %v9721
        %v9723 = vsel %vm1817, %v9713, %v9722
        %v9725 = vshrl.u32 %v9366, 16
        %v9727 = vrot.slane %v9725, 1
        %v9728 = vshll.u32 %v9366, 16
        %v9730 = vrot.slane %v9728, 2
        %v9731 = vor.u32 %v9727, %v9730
        %v9732 = vsel %vm1817, %v9722, %v9731
        %v9734 = vshrl.u32 %v9367, 16
        %v9736 = vrot.slane %v9734, 1
        %v9737 = vshll.u32 %v9367, 16
        %v9739 = vrot.slane %v9737, 2
        %v9740 = vor.u32 %v9736, %v9739
        %v9741 = vsel %vm1817, %v9731, %v9740
        %v9743 = vshrl.u32 %v9368, 16
        %v9745 = vrot.slane %v9743, 1
        %v9746 = vshll.u32 %v9368, 16
        %v9748 = vrot.slane %v9746, 2
        %v9749 = vor.u32 %v9745, %v9748
        %v9750 = vsel %vm1817, %v9740, %v9749
        %v9752 = vshrl.u32 %v9369, 16
        %v9754 = vrot.slane %v9752, 1
        %v9755 = vshll.u32 %v9369, 16
        %v9757 = vrot.slane %v9755, 2
        %v9758 = vor.u32 %v9754, %v9757
        %v9759 = vsel %vm1817, %v9749, %v9758
        %v9761 = vshrl.u32 %v9370, 16
        %v9763 = vrot.slane %v9761, 1
        %v9764 = vshll.u32 %v9370, 16
        %v9766 = vrot.slane %v9764, 2
        %v9767 = vor.u32 %v9763, %v9766
        %v9768 = vsel %vm1817, %v9758, %v9767
        %v9770 = vshrl.u32 %v9371, 16
        %v9772 = vrot.slane %v9770, 1
        %v9773 = vshll.u32 %v9371, 16
        %v9775 = vrot.slane %v9773, 2
        %v9776 = vor.u32 %v9772, %v9775
        %v9777 = vsel %vm1817, %v9767, %v9776
        %v9779 = vshrl.u32 %v9372, 16
        %v9781 = vrot.slane %v9779, 1
        %v9782 = vshll.u32 %v9372, 16
        %v9784 = vrot.slane %v9782, 2
        %v9785 = vor.u32 %v9781, %v9784
        %v9786 = vsel %vm1817, %v9776, %v9785
        %v9788 = vshrl.u32 %v9373, 16
        %v9790 = vrot.slane %v9788, 1
        %v9791 = vshll.u32 %v9373, 16
        %v9793 = vrot.slane %v9791, 2
        %v9794 = vor.u32 %v9790, %v9793
        %v9795 = vsel %vm1817, %v9785, %v9794
        %v9797 = vshrl.u32 %v9374, 16
        %v9799 = vrot.slane %v9797, 1
        %v9800 = vshll.u32 %v9374, 16
        %v9802 = vrot.slane %v9800, 2
        %v9803 = vor.u32 %v9799, %v9802
        %v9804 = vsel %vm1817, %v9794, %v9803
        %v9806 = vshrl.u32 %v9375, 16
        %v9808 = vrot.slane %v9806, 1
        %v9809 = vshll.u32 %v9375, 16
        %v9811 = vrot.slane %v9809, 2
        %v9812 = vor.u32 %v9808, %v9811
        %v9813 = vsel %vm1817, %v9803, %v9812
        %v9815 = vshrl.u32 %v9376, 16
        %v9817 = vrot.slane %v9815, 1
        %v9818 = vshll.u32 %v9376, 16
        %v9820 = vrot.slane %v9818, 2
        %v9821 = vor.u32 %v9817, %v9820
        %v9822 = vsel %vm1817, %v9812, %v9821
        %v9824 = vshrl.u32 %v9377, 16
        %v9826 = vrot.slane %v9824, 1
        %v9827 = vshll.u32 %v9377, 16
        %v9829 = vrot.slane %v9827, 2
        %v9830 = vor.u32 %v9826, %v9829
        %v9831 = vsel %vm1817, %v9821, %v9830
        %v9833 = vshrl.u32 %v9378, 16
        %v9835 = vrot.slane %v9833, 1
        %v9836 = vshll.u32 %v9378, 16
        %v9838 = vrot.slane %v9836, 2
        %v9839 = vor.u32 %v9835, %v9838
        %v9840 = vsel %vm1817, %v9830, %v9839
        %v9842 = vshrl.u32 %v9379, 16
        %v9844 = vrot.slane %v9842, 1
        %v9845 = vshll.u32 %v9379, 16
        %v9847 = vrot.slane %v9845, 2
        %v9848 = vor.u32 %v9844, %v9847
        %v9849 = vsel %vm1817, %v9839, %v9848
        %v9851 = vshrl.u32 %v9688, 16
        %v9853 = vrot.slane %v9851, 1
        %v9854 = vshll.u32 %v9688, 16
        %v9856 = vrot.slane %v9854, 2
        %v9857 = vor.u32 %v9853, %v9856
        %v9858 = vsel %vm1817, %v9848, %v9857
        %v9860 = vsel %vm612, %v9705, 0
        %v9863 = vsel %vm612, %v9714, 0
        %v9866 = vsel %vm612, %v9723, 0
        %v9869 = vsel %vm612, %v9732, 0
        %v9872 = vsel %vm612, %v9741, 0
        %v9875 = vsel %vm612, %v9750, 0
        %v9878 = vsel %vm612, %v9759, 0
        %v9881 = vsel %vm612, %v9768, 0
        %v9884 = vsel %vm612, %v9777, 0
        %v9887 = vsel %vm612, %v9786, 0
        %v9890 = vsel %vm612, %v9795, 0
        %v9893 = vsel %vm612, %v9804, 0
        %v9896 = vsel %vm612, %v9813, 0
        %v9899 = vsel %vm612, %v9822, 0
        %v9902 = vsel %vm612, %v9831, 0
        %v9905 = vsel %vm612, %v9840, 0
        %v9908 = vsel %vm612, %v9849, 0
        %v9911 = vsel %vm612, %v9858, 0
        %9913 = vmatprep.subr.bf16.mxu0 0
        %9914 = vmatpush1.bf16.msra.mxu0 %v2043
        %9915 = vmatprep.subr.bf16.mxu0 0
        %9916 = vmatpush1.bf16.msra.mxu0 0
        %9917 = vmatprep.subr.bf16.mxu0 0
        %9918 = vmatpush1.bf16.msra.mxu0 0
        %9919 = vmatprep.subr.bf16.mxu0 0
        %9920 = vmatpush1.bf16.msra.mxu0 0
        %9921 = vmatprep.subr.bf16.mxu0 0
        %9922 = vmatpush1.bf16.msra.mxu0 0
        %9923 = vmatprep.subr.bf16.mxu0 0
        %9924 = vmatpush1.bf16.msra.mxu0 0
        %9925 = vmatprep.subr.bf16.mxu0 0
        %9926 = vmatpush1.bf16.msra.mxu0 0
        %9927 = vmatprep.subr.bf16.mxu0 0
        %9928 = vmatpush1.bf16.msra.mxu0 0
        %9929 = vmatprep.subr.bf16.mxu0 0
        %9930 = vmatpush1.bf16.msra.mxu0 0
        %9931 = vmatprep.subr.bf16.mxu0 0
        %9932 = vmatpush1.bf16.msra.mxu0 0
        %9933 = vmatprep.subr.bf16.mxu0 0
        %9934 = vmatpush1.bf16.msra.mxu0 0
        %9935 = vmatprep.subr.bf16.mxu0 0
        %9936 = vmatpush1.bf16.msra.mxu0 0
        %9937 = vmatprep.subr.bf16.mxu0 0
        %9938 = vmatpush1.bf16.msra.mxu0 0
        %9939 = vmatprep.subr.bf16.mxu0 0
        %9940 = vmatpush1.bf16.msra.mxu0 0
        %9941 = vmatprep.subr.bf16.mxu0 0
        %9942 = vmatpush1.bf16.msra.mxu0 0
        %9943 = vmatprep.subr.bf16.mxu0 0
        %9944 = vmatpush1.bf16.msra.mxu0 0
        %9945 = vmatprep.mubr.bf16.mxu0 0
        %9946 = vmatmul.mubr.bf16.gmra.mrb[0].mxu0 %v9860
        %v9947 = vpop.f32.mrb[0].mxu0
        %v9948 = vadd.f32 0.0, %v9947
        %v9949 = vpop.f32.mrb[0].mxu0
        %v9950 = vpop.f32.mrb[0].mxu0
        %v9951 = vadd.f32 0.0, %v9950
        %v9952 = vpop.f32.mrb[0].mxu0
        %9953 = vmatprep.mubr.bf16.mxu0 0
        %9954 = vmatmul.mubr.bf16.gmra.mrb[0].mxu0 %v9863
        %v9955 = vpop.f32.mrb[0].mxu0
        %v9956 = vadd.f32 0.0, %v9955
        %v9957 = vpop.f32.mrb[0].mxu0
        %v9958 = vpop.f32.mrb[0].mxu0
        %v9959 = vadd.f32 0.0, %v9958
        %v9960 = vpop.f32.mrb[0].mxu0
        %9961 = vmatprep.mubr.bf16.mxu0 0
        %9962 = vmatmul.mubr.bf16.gmra.mrb[0].mxu0 %v9866
        %v9963 = vpop.f32.mrb[0].mxu0
        %v9964 = vadd.f32 0.0, %v9963
        %v9965 = vpop.f32.mrb[0].mxu0
        %v9966 = vpop.f32.mrb[0].mxu0
        %v9967 = vadd.f32 0.0, %v9966
        %v9968 = vpop.f32.mrb[0].mxu0
        %9969 = vmatprep.mubr.bf16.mxu0 0
        %9970 = vmatmul.mubr.bf16.gmra.mrb[0].mxu0 %v9869
        %v9971 = vpop.f32.mrb[0].mxu0
        %v9972 = vadd.f32 0.0, %v9971
        %v9973 = vpop.f32.mrb[0].mxu0
        %v9974 = vpop.f32.mrb[0].mxu0
        %v9975 = vadd.f32 0.0, %v9974
        %v9976 = vpop.f32.mrb[0].mxu0
        %9977 = vmatprep.mubr.bf16.mxu0 0
        %9978 = vmatmul.mubr.bf16.gmra.mrb[0].mxu0 %v9872
        %v9979 = vpop.f32.mrb[0].mxu0
        %v9980 = vadd.f32 0.0, %v9979
        %v9981 = vpop.f32.mrb[0].mxu0
        %v9982 = vpop.f32.mrb[0].mxu0
        %v9983 = vadd.f32 0.0, %v9982
        %v9984 = vpop.f32.mrb[0].mxu0
        %9985 = vmatprep.mubr.bf16.mxu0 0
        %9986 = vmatmul.mubr.bf16.gmra.mrb[0].mxu0 %v9875
        %v9987 = vpop.f32.mrb[0].mxu0
        %v9988 = vadd.f32 0.0, %v9987
        %v9989 = vpop.f32.mrb[0].mxu0
        %v9990 = vpop.f32.mrb[0].mxu0
        %v9991 = vadd.f32 0.0, %v9990
        %v9992 = vpop.f32.mrb[0].mxu0
        %9993 = vmatprep.mubr.bf16.mxu0 0
        %9994 = vmatmul.mubr.bf16.gmra.mrb[0].mxu0 %v9878
        %v9995 = vpop.f32.mrb[0].mxu0
        %v9996 = vadd.f32 0.0, %v9995
        %v9997 = vpop.f32.mrb[0].mxu0
        %v9998 = vpop.f32.mrb[0].mxu0
        %v9999 = vadd.f32 0.0, %v9998
        %v10000 = vpop.f32.mrb[0].mxu0
        %10001 = vmatprep.mubr.bf16.mxu0 0
        %10002 = vmatmul.mubr.bf16.gmra.mrb[0].mxu0 %v9881
        %v10003 = vpop.f32.mrb[0].mxu0
        %v10004 = vadd.f32 0.0, %v10003
        %v10005 = vpop.f32.mrb[0].mxu0
        %v10006 = vpop.f32.mrb[0].mxu0
        %v10007 = vadd.f32 0.0, %v10006
        %v10008 = vpop.f32.mrb[0].mxu0
        %10009 = vmatprep.mubr.bf16.mxu0 0
        %10010 = vmatmul.mubr.bf16.gmra.mrb[0].mxu0 %v9884
        %v10011 = vpop.f32.mrb[0].mxu0
        %v10012 = vadd.f32 0.0, %v10011
        %v10013 = vpop.f32.mrb[0].mxu0
        %v10014 = vpop.f32.mrb[0].mxu0
        %v10015 = vadd.f32 0.0, %v10014
        %v10016 = vpop.f32.mrb[0].mxu0
        %10017 = vmatprep.mubr.bf16.mxu0 0
        %10018 = vmatmul.mubr.bf16.gmra.mrb[0].mxu0 %v9887
        %v10019 = vpop.f32.mrb[0].mxu0
        %v10020 = vadd.f32 0.0, %v10019
        %v10021 = vpop.f32.mrb[0].mxu0
        %v10022 = vpop.f32.mrb[0].mxu0
        %v10023 = vadd.f32 0.0, %v10022
        %v10024 = vpop.f32.mrb[0].mxu0
        %10025 = vmatprep.mubr.bf16.mxu0 0
        %10026 = vmatmul.mubr.bf16.gmra.mrb[0].mxu0 %v9890
        %v10027 = vpop.f32.mrb[0].mxu0
        %v10028 = vadd.f32 0.0, %v10027
        %v10029 = vpop.f32.mrb[0].mxu0
        %v10030 = vpop.f32.mrb[0].mxu0
        %v10031 = vadd.f32 0.0, %v10030
        %v10032 = vpop.f32.mrb[0].mxu0
        %10033 = vmatprep.mubr.bf16.mxu0 0
        %10034 = vmatmul.mubr.bf16.gmra.mrb[0].mxu0 %v9893
        %v10035 = vpop.f32.mrb[0].mxu0
        %v10036 = vadd.f32 0.0, %v10035
        %v10037 = vpop.f32.mrb[0].mxu0
        %v10038 = vpop.f32.mrb[0].mxu0
        %v10039 = vadd.f32 0.0, %v10038
        %v10040 = vpop.f32.mrb[0].mxu0
        %10041 = vmatprep.mubr.bf16.mxu0 0
        %10042 = vmatmul.mubr.bf16.gmra.mrb[0].mxu0 %v9896
        %v10043 = vpop.f32.mrb[0].mxu0
        %v10044 = vadd.f32 0.0, %v10043
        %v10045 = vpop.f32.mrb[0].mxu0
        %v10046 = vpop.f32.mrb[0].mxu0
        %v10047 = vadd.f32 0.0, %v10046
        %v10048 = vpop.f32.mrb[0].mxu0
        %10049 = vmatprep.mubr.bf16.mxu0 0
        %10050 = vmatmul.mubr.bf16.gmra.mrb[0].mxu0 %v9899
        %v10051 = vpop.f32.mrb[0].mxu0
        %v10052 = vadd.f32 0.0, %v10051
        %v10053 = vpop.f32.mrb[0].mxu0
        %v10054 = vpop.f32.mrb[0].mxu0
        %v10055 = vadd.f32 0.0, %v10054
        %v10056 = vpop.f32.mrb[0].mxu0
        %10057 = vmatprep.mubr.bf16.mxu0 0
        %10058 = vmatmul.mubr.bf16.gmra.mrb[0].mxu0 %v9902
        %v10059 = vpop.f32.mrb[0].mxu0
        %v10060 = vadd.f32 0.0, %v10059
        %v10061 = vpop.f32.mrb[0].mxu0
        %v10062 = vpop.f32.mrb[0].mxu0
        %v10063 = vadd.f32 0.0, %v10062
        %v10064 = vpop.f32.mrb[0].mxu0
        %10065 = vmatprep.mubr.bf16.mxu0 0
        %10066 = vmatmul.mubr.bf16.gmra.mrb[0].mxu0 %v9905
        %v10067 = vpop.f32.mrb[0].mxu0
        %v10068 = vadd.f32 0.0, %v10067
        %v10069 = vpop.f32.mrb[0].mxu0
        %v10070 = vpop.f32.mrb[0].mxu0
        %v10071 = vadd.f32 0.0, %v10070
        %v10072 = vpop.f32.mrb[0].mxu0
        %10073 = vmatprep.mubr.bf16.mxu0 0
        %10074 = vmatmul.mubr.bf16.gmra.mrb[0].mxu0 %v9908
        %v10075 = vpop.f32.mrb[0].mxu0
        %v10076 = vadd.f32 0.0, %v10075
        %v10077 = vpop.f32.mrb[0].mxu0
        %v10078 = vpop.f32.mrb[0].mxu0
        %v10079 = vadd.f32 0.0, %v10078
        %v10080 = vpop.f32.mrb[0].mxu0
        %10081 = vmatprep.mubr.bf16.mxu0 0
        %10082 = vmatmul.mubr.bf16.gmra.mrb[0].mxu0 %v9911
        %v10083 = vpop.f32.mrb[0].mxu0
        %v10084 = vadd.f32 0.0, %v10083
        %v10085 = vpop.f32.mrb[0].mxu0
        %v10086 = vpop.f32.mrb[0].mxu0
        %v10087 = vadd.f32 0.0, %v10086
        %v10088 = vpop.f32.mrb[0].mxu0
        %10089 = vdwg.mxu0
        %v10090 = vadd.f32 %v9649, %v9948
        %v10091 = vadd.f32 %v9650, %v9951
        %v10092 = vadd.f32 %v9651, %v9956
        %v10093 = vadd.f32 %v9652, %v9959
        %v10094 = vadd.f32 %v9653, %v9964
        %v10095 = vadd.f32 %v9654, %v9967
        %v10096 = vadd.f32 %v9655, %v9972
        %v10097 = vadd.f32 %v9656, %v9975
        %v10098 = vadd.f32 %v9657, %v9980
        %v10099 = vadd.f32 %v9658, %v9983
        %v10100 = vadd.f32 %v9659, %v9988
        %v10101 = vadd.f32 %v9660, %v9991
        %v10102 = vadd.f32 %v9661, %v9996
        %v10103 = vadd.f32 %v9662, %v9999
        %v10104 = vadd.f32 %v9663, %v10004
        %v10105 = vadd.f32 %v9664, %v10007
        %v10106 = vadd.f32 %v9665, %v10012
        %v10107 = vadd.f32 %v9666, %v10015
        %v10108 = vadd.f32 %v9667, %v10020
        %v10109 = vadd.f32 %v9668, %v10023
        %v10110 = vadd.f32 %v9669, %v10028
        %v10111 = vadd.f32 %v9670, %v10031
        %v10112 = vadd.f32 %v9671, %v10036
        %v10113 = vadd.f32 %v9672, %v10039
        %v10114 = vadd.f32 %v9673, %v10044
        %v10115 = vadd.f32 %v9674, %v10047
        %v10116 = vadd.f32 %v9675, %v10052
        %v10117 = vadd.f32 %v9676, %v10055
        %v10118 = vadd.f32 %v9677, %v10060
        %v10119 = vadd.f32 %v9678, %v10063
        %v10120 = vadd.f32 %v9679, %v10068
        %v10121 = vadd.f32 %v9680, %v10071
        %v10122 = vadd.f32 %v9681, %v10076
        %v10123 = vadd.f32 %v9682, %v10079
        %v10124 = vadd.f32 %v9683, %v10084
        %v10125 = vadd.f32 %v9684, %v10087
        %v10126 = vld [vmem:[%s277 + $0x8] sm:$0xc]
        %v10128 = vunpack.c.l.b16 %v10126
        %v10129 = vpack.c.b16 %v9326, %v10128
        %v10130 = vrot.slane %v10129, 2
        %v10131 = vrot.slane %v9363, 2
        %v10132 = vsel %vm2262, %v10130, %v10131
        %v10133 = vrot.slane %v9364, 2
        %v10134 = vsel %vm2262, %v10131, %v10133
        %v10135 = vrot.slane %v9365, 2
        %v10136 = vsel %vm2262, %v10133, %v10135
        %v10137 = vrot.slane %v9366, 2
        %v10138 = vsel %vm2262, %v10135, %v10137
        %v10139 = vrot.slane %v9367, 2
        %v10140 = vsel %vm2262, %v10137, %v10139
        %v10141 = vrot.slane %v9368, 2
        %v10142 = vsel %vm2262, %v10139, %v10141
        %v10143 = vrot.slane %v9369, 2
        %v10144 = vsel %vm2262, %v10141, %v10143
        %v10145 = vrot.slane %v9370, 2
        %v10146 = vsel %vm2262, %v10143, %v10145
        %v10147 = vrot.slane %v9371, 2
        %v10148 = vsel %vm2262, %v10145, %v10147
        %v10149 = vrot.slane %v9372, 2
        %v10150 = vsel %vm2262, %v10147, %v10149
        %v10151 = vrot.slane %v9373, 2
        %v10152 = vsel %vm2262, %v10149, %v10151
        %v10153 = vrot.slane %v9374, 2
        %v10154 = vsel %vm2262, %v10151, %v10153
        %v10155 = vrot.slane %v9375, 2
        %v10156 = vsel %vm2262, %v10153, %v10155
        %v10157 = vrot.slane %v9376, 2
        %v10158 = vsel %vm2262, %v10155, %v10157
        %v10159 = vrot.slane %v9377, 2
        %v10160 = vsel %vm2262, %v10157, %v10159
        %v10161 = vrot.slane %v9378, 2
        %v10162 = vsel %vm2262, %v10159, %v10161
        %v10163 = vrot.slane %v9379, 2
        %v10164 = vsel %vm2262, %v10161, %v10163
        %v10165 = vrot.slane %v9688, 2
        %v10166 = vsel %vm2262, %v10163, %v10165
        %v10168 = vsel %vm612, %v10132, 0
        %v10171 = vsel %vm612, %v10134, 0
        %v10174 = vsel %vm612, %v10136, 0
        %v10177 = vsel %vm612, %v10138, 0
        %v10180 = vsel %vm612, %v10140, 0
        %v10183 = vsel %vm612, %v10142, 0
        %v10186 = vsel %vm612, %v10144, 0
        %v10189 = vsel %vm612, %v10146, 0
        %v10192 = vsel %vm612, %v10148, 0
        %v10195 = vsel %vm612, %v10150, 0
        %v10198 = vsel %vm612, %v10152, 0
        %v10201 = vsel %vm612, %v10154, 0
        %v10204 = vsel %vm612, %v10156, 0
        %v10207 = vsel %vm612, %v10158, 0
        %v10210 = vsel %vm612, %v10160, 0
        %v10213 = vsel %vm612, %v10162, 0
        %v10216 = vsel %vm612, %v10164, 0
        %v10219 = vsel %vm612, %v10166, 0
        %10221 = vmatprep.subr.bf16.mxu0 0
        %10222 = vmatpush1.bf16.msra.mxu0 %v2355
        %10223 = vmatprep.subr.bf16.mxu0 0
        %10224 = vmatpush1.bf16.msra.mxu0 0
        %10225 = vmatprep.subr.bf16.mxu0 0
        %10226 = vmatpush1.bf16.msra.mxu0 0
        %10227 = vmatprep.subr.bf16.mxu0 0
        %10228 = vmatpush1.bf16.msra.mxu0 0
        %10229 = vmatprep.subr.bf16.mxu0 0
        %10230 = vmatpush1.bf16.msra.mxu0 0
        %10231 = vmatprep.subr.bf16.mxu0 0
        %10232 = vmatpush1.bf16.msra.mxu0 0
        %10233 = vmatprep.subr.bf16.mxu0 0
        %10234 = vmatpush1.bf16.msra.mxu0 0
        %10235 = vmatprep.subr.bf16.mxu0 0
        %10236 = vmatpush1.bf16.msra.mxu0 0
        %10237 = vmatprep.subr.bf16.mxu0 0
        %10238 = vmatpush1.bf16.msra.mxu0 0
        %10239 = vmatprep.subr.bf16.mxu0 0
        %10240 = vmatpush1.bf16.msra.mxu0 0
        %10241 = vmatprep.subr.bf16.mxu0 0
        %10242 = vmatpush1.bf16.msra.mxu0 0
        %10243 = vmatprep.subr.bf16.mxu0 0
        %10244 = vmatpush1.bf16.msra.mxu0 0
        %10245 = vmatprep.subr.bf16.mxu0 0
        %10246 = vmatpush1.bf16.msra.mxu0 0
        %10247 = vmatprep.subr.bf16.mxu0 0
        %10248 = vmatpush1.bf16.msra.mxu0 0
        %10249 = vmatprep.subr.bf16.mxu0 0
        %10250 = vmatpush1.bf16.msra.mxu0 0
        %10251 = vmatprep.subr.bf16.mxu0 0
        %10252 = vmatpush1.bf16.msra.mxu0 0
        %10253 = vmatprep.mubr.bf16.mxu0 0
        %10254 = vmatmul.mubr.bf16.gmra.mrb[0].mxu0 %v10168
        %v10255 = vpop.f32.mrb[0].mxu0
        %v10256 = vadd.f32 0.0, %v10255
        %v10257 = vpop.f32.mrb[0].mxu0
        %v10258 = vpop.f32.mrb[0].mxu0
        %v10259 = vadd.f32 0.0, %v10258
        %v10260 = vpop.f32.mrb[0].mxu0
        %10261 = vmatprep.mubr.bf16.mxu0 0
        %10262 = vmatmul.mubr.bf16.gmra.mrb[0].mxu0 %v10171
        %v10263 = vpop.f32.mrb[0].mxu0
        %v10264 = vadd.f32 0.0, %v10263
        %v10265 = vpop.f32.mrb[0].mxu0
        %v10266 = vpop.f32.mrb[0].mxu0
        %v10267 = vadd.f32 0.0, %v10266
        %v10268 = vpop.f32.mrb[0].mxu0
        %10269 = vmatprep.mubr.bf16.mxu0 0
        %10270 = vmatmul.mubr.bf16.gmra.mrb[0].mxu0 %v10174
        %v10271 = vpop.f32.mrb[0].mxu0
        %v10272 = vadd.f32 0.0, %v10271
        %v10273 = vpop.f32.mrb[0].mxu0
        %v10274 = vpop.f32.mrb[0].mxu0
        %v10275 = vadd.f32 0.0, %v10274
        %v10276 = vpop.f32.mrb[0].mxu0
        %10277 = vmatprep.mubr.bf16.mxu0 0
        %10278 = vmatmul.mubr.bf16.gmra.mrb[0].mxu0 %v10177
        %v10279 = vpop.f32.mrb[0].mxu0
        %v10280 = vadd.f32 0.0, %v10279
        %v10281 = vpop.f32.mrb[0].mxu0
        %v10282 = vpop.f32.mrb[0].mxu0
        %v10283 = vadd.f32 0.0, %v10282
        %v10284 = vpop.f32.mrb[0].mxu0
        %10285 = vmatprep.mubr.bf16.mxu0 0
        %10286 = vmatmul.mubr.bf16.gmra.mrb[0].mxu0 %v10180
        %v10287 = vpop.f32.mrb[0].mxu0
        %v10288 = vadd.f32 0.0, %v10287
        %v10289 = vpop.f32.mrb[0].mxu0
        %v10290 = vpop.f32.mrb[0].mxu0
        %v10291 = vadd.f32 0.0, %v10290
        %v10292 = vpop.f32.mrb[0].mxu0
        %10293 = vmatprep.mubr.bf16.mxu0 0
        %10294 = vmatmul.mubr.bf16.gmra.mrb[0].mxu0 %v10183
        %v10295 = vpop.f32.mrb[0].mxu0
        %v10296 = vadd.f32 0.0, %v10295
        %v10297 = vpop.f32.mrb[0].mxu0
        %v10298 = vpop.f32.mrb[0].mxu0
        %v10299 = vadd.f32 0.0, %v10298
        %v10300 = vpop.f32.mrb[0].mxu0
        %10301 = vmatprep.mubr.bf16.mxu0 0
        %10302 = vmatmul.mubr.bf16.gmra.mrb[0].mxu0 %v10186
        %v10303 = vpop.f32.mrb[0].mxu0
        %v10304 = vadd.f32 0.0, %v10303
        %v10305 = vpop.f32.mrb[0].mxu0
        %v10306 = vpop.f32.mrb[0].mxu0
        %v10307 = vadd.f32 0.0, %v10306
        %v10308 = vpop.f32.mrb[0].mxu0
        %10309 = vmatprep.mubr.bf16.mxu0 0
        %10310 = vmatmul.mubr.bf16.gmra.mrb[0].mxu0 %v10189
        %v10311 = vpop.f32.mrb[0].mxu0
        %v10312 = vadd.f32 0.0, %v10311
        %v10313 = vpop.f32.mrb[0].mxu0
        %v10314 = vpop.f32.mrb[0].mxu0
        %v10315 = vadd.f32 0.0, %v10314
        %v10316 = vpop.f32.mrb[0].mxu0
        %10317 = vmatprep.mubr.bf16.mxu0 0
        %10318 = vmatmul.mubr.bf16.gmra.mrb[0].mxu0 %v10192
        %v10319 = vpop.f32.mrb[0].mxu0
        %v10320 = vadd.f32 0.0, %v10319
        %v10321 = vpop.f32.mrb[0].mxu0
        %v10322 = vpop.f32.mrb[0].mxu0
        %v10323 = vadd.f32 0.0, %v10322
        %v10324 = vpop.f32.mrb[0].mxu0
        %10325 = vmatprep.mubr.bf16.mxu0 0
        %10326 = vmatmul.mubr.bf16.gmra.mrb[0].mxu0 %v10195
        %v10327 = vpop.f32.mrb[0].mxu0
        %v10328 = vadd.f32 0.0, %v10327
        %v10329 = vpop.f32.mrb[0].mxu0
        %v10330 = vpop.f32.mrb[0].mxu0
        %v10331 = vadd.f32 0.0, %v10330
        %v10332 = vpop.f32.mrb[0].mxu0
        %10333 = vmatprep.mubr.bf16.mxu0 0
        %10334 = vmatmul.mubr.bf16.gmra.mrb[0].mxu0 %v10198
        %v10335 = vpop.f32.mrb[0].mxu0
        %v10336 = vadd.f32 0.0, %v10335
        %v10337 = vpop.f32.mrb[0].mxu0
        %v10338 = vpop.f32.mrb[0].mxu0
        %v10339 = vadd.f32 0.0, %v10338
        %v10340 = vpop.f32.mrb[0].mxu0
        %10341 = vmatprep.mubr.bf16.mxu0 0
        %10342 = vmatmul.mubr.bf16.gmra.mrb[0].mxu0 %v10201
        %v10343 = vpop.f32.mrb[0].mxu0
        %v10344 = vadd.f32 0.0, %v10343
        %v10345 = vpop.f32.mrb[0].mxu0
        %v10346 = vpop.f32.mrb[0].mxu0
        %v10347 = vadd.f32 0.0, %v10346
        %v10348 = vpop.f32.mrb[0].mxu0
        %10349 = vmatprep.mubr.bf16.mxu0 0
        %10350 = vmatmul.mubr.bf16.gmra.mrb[0].mxu0 %v10204
        %v10351 = vpop.f32.mrb[0].mxu0
        %v10352 = vadd.f32 0.0, %v10351
        %v10353 = vpop.f32.mrb[0].mxu0
        %v10354 = vpop.f32.mrb[0].mxu0
        %v10355 = vadd.f32 0.0, %v10354
        %v10356 = vpop.f32.mrb[0].mxu0
        %10357 = vmatprep.mubr.bf16.mxu0 0
        %10358 = vmatmul.mubr.bf16.gmra.mrb[0].mxu0 %v10207
        %v10359 = vpop.f32.mrb[0].mxu0
        %v10360 = vadd.f32 0.0, %v10359
        %v10361 = vpop.f32.mrb[0].mxu0
        %v10362 = vpop.f32.mrb[0].mxu0
        %v10363 = vadd.f32 0.0, %v10362
        %v10364 = vpop.f32.mrb[0].mxu0
        %10365 = vmatprep.mubr.bf16.mxu0 0
        %10366 = vmatmul.mubr.bf16.gmra.mrb[0].mxu0 %v10210
        %v10367 = vpop.f32.mrb[0].mxu0
        %v10368 = vadd.f32 0.0, %v10367
        %v10369 = vpop.f32.mrb[0].mxu0
        %v10370 = vpop.f32.mrb[0].mxu0
        %v10371 = vadd.f32 0.0, %v10370
        %v10372 = vpop.f32.mrb[0].mxu0
        %10373 = vmatprep.mubr.bf16.mxu0 0
        %10374 = vmatmul.mubr.bf16.gmra.mrb[0].mxu0 %v10213
        %v10375 = vpop.f32.mrb[0].mxu0
        %v10376 = vadd.f32 0.0, %v10375
        %v10377 = vpop.f32.mrb[0].mxu0
        %v10378 = vpop.f32.mrb[0].mxu0
        %v10379 = vadd.f32 0.0, %v10378
        %v10380 = vpop.f32.mrb[0].mxu0
        %10381 = vmatprep.mubr.bf16.mxu0 0
        %10382 = vmatmul.mubr.bf16.gmra.mrb[0].mxu0 %v10216
        %v10383 = vpop.f32.mrb[0].mxu0
        %v10384 = vadd.f32 0.0, %v10383
        %v10385 = vpop.f32.mrb[0].mxu0
        %v10386 = vpop.f32.mrb[0].mxu0
        %v10387 = vadd.f32 0.0, %v10386
        %v10388 = vpop.f32.mrb[0].mxu0
        %10389 = vmatprep.mubr.bf16.mxu0 0
        %10390 = vmatmul.mubr.bf16.gmra.mrb[0].mxu0 %v10219
        %v10391 = vpop.f32.mrb[0].mxu0
        %v10392 = vadd.f32 0.0, %v10391
        %v10393 = vpop.f32.mrb[0].mxu0
        %v10394 = vpop.f32.mrb[0].mxu0
        %v10395 = vadd.f32 0.0, %v10394
        %v10396 = vpop.f32.mrb[0].mxu0
        %10397 = vdwg.mxu0
        %v10398 = vadd.f32 %v10090, %v10256
        %v10399 = vadd.f32 %v10091, %v10259
        %v10400 = vadd.f32 %v10092, %v10264
        %v10401 = vadd.f32 %v10093, %v10267
        %v10402 = vadd.f32 %v10094, %v10272
        %v10403 = vadd.f32 %v10095, %v10275
        %v10404 = vadd.f32 %v10096, %v10280
        %v10405 = vadd.f32 %v10097, %v10283
        %v10406 = vadd.f32 %v10098, %v10288
        %v10407 = vadd.f32 %v10099, %v10291
        %v10408 = vadd.f32 %v10100, %v10296
        %v10409 = vadd.f32 %v10101, %v10299
        %v10410 = vadd.f32 %v10102, %v10304
        %v10411 = vadd.f32 %v10103, %v10307
        %v10412 = vadd.f32 %v10104, %v10312
        %v10413 = vadd.f32 %v10105, %v10315
        %v10414 = vadd.f32 %v10106, %v10320
        %v10415 = vadd.f32 %v10107, %v10323
        %v10416 = vadd.f32 %v10108, %v10328
        %v10417 = vadd.f32 %v10109, %v10331
        %v10418 = vadd.f32 %v10110, %v10336
        %v10419 = vadd.f32 %v10111, %v10339
        %v10420 = vadd.f32 %v10112, %v10344
        %v10421 = vadd.f32 %v10113, %v10347
        %v10422 = vadd.f32 %v10114, %v10352
        %v10423 = vadd.f32 %v10115, %v10355
        %v10424 = vadd.f32 %v10116, %v10360
        %v10425 = vadd.f32 %v10117, %v10363
        %v10426 = vadd.f32 %v10118, %v10368
        %v10427 = vadd.f32 %v10119, %v10371
        %v10428 = vadd.f32 %v10120, %v10376
        %v10429 = vadd.f32 %v10121, %v10379
        %v10430 = vadd.f32 %v10122, %v10384
        %v10431 = vadd.f32 %v10123, %v10387
        %v10432 = vadd.f32 %v10124, %v10392
        %v10433 = vadd.f32 %v10125, %v10395
        %v10434 = vld [vmem:[%s277 + $0x10] sm:$0xc]
        %v10435 = vld [vmem:[%s277 + $0x14] sm:$0xf]
        %v10436 = vld [vmem:[%s277 + $0x18] sm:$0xf]
        %v10437 = vld [vmem:[%s277 + $0x1c] sm:$0xf]
        %v10438 = vld [vmem:[%s277 + $0x20] sm:$0xf]
        %v10439 = vld [vmem:[%s277 + $0x24] sm:$0xf]
        %v10440 = vld [vmem:[%s277 + $0x28] sm:$0xf]
        %v10441 = vld [vmem:[%s277 + $0x2c] sm:$0xf]
        %v10442 = vld [vmem:[%s277 + $0x30] sm:$0xf]
        %v10443 = vld [vmem:[%s277 + $0x34] sm:$0xf]
        %v10444 = vld [vmem:[%s277 + $0x38] sm:$0xf]
        %v10445 = vld [vmem:[%s277 + $0x3c] sm:$0xf]
        %v10446 = vld [vmem:[%s277 + $0x40] sm:$0xf]
        %v10447 = vld [vmem:[%s277 + $0x44] sm:$0xf]
        %v10448 = vld [vmem:[%s277 + $0x48] sm:$0xf]
        %v10449 = vld [vmem:[%s277 + $0x4c] sm:$0xf]
        %v10450 = vld [vmem:[%s277 + $0x50] sm:$0xf]
        %v10451 = vld [vmem:[%s277 + $0x54] sm:$0xf]
        %v10452 = vld [vmem:[%s277 + $0x58] sm:$0xf]
        %v10453 = vld [vmem:[%s277 + $0x5c] sm:$0xf]
        %v10454 = vld [vmem:[%s277 + $0x60] sm:$0xf]
        %v10455 = vld [vmem:[%s277 + $0x64] sm:$0xf]
        %v10456 = vld [vmem:[%s277 + $0x68] sm:$0xf]
        %v10457 = vld [vmem:[%s277 + $0x6c] sm:$0xf]
        %v10458 = vld [vmem:[%s277 + $0x70] sm:$0xf]
        %v10459 = vld [vmem:[%s277 + $0x74] sm:$0xf]
        %v10460 = vld [vmem:[%s277 + $0x78] sm:$0xf]
        %v10461 = vld [vmem:[%s277 + $0x7c] sm:$0xf]
        %v10462 = vld [vmem:[%s277 + $0x80] sm:$0xf]
        %v10463 = vld [vmem:[%s277 + $0x84] sm:$0xf]
        %v10464 = vld [vmem:[%s277 + $0x88] sm:$0xf]
        %v10465 = vld [vmem:[%s277 + $0x8c] sm:$0xf]
        %v10466 = vld [vmem:[%s277 + $0x90] sm:$0xf]
        %v10467 = vld [vmem:[%s277 + $0x94] sm:$0xf]
        %v10468 = vld [vmem:[%s277 + $0x98] sm:$0xf]
        %v10469 = vld [vmem:[%s277 + $0x9c] sm:$0xf]
        %v10470 = vld [vmem:[%s277 + $0xa0] sm:$0x3]
        %v10508 = vunpack.c.l.b16 %v10434
        %v10509 = vunpack.c.l.b16 %v10435
        %v10510 = vunpack.c.l.b16 %v10436
        %v10511 = vunpack.c.l.b16 %v10437
        %v10512 = vunpack.c.l.b16 %v10438
        %v10513 = vunpack.c.l.b16 %v10439
        %v10514 = vunpack.c.l.b16 %v10440
        %v10515 = vunpack.c.l.b16 %v10441
        %v10516 = vunpack.c.l.b16 %v10442
        %v10517 = vunpack.c.l.b16 %v10443
        %v10518 = vunpack.c.l.b16 %v10444
        %v10519 = vunpack.c.l.b16 %v10445
        %v10520 = vunpack.c.l.b16 %v10446
        %v10521 = vunpack.c.l.b16 %v10447
        %v10522 = vunpack.c.l.b16 %v10448
        %v10523 = vunpack.c.l.b16 %v10449
        %v10524 = vunpack.c.l.b16 %v10450
        %v10525 = vunpack.c.l.b16 %v10451
        %v10526 = vunpack.c.l.b16 %v10452
        %v10527 = vunpack.c.l.b16 %v10453
        %v10528 = vunpack.c.l.b16 %v10454
        %v10529 = vunpack.c.l.b16 %v10455
        %v10530 = vunpack.c.l.b16 %v10456
        %v10531 = vunpack.c.l.b16 %v10457
        %v10532 = vunpack.c.l.b16 %v10458
        %v10533 = vunpack.c.l.b16 %v10459
        %v10534 = vunpack.c.l.b16 %v10460
        %v10535 = vunpack.c.l.b16 %v10461
        %v10536 = vunpack.c.l.b16 %v10462
        %v10537 = vunpack.c.l.b16 %v10463
        %v10538 = vunpack.c.l.b16 %v10464
        %v10539 = vunpack.c.l.b16 %v10465
        %v10540 = vunpack.c.l.b16 %v10466
        %v10541 = vunpack.c.l.b16 %v10467
        %v10542 = vunpack.c.l.b16 %v10468
        %v10543 = vunpack.c.l.b16 %v10469
        %v10544 = vunpack.c.l.b16 %v10470
        %v10545 = vpack.c.b16 %v10509, %v10508
        %v10546 = vpack.c.b16 %v10511, %v10510
        %v10547 = vpack.c.b16 %v10513, %v10512
        %v10548 = vpack.c.b16 %v10515, %v10514
        %v10549 = vpack.c.b16 %v10517, %v10516
        %v10550 = vpack.c.b16 %v10519, %v10518
        %v10551 = vpack.c.b16 %v10521, %v10520
        %v10552 = vpack.c.b16 %v10523, %v10522
        %v10553 = vpack.c.b16 %v10525, %v10524
        %v10554 = vpack.c.b16 %v10527, %v10526
        %v10555 = vpack.c.b16 %v10529, %v10528
        %v10556 = vpack.c.b16 %v10531, %v10530
        %v10557 = vpack.c.b16 %v10533, %v10532
        %v10558 = vpack.c.b16 %v10535, %v10534
        %v10559 = vpack.c.b16 %v10537, %v10536
        %v10560 = vpack.c.b16 %v10539, %v10538
        %v10561 = vpack.c.b16 %v10541, %v10540
        %v10562 = vpack.c.b16 %v10543, %v10542
        %v10563 = vpack.c.b16 %v10544, %v10544
        %v10564 = vrot.slane %v10545, 2
        %v10565 = vrot.slane %v10546, 2
        %v10566 = vsel %vm2262, %v10564, %v10565
        %v10567 = vrot.slane %v10547, 2
        %v10568 = vsel %vm2262, %v10565, %v10567
        %v10569 = vrot.slane %v10548, 2
        %v10570 = vsel %vm2262, %v10567, %v10569
        %v10571 = vrot.slane %v10549, 2
        %v10572 = vsel %vm2262, %v10569, %v10571
        %v10573 = vrot.slane %v10550, 2
        %v10574 = vsel %vm2262, %v10571, %v10573
        %v10575 = vrot.slane %v10551, 2
        %v10576 = vsel %vm2262, %v10573, %v10575
        %v10577 = vrot.slane %v10552, 2
        %v10578 = vsel %vm2262, %v10575, %v10577
        %v10579 = vrot.slane %v10553, 2
        %v10580 = vsel %vm2262, %v10577, %v10579
        %v10581 = vrot.slane %v10554, 2
        %v10582 = vsel %vm2262, %v10579, %v10581
        %v10583 = vrot.slane %v10555, 2
        %v10584 = vsel %vm2262, %v10581, %v10583
        %v10585 = vrot.slane %v10556, 2
        %v10586 = vsel %vm2262, %v10583, %v10585
        %v10587 = vrot.slane %v10557, 2
        %v10588 = vsel %vm2262, %v10585, %v10587
        %v10589 = vrot.slane %v10558, 2
        %v10590 = vsel %vm2262, %v10587, %v10589
        %v10591 = vrot.slane %v10559, 2
        %v10592 = vsel %vm2262, %v10589, %v10591
        %v10593 = vrot.slane %v10560, 2
        %v10594 = vsel %vm2262, %v10591, %v10593
        %v10595 = vrot.slane %v10561, 2
        %v10596 = vsel %vm2262, %v10593, %v10595
        %v10597 = vrot.slane %v10562, 2
        %v10598 = vsel %vm2262, %v10595, %v10597
        %v10599 = vrot.slane %v10563, 2
        %v10600 = vsel %vm2262, %v10597, %v10599
        %v10602 = vsel %vm612, %v10566, 0
        %v10605 = vsel %vm612, %v10568, 0
        %v10608 = vsel %vm612, %v10570, 0
        %v10611 = vsel %vm612, %v10572, 0
        %v10614 = vsel %vm612, %v10574, 0
        %v10617 = vsel %vm612, %v10576, 0
        %v10620 = vsel %vm612, %v10578, 0
        %v10623 = vsel %vm612, %v10580, 0
        %v10626 = vsel %vm612, %v10582, 0
        %v10629 = vsel %vm612, %v10584, 0
        %v10632 = vsel %vm612, %v10586, 0
        %v10635 = vsel %vm612, %v10588, 0
        %v10638 = vsel %vm612, %v10590, 0
        %v10641 = vsel %vm612, %v10592, 0
        %v10644 = vsel %vm612, %v10594, 0
        %v10647 = vsel %vm612, %v10596, 0
        %v10650 = vsel %vm612, %v10598, 0
        %v10653 = vsel %vm612, %v10600, 0
        %10655 = vmatprep.subr.bf16.mxu0 0
        %10656 = vmatpush1.bf16.msra.mxu0 %v2792
        %10657 = vmatprep.subr.bf16.mxu0 0
        %10658 = vmatpush1.bf16.msra.mxu0 0
        %10659 = vmatprep.subr.bf16.mxu0 0
        %10660 = vmatpush1.bf16.msra.mxu0 0
        %10661 = vmatprep.subr.bf16.mxu0 0
        %10662 = vmatpush1.bf16.msra.mxu0 0
        %10663 = vmatprep.subr.bf16.mxu0 0
        %10664 = vmatpush1.bf16.msra.mxu0 0
        %10665 = vmatprep.subr.bf16.mxu0 0
        %10666 = vmatpush1.bf16.msra.mxu0 0
        %10667 = vmatprep.subr.bf16.mxu0 0
        %10668 = vmatpush1.bf16.msra.mxu0 0
        %10669 = vmatprep.subr.bf16.mxu0 0
        %10670 = vmatpush1.bf16.msra.mxu0 0
        %10671 = vmatprep.subr.bf16.mxu0 0
        %10672 = vmatpush1.bf16.msra.mxu0 0
        %10673 = vmatprep.subr.bf16.mxu0 0
        %10674 = vmatpush1.bf16.msra.mxu0 0
        %10675 = vmatprep.subr.bf16.mxu0 0
        %10676 = vmatpush1.bf16.msra.mxu0 0
        %10677 = vmatprep.subr.bf16.mxu0 0
        %10678 = vmatpush1.bf16.msra.mxu0 0
        %10679 = vmatprep.subr.bf16.mxu0 0
        %10680 = vmatpush1.bf16.msra.mxu0 0
        %10681 = vmatprep.subr.bf16.mxu0 0
        %10682 = vmatpush1.bf16.msra.mxu0 0
        %10683 = vmatprep.subr.bf16.mxu0 0
        %10684 = vmatpush1.bf16.msra.mxu0 0
        %10685 = vmatprep.subr.bf16.mxu0 0
        %10686 = vmatpush1.bf16.msra.mxu0 0
        %10687 = vmatprep.mubr.bf16.mxu0 0
        %10688 = vmatmul.mubr.bf16.gmra.mrb[0].mxu0 %v10602
        %v10689 = vpop.f32.mrb[0].mxu0
        %v10690 = vadd.f32 0.0, %v10689
        %v10691 = vpop.f32.mrb[0].mxu0
        %v10692 = vpop.f32.mrb[0].mxu0
        %v10693 = vadd.f32 0.0, %v10692
        %v10694 = vpop.f32.mrb[0].mxu0
        %10695 = vmatprep.mubr.bf16.mxu0 0
        %10696 = vmatmul.mubr.bf16.gmra.mrb[0].mxu0 %v10605
        %v10697 = vpop.f32.mrb[0].mxu0
        %v10698 = vadd.f32 0.0, %v10697
        %v10699 = vpop.f32.mrb[0].mxu0
        %v10700 = vpop.f32.mrb[0].mxu0
        %v10701 = vadd.f32 0.0, %v10700
        %v10702 = vpop.f32.mrb[0].mxu0
        %10703 = vmatprep.mubr.bf16.mxu0 0
        %10704 = vmatmul.mubr.bf16.gmra.mrb[0].mxu0 %v10608
        %v10705 = vpop.f32.mrb[0].mxu0
        %v10706 = vadd.f32 0.0, %v10705
        %v10707 = vpop.f32.mrb[0].mxu0
        %v10708 = vpop.f32.mrb[0].mxu0
        %v10709 = vadd.f32 0.0, %v10708
        %v10710 = vpop.f32.mrb[0].mxu0
        %10711 = vmatprep.mubr.bf16.mxu0 0
        %10712 = vmatmul.mubr.bf16.gmra.mrb[0].mxu0 %v10611
        %v10713 = vpop.f32.mrb[0].mxu0
        %v10714 = vadd.f32 0.0, %v10713
        %v10715 = vpop.f32.mrb[0].mxu0
        %v10716 = vpop.f32.mrb[0].mxu0
        %v10717 = vadd.f32 0.0, %v10716
        %v10718 = vpop.f32.mrb[0].mxu0
        %10719 = vmatprep.mubr.bf16.mxu0 0
        %10720 = vmatmul.mubr.bf16.gmra.mrb[0].mxu0 %v10614
        %v10721 = vpop.f32.mrb[0].mxu0
        %v10722 = vadd.f32 0.0, %v10721
        %v10723 = vpop.f32.mrb[0].mxu0
        %v10724 = vpop.f32.mrb[0].mxu0
        %v10725 = vadd.f32 0.0, %v10724
        %v10726 = vpop.f32.mrb[0].mxu0
        %10727 = vmatprep.mubr.bf16.mxu0 0
        %10728 = vmatmul.mubr.bf16.gmra.mrb[0].mxu0 %v10617
        %v10729 = vpop.f32.mrb[0].mxu0
        %v10730 = vadd.f32 0.0, %v10729
        %v10731 = vpop.f32.mrb[0].mxu0
        %v10732 = vpop.f32.mrb[0].mxu0
        %v10733 = vadd.f32 0.0, %v10732
        %v10734 = vpop.f32.mrb[0].mxu0
        %10735 = vmatprep.mubr.bf16.mxu0 0
        %10736 = vmatmul.mubr.bf16.gmra.mrb[0].mxu0 %v10620
        %v10737 = vpop.f32.mrb[0].mxu0
        %v10738 = vadd.f32 0.0, %v10737
        %v10739 = vpop.f32.mrb[0].mxu0
        %v10740 = vpop.f32.mrb[0].mxu0
        %v10741 = vadd.f32 0.0, %v10740
        %v10742 = vpop.f32.mrb[0].mxu0
        %10743 = vmatprep.mubr.bf16.mxu0 0
        %10744 = vmatmul.mubr.bf16.gmra.mrb[0].mxu0 %v10623
        %v10745 = vpop.f32.mrb[0].mxu0
        %v10746 = vadd.f32 0.0, %v10745
        %v10747 = vpop.f32.mrb[0].mxu0
        %v10748 = vpop.f32.mrb[0].mxu0
        %v10749 = vadd.f32 0.0, %v10748
        %v10750 = vpop.f32.mrb[0].mxu0
        %10751 = vmatprep.mubr.bf16.mxu0 0
        %10752 = vmatmul.mubr.bf16.gmra.mrb[0].mxu0 %v10626
        %v10753 = vpop.f32.mrb[0].mxu0
        %v10754 = vadd.f32 0.0, %v10753
        %v10755 = vpop.f32.mrb[0].mxu0
        %v10756 = vpop.f32.mrb[0].mxu0
        %v10757 = vadd.f32 0.0, %v10756
        %v10758 = vpop.f32.mrb[0].mxu0
        %10759 = vmatprep.mubr.bf16.mxu0 0
        %10760 = vmatmul.mubr.bf16.gmra.mrb[0].mxu0 %v10629
        %v10761 = vpop.f32.mrb[0].mxu0
        %v10762 = vadd.f32 0.0, %v10761
        %v10763 = vpop.f32.mrb[0].mxu0
        %v10764 = vpop.f32.mrb[0].mxu0
        %v10765 = vadd.f32 0.0, %v10764
        %v10766 = vpop.f32.mrb[0].mxu0
        %10767 = vmatprep.mubr.bf16.mxu0 0
        %10768 = vmatmul.mubr.bf16.gmra.mrb[0].mxu0 %v10632
        %v10769 = vpop.f32.mrb[0].mxu0
        %v10770 = vadd.f32 0.0, %v10769
        %v10771 = vpop.f32.mrb[0].mxu0
        %v10772 = vpop.f32.mrb[0].mxu0
        %v10773 = vadd.f32 0.0, %v10772
        %v10774 = vpop.f32.mrb[0].mxu0
        %10775 = vmatprep.mubr.bf16.mxu0 0
        %10776 = vmatmul.mubr.bf16.gmra.mrb[0].mxu0 %v10635
        %v10777 = vpop.f32.mrb[0].mxu0
        %v10778 = vadd.f32 0.0, %v10777
        %v10779 = vpop.f32.mrb[0].mxu0
        %v10780 = vpop.f32.mrb[0].mxu0
        %v10781 = vadd.f32 0.0, %v10780
        %v10782 = vpop.f32.mrb[0].mxu0
        %10783 = vmatprep.mubr.bf16.mxu0 0
        %10784 = vmatmul.mubr.bf16.gmra.mrb[0].mxu0 %v10638
        %v10785 = vpop.f32.mrb[0].mxu0
        %v10786 = vadd.f32 0.0, %v10785
        %v10787 = vpop.f32.mrb[0].mxu0
        %v10788 = vpop.f32.mrb[0].mxu0
        %v10789 = vadd.f32 0.0, %v10788
        %v10790 = vpop.f32.mrb[0].mxu0
        %10791 = vmatprep.mubr.bf16.mxu0 0
        %10792 = vmatmul.mubr.bf16.gmra.mrb[0].mxu0 %v10641
        %v10793 = vpop.f32.mrb[0].mxu0
        %v10794 = vadd.f32 0.0, %v10793
        %v10795 = vpop.f32.mrb[0].mxu0
        %v10796 = vpop.f32.mrb[0].mxu0
        %v10797 = vadd.f32 0.0, %v10796
        %v10798 = vpop.f32.mrb[0].mxu0
        %10799 = vmatprep.mubr.bf16.mxu0 0
        %10800 = vmatmul.mubr.bf16.gmra.mrb[0].mxu0 %v10644
        %v10801 = vpop.f32.mrb[0].mxu0
        %v10802 = vadd.f32 0.0, %v10801
        %v10803 = vpop.f32.mrb[0].mxu0
        %v10804 = vpop.f32.mrb[0].mxu0
        %v10805 = vadd.f32 0.0, %v10804
        %v10806 = vpop.f32.mrb[0].mxu0
        %10807 = vmatprep.mubr.bf16.mxu0 0
        %10808 = vmatmul.mubr.bf16.gmra.mrb[0].mxu0 %v10647
        %v10809 = vpop.f32.mrb[0].mxu0
        %v10810 = vadd.f32 0.0, %v10809
        %v10811 = vpop.f32.mrb[0].mxu0
        %v10812 = vpop.f32.mrb[0].mxu0
        %v10813 = vadd.f32 0.0, %v10812
        %v10814 = vpop.f32.mrb[0].mxu0
        %10815 = vmatprep.mubr.bf16.mxu0 0
        %10816 = vmatmul.mubr.bf16.gmra.mrb[0].mxu0 %v10650
        %v10817 = vpop.f32.mrb[0].mxu0
        %v10818 = vadd.f32 0.0, %v10817
        %v10819 = vpop.f32.mrb[0].mxu0
        %v10820 = vpop.f32.mrb[0].mxu0
        %v10821 = vadd.f32 0.0, %v10820
        %v10822 = vpop.f32.mrb[0].mxu0
        %10823 = vmatprep.mubr.bf16.mxu0 0
        %10824 = vmatmul.mubr.bf16.gmra.mrb[0].mxu0 %v10653
        %v10825 = vpop.f32.mrb[0].mxu0
        %v10826 = vadd.f32 0.0, %v10825
        %v10827 = vpop.f32.mrb[0].mxu0
        %v10828 = vpop.f32.mrb[0].mxu0
        %v10829 = vadd.f32 0.0, %v10828
        %v10830 = vpop.f32.mrb[0].mxu0
        %10831 = vdwg.mxu0
        %v10832 = vadd.f32 %v10398, %v10690
        %v10833 = vadd.f32 %v10399, %v10693
        %v10834 = vadd.f32 %v10400, %v10698
        %v10835 = vadd.f32 %v10401, %v10701
        %v10836 = vadd.f32 %v10402, %v10706
        %v10837 = vadd.f32 %v10403, %v10709
        %v10838 = vadd.f32 %v10404, %v10714
        %v10839 = vadd.f32 %v10405, %v10717
        %v10840 = vadd.f32 %v10406, %v10722
        %v10841 = vadd.f32 %v10407, %v10725
        %v10842 = vadd.f32 %v10408, %v10730
        %v10843 = vadd.f32 %v10409, %v10733
        %v10844 = vadd.f32 %v10410, %v10738
        %v10845 = vadd.f32 %v10411, %v10741
        %v10846 = vadd.f32 %v10412, %v10746
        %v10847 = vadd.f32 %v10413, %v10749
        %v10848 = vadd.f32 %v10414, %v10754
        %v10849 = vadd.f32 %v10415, %v10757
        %v10850 = vadd.f32 %v10416, %v10762
        %v10851 = vadd.f32 %v10417, %v10765
        %v10852 = vadd.f32 %v10418, %v10770
        %v10853 = vadd.f32 %v10419, %v10773
        %v10854 = vadd.f32 %v10420, %v10778
        %v10855 = vadd.f32 %v10421, %v10781
        %v10856 = vadd.f32 %v10422, %v10786
        %v10857 = vadd.f32 %v10423, %v10789
        %v10858 = vadd.f32 %v10424, %v10794
        %v10859 = vadd.f32 %v10425, %v10797
        %v10860 = vadd.f32 %v10426, %v10802
        %v10861 = vadd.f32 %v10427, %v10805
        %v10862 = vadd.f32 %v10428, %v10810
        %v10863 = vadd.f32 %v10429, %v10813
        %v10864 = vadd.f32 %v10430, %v10818
        %v10865 = vadd.f32 %v10431, %v10821
        %v10866 = vadd.f32 %v10432, %v10826
        %v10867 = vadd.f32 %v10433, %v10829
        %v10868 = vld [vmem:[%s277 + $0xa0] sm:$0x7]
        %v10870 = vunpack.c.l.b16 %v10868
        %v10871 = vpack.c.b16 %v10870, %v10870
        %v10873 = vshrl.u32 %v10545, 16
        %v10875 = vrot.slane %v10873, 2
        %v10876 = vshll.u32 %v10545, 16
        %v10878 = vrot.slane %v10876, 3
        %v10879 = vor.u32 %v10875, %v10878
        %v10881 = vshrl.u32 %v10546, 16
        %v10883 = vrot.slane %v10881, 2
        %v10884 = vshll.u32 %v10546, 16
        %v10886 = vrot.slane %v10884, 3
        %v10887 = vor.u32 %v10883, %v10886
        %v10888 = vsel %vm3011, %v10879, %v10887
        %v10890 = vshrl.u32 %v10547, 16
        %v10892 = vrot.slane %v10890, 2
        %v10893 = vshll.u32 %v10547, 16
        %v10895 = vrot.slane %v10893, 3
        %v10896 = vor.u32 %v10892, %v10895
        %v10897 = vsel %vm3011, %v10887, %v10896
        %v10899 = vshrl.u32 %v10548, 16
        %v10901 = vrot.slane %v10899, 2
        %v10902 = vshll.u32 %v10548, 16
        %v10904 = vrot.slane %v10902, 3
        %v10905 = vor.u32 %v10901, %v10904
        %v10906 = vsel %vm3011, %v10896, %v10905
        %v10908 = vshrl.u32 %v10549, 16
        %v10910 = vrot.slane %v10908, 2
        %v10911 = vshll.u32 %v10549, 16
        %v10913 = vrot.slane %v10911, 3
        %v10914 = vor.u32 %v10910, %v10913
        %v10915 = vsel %vm3011, %v10905, %v10914
        %v10917 = vshrl.u32 %v10550, 16
        %v10919 = vrot.slane %v10917, 2
        %v10920 = vshll.u32 %v10550, 16
        %v10922 = vrot.slane %v10920, 3
        %v10923 = vor.u32 %v10919, %v10922
        %v10924 = vsel %vm3011, %v10914, %v10923
        %v10926 = vshrl.u32 %v10551, 16
        %v10928 = vrot.slane %v10926, 2
        %v10929 = vshll.u32 %v10551, 16
        %v10931 = vrot.slane %v10929, 3
        %v10932 = vor.u32 %v10928, %v10931
        %v10933 = vsel %vm3011, %v10923, %v10932
        %v10935 = vshrl.u32 %v10552, 16
        %v10937 = vrot.slane %v10935, 2
        %v10938 = vshll.u32 %v10552, 16
        %v10940 = vrot.slane %v10938, 3
        %v10941 = vor.u32 %v10937, %v10940
        %v10942 = vsel %vm3011, %v10932, %v10941
        %v10944 = vshrl.u32 %v10553, 16
        %v10946 = vrot.slane %v10944, 2
        %v10947 = vshll.u32 %v10553, 16
        %v10949 = vrot.slane %v10947, 3
        %v10950 = vor.u32 %v10946, %v10949
        %v10951 = vsel %vm3011, %v10941, %v10950
        %v10953 = vshrl.u32 %v10554, 16
        %v10955 = vrot.slane %v10953, 2
        %v10956 = vshll.u32 %v10554, 16
        %v10958 = vrot.slane %v10956, 3
        %v10959 = vor.u32 %v10955, %v10958
        %v10960 = vsel %vm3011, %v10950, %v10959
        %v10962 = vshrl.u32 %v10555, 16
        %v10964 = vrot.slane %v10962, 2
        %v10965 = vshll.u32 %v10555, 16
        %v10967 = vrot.slane %v10965, 3
        %v10968 = vor.u32 %v10964, %v10967
        %v10969 = vsel %vm3011, %v10959, %v10968
        %v10971 = vshrl.u32 %v10556, 16
        %v10973 = vrot.slane %v10971, 2
        %v10974 = vshll.u32 %v10556, 16
        %v10976 = vrot.slane %v10974, 3
        %v10977 = vor.u32 %v10973, %v10976
        %v10978 = vsel %vm3011, %v10968, %v10977
        %v10980 = vshrl.u32 %v10557, 16
        %v10982 = vrot.slane %v10980, 2
        %v10983 = vshll.u32 %v10557, 16
        %v10985 = vrot.slane %v10983, 3
        %v10986 = vor.u32 %v10982, %v10985
        %v10987 = vsel %vm3011, %v10977, %v10986
        %v10989 = vshrl.u32 %v10558, 16
        %v10991 = vrot.slane %v10989, 2
        %v10992 = vshll.u32 %v10558, 16
        %v10994 = vrot.slane %v10992, 3
        %v10995 = vor.u32 %v10991, %v10994
        %v10996 = vsel %vm3011, %v10986, %v10995
        %v10998 = vshrl.u32 %v10559, 16
        %v11000 = vrot.slane %v10998, 2
        %v11001 = vshll.u32 %v10559, 16
        %v11003 = vrot.slane %v11001, 3
        %v11004 = vor.u32 %v11000, %v11003
        %v11005 = vsel %vm3011, %v10995, %v11004
        %v11007 = vshrl.u32 %v10560, 16
        %v11009 = vrot.slane %v11007, 2
        %v11010 = vshll.u32 %v10560, 16
        %v11012 = vrot.slane %v11010, 3
        %v11013 = vor.u32 %v11009, %v11012
        %v11014 = vsel %vm3011, %v11004, %v11013
        %v11016 = vshrl.u32 %v10561, 16
        %v11018 = vrot.slane %v11016, 2
        %v11019 = vshll.u32 %v10561, 16
        %v11021 = vrot.slane %v11019, 3
        %v11022 = vor.u32 %v11018, %v11021
        %v11023 = vsel %vm3011, %v11013, %v11022
        %v11025 = vshrl.u32 %v10562, 16
        %v11027 = vrot.slane %v11025, 2
        %v11028 = vshll.u32 %v10562, 16
        %v11030 = vrot.slane %v11028, 3
        %v11031 = vor.u32 %v11027, %v11030
        %v11032 = vsel %vm3011, %v11022, %v11031
        %v11034 = vshrl.u32 %v10871, 16
        %v11036 = vrot.slane %v11034, 2
        %v11037 = vshll.u32 %v10871, 16
        %v11039 = vrot.slane %v11037, 3
        %v11040 = vor.u32 %v11036, %v11039
        %v11041 = vsel %vm3011, %v11031, %v11040
        %v11043 = vsel %vm612, %v10888, 0
        %v11046 = vsel %vm612, %v10897, 0
        %v11049 = vsel %vm612, %v10906, 0
        %v11052 = vsel %vm612, %v10915, 0
        %v11055 = vsel %vm612, %v10924, 0
        %v11058 = vsel %vm612, %v10933, 0
        %v11061 = vsel %vm612, %v10942, 0
        %v11064 = vsel %vm612, %v10951, 0
        %v11067 = vsel %vm612, %v10960, 0
        %v11070 = vsel %vm612, %v10969, 0
        %v11073 = vsel %vm612, %v10978, 0
        %v11076 = vsel %vm612, %v10987, 0
        %v11079 = vsel %vm612, %v10996, 0
        %v11082 = vsel %vm612, %v11005, 0
        %v11085 = vsel %vm612, %v11014, 0
        %v11088 = vsel %vm612, %v11023, 0
        %v11091 = vsel %vm612, %v11032, 0
        %v11094 = vsel %vm612, %v11041, 0
        %11096 = vmatprep.subr.bf16.mxu0 0
        %11097 = vmatpush1.bf16.msra.mxu0 %v3237
        %11098 = vmatprep.subr.bf16.mxu0 0
        %11099 = vmatpush1.bf16.msra.mxu0 0
        %11100 = vmatprep.subr.bf16.mxu0 0
        %11101 = vmatpush1.bf16.msra.mxu0 0
        %11102 = vmatprep.subr.bf16.mxu0 0
        %11103 = vmatpush1.bf16.msra.mxu0 0
        %11104 = vmatprep.subr.bf16.mxu0 0
        %11105 = vmatpush1.bf16.msra.mxu0 0
        %11106 = vmatprep.subr.bf16.mxu0 0
        %11107 = vmatpush1.bf16.msra.mxu0 0
        %11108 = vmatprep.subr.bf16.mxu0 0
        %11109 = vmatpush1.bf16.msra.mxu0 0
        %11110 = vmatprep.subr.bf16.mxu0 0
        %11111 = vmatpush1.bf16.msra.mxu0 0
        %11112 = vmatprep.subr.bf16.mxu0 0
        %11113 = vmatpush1.bf16.msra.mxu0 0
        %11114 = vmatprep.subr.bf16.mxu0 0
        %11115 = vmatpush1.bf16.msra.mxu0 0
        %11116 = vmatprep.subr.bf16.mxu0 0
        %11117 = vmatpush1.bf16.msra.mxu0 0
        %11118 = vmatprep.subr.bf16.mxu0 0
        %11119 = vmatpush1.bf16.msra.mxu0 0
        %11120 = vmatprep.subr.bf16.mxu0 0
        %11121 = vmatpush1.bf16.msra.mxu0 0
        %11122 = vmatprep.subr.bf16.mxu0 0
        %11123 = vmatpush1.bf16.msra.mxu0 0
        %11124 = vmatprep.subr.bf16.mxu0 0
        %11125 = vmatpush1.bf16.msra.mxu0 0
        %11126 = vmatprep.subr.bf16.mxu0 0
        %11127 = vmatpush1.bf16.msra.mxu0 0
        %11128 = vmatprep.mubr.bf16.mxu0 0
        %11129 = vmatmul.mubr.bf16.gmra.mrb[0].mxu0 %v11043
        %v11130 = vpop.f32.mrb[0].mxu0
        %v11131 = vadd.f32 0.0, %v11130
        %v11132 = vpop.f32.mrb[0].mxu0
        %v11133 = vpop.f32.mrb[0].mxu0
        %v11134 = vadd.f32 0.0, %v11133
        %v11135 = vpop.f32.mrb[0].mxu0
        %11136 = vmatprep.mubr.bf16.mxu0 0
        %11137 = vmatmul.mubr.bf16.gmra.mrb[0].mxu0 %v11046
        %v11138 = vpop.f32.mrb[0].mxu0
        %v11139 = vadd.f32 0.0, %v11138
        %v11140 = vpop.f32.mrb[0].mxu0
        %v11141 = vpop.f32.mrb[0].mxu0
        %v11142 = vadd.f32 0.0, %v11141
        %v11143 = vpop.f32.mrb[0].mxu0
        %11144 = vmatprep.mubr.bf16.mxu0 0
        %11145 = vmatmul.mubr.bf16.gmra.mrb[0].mxu0 %v11049
        %v11146 = vpop.f32.mrb[0].mxu0
        %v11147 = vadd.f32 0.0, %v11146
        %v11148 = vpop.f32.mrb[0].mxu0
        %v11149 = vpop.f32.mrb[0].mxu0
        %v11150 = vadd.f32 0.0, %v11149
        %v11151 = vpop.f32.mrb[0].mxu0
        %11152 = vmatprep.mubr.bf16.mxu0 0
        %11153 = vmatmul.mubr.bf16.gmra.mrb[0].mxu0 %v11052
        %v11154 = vpop.f32.mrb[0].mxu0
        %v11155 = vadd.f32 0.0, %v11154
        %v11156 = vpop.f32.mrb[0].mxu0
        %v11157 = vpop.f32.mrb[0].mxu0
        %v11158 = vadd.f32 0.0, %v11157
        %v11159 = vpop.f32.mrb[0].mxu0
        %11160 = vmatprep.mubr.bf16.mxu0 0
        %11161 = vmatmul.mubr.bf16.gmra.mrb[0].mxu0 %v11055
        %v11162 = vpop.f32.mrb[0].mxu0
        %v11163 = vadd.f32 0.0, %v11162
        %v11164 = vpop.f32.mrb[0].mxu0
        %v11165 = vpop.f32.mrb[0].mxu0
        %v11166 = vadd.f32 0.0, %v11165
        %v11167 = vpop.f32.mrb[0].mxu0
        %11168 = vmatprep.mubr.bf16.mxu0 0
        %11169 = vmatmul.mubr.bf16.gmra.mrb[0].mxu0 %v11058
        %v11170 = vpop.f32.mrb[0].mxu0
        %v11171 = vadd.f32 0.0, %v11170
        %v11172 = vpop.f32.mrb[0].mxu0
        %v11173 = vpop.f32.mrb[0].mxu0
        %v11174 = vadd.f32 0.0, %v11173
        %v11175 = vpop.f32.mrb[0].mxu0
        %11176 = vmatprep.mubr.bf16.mxu0 0
        %11177 = vmatmul.mubr.bf16.gmra.mrb[0].mxu0 %v11061
        %v11178 = vpop.f32.mrb[0].mxu0
        %v11179 = vadd.f32 0.0, %v11178
        %v11180 = vpop.f32.mrb[0].mxu0
        %v11181 = vpop.f32.mrb[0].mxu0
        %v11182 = vadd.f32 0.0, %v11181
        %v11183 = vpop.f32.mrb[0].mxu0
        %11184 = vmatprep.mubr.bf16.mxu0 0
        %11185 = vmatmul.mubr.bf16.gmra.mrb[0].mxu0 %v11064
        %v11186 = vpop.f32.mrb[0].mxu0
        %v11187 = vadd.f32 0.0, %v11186
        %v11188 = vpop.f32.mrb[0].mxu0
        %v11189 = vpop.f32.mrb[0].mxu0
        %v11190 = vadd.f32 0.0, %v11189
        %v11191 = vpop.f32.mrb[0].mxu0
        %11192 = vmatprep.mubr.bf16.mxu0 0
        %11193 = vmatmul.mubr.bf16.gmra.mrb[0].mxu0 %v11067
        %v11194 = vpop.f32.mrb[0].mxu0
        %v11195 = vadd.f32 0.0, %v11194
        %v11196 = vpop.f32.mrb[0].mxu0
        %v11197 = vpop.f32.mrb[0].mxu0
        %v11198 = vadd.f32 0.0, %v11197
        %v11199 = vpop.f32.mrb[0].mxu0
        %11200 = vmatprep.mubr.bf16.mxu0 0
        %11201 = vmatmul.mubr.bf16.gmra.mrb[0].mxu0 %v11070
        %v11202 = vpop.f32.mrb[0].mxu0
        %v11203 = vadd.f32 0.0, %v11202
        %v11204 = vpop.f32.mrb[0].mxu0
        %v11205 = vpop.f32.mrb[0].mxu0
        %v11206 = vadd.f32 0.0, %v11205
        %v11207 = vpop.f32.mrb[0].mxu0
        %11208 = vmatprep.mubr.bf16.mxu0 0
        %11209 = vmatmul.mubr.bf16.gmra.mrb[0].mxu0 %v11073
        %v11210 = vpop.f32.mrb[0].mxu0
        %v11211 = vadd.f32 0.0, %v11210
        %v11212 = vpop.f32.mrb[0].mxu0
        %v11213 = vpop.f32.mrb[0].mxu0
        %v11214 = vadd.f32 0.0, %v11213
        %v11215 = vpop.f32.mrb[0].mxu0
        %11216 = vmatprep.mubr.bf16.mxu0 0
        %11217 = vmatmul.mubr.bf16.gmra.mrb[0].mxu0 %v11076
        %v11218 = vpop.f32.mrb[0].mxu0
        %v11219 = vadd.f32 0.0, %v11218
        %v11220 = vpop.f32.mrb[0].mxu0
        %v11221 = vpop.f32.mrb[0].mxu0
        %v11222 = vadd.f32 0.0, %v11221
        %v11223 = vpop.f32.mrb[0].mxu0
        %11224 = vmatprep.mubr.bf16.mxu0 0
        %11225 = vmatmul.mubr.bf16.gmra.mrb[0].mxu0 %v11079
        %v11226 = vpop.f32.mrb[0].mxu0
        %v11227 = vadd.f32 0.0, %v11226
        %v11228 = vpop.f32.mrb[0].mxu0
        %v11229 = vpop.f32.mrb[0].mxu0
        %v11230 = vadd.f32 0.0, %v11229
        %v11231 = vpop.f32.mrb[0].mxu0
        %11232 = vmatprep.mubr.bf16.mxu0 0
        %11233 = vmatmul.mubr.bf16.gmra.mrb[0].mxu0 %v11082
        %v11234 = vpop.f32.mrb[0].mxu0
        %v11235 = vadd.f32 0.0, %v11234
        %v11236 = vpop.f32.mrb[0].mxu0
        %v11237 = vpop.f32.mrb[0].mxu0
        %v11238 = vadd.f32 0.0, %v11237
        %v11239 = vpop.f32.mrb[0].mxu0
        %11240 = vmatprep.mubr.bf16.mxu0 0
        %11241 = vmatmul.mubr.bf16.gmra.mrb[0].mxu0 %v11085
        %v11242 = vpop.f32.mrb[0].mxu0
        %v11243 = vadd.f32 0.0, %v11242
        %v11244 = vpop.f32.mrb[0].mxu0
        %v11245 = vpop.f32.mrb[0].mxu0
        %v11246 = vadd.f32 0.0, %v11245
        %v11247 = vpop.f32.mrb[0].mxu0
        %11248 = vmatprep.mubr.bf16.mxu0 0
        %11249 = vmatmul.mubr.bf16.gmra.mrb[0].mxu0 %v11088
        %v11250 = vpop.f32.mrb[0].mxu0
        %v11251 = vadd.f32 0.0, %v11250
        %v11252 = vpop.f32.mrb[0].mxu0
        %v11253 = vpop.f32.mrb[0].mxu0
        %v11254 = vadd.f32 0.0, %v11253
        %v11255 = vpop.f32.mrb[0].mxu0
        %11256 = vmatprep.mubr.bf16.mxu0 0
        %11257 = vmatmul.mubr.bf16.gmra.mrb[0].mxu0 %v11091
        %v11258 = vpop.f32.mrb[0].mxu0
        %v11259 = vadd.f32 0.0, %v11258
        %v11260 = vpop.f32.mrb[0].mxu0
        %v11261 = vpop.f32.mrb[0].mxu0
        %v11262 = vadd.f32 0.0, %v11261
        %v11263 = vpop.f32.mrb[0].mxu0
        %11264 = vmatprep.mubr.bf16.mxu0 0
        %11265 = vmatmul.mubr.bf16.gmra.mrb[0].mxu0 %v11094
        %v11266 = vpop.f32.mrb[0].mxu0
        %v11267 = vadd.f32 0.0, %v11266
        %v11268 = vpop.f32.mrb[0].mxu0
        %v11269 = vpop.f32.mrb[0].mxu0
        %v11270 = vadd.f32 0.0, %v11269
        %v11271 = vpop.f32.mrb[0].mxu0
        %11272 = vdwg.mxu0
        %v11273 = vadd.f32 %v10832, %v11131
        %v11274 = vadd.f32 %v10833, %v11134
        %v11275 = vadd.f32 %v10834, %v11139
        %v11276 = vadd.f32 %v10835, %v11142
        %v11277 = vadd.f32 %v10836, %v11147
        %v11278 = vadd.f32 %v10837, %v11150
        %v11279 = vadd.f32 %v10838, %v11155
        %v11280 = vadd.f32 %v10839, %v11158
        %v11281 = vadd.f32 %v10840, %v11163
        %v11282 = vadd.f32 %v10841, %v11166
        %v11283 = vadd.f32 %v10842, %v11171
        %v11284 = vadd.f32 %v10843, %v11174
        %v11285 = vadd.f32 %v10844, %v11179
        %v11286 = vadd.f32 %v10845, %v11182
        %v11287 = vadd.f32 %v10846, %v11187
        %v11288 = vadd.f32 %v10847, %v11190
        %v11289 = vadd.f32 %v10848, %v11195
        %v11290 = vadd.f32 %v10849, %v11198
        %v11291 = vadd.f32 %v10850, %v11203
        %v11292 = vadd.f32 %v10851, %v11206
        %v11293 = vadd.f32 %v10852, %v11211
        %v11294 = vadd.f32 %v10853, %v11214
        %v11295 = vadd.f32 %v10854, %v11219
        %v11296 = vadd.f32 %v10855, %v11222
        %v11297 = vadd.f32 %v10856, %v11227
        %v11298 = vadd.f32 %v10857, %v11230
        %v11299 = vadd.f32 %v10858, %v11235
        %v11300 = vadd.f32 %v10859, %v11238
        %v11301 = vadd.f32 %v10860, %v11243
        %v11302 = vadd.f32 %v10861, %v11246
        %v11303 = vadd.f32 %v10862, %v11251
        %v11304 = vadd.f32 %v10863, %v11254
        %v11305 = vadd.f32 %v10864, %v11259
        %v11306 = vadd.f32 %v10865, %v11262
        %v11307 = vadd.f32 %v10866, %v11267
        %v11308 = vadd.f32 %v10867, %v11270
        %v11309 = vld [vmem:[%s277 + $0x10] sm:$0x8]
        %v11311 = vunpack.c.l.b16 %v11309
        %v11312 = vpack.c.b16 %v10509, %v11311
        %v11313 = vrot.slane %v11312, 3
        %v11314 = vrot.slane %v10546, 3
        %v11315 = vsel %vm3456, %v11313, %v11314
        %v11316 = vrot.slane %v10547, 3
        %v11317 = vsel %vm3456, %v11314, %v11316
        %v11318 = vrot.slane %v10548, 3
        %v11319 = vsel %vm3456, %v11316, %v11318
        %v11320 = vrot.slane %v10549, 3
        %v11321 = vsel %vm3456, %v11318, %v11320
        %v11322 = vrot.slane %v10550, 3
        %v11323 = vsel %vm3456, %v11320, %v11322
        %v11324 = vrot.slane %v10551, 3
        %v11325 = vsel %vm3456, %v11322, %v11324
        %v11326 = vrot.slane %v10552, 3
        %v11327 = vsel %vm3456, %v11324, %v11326
        %v11328 = vrot.slane %v10553, 3
        %v11329 = vsel %vm3456, %v11326, %v11328
        %v11330 = vrot.slane %v10554, 3
        %v11331 = vsel %vm3456, %v11328, %v11330
        %v11332 = vrot.slane %v10555, 3
        %v11333 = vsel %vm3456, %v11330, %v11332
        %v11334 = vrot.slane %v10556, 3
        %v11335 = vsel %vm3456, %v11332, %v11334
        %v11336 = vrot.slane %v10557, 3
        %v11337 = vsel %vm3456, %v11334, %v11336
        %v11338 = vrot.slane %v10558, 3
        %v11339 = vsel %vm3456, %v11336, %v11338
        %v11340 = vrot.slane %v10559, 3
        %v11341 = vsel %vm3456, %v11338, %v11340
        %v11342 = vrot.slane %v10560, 3
        %v11343 = vsel %vm3456, %v11340, %v11342
        %v11344 = vrot.slane %v10561, 3
        %v11345 = vsel %vm3456, %v11342, %v11344
        %v11346 = vrot.slane %v10562, 3
        %v11347 = vsel %vm3456, %v11344, %v11346
        %v11348 = vrot.slane %v10871, 3
        %v11349 = vsel %vm3456, %v11346, %v11348
        %v11351 = vsel %vm612, %v11315, 0
        %v11354 = vsel %vm612, %v11317, 0
        %v11357 = vsel %vm612, %v11319, 0
        %v11360 = vsel %vm612, %v11321, 0
        %v11363 = vsel %vm612, %v11323, 0
        %v11366 = vsel %vm612, %v11325, 0
        %v11369 = vsel %vm612, %v11327, 0
        %v11372 = vsel %vm612, %v11329, 0
        %v11375 = vsel %vm612, %v11331, 0
        %v11378 = vsel %vm612, %v11333, 0
        %v11381 = vsel %vm612, %v11335, 0
        %v11384 = vsel %vm612, %v11337, 0
        %v11387 = vsel %vm612, %v11339, 0
        %v11390 = vsel %vm612, %v11341, 0
        %v11393 = vsel %vm612, %v11343, 0
        %v11396 = vsel %vm612, %v11345, 0
        %v11399 = vsel %vm612, %v11347, 0
        %v11402 = vsel %vm612, %v11349, 0
        %11404 = vmatprep.subr.bf16.mxu0 0
        %11405 = vmatpush1.bf16.msra.mxu0 %v3549
        %11406 = vmatprep.subr.bf16.mxu0 0
        %11407 = vmatpush1.bf16.msra.mxu0 0
        %11408 = vmatprep.subr.bf16.mxu0 0
        %11409 = vmatpush1.bf16.msra.mxu0 0
        %11410 = vmatprep.subr.bf16.mxu0 0
        %11411 = vmatpush1.bf16.msra.mxu0 0
        %11412 = vmatprep.subr.bf16.mxu0 0
        %11413 = vmatpush1.bf16.msra.mxu0 0
        %11414 = vmatprep.subr.bf16.mxu0 0
        %11415 = vmatpush1.bf16.msra.mxu0 0
        %11416 = vmatprep.subr.bf16.mxu0 0
        %11417 = vmatpush1.bf16.msra.mxu0 0
        %11418 = vmatprep.subr.bf16.mxu0 0
        %11419 = vmatpush1.bf16.msra.mxu0 0
        %11420 = vmatprep.subr.bf16.mxu0 0
        %11421 = vmatpush1.bf16.msra.mxu0 0
        %11422 = vmatprep.subr.bf16.mxu0 0
        %11423 = vmatpush1.bf16.msra.mxu0 0
        %11424 = vmatprep.subr.bf16.mxu0 0
        %11425 = vmatpush1.bf16.msra.mxu0 0
        %11426 = vmatprep.subr.bf16.mxu0 0
        %11427 = vmatpush1.bf16.msra.mxu0 0
        %11428 = vmatprep.subr.bf16.mxu0 0
        %11429 = vmatpush1.bf16.msra.mxu0 0
        %11430 = vmatprep.subr.bf16.mxu0 0
        %11431 = vmatpush1.bf16.msra.mxu0 0
        %11432 = vmatprep.subr.bf16.mxu0 0
        %11433 = vmatpush1.bf16.msra.mxu0 0
        %11434 = vmatprep.subr.bf16.mxu0 0
        %11435 = vmatpush1.bf16.msra.mxu0 0
        %11436 = vmatprep.mubr.bf16.mxu0 0
        %11437 = vmatmul.mubr.bf16.gmra.mrb[0].mxu0 %v11351
        %v11438 = vpop.f32.mrb[0].mxu0
        %v11439 = vadd.f32 0.0, %v11438
        %v11440 = vpop.f32.mrb[0].mxu0
        %v11441 = vpop.f32.mrb[0].mxu0
        %v11442 = vadd.f32 0.0, %v11441
        %v11443 = vpop.f32.mrb[0].mxu0
        %11444 = vmatprep.mubr.bf16.mxu0 0
        %11445 = vmatmul.mubr.bf16.gmra.mrb[0].mxu0 %v11354
        %v11446 = vpop.f32.mrb[0].mxu0
        %v11447 = vadd.f32 0.0, %v11446
        %v11448 = vpop.f32.mrb[0].mxu0
        %v11449 = vpop.f32.mrb[0].mxu0
        %v11450 = vadd.f32 0.0, %v11449
        %v11451 = vpop.f32.mrb[0].mxu0
        %11452 = vmatprep.mubr.bf16.mxu0 0
        %11453 = vmatmul.mubr.bf16.gmra.mrb[0].mxu0 %v11357
        %v11454 = vpop.f32.mrb[0].mxu0
        %v11455 = vadd.f32 0.0, %v11454
        %v11456 = vpop.f32.mrb[0].mxu0
        %v11457 = vpop.f32.mrb[0].mxu0
        %v11458 = vadd.f32 0.0, %v11457
        %v11459 = vpop.f32.mrb[0].mxu0
        %11460 = vmatprep.mubr.bf16.mxu0 0
        %11461 = vmatmul.mubr.bf16.gmra.mrb[0].mxu0 %v11360
        %v11462 = vpop.f32.mrb[0].mxu0
        %v11463 = vadd.f32 0.0, %v11462
        %v11464 = vpop.f32.mrb[0].mxu0
        %v11465 = vpop.f32.mrb[0].mxu0
        %v11466 = vadd.f32 0.0, %v11465
        %v11467 = vpop.f32.mrb[0].mxu0
        %11468 = vmatprep.mubr.bf16.mxu0 0
        %11469 = vmatmul.mubr.bf16.gmra.mrb[0].mxu0 %v11363
        %v11470 = vpop.f32.mrb[0].mxu0
        %v11471 = vadd.f32 0.0, %v11470
        %v11472 = vpop.f32.mrb[0].mxu0
        %v11473 = vpop.f32.mrb[0].mxu0
        %v11474 = vadd.f32 0.0, %v11473
        %v11475 = vpop.f32.mrb[0].mxu0
        %11476 = vmatprep.mubr.bf16.mxu0 0
        %11477 = vmatmul.mubr.bf16.gmra.mrb[0].mxu0 %v11366
        %v11478 = vpop.f32.mrb[0].mxu0
        %v11479 = vadd.f32 0.0, %v11478
        %v11480 = vpop.f32.mrb[0].mxu0
        %v11481 = vpop.f32.mrb[0].mxu0
        %v11482 = vadd.f32 0.0, %v11481
        %v11483 = vpop.f32.mrb[0].mxu0
        %11484 = vmatprep.mubr.bf16.mxu0 0
        %11485 = vmatmul.mubr.bf16.gmra.mrb[0].mxu0 %v11369
        %v11486 = vpop.f32.mrb[0].mxu0
        %v11487 = vadd.f32 0.0, %v11486
        %v11488 = vpop.f32.mrb[0].mxu0
        %v11489 = vpop.f32.mrb[0].mxu0
        %v11490 = vadd.f32 0.0, %v11489
        %v11491 = vpop.f32.mrb[0].mxu0
        %11492 = vmatprep.mubr.bf16.mxu0 0
        %11493 = vmatmul.mubr.bf16.gmra.mrb[0].mxu0 %v11372
        %v11494 = vpop.f32.mrb[0].mxu0
        %v11495 = vadd.f32 0.0, %v11494
        %v11496 = vpop.f32.mrb[0].mxu0
        %v11497 = vpop.f32.mrb[0].mxu0
        %v11498 = vadd.f32 0.0, %v11497
        %v11499 = vpop.f32.mrb[0].mxu0
        %11500 = vmatprep.mubr.bf16.mxu0 0
        %11501 = vmatmul.mubr.bf16.gmra.mrb[0].mxu0 %v11375
        %v11502 = vpop.f32.mrb[0].mxu0
        %v11503 = vadd.f32 0.0, %v11502
        %v11504 = vpop.f32.mrb[0].mxu0
        %v11505 = vpop.f32.mrb[0].mxu0
        %v11506 = vadd.f32 0.0, %v11505
        %v11507 = vpop.f32.mrb[0].mxu0
        %11508 = vmatprep.mubr.bf16.mxu0 0
        %11509 = vmatmul.mubr.bf16.gmra.mrb[0].mxu0 %v11378
        %v11510 = vpop.f32.mrb[0].mxu0
        %v11511 = vadd.f32 0.0, %v11510
        %v11512 = vpop.f32.mrb[0].mxu0
        %v11513 = vpop.f32.mrb[0].mxu0
        %v11514 = vadd.f32 0.0, %v11513
        %v11515 = vpop.f32.mrb[0].mxu0
        %11516 = vmatprep.mubr.bf16.mxu0 0
        %11517 = vmatmul.mubr.bf16.gmra.mrb[0].mxu0 %v11381
        %v11518 = vpop.f32.mrb[0].mxu0
        %v11519 = vadd.f32 0.0, %v11518
        %v11520 = vpop.f32.mrb[0].mxu0
        %v11521 = vpop.f32.mrb[0].mxu0
        %v11522 = vadd.f32 0.0, %v11521
        %v11523 = vpop.f32.mrb[0].mxu0
        %11524 = vmatprep.mubr.bf16.mxu0 0
        %11525 = vmatmul.mubr.bf16.gmra.mrb[0].mxu0 %v11384
        %v11526 = vpop.f32.mrb[0].mxu0
        %v11527 = vadd.f32 0.0, %v11526
        %v11528 = vpop.f32.mrb[0].mxu0
        %v11529 = vpop.f32.mrb[0].mxu0
        %v11530 = vadd.f32 0.0, %v11529
        %v11531 = vpop.f32.mrb[0].mxu0
        %11532 = vmatprep.mubr.bf16.mxu0 0
        %11533 = vmatmul.mubr.bf16.gmra.mrb[0].mxu0 %v11387
        %v11534 = vpop.f32.mrb[0].mxu0
        %v11535 = vadd.f32 0.0, %v11534
        %v11536 = vpop.f32.mrb[0].mxu0
        %v11537 = vpop.f32.mrb[0].mxu0
        %v11538 = vadd.f32 0.0, %v11537
        %v11539 = vpop.f32.mrb[0].mxu0
        %11540 = vmatprep.mubr.bf16.mxu0 0
        %11541 = vmatmul.mubr.bf16.gmra.mrb[0].mxu0 %v11390
        %v11542 = vpop.f32.mrb[0].mxu0
        %v11543 = vadd.f32 0.0, %v11542
        %v11544 = vpop.f32.mrb[0].mxu0
        %v11545 = vpop.f32.mrb[0].mxu0
        %v11546 = vadd.f32 0.0, %v11545
        %v11547 = vpop.f32.mrb[0].mxu0
        %11548 = vmatprep.mubr.bf16.mxu0 0
        %11549 = vmatmul.mubr.bf16.gmra.mrb[0].mxu0 %v11393
        %v11550 = vpop.f32.mrb[0].mxu0
        %v11551 = vadd.f32 0.0, %v11550
        %v11552 = vpop.f32.mrb[0].mxu0
        %v11553 = vpop.f32.mrb[0].mxu0
        %v11554 = vadd.f32 0.0, %v11553
        %v11555 = vpop.f32.mrb[0].mxu0
        %11556 = vmatprep.mubr.bf16.mxu0 0
        %11557 = vmatmul.mubr.bf16.gmra.mrb[0].mxu0 %v11396
        %v11558 = vpop.f32.mrb[0].mxu0
        %v11559 = vadd.f32 0.0, %v11558
        %v11560 = vpop.f32.mrb[0].mxu0
        %v11561 = vpop.f32.mrb[0].mxu0
        %v11562 = vadd.f32 0.0, %v11561
        %v11563 = vpop.f32.mrb[0].mxu0
        %11564 = vmatprep.mubr.bf16.mxu0 0
        %11565 = vmatmul.mubr.bf16.gmra.mrb[0].mxu0 %v11399
        %v11566 = vpop.f32.mrb[0].mxu0
        %v11567 = vadd.f32 0.0, %v11566
        %v11568 = vpop.f32.mrb[0].mxu0
        %v11569 = vpop.f32.mrb[0].mxu0
        %v11570 = vadd.f32 0.0, %v11569
        %v11571 = vpop.f32.mrb[0].mxu0
        %11572 = vmatprep.mubr.bf16.mxu0 0
        %11573 = vmatmul.mubr.bf16.gmra.mrb[0].mxu0 %v11402
        %v11574 = vpop.f32.mrb[0].mxu0
        %v11575 = vadd.f32 0.0, %v11574
        %v11576 = vpop.f32.mrb[0].mxu0
        %v11577 = vpop.f32.mrb[0].mxu0
        %v11578 = vadd.f32 0.0, %v11577
        %v11579 = vpop.f32.mrb[0].mxu0
        %11580 = vdwg.mxu0
        %v11581 = vadd.f32 %v11273, %v11439
        %v11582 = vadd.f32 %v11274, %v11442
        %v11583 = vadd.f32 %v11275, %v11447
        %v11584 = vadd.f32 %v11276, %v11450
        %v11585 = vadd.f32 %v11277, %v11455
        %v11586 = vadd.f32 %v11278, %v11458
        %v11587 = vadd.f32 %v11279, %v11463
        %v11588 = vadd.f32 %v11280, %v11466
        %v11589 = vadd.f32 %v11281, %v11471
        %v11590 = vadd.f32 %v11282, %v11474
        %v11591 = vadd.f32 %v11283, %v11479
        %v11592 = vadd.f32 %v11284, %v11482
        %v11593 = vadd.f32 %v11285, %v11487
        %v11594 = vadd.f32 %v11286, %v11490
        %v11595 = vadd.f32 %v11287, %v11495
        %v11596 = vadd.f32 %v11288, %v11498
        %v11597 = vadd.f32 %v11289, %v11503
        %v11598 = vadd.f32 %v11290, %v11506
        %v11599 = vadd.f32 %v11291, %v11511
        %v11600 = vadd.f32 %v11292, %v11514
        %v11601 = vadd.f32 %v11293, %v11519
        %v11602 = vadd.f32 %v11294, %v11522
        %v11603 = vadd.f32 %v11295, %v11527
        %v11604 = vadd.f32 %v11296, %v11530
        %v11605 = vadd.f32 %v11297, %v11535
        %v11606 = vadd.f32 %v11298, %v11538
        %v11607 = vadd.f32 %v11299, %v11543
        %v11608 = vadd.f32 %v11300, %v11546
        %v11609 = vadd.f32 %v11301, %v11551
        %v11610 = vadd.f32 %v11302, %v11554
        %v11611 = vadd.f32 %v11303, %v11559
        %v11612 = vadd.f32 %v11304, %v11562
        %v11613 = vadd.f32 %v11305, %v11567
        %v11614 = vadd.f32 %v11306, %v11570
        %v11615 = vadd.f32 %v11307, %v11575
        %v11616 = vadd.f32 %v11308, %v11578
        %v11617 = vadd.f32 %v11581, %v3768
        %v11618 = vadd.f32 %v11582, %v3768
        %v11619 = vadd.f32 %v11583, %v3768
        %v11620 = vadd.f32 %v11584, %v3768
        %v11621 = vadd.f32 %v11585, %v3768
        %v11622 = vadd.f32 %v11586, %v3768
        %v11623 = vadd.f32 %v11587, %v3768
        %v11624 = vadd.f32 %v11588, %v3768
        %v11625 = vadd.f32 %v11589, %v3768
        %v11626 = vadd.f32 %v11590, %v3768
        %v11627 = vadd.f32 %v11591, %v3768
        %v11628 = vadd.f32 %v11592, %v3768
        %v11629 = vadd.f32 %v11593, %v3768
        %v11630 = vadd.f32 %v11594, %v3768
        %v11631 = vadd.f32 %v11595, %v3768
        %v11632 = vadd.f32 %v11596, %v3768
        %v11633 = vadd.f32 %v11597, %v3768
        %v11634 = vadd.f32 %v11598, %v3768
        %v11635 = vadd.f32 %v11599, %v3768
        %v11636 = vadd.f32 %v11600, %v3768
        %v11637 = vadd.f32 %v11601, %v3768
        %v11638 = vadd.f32 %v11602, %v3768
        %v11639 = vadd.f32 %v11603, %v3768
        %v11640 = vadd.f32 %v11604, %v3768
        %v11641 = vadd.f32 %v11605, %v3768
        %v11642 = vadd.f32 %v11606, %v3768
        %v11643 = vadd.f32 %v11607, %v3768
        %v11644 = vadd.f32 %v11608, %v3768
        %v11645 = vadd.f32 %v11609, %v3768
        %v11646 = vadd.f32 %v11610, %v3768
        %v11647 = vadd.f32 %v11611, %v3768
        %v11648 = vadd.f32 %v11612, %v3768
        %v11649 = vadd.f32 %v11613, %v3768
        %v11650 = vadd.f32 %v11614, %v3768
        %v11651 = vadd.f32 %v11615, %v3768
        %v11652 = vadd.f32 %v11616, %v3768
        %v11653 = vmax.f32 %v11617, 0.0
        %v11654 = vmax.f32 %v11618, 0.0
        %v11655 = vmax.f32 %v11619, 0.0
        %v11656 = vmax.f32 %v11620, 0.0
        %v11657 = vmax.f32 %v11621, 0.0
        %v11658 = vmax.f32 %v11622, 0.0
        %v11659 = vmax.f32 %v11623, 0.0
        %v11660 = vmax.f32 %v11624, 0.0
        %v11661 = vmax.f32 %v11625, 0.0
        %v11662 = vmax.f32 %v11626, 0.0
        %v11663 = vmax.f32 %v11627, 0.0
        %v11664 = vmax.f32 %v11628, 0.0
        %v11665 = vmax.f32 %v11629, 0.0
        %v11666 = vmax.f32 %v11630, 0.0
        %v11667 = vmax.f32 %v11631, 0.0
        %v11668 = vmax.f32 %v11632, 0.0
        %v11669 = vmax.f32 %v11633, 0.0
        %v11670 = vmax.f32 %v11634, 0.0
        %v11671 = vmax.f32 %v11635, 0.0
        %v11672 = vmax.f32 %v11636, 0.0
        %v11673 = vmax.f32 %v11637, 0.0
        %v11674 = vmax.f32 %v11638, 0.0
        %v11675 = vmax.f32 %v11639, 0.0
        %v11676 = vmax.f32 %v11640, 0.0
        %v11677 = vmax.f32 %v11641, 0.0
        %v11678 = vmax.f32 %v11642, 0.0
        %v11679 = vmax.f32 %v11643, 0.0
        %v11680 = vmax.f32 %v11644, 0.0
        %v11681 = vmax.f32 %v11645, 0.0
        %v11682 = vmax.f32 %v11646, 0.0
        %v11683 = vmax.f32 %v11647, 0.0
        %v11684 = vmax.f32 %v11648, 0.0
        %v11685 = vmax.f32 %v11649, 0.0
        %v11686 = vmax.f32 %v11650, 0.0
        %v11687 = vmax.f32 %v11651, 0.0
        %v11688 = vmax.f32 %v11652, 0.0
        %v11689 = vmul.f32 %v11653, %v3845
        %v11690 = vmul.f32 %v11654, %v3850
        %v11691 = vmul.f32 %v11655, %v3855
        %v11692 = vmul.f32 %v11656, %v3860
        %v11693 = vmul.f32 %v11657, %v3865
        %v11694 = vmul.f32 %v11658, %v3870
        %v11695 = vmul.f32 %v11659, %v3875
        %v11696 = vmul.f32 %v11660, %v3880
        %v11697 = vmul.f32 %v11661, %v3885
        %v11698 = vmul.f32 %v11662, %v3890
        %v11699 = vmul.f32 %v11663, %v3895
        %v11700 = vmul.f32 %v11664, %v3900
        %v11701 = vmul.f32 %v11665, %v3905
        %v11702 = vmul.f32 %v11666, %v3910
        %v11703 = vmul.f32 %v11667, %v3915
        %v11704 = vmul.f32 %v11668, %v3920
        %v11705 = vmul.f32 %v11669, %v3925
        %v11706 = vmul.f32 %v11670, %v3930
        %v11707 = vmul.f32 %v11671, %v3935
        %v11708 = vmul.f32 %v11672, %v3940
        %v11709 = vmul.f32 %v11673, %v3945
        %v11710 = vmul.f32 %v11674, %v3950
        %v11711 = vmul.f32 %v11675, %v3955
        %v11712 = vmul.f32 %v11676, %v3960
        %v11713 = vmul.f32 %v11677, %v3965
        %v11714 = vmul.f32 %v11678, %v3970
        %v11715 = vmul.f32 %v11679, %v3975
        %v11716 = vmul.f32 %v11680, %v3980
        %v11717 = vmul.f32 %v11681, %v3985
        %v11718 = vmul.f32 %v11682, %v3990
        %v11719 = vmul.f32 %v11683, %v3995
        %v11720 = vmul.f32 %v11684, %v4000
        %v11721 = vmul.f32 %v11685, %v4005
        %v11722 = vmul.f32 %v11686, %v4010
        %v11723 = vmul.f32 %v11687, %v4015
        %v11724 = vmul.f32 %v11688, %v4020
        %v11725 = vsub.f32 %v4022, %v11689
        %v11726 = vsub.f32 %v4023, %v11690
        %v11727 = vsub.f32 %v4024, %v11691
        %v11728 = vsub.f32 %v4025, %v11692
        %v11729 = vsub.f32 %v4026, %v11693
        %v11730 = vsub.f32 %v4027, %v11694
        %v11731 = vsub.f32 %v4028, %v11695
        %v11732 = vsub.f32 %v4029, %v11696
        %v11733 = vsub.f32 %v4030, %v11697
        %v11734 = vsub.f32 %v4031, %v11698
        %v11735 = vsub.f32 %v4032, %v11699
        %v11736 = vsub.f32 %v4033, %v11700
        %v11737 = vsub.f32 %v4034, %v11701
        %v11738 = vsub.f32 %v4035, %v11702
        %v11739 = vsub.f32 %v4036, %v11703
        %v11740 = vsub.f32 %v4037, %v11704
        %v11741 = vsub.f32 %v4038, %v11705
        %v11742 = vsub.f32 %v4039, %v11706
        %v11743 = vsub.f32 %v4040, %v11707
        %v11744 = vsub.f32 %v4041, %v11708
        %v11745 = vsub.f32 %v4042, %v11709
        %v11746 = vsub.f32 %v4043, %v11710
        %v11747 = vsub.f32 %v4044, %v11711
        %v11748 = vsub.f32 %v4045, %v11712
        %v11749 = vsub.f32 %v4046, %v11713
        %v11750 = vsub.f32 %v4047, %v11714
        %v11751 = vsub.f32 %v4048, %v11715
        %v11752 = vsub.f32 %v4049, %v11716
        %v11753 = vsub.f32 %v4050, %v11717
        %v11754 = vsub.f32 %v4051, %v11718
        %v11755 = vsub.f32 %v4052, %v11719
        %v11756 = vsub.f32 %v4053, %v11720
        %v11757 = vsub.f32 %v4054, %v11721
        %v11758 = vsub.f32 %v4055, %v11722
        %v11759 = vsub.f32 %v4056, %v11723
        %v11760 = vsub.f32 %v4057, %v11724
        %v11761 = vand.u32 2147483647, %v11725
        %v11762 = vand.u32 2147483647, %v11726
        %v11763 = vand.u32 2147483647, %v11727
        %v11764 = vand.u32 2147483647, %v11728
        %v11765 = vand.u32 2147483647, %v11729
        %v11766 = vand.u32 2147483647, %v11730
        %v11767 = vand.u32 2147483647, %v11731
        %v11768 = vand.u32 2147483647, %v11732
        %v11769 = vand.u32 2147483647, %v11733
        %v11770 = vand.u32 2147483647, %v11734
        %v11771 = vand.u32 2147483647, %v11735
        %v11772 = vand.u32 2147483647, %v11736
        %v11773 = vand.u32 2147483647, %v11737
        %v11774 = vand.u32 2147483647, %v11738
        %v11775 = vand.u32 2147483647, %v11739
        %v11776 = vand.u32 2147483647, %v11740
        %v11777 = vand.u32 2147483647, %v11741
        %v11778 = vand.u32 2147483647, %v11742
        %v11779 = vand.u32 2147483647, %v11743
        %v11780 = vand.u32 2147483647, %v11744
        %v11781 = vand.u32 2147483647, %v11745
        %v11782 = vand.u32 2147483647, %v11746
        %v11783 = vand.u32 2147483647, %v11747
        %v11784 = vand.u32 2147483647, %v11748
        %v11785 = vand.u32 2147483647, %v11749
        %v11786 = vand.u32 2147483647, %v11750
        %v11787 = vand.u32 2147483647, %v11751
        %v11788 = vand.u32 2147483647, %v11752
        %v11789 = vand.u32 2147483647, %v11753
        %v11790 = vand.u32 2147483647, %v11754
        %v11791 = vand.u32 2147483647, %v11755
        %v11792 = vand.u32 2147483647, %v11756
        %v11793 = vand.u32 2147483647, %v11757
        %v11794 = vand.u32 2147483647, %v11758
        %v11795 = vand.u32 2147483647, %v11759
        %v11796 = vand.u32 2147483647, %v11760
        %v11797 = vadd.f32 %v11761, %v11762
        %v11798 = vadd.f32 %v11797, %v11763
        %v11799 = vadd.f32 %v11798, %v11764
        %v11800 = vadd.f32 %v11799, %v11765
        %v11801 = vadd.f32 %v11800, %v11766
        %v11802 = vadd.f32 %v11801, %v11767
        %v11803 = vadd.f32 %v11802, %v11768
        %v11804 = vadd.f32 %v11803, %v11769
        %v11805 = vadd.f32 %v11804, %v11770
        %v11806 = vadd.f32 %v11805, %v11771
        %v11807 = vadd.f32 %v11806, %v11772
        %v11808 = vadd.f32 %v11807, %v11773
        %v11809 = vadd.f32 %v11808, %v11774
        %v11810 = vadd.f32 %v11809, %v11775
        %v11811 = vadd.f32 %v11810, %v11776
        %v11812 = vadd.f32 %v11811, %v11777
        %v11813 = vadd.f32 %v11812, %v11778
        %v11814 = vadd.f32 %v11813, %v11779
        %v11815 = vadd.f32 %v11814, %v11780
        %v11816 = vadd.f32 %v11815, %v11781
        %v11817 = vadd.f32 %v11816, %v11782
        %v11818 = vadd.f32 %v11817, %v11783
        %v11819 = vadd.f32 %v11818, %v11784
        %v11820 = vadd.f32 %v11819, %v11785
        %v11821 = vadd.f32 %v11820, %v11786
        %v11822 = vadd.f32 %v11821, %v11787
        %v11823 = vadd.f32 %v11822, %v11788
        %v11824 = vadd.f32 %v11823, %v11789
        %v11825 = vadd.f32 %v11824, %v11790
        %v11826 = vadd.f32 %v11825, %v11791
        %v11827 = vadd.f32 %v11826, %v11792
        %v11828 = vadd.f32 %v11827, %v11793
        %v11829 = vadd.f32 %v11828, %v11794
        %v11830 = vadd.f32 %v11829, %v11795
        %v11831 = vadd.f32 %v11830, %v11796
        %11832 = vadd.xlane.f32.xlu0 %v11831
        %v11833 = vpop.xlane.xlu0 %11832
        %v11834 = vrot.slane %v11833, 4
        %v11835 = vadd.f32 %v11833, %v11834
        %v11836 = vrot.slane %v11835, 2
        %v11837 = vadd.f32 %v11835, %v11836
        %v11838 = vrot.slane %v11837, 1
        %v11839 = vadd.f32 %v11837, %v11838
        %s11840 = vtos %v11839
        %s11841 = smul.f32 %s11840, 0.00012207031
        %s11842 = sadd.f32 %s8220, %s11841
        %p11843 = scmp.eq.s32.totalorder %s18, 0
        // Predicated region
        $region45: #{med_perceptual_loss.1} parent=43 // pred_check
          %p11844 = pneg %p11843
        $region46: #{med_perceptual_loss.1} parent=43 // pred_check_branch
          %11846 = sbr.rel (%p11844) target = $region48
        $region47: #{med_perceptual_loss.1} parent=43 // pred_region
          %s11847 = scalar_lea.smem [#allocation2], 0
          %11848 = sst [smem:[%s11847]] 0.0
        $region48: #{med_perceptual_loss.1} parent=43 // pred_fallthru
          _
        %s11849 = sld [smem:[#allocation2]]
        %s11850 = sadd.f32 %s11849, %s11842
        %s11851 = scalar_lea.smem [#allocation2], 0
        %11852 = sst [smem:[%s11851]] %s11850
        %s11853 = sld [smem:[#allocation2]]
        %s11854 = scalar_lea.smem [#allocation3], 0
        %11855 = sst [smem:[%s11854]] %s11853
        // Predicated region
        $region49: #{med_perceptual_loss.1} parent=43 // pred_check
          %p11856 = pneg %p172
        $region50: #{med_perceptual_loss.1} parent=43 // pred_check_branch
          %11858 = sbr.rel (%p11856) target = $region52
        $region51: #{med_perceptual_loss.1} parent=43 // pred_region
          %s11860 = ssub.s32 16, 16
          %11861 = vsyncadd [#allocation4], %s11860
          %11864 = dma.smem_to_hbm [#allocation3], 16, %s6, [#allocation4]
        $region52: #{med_perceptual_loss.1} parent=43 // pred_fallthru
          _
        // Predicated region
        $region53: #{med_perceptual_loss.1} parent=43 // pred_check
          %p11865 = pneg %p172
        $region54: #{med_perceptual_loss.1} parent=43 // pred_check_branch
          %11867 = sbr.rel (%p11865) target = $region56
        $region55: #{med_perceptual_loss.1} parent=43 // pred_region
          %11868 = dma.done [#allocation4], 16
        $region56: #{med_perceptual_loss.1} parent=43 // pred_fallthru
          _
        %11869 = sfence
      $region44: #{med_perceptual_loss.1} parent=5 // pred_fallthru
        _
      %p11870 = scmp.le.s32.totalorder 2, %s13
      // Predicated region
      $region57: #{med_perceptual_loss.1} parent=5 // pred_check
        %p11871 = pneg %p11870
      $region58: #{med_perceptual_loss.1} parent=5 // pred_check_branch
        %11873 = sbr.rel (%p11871) target = $region60
      $region59: #{med_perceptual_loss.1} parent=5 // pred_region
        %s11874 = ssub.s32 %s13, 2
      $region60: #{med_perceptual_loss.1} parent=5 // pred_fallthru
        _
    $region6: #{med_perceptual_loss.1} parent=1 // loop_footer
      %s17 = sadd.s32 1, %s13
    $region7: #{med_perceptual_loss.1} parent=1 // loop_footer_branch
      %12 = sbr.rel target = $region3
    $region8: #{med_perceptual_loss.1} parent=1 // loop_exit
      _
    %11875 = vsyncpa [#allocation4], 1
    %s11876 = scalar_lea.sflag [#allocation4], 1
    %11877 = vsyncpa %s11876, 1

</llo_original>
